<compile_context>
chip_gen: v5e
topology: v5e:2x2
jax: 0.10.0
libtpu: 0.0.40
codegen_flags: <defaults>
</compile_context>

<pallas_src>
import functools

import jax
import jax.numpy as jnp
from jax.experimental import pallas as pl
from jax.experimental.pallas import tpu as pltpu


def _round_up(x, m):
    return (x + m - 1) // m * m


# ----------------------------------------------------------------------------
# Pallas kernel: Y = relu(X @ W + b)   (X, W bf16; accumulate f32; store bf16)
# ----------------------------------------------------------------------------
def _conv_mm_kernel(x_ref, w_ref, b_ref, o_ref):
    y = jnp.dot(x_ref[...], w_ref[...], preferred_element_type=jnp.float32)
    y = jnp.maximum(y + b_ref[...], 0.0)
    o_ref[...] = y.astype(o_ref.dtype)


def conv_gemm(x, w, b, *, tm_cap=1024):
    """x: (M, K) bf16, w: (K, N) bf16, b: (1, N) f32 -> (M, N) bf16."""
    M, K = x.shape
    N = w.shape[1]
    TM = M if M <= tm_cap else tm_cap
    Mp = _round_up(M, TM)
    if Mp != M:
        x = jnp.pad(x, ((0, Mp - M), (0, 0)))

    out = pl.pallas_call(
        _conv_mm_kernel,
        out_shape=jax.ShapeDtypeStruct((Mp, N), jnp.bfloat16),
        grid_spec=pltpu.PrefetchScalarGridSpec(
            num_scalar_prefetch=0,
            grid=(Mp // TM,),
            in_specs=[
                pl.BlockSpec((TM, K), lambda m: (m, 0)),
                pl.BlockSpec((K, N), lambda m: (0, 0)),
                pl.BlockSpec((1, N), lambda m: (0, 0)),
            ],
            out_specs=pl.BlockSpec((TM, N), lambda m: (m, 0)),
        ),
        compiler_params=pltpu.CompilerParams(
            dimension_semantics=("parallel",)),
    )(x, w, b)
    return out[:M] if Mp != M else out


# ----------------------------------------------------------------------------
# Pallas kernel: fused tail  fc1 + ReLU + head; softmax only on the actor
# ----------------------------------------------------------------------------
def _tail_kernel(x_ref, w1_ref, b1_ref, w2_ref, b2_ref, o_ref, *, n_actions):
    h = jnp.dot(x_ref[...], w1_ref[...], preferred_element_type=jnp.float32)
    h = jnp.maximum(h + b1_ref[...], 0.0)
    y = jnp.dot(h.astype(w2_ref.dtype), w2_ref[...],
                preferred_element_type=jnp.float32) + b2_ref[...]

    @pl.when(pl.program_id(0) == 0)           # critic: raw value in column 0
    def _():
        o_ref[...] = y

    @pl.when(pl.program_id(0) == 1)           # actor: masked softmax
    def _():
        mask = jax.lax.broadcasted_iota(jnp.int32, y.shape, 1) < n_actions
        logits = jnp.where(mask, y, -jnp.inf)
        m = jnp.max(logits, axis=-1, keepdims=True)
        e = jnp.where(mask, jnp.exp(logits - m), 0.0)
        o_ref[...] = e / jnp.sum(e, axis=-1, keepdims=True)


def fused_tail(h, w1, b1, w2, b2, n_actions):
    """h: (2, B, 3136) bf16 -> (2, B, 128) f32 (critic raw / actor probs)."""
    G, B, K = h.shape
    HID = w1.shape[2]
    NH = w2.shape[2]
    return pl.pallas_call(
        functools.partial(_tail_kernel, n_actions=n_actions),
        out_shape=jax.ShapeDtypeStruct((G, B, NH), jnp.float32),
        grid_spec=pltpu.PrefetchScalarGridSpec(
            num_scalar_prefetch=0,
            grid=(G,),
            in_specs=[
                pl.BlockSpec((None, B, K), lambda g: (g, 0, 0)),
                pl.BlockSpec((None, K, HID), lambda g: (g, 0, 0)),
                pl.BlockSpec((None, 1, HID), lambda g: (g, 0, 0)),
                pl.BlockSpec((None, HID, NH), lambda g: (g, 0, 0)),
                pl.BlockSpec((None, 1, NH), lambda g: (g, 0, 0)),
            ],
            out_specs=pl.BlockSpec((None, B, NH), lambda g: (g, 0, 0)),
        ),
        compiler_params=pltpu.CompilerParams(
            dimension_semantics=("parallel",)),
    )(h, w1, b1, w2, b2)


# ----------------------------------------------------------------------------
# JAX layout glue: space-to-depth (absorbs the conv stride) + 2x2 / 3x3 taps
# ----------------------------------------------------------------------------
def _space_to_depth(x, block):
    B, H, W, C = x.shape
    x = x.reshape(B, H // block, block, W // block, block, C)
    x = x.transpose(0, 1, 3, 2, 4, 5)
    return x.reshape(B, H // block, W // block, block * block * C)


def _unit_stride_patches(x, kh, kw):
    H, W = x.shape[1], x.shape[2]
    oh, ow = H - kh + 1, W - kw + 1
    cols = [x[:, i:i + oh, j:j + ow, :] for i in range(kh) for j in range(kw)]
    return jnp.concatenate(cols, axis=-1), oh, ow


# ----------------------------------------------------------------------------
# ActorCritic forward (jitted):  NCHW f32 input -> (probs, value)
# ----------------------------------------------------------------------------
def actor_critic_forward(x_nchw, fp, *, n_actions):
    B = x_nchw.shape[0]
    x = jnp.transpose(x_nchw, (0, 2, 3, 1)).astype(jnp.bfloat16)   # NHWC bf16

    # conv1 (k=8, s=4): both branches fused along N (32+32=64 output channels)
    z = _space_to_depth(x, 4)                                       # (B,21,21,64)
    p, oh, ow = _unit_stride_patches(z, 2, 2)                       # (B,20,20,256)
    h = conv_gemm(p.reshape(B * oh * ow, -1), fp["c1_w"], fp["c1_b"])
    h = h.reshape(B, oh, ow, -1)                                    # (B,20,20,64)

    # conv2 (k=4, s=2): block-diagonal branch packing -> 128-lane-dense output
    z = _space_to_depth(h, 2)                                       # (B,10,10,256)
    p, oh, ow = _unit_stride_patches(z, 2, 2)                       # (B,9,9,1024)
    h = conv_gemm(p.reshape(B * oh * ow, -1), fp["c2_w"], fp["c2_b"])
    h = h.reshape(B, oh, ow, -1)                                    # (B,9,9,128)

    # conv3 (k=3, s=1): block-diagonal branch packing
    p, oh, ow = _unit_stride_patches(h, 3, 3)                       # (B,7,7,1152)
    y = conv_gemm(p.reshape(B * oh * ow, -1), fp["c3_w"], fp["c3_b"])  # (B*49,128)

    # split [critic|actor] channels and flatten to (branch, B, 7*7*64)
    y = y.reshape(B, oh * ow, 2, 64)
    h_tail = jnp.transpose(y, (2, 0, 1, 3)).reshape(2, B, oh * ow * 64)

    # fused tail: fc1 + ReLU + heads (+ masked softmax on the actor branch)
    out = fused_tail(h_tail, fp["fc1_w"], fp["fc1_b"],
                     fp["fc2_w"], fp["fc2_b"], n_actions)           # (2, B, 128)
    value = out[0, :, :1]
    probs = out[1, :, :n_actions]
    return probs, value


# ----------------------------------------------------------------------------
# Parameter init (PyTorch layouts) + one-time fusion/permutation (outside jit)
# ----------------------------------------------------------------------------
def init_branch_params(key, in_channels, n_out):
    ks = jax.random.split(key, 10)

    def w(k, shape, fan_in):
        return jax.random.normal(k, shape, jnp.float32) / jnp.sqrt(fan_in)

    def b(k, n):
        return 0.05 * jax.random.normal(k, (n,), jnp.float32)

    return {
        "c1_w": w(ks[0], (32, in_channels, 8, 8), in_channels * 64),
        "c1_b": b(ks[1], 32),
        "c2_w": w(ks[2], (64, 32, 4, 4), 32 * 16),
        "c2_b": b(ks[3], 64),
        "c3_w": w(ks[4], (64, 64, 3, 3), 64 * 9),
        "c3_b": b(ks[5], 64),
        "fc1_w": w(ks[6], (512, 7 * 7 * 64), 7 * 7 * 64),   # torch (out, in)
        "fc1_b": b(ks[7], 512),
        "fc2_w": w(ks[8], (n_out, 512), 512),
        "fc2_b": b(ks[9], n_out),
    }


def _tap_reorder(w, block):
    """(O, C, K, K) torch conv weight -> (A, A, block, block, C, O),
    where spatial offset i = block*a + p (matches space-to-depth + 2x2 taps)."""
    O, C, K, _ = w.shape
    A = K // block
    w = jnp.transpose(w, (2, 3, 1, 0))            # (i, j, c, o)
    w = w.reshape(A, block, A, block, C, O)       # (a, p, b, q, c, o)
    return jnp.transpose(w, (0, 2, 1, 3, 4, 5))   # (a, b, p, q, c, o)


def _conv_blockdiag_s2d(wc, wa, block):
    """Stride==block convs: block-diag [critic|actor] matmul weight."""
    O, C, K, _ = wc.shape
    A = K // block
    rc = _tap_reorder(wc, block)
    ra = _tap_reorder(wa, block)
    full = jnp.zeros((A, A, block, block, 2, C, 2 * O), jnp.float32)
    full = full.at[..., 0, :, :O].set(rc)
    full = full.at[..., 1, :, O:].set(ra)
    return full.reshape(A * A * block * block * 2 * C, 2 * O)


def _conv_blockdiag_s1(wc, wa):
    """Stride-1 convs: block-diag [critic|actor] matmul weight."""
    O, C, K, _ = wc.shape
    rc = jnp.transpose(wc, (2, 3, 1, 0))          # (i, j, c, o)
    ra = jnp.transpose(wa, (2, 3, 1, 0))
    full = jnp.zeros((K, K, 2, C, 2 * O), jnp.float32)
    full = full.at[:, :, 0, :, :O].set(rc)
    full = full.at[:, :, 1, :, O:].set(ra)
    return full.reshape(K * K * 2 * C, 2 * O)


def _fc1_cols(w):
    """torch fc1 (512, 3136) with inputs ordered (c, y, x) -> (3136, 512)
    with rows ordered (y, x, c) to match the NHWC conv3 flatten."""
    w = w.T.reshape(64, 7, 7, -1)
    return jnp.transpose(w, (1, 2, 0, 3)).reshape(7 * 7 * 64, -1)


def _head_cols(w, b, pad=128):
    n_out = w.shape[0]
    wp = jnp.zeros((512, pad), jnp.float32).at[:, :n_out].set(w.T)
    bp = jnp.zeros((pad,), jnp.float32).at[:n_out].set(b)
    return wp, bp


def prepare_fused_params(cp, ap, n_actions, head_pad=128):
    bf = jnp.bfloat16
    # conv1: shared input -> fuse critic/actor along N
    c1_w = jnp.concatenate([_tap_reorder(cp["c1_w"], 4).reshape(-1, 32),
                            _tap_reorder(ap["c1_w"], 4).reshape(-1, 32)], axis=1)
    c1_b = jnp.concatenate([cp["c1_b"], ap["c1_b"]])
    # conv2/conv3: block-diagonal branch packing (128-lane-dense outputs)
    c2_w = _conv_blockdiag_s2d(cp["c2_w"], ap["c2_w"], 2)
    c2_b = jnp.concatenate([cp["c2_b"], ap["c2_b"]])
    c3_w = _conv_blockdiag_s1(cp["c3_w"], ap["c3_w"])
    c3_b = jnp.concatenate([cp["c3_b"], ap["c3_b"]])
    # tail: branch-stacked fc1 / heads (heads zero-padded to 128 lanes)
    fc1_w = jnp.stack([_fc1_cols(cp["fc1_w"]), _fc1_cols(ap["fc1_w"])])
    fc1_b = jnp.stack([cp["fc1_b"], ap["fc1_b"]])
    wc, bc = _head_cols(cp["fc2_w"], cp["fc2_b"], head_pad)
    wa, ba = _head_cols(ap["fc2_w"], ap["fc2_b"], head_pad)
    return {
        "c1_w": c1_w.astype(bf), "c1_b": c1_b.reshape(1, -1),
        "c2_w": c2_w.astype(bf), "c2_b": c2_b.reshape(1, -1),
        "c3_w": c3_w.astype(bf), "c3_b": c3_b.reshape(1, -1),
        "fc1_w": fc1_w.astype(bf), "fc1_b": fc1_b.reshape(2, 1, -1),
        "fc2_w": jnp.stack([wc, wa]).astype(bf),
        "fc2_b": jnp.stack([bc, ba]).reshape(2, 1, -1),
    }


# ----------------------------------------------------------------------------
# Pure-JAX f32 reference (PyTorch semantics) for correctness checking
# ----------------------------------------------------------------------------
def reference_forward(x, critic_p, actor_p):
    def tower(p):
        h = x
        for name, stride in (("c1", 4), ("c2", 2), ("c3", 1)):
            h = jax.lax.conv_general_dilated(
                h, p[name + "_w"], (stride, stride), "VALID",
                dimension_numbers=("NCHW", "OIHW", "NCHW"))
            h = jax.nn.relu(h + p[name + "_b"][None, :, None, None])
        h = h.reshape(h.shape[0], -1)
        h = jax.nn.relu(h @ p["fc1_w"].T + p["fc1_b"])
        return h @ p["fc2_w"].T + p["fc2_b"]
    value = tower(critic_p)
    probs = jax.nn.softmax(tower(actor_p), axis=-1)
    return probs, value


if __name__ == "__main__":
    key = jax.random.PRNGKey(0)
    k_x, k_c, k_a = jax.random.split(key, 3)

    # fc1 expects 7*7*64 features, which pins the input to 84x84 (Atari).
    B, C, H, W = 2, 4, 84, 84
    N_ACTIONS = 14
    x = jax.random.normal(k_x, (B, C, H, W), jnp.float32)

    critic_params = init_branch_params(k_c, in_channels=4, n_out=1)
    actor_params = init_branch_params(k_a, in_channels=4, n_out=N_ACTIONS)
    fused_params = prepare_fused_params(critic_params, actor_params, N_ACTIONS)

    fwd = jax.jit(functools.partial(actor_critic_forward, n_actions=N_ACTIONS))
    probs, value = jax.block_until_ready(fwd(x, fused_params))

    assert probs.shape == (B, N_ACTIONS) and value.shape == (B, 1)
    assert jnp.allclose(jnp.sum(probs, axis=1), 1.0, atol=1e-4)
    assert bool(jnp.all(probs >= 0.0))

    # Check against the f32 reference (bf16 weights/activations -> loose tol).
    ref_probs, ref_value = reference_forward(x, critic_params, actor_params)
    p_err = float(jnp.max(jnp.abs(probs - ref_probs)))
    v_err = float(jnp.max(jnp.abs(value - ref_value)))
    assert p_err < 5e-2, f"actor probs mismatch vs reference: {p_err}"
    assert v_err < 1e-1 + 1e-1 * float(jnp.max(jnp.abs(ref_value))), (
        f"critic value mismatch vs reference: {v_err}")

    print("KERNEL_OK")
</pallas_src>

<mosaic_0001>
module attributes {stable_mosaic.version = 11 : i64} {
  func.func @_conv_mm_kernel(%arg0: i32, %arg1: memref<800x256xbf16, #tpu.memory_space<vmem>>, %arg2: memref<256x64xbf16, #tpu.memory_space<vmem>>, %arg3: memref<1x64xf32, #tpu.memory_space<vmem>>, %arg4: memref<800x64xbf16, #tpu.memory_space<vmem>>) attributes {dimension_semantics = [#tpu.dimension_semantics<parallel>], iteration_bounds = array<i64: 1>, scalar_prefetch = 0 : i64, scratch_operands = 0 : i64, tpu.core_type = #tpu.core_type<tc>, window_params = [{transform_indices = @transform_0, window_bounds = array<i64: 800, 256>}, {pipeline_mode = #tpu.pipeline_mode<synchronous>, transform_indices = @transform_1, window_bounds = array<i64: 256, 64>}, {pipeline_mode = #tpu.pipeline_mode<synchronous>, transform_indices = @transform_2, window_bounds = array<i64: 1, 64>}, {transform_indices = @transform_3, window_bounds = array<i64: 800, 64>}]} {
    %c0 = arith.constant 0 : index
    %c0_0 = arith.constant 0 : index
    %0 = vector.load %arg1[%c0, %c0_0] : memref<800x256xbf16, #tpu.memory_space<vmem>>, vector<800x256xbf16>
    %c0_1 = arith.constant 0 : index
    %c0_2 = arith.constant 0 : index
    %1 = vector.load %arg2[%c0_1, %c0_2] : memref<256x64xbf16, #tpu.memory_space<vmem>>, vector<256x64xbf16>
    %cst = arith.constant dense<0.000000e+00> : vector<800x64xf32>
    %2 = tpu.matmul %0, %1, %cst {dimension_numbers = #tpu.dot_dimension_numbers<[1], [0], [0], [1], [0, 0, 1, 1], [], []>} : vector<800x256xbf16>, vector<256x64xbf16>, vector<800x64xf32> -> vector<800x64xf32>
    %c0_3 = arith.constant 0 : index
    %c0_4 = arith.constant 0 : index
    %3 = vector.load %arg3[%c0_3, %c0_4] : memref<1x64xf32, #tpu.memory_space<vmem>>, vector<1x64xf32>
    %4 = vector.broadcast %3 : vector<1x64xf32> to vector<800x64xf32>
    %5 = arith.addf %2, %4 : vector<800x64xf32>
    %cst_5 = arith.constant 0.000000e+00 : f32
    %6 = vector.broadcast %cst_5 : f32 to vector<800x64xf32>
    %7 = arith.maximumf %5, %6 : vector<800x64xf32>
    %8 = arith.truncf %7 : vector<800x64xf32> to vector<800x64xbf16>
    %c0_6 = arith.constant 0 : index
    %c0_7 = arith.constant 0 : index
    %9 = vector.load %arg4[%c0_6, %c0_7] : memref<800x64xbf16, #tpu.memory_space<vmem>>, vector<800x64xbf16>
    tpu.vector_store %arg4[%c0_6, %c0_7], %8 {strides = array<i32>} : memref<800x64xbf16, #tpu.memory_space<vmem>>, vector<800x64xbf16>,
    return
  }
  func.func @transform_0(%arg0: i32) -> (i32, i32) {
    %c0_i32 = arith.constant 0 : i32
    %c0_i32_0 = arith.constant 0 : i32
    return %arg0, %c0_i32 : i32, i32
  }
  func.func @transform_1(%arg0: i32) -> (i32, i32) {
    %c0_i32 = arith.constant 0 : i32
    %c0_i32_0 = arith.constant 0 : i32
    %c0_i32_1 = arith.constant 0 : i32
    return %c0_i32, %c0_i32_0 : i32, i32
  }
  func.func @transform_2(%arg0: i32) -> (i32, i32) {
    %c0_i32 = arith.constant 0 : i32
    %c0_i32_0 = arith.constant 0 : i32
    %c0_i32_1 = arith.constant 0 : i32
    return %c0_i32, %c0_i32_0 : i32, i32
  }
  func.func @transform_3(%arg0: i32) -> (i32, i32) {
    %c0_i32 = arith.constant 0 : i32
    %c0_i32_0 = arith.constant 0 : i32
    return %arg0, %c0_i32 : i32, i32
  }
}

module attributes {stable_mosaic.version = 11 : i64} {
  func.func @_conv_mm_kernel(%arg0: i32, %arg1: memref<162x1024xbf16, #tpu.memory_space<vmem>>, %arg2: memref<1024x128xbf16, #tpu.memory_space<vmem>>, %arg3: memref<1x128xf32, #tpu.memory_space<vmem>>, %arg4: memref<162x128xbf16, #tpu.memory_space<vmem>>) attributes {dimension_semantics = [#tpu.dimension_semantics<parallel>], iteration_bounds = array<i64: 1>, scalar_prefetch = 0 : i64, scratch_operands = 0 : i64, tpu.core_type = #tpu.core_type<tc>, window_params = [{transform_indices = @transform_0, window_bounds = array<i64: 162, 1024>}, {pipeline_mode = #tpu.pipeline_mode<synchronous>, transform_indices = @transform_1, window_bounds = array<i64: 1024, 128>}, {pipeline_mode = #tpu.pipeline_mode<synchronous>, transform_indices = @transform_2, window_bounds = array<i64: 1, 128>}, {transform_indices = @transform_3, window_bounds = array<i64: 162, 128>}]} {
    %c0 = arith.constant 0 : index
    %c0_0 = arith.constant 0 : index
    %0 = vector.load %arg1[%c0, %c0_0] : memref<162x1024xbf16, #tpu.memory_space<vmem>>, vector<162x1024xbf16>
    %c0_1 = arith.constant 0 : index
    %c0_2 = arith.constant 0 : index
    %1 = vector.load %arg2[%c0_1, %c0_2] : memref<1024x128xbf16, #tpu.memory_space<vmem>>, vector<1024x128xbf16>
    %cst = arith.constant dense<0.000000e+00> : vector<162x128xf32>
    %2 = tpu.matmul %0, %1, %cst {dimension_numbers = #tpu.dot_dimension_numbers<[1], [0], [0], [1], [0, 0, 1, 1], [], []>} : vector<162x1024xbf16>, vector<1024x128xbf16>, vector<162x128xf32> -> vector<162x128xf32>
    %c0_3 = arith.constant 0 : index
    %c0_4 = arith.constant 0 : index
    %3 = vector.load %arg3[%c0_3, %c0_4] : memref<1x128xf32, #tpu.memory_space<vmem>>, vector<1x128xf32>
    %4 = vector.broadcast %3 : vector<1x128xf32> to vector<162x128xf32>
    %5 = arith.addf %2, %4 : vector<162x128xf32>
    %cst_5 = arith.constant 0.000000e+00 : f32
    %6 = vector.broadcast %cst_5 : f32 to vector<162x128xf32>
    %7 = arith.maximumf %5, %6 : vector<162x128xf32>
    %8 = arith.truncf %7 : vector<162x128xf32> to vector<162x128xbf16>
    %c0_6 = arith.constant 0 : index
    %c0_7 = arith.constant 0 : index
    %9 = vector.load %arg4[%c0_6, %c0_7] : memref<162x128xbf16, #tpu.memory_space<vmem>>, vector<162x128xbf16>
    tpu.vector_store %arg4[%c0_6, %c0_7], %8 {strides = array<i32>} : memref<162x128xbf16, #tpu.memory_space<vmem>>, vector<162x128xbf16>,
    return
  }
  func.func @transform_0(%arg0: i32) -> (i32, i32) {
    %c0_i32 = arith.constant 0 : i32
    %c0_i32_0 = arith.constant 0 : i32
    return %arg0, %c0_i32 : i32, i32
  }
  func.func @transform_1(%arg0: i32) -> (i32, i32) {
    %c0_i32 = arith.constant 0 : i32
    %c0_i32_0 = arith.constant 0 : i32
    %c0_i32_1 = arith.constant 0 : i32
    return %c0_i32, %c0_i32_0 : i32, i32
  }
  func.func @transform_2(%arg0: i32) -> (i32, i32) {
    %c0_i32 = arith.constant 0 : i32
    %c0_i32_0 = arith.constant 0 : i32
    %c0_i32_1 = arith.constant 0 : i32
    return %c0_i32, %c0_i32_0 : i32, i32
  }
  func.func @transform_3(%arg0: i32) -> (i32, i32) {
    %c0_i32 = arith.constant 0 : i32
    %c0_i32_0 = arith.constant 0 : i32
    return %arg0, %c0_i32 : i32, i32
  }
}

module attributes {stable_mosaic.version = 11 : i64} {
  func.func @_conv_mm_kernel(%arg0: i32, %arg1: memref<98x1152xbf16, #tpu.memory_space<vmem>>, %arg2: memref<1152x128xbf16, #tpu.memory_space<vmem>>, %arg3: memref<1x128xf32, #tpu.memory_space<vmem>>, %arg4: memref<98x128xbf16, #tpu.memory_space<vmem>>) attributes {dimension_semantics = [#tpu.dimension_semantics<parallel>], iteration_bounds = array<i64: 1>, scalar_prefetch = 0 : i64, scratch_operands = 0 : i64, tpu.core_type = #tpu.core_type<tc>, window_params = [{transform_indices = @transform_0, window_bounds = array<i64: 98, 1152>}, {pipeline_mode = #tpu.pipeline_mode<synchronous>, transform_indices = @transform_1, window_bounds = array<i64: 1152, 128>}, {pipeline_mode = #tpu.pipeline_mode<synchronous>, transform_indices = @transform_2, window_bounds = array<i64: 1, 128>}, {transform_indices = @transform_3, window_bounds = array<i64: 98, 128>}]} {
    %c0 = arith.constant 0 : index
    %c0_0 = arith.constant 0 : index
    %0 = vector.load %arg1[%c0, %c0_0] : memref<98x1152xbf16, #tpu.memory_space<vmem>>, vector<98x1152xbf16>
    %c0_1 = arith.constant 0 : index
    %c0_2 = arith.constant 0 : index
    %1 = vector.load %arg2[%c0_1, %c0_2] : memref<1152x128xbf16, #tpu.memory_space<vmem>>, vector<1152x128xbf16>
    %cst = arith.constant dense<0.000000e+00> : vector<98x128xf32>
    %2 = tpu.matmul %0, %1, %cst {dimension_numbers = #tpu.dot_dimension_numbers<[1], [0], [0], [1], [0, 0, 1, 1], [], []>} : vector<98x1152xbf16>, vector<1152x128xbf16>, vector<98x128xf32> -> vector<98x128xf32>
    %c0_3 = arith.constant 0 : index
    %c0_4 = arith.constant 0 : index
    %3 = vector.load %arg3[%c0_3, %c0_4] : memref<1x128xf32, #tpu.memory_space<vmem>>, vector<1x128xf32>
    %4 = vector.broadcast %3 : vector<1x128xf32> to vector<98x128xf32>
    %5 = arith.addf %2, %4 : vector<98x128xf32>
    %cst_5 = arith.constant 0.000000e+00 : f32
    %6 = vector.broadcast %cst_5 : f32 to vector<98x128xf32>
    %7 = arith.maximumf %5, %6 : vector<98x128xf32>
    %8 = arith.truncf %7 : vector<98x128xf32> to vector<98x128xbf16>
    %c0_6 = arith.constant 0 : index
    %c0_7 = arith.constant 0 : index
    %9 = vector.load %arg4[%c0_6, %c0_7] : memref<98x128xbf16, #tpu.memory_space<vmem>>, vector<98x128xbf16>
    tpu.vector_store %arg4[%c0_6, %c0_7], %8 {strides = array<i32>} : memref<98x128xbf16, #tpu.memory_space<vmem>>, vector<98x128xbf16>,
    return
  }
  func.func @transform_0(%arg0: i32) -> (i32, i32) {
    %c0_i32 = arith.constant 0 : i32
    %c0_i32_0 = arith.constant 0 : i32
    return %arg0, %c0_i32 : i32, i32
  }
  func.func @transform_1(%arg0: i32) -> (i32, i32) {
    %c0_i32 = arith.constant 0 : i32
    %c0_i32_0 = arith.constant 0 : i32
    %c0_i32_1 = arith.constant 0 : i32
    return %c0_i32, %c0_i32_0 : i32, i32
  }
  func.func @transform_2(%arg0: i32) -> (i32, i32) {
    %c0_i32 = arith.constant 0 : i32
    %c0_i32_0 = arith.constant 0 : i32
    %c0_i32_1 = arith.constant 0 : i32
    return %c0_i32, %c0_i32_0 : i32, i32
  }
  func.func @transform_3(%arg0: i32) -> (i32, i32) {
    %c0_i32 = arith.constant 0 : i32
    %c0_i32_0 = arith.constant 0 : i32
    return %arg0, %c0_i32 : i32, i32
  }
}

module attributes {stable_mosaic.version = 11 : i64} {
  func.func @_tail_kernel(%arg0: i32, %arg1: memref<1x2x3136xbf16, #tpu.memory_space<vmem>>, %arg2: memref<1x3136x512xbf16, #tpu.memory_space<vmem>>, %arg3: memref<1x1x512xf32, #tpu.memory_space<vmem>>, %arg4: memref<1x512x128xbf16, #tpu.memory_space<vmem>>, %arg5: memref<1x1x128xf32, #tpu.memory_space<vmem>>, %arg6: memref<1x2x128xf32, #tpu.memory_space<vmem>>) attributes {dimension_semantics = [#tpu.dimension_semantics<parallel>], iteration_bounds = array<i64: 2>, scalar_prefetch = 0 : i64, scratch_operands = 0 : i64, tpu.core_type = #tpu.core_type<tc>, window_params = [{transform_indices = @transform_0, window_bounds = array<i64: 1, 2, 3136>}, {transform_indices = @transform_1, window_bounds = array<i64: 1, 3136, 512>}, {transform_indices = @transform_2, window_bounds = array<i64: 1, 1, 512>}, {transform_indices = @transform_3, window_bounds = array<i64: 1, 512, 128>}, {transform_indices = @transform_4, window_bounds = array<i64: 1, 1, 128>}, {transform_indices = @transform_5, window_bounds = array<i64: 1, 2, 128>}]} {
    %c0 = arith.constant 0 : index
    %c0_0 = arith.constant 0 : index
    %c0_1 = arith.constant 0 : index
    %0 = vector.load %arg1[%c0, %c0_0, %c0_1] : memref<1x2x3136xbf16, #tpu.memory_space<vmem>>, vector<1x2x3136xbf16>
    %1 = vector.shape_cast %0 : vector<1x2x3136xbf16> to vector<2x3136xbf16>
    %c0_2 = arith.constant 0 : index
    %c0_3 = arith.constant 0 : index
    %c0_4 = arith.constant 0 : index
    %2 = vector.load %arg2[%c0_2, %c0_3, %c0_4] : memref<1x3136x512xbf16, #tpu.memory_space<vmem>>, vector<1x3136x512xbf16>
    %3 = vector.shape_cast %2 : vector<1x3136x512xbf16> to vector<3136x512xbf16>
    %cst = arith.constant dense<0.000000e+00> : vector<2x512xf32>
    %4 = tpu.matmul %1, %3, %cst {dimension_numbers = #tpu.dot_dimension_numbers<[1], [0], [0], [1], [0, 0, 1, 1], [], []>} : vector<2x3136xbf16>, vector<3136x512xbf16>, vector<2x512xf32> -> vector<2x512xf32>
    %c0_5 = arith.constant 0 : index
    %c0_6 = arith.constant 0 : index
    %c0_7 = arith.constant 0 : index
    %5 = vector.load %arg3[%c0_5, %c0_6, %c0_7] : memref<1x1x512xf32, #tpu.memory_space<vmem>>, vector<1x1x512xf32>
    %6 = vector.shape_cast %5 : vector<1x1x512xf32> to vector<1x512xf32>
    %7 = vector.broadcast %6 : vector<1x512xf32> to vector<2x512xf32>
    %8 = arith.addf %4, %7 : vector<2x512xf32>
    %cst_8 = arith.constant 0.000000e+00 : f32
    %9 = vector.broadcast %cst_8 : f32 to vector<2x512xf32>
    %10 = arith.maximumf %8, %9 : vector<2x512xf32>
    %11 = arith.truncf %10 : vector<2x512xf32> to vector<2x512xbf16>
    %c0_9 = arith.constant 0 : index
    %c0_10 = arith.constant 0 : index
    %c0_11 = arith.constant 0 : index
    %12 = vector.load %arg4[%c0_9, %c0_10, %c0_11] : memref<1x512x128xbf16, #tpu.memory_space<vmem>>, vector<1x512x128xbf16>
    %13 = vector.shape_cast %12 : vector<1x512x128xbf16> to vector<512x128xbf16>
    %cst_12 = arith.constant dense<0.000000e+00> : vector<2x128xf32>
    %14 = tpu.matmul %11, %13, %cst_12 {dimension_numbers = #tpu.dot_dimension_numbers<[1], [0], [0], [1], [0, 0, 1, 1], [], []>} : vector<2x512xbf16>, vector<512x128xbf16>, vector<2x128xf32> -> vector<2x128xf32>
    %c0_13 = arith.constant 0 : index
    %c0_14 = arith.constant 0 : index
    %c0_15 = arith.constant 0 : index
    %15 = vector.load %arg5[%c0_13, %c0_14, %c0_15] : memref<1x1x128xf32, #tpu.memory_space<vmem>>, vector<1x1x128xf32>
    %16 = vector.shape_cast %15 : vector<1x1x128xf32> to vector<1x128xf32>
    %17 = vector.broadcast %16 : vector<1x128xf32> to vector<2x128xf32>
    %18 = arith.addf %14, %17 : vector<2x128xf32>
    %c0_i32 = arith.constant 0 : i32
    %19 = arith.cmpi eq, %arg0, %c0_i32 : i32
    %20 = arith.extui %19 : i1 to i32
    %c0_i32_16 = arith.constant 0 : i32
    %21 = arith.cmpi ne, %20, %c0_i32_16 : i32
    scf.if %21 {
      %c0_18 = arith.constant 0 : index
      %c0_19 = arith.constant 0 : index
      %c0_20 = arith.constant 0 : index
      %25 = vector.load %arg6[%c0_18, %c0_19, %c0_20] : memref<1x2x128xf32, #tpu.memory_space<vmem>>, vector<1x2x128xf32>
      %26 = vector.shape_cast %25 : vector<1x2x128xf32> to vector<2x128xf32>
      %27 = vector.shape_cast %18 : vector<2x128xf32> to vector<1x2x128xf32>
      tpu.vector_store %arg6[%c0_18, %c0_19, %c0_20], %27 {strides = array<i32>} : memref<1x2x128xf32, #tpu.memory_space<vmem>>, vector<1x2x128xf32>,
    } else {
    }
    %c1_i32 = arith.constant 1 : i32
    %22 = arith.cmpi eq, %arg0, %c1_i32 : i32
    %23 = arith.extui %22 : i1 to i32
    %c0_i32_17 = arith.constant 0 : i32
    %24 = arith.cmpi ne, %23, %c0_i32_17 : i32
    scf.if %24 {
      %25 = tpu.iota {dimensions = array<i32: 1>} : vector<2x128xi32>
      %c14_i32 = arith.constant 14 : i32
      %26 = vector.broadcast %c14_i32 : i32 to vector<2x128xi32>
      %27 = arith.cmpi slt, %25, %26 : vector<2x128xi32>
      %cst_18 = arith.constant 0xFF800000 : f32
      %28 = vector.broadcast %cst_18 : f32 to vector<2x128xf32>
      %29 = arith.select %27, %18, %28 : vector<2x128xi1>, vector<2x128xf32>
      %cst_19 = arith.constant dense<0xFF800000> : vector<2xf32>
      %30 = vector.multi_reduction <maximumf>, %29, %cst_19 [1] : vector<2x128xf32> to vector<2xf32>
      %31 = vector.shape_cast %30 : vector<2xf32> to vector<2x1xf32>
      %32 = vector.broadcast %31 : vector<2x1xf32> to vector<2x128xf32>
      %33 = arith.subf %29, %32 : vector<2x128xf32>
      %34 = math.exp %33 : vector<2x128xf32>
      %cst_20 = arith.constant 0.000000e+00 : f32
      %35 = vector.broadcast %cst_20 : f32 to vector<2x128xf32>
      %36 = arith.select %27, %34, %35 : vector<2x128xi1>, vector<2x128xf32>
      %cst_21 = arith.constant dense<0.000000e+00> : vector<2xf32>
      %37 = vector.multi_reduction <add>, %36, %cst_21 [1] : vector<2x128xf32> to vector<2xf32>
      %38 = vector.shape_cast %37 : vector<2xf32> to vector<2x1xf32>
      %39 = vector.broadcast %38 : vector<2x1xf32> to vector<2x128xf32>
      %40 = arith.divf %36, %39 : vector<2x128xf32>
      %c0_22 = arith.constant 0 : index
      %c0_23 = arith.constant 0 : index
      %c0_24 = arith.constant 0 : index
      %41 = vector.load %arg6[%c0_22, %c0_23, %c0_24] : memref<1x2x128xf32, #tpu.memory_space<vmem>>, vector<1x2x128xf32>
      %42 = vector.shape_cast %41 : vector<1x2x128xf32> to vector<2x128xf32>
      %43 = vector.shape_cast %40 : vector<2x128xf32> to vector<1x2x128xf32>
      tpu.vector_store %arg6[%c0_22, %c0_23, %c0_24], %43 {strides = array<i32>} : memref<1x2x128xf32, #tpu.memory_space<vmem>>, vector<1x2x128xf32>,
    } else {
    }
    return
  }
  func.func @transform_0(%arg0: i32) -> (i32, i32, i32) {
    %c0_i32 = arith.constant 0 : i32
    %c0_i32_0 = arith.constant 0 : i32
    %c0_i32_1 = arith.constant 0 : i32
    return %arg0, %c0_i32, %c0_i32_0 : i32, i32, i32
  }
  func.func @transform_1(%arg0: i32) -> (i32, i32, i32) {
    %c0_i32 = arith.constant 0 : i32
    %c0_i32_0 = arith.constant 0 : i32
    %c0_i32_1 = arith.constant 0 : i32
    return %arg0, %c0_i32, %c0_i32_0 : i32, i32, i32
  }
  func.func @transform_2(%arg0: i32) -> (i32, i32, i32) {
    %c0_i32 = arith.constant 0 : i32
    %c0_i32_0 = arith.constant 0 : i32
    %c0_i32_1 = arith.constant 0 : i32
    return %arg0, %c0_i32, %c0_i32_0 : i32, i32, i32
  }
  func.func @transform_3(%arg0: i32) -> (i32, i32, i32) {
    %c0_i32 = arith.constant 0 : i32
    %c0_i32_0 = arith.constant 0 : i32
    %c0_i32_1 = arith.constant 0 : i32
    return %arg0, %c0_i32, %c0_i32_0 : i32, i32, i32
  }
  func.func @transform_4(%arg0: i32) -> (i32, i32, i32) {
    %c0_i32 = arith.constant 0 : i32
    %c0_i32_0 = arith.constant 0 : i32
    %c0_i32_1 = arith.constant 0 : i32
    return %arg0, %c0_i32, %c0_i32_0 : i32, i32, i32
  }
  func.func @transform_5(%arg0: i32) -> (i32, i32, i32) {
    %c0_i32 = arith.constant 0 : i32
    %c0_i32_0 = arith.constant 0 : i32
    %c0_i32_1 = arith.constant 0 : i32
    return %arg0, %c0_i32, %c0_i32_0 : i32, i32, i32
  }
}

</mosaic_0001>

<llo_original>
// kernel: actor_critic_forward.4
$region0: #{actor_critic_forward.4}
  #allocation0 [shape = 'u32[]', space=smem, size = 0x4, offset = 0x4, fixed_abs, tag = 'smem constant byte address 0x4 - core index']
  #allocation1 [shape = 'u32[72,128]{1,0:T(1,128)}', space=vmem, size = 0x9000, scoped, tag = 'internal scratch']
  %s0 = inlined_call_operand.vmem [shape: bf16[800,256], index: 0, kind: input, shape index: {}]
  %s1 = inlined_call_operand.vmem [shape: bf16[256,64], index: 1, kind: input, shape index: {}]
  %s2 = inlined_call_operand.vmem [shape: f32[1,64], index: 2, kind: input, shape index: {}]
  %s3 = inlined_call_operand.vmem [shape: bf16[800,64], index: 3, kind: output, shape index: {}]
  %s4 = sld [smem:[#allocation0]]
  $region22: #{actor_critic_forward.4} parent=0
    _
  %s6 = ssub.s32 1, %s4
  %s7 = scalar_select 0, %s6, %s4
  // Predicated region
  $region2: #{actor_critic_forward.4} parent=0 // pred_check
    _
  $region3: #{actor_critic_forward.4} parent=0 // pred_check_branch
    %9 = sbr.rel (0) target = $region5
  $region4: #{actor_critic_forward.4} parent=0 // pred_region
    _
  $region5: #{actor_critic_forward.4} parent=0 // pred_fallthru
    _
  // Predicated region
  $region6: #{actor_critic_forward.4} parent=0 // pred_check
    _
  $region7: #{actor_critic_forward.4} parent=0 // pred_check_branch
    %11 = sbr.rel (0) target = $region9
  $region8: #{actor_critic_forward.4} parent=0 // pred_region
    _
  $region9: #{actor_critic_forward.4} parent=0 // pred_fallthru
    _
  // Predicated region
  $region10: #{actor_critic_forward.4} parent=0 // pred_check
    _
  $region11: #{actor_critic_forward.4} parent=0 // pred_check_branch
    %13 = sbr.rel (0) target = $region13
  $region12: #{actor_critic_forward.4} parent=0 // pred_region
    _
  $region13: #{actor_critic_forward.4} parent=0 // pred_fallthru
    _
  %v14 = vld [vmem:[%s0] sm:$0xff]
  %v15 = vld [vmem:[%s0 + $0x8] sm:$0xff]
  %v16 = vld [vmem:[%s0 + $0x10] sm:$0xff]
  %v17 = vld [vmem:[%s0 + $0x18] sm:$0xff]
  %v18 = vld [vmem:[%s0 + $0x20] sm:$0xff]
  %v19 = vld [vmem:[%s0 + $0x28] sm:$0xff]
  %v20 = vld [vmem:[%s0 + $0x30] sm:$0xff]
  %v21 = vld [vmem:[%s0 + $0x38] sm:$0xff]
  %v22 = vld [vmem:[%s0 + $0x40] sm:$0xff]
  %v23 = vld [vmem:[%s0 + $0x48] sm:$0xff]
  %v24 = vld [vmem:[%s0 + $0x50] sm:$0xff]
  %v25 = vld [vmem:[%s0 + $0x58] sm:$0xff]
  %v26 = vld [vmem:[%s0 + $0x60] sm:$0xff]
  %v27 = vld [vmem:[%s0 + $0x68] sm:$0xff]
  %v28 = vld [vmem:[%s0 + $0x70] sm:$0xff]
  %v29 = vld [vmem:[%s0 + $0x78] sm:$0xff]
  %v30 = vld [vmem:[%s0 + $0x80] sm:$0xff]
  %v31 = vld [vmem:[%s0 + $0x88] sm:$0xff]
  %v32 = vld [vmem:[%s0 + $0x90] sm:$0xff]
  %v33 = vld [vmem:[%s0 + $0x98] sm:$0xff]
  %v34 = vld [vmem:[%s0 + $0xa0] sm:$0xff]
  %v35 = vld [vmem:[%s0 + $0xa8] sm:$0xff]
  %v36 = vld [vmem:[%s0 + $0xb0] sm:$0xff]
  %v37 = vld [vmem:[%s0 + $0xb8] sm:$0xff]
  %v38 = vld [vmem:[%s0 + $0xc0] sm:$0xff]
  %v39 = vld [vmem:[%s0 + $0xc8] sm:$0xff]
  %v40 = vld [vmem:[%s0 + $0xd0] sm:$0xff]
  %v41 = vld [vmem:[%s0 + $0xd8] sm:$0xff]
  %v42 = vld [vmem:[%s0 + $0xe0] sm:$0xff]
  %v43 = vld [vmem:[%s0 + $0xe8] sm:$0xff]
  %v44 = vld [vmem:[%s0 + $0xf0] sm:$0xff]
  %v45 = vld [vmem:[%s0 + $0xf8] sm:$0xff]
  %v46 = vld [vmem:[%s0 + $0x100] sm:$0xff]
  %v47 = vld [vmem:[%s0 + $0x108] sm:$0xff]
  %v48 = vld [vmem:[%s0 + $0x110] sm:$0xff]
  %v49 = vld [vmem:[%s0 + $0x118] sm:$0xff]
  %v50 = vld [vmem:[%s0 + $0x120] sm:$0xff]
  %v51 = vld [vmem:[%s0 + $0x128] sm:$0xff]
  %v52 = vld [vmem:[%s0 + $0x130] sm:$0xff]
  %v53 = vld [vmem:[%s0 + $0x138] sm:$0xff]
  %v54 = vld [vmem:[%s0 + $0x140] sm:$0xff]
  %v55 = vld [vmem:[%s0 + $0x148] sm:$0xff]
  %v56 = vld [vmem:[%s0 + $0x150] sm:$0xff]
  %v57 = vld [vmem:[%s0 + $0x158] sm:$0xff]
  %v58 = vld [vmem:[%s0 + $0x160] sm:$0xff]
  %v59 = vld [vmem:[%s0 + $0x168] sm:$0xff]
  %v60 = vld [vmem:[%s0 + $0x170] sm:$0xff]
  %v61 = vld [vmem:[%s0 + $0x178] sm:$0xff]
  %v62 = vld [vmem:[%s0 + $0x180] sm:$0xff]
  %v63 = vld [vmem:[%s0 + $0x188] sm:$0xff]
  %v64 = vld [vmem:[%s0 + $0x190] sm:$0xff]
  %v65 = vld [vmem:[%s0 + $0x198] sm:$0xff]
  %v66 = vld [vmem:[%s0 + $0x1a0] sm:$0xff]
  %v67 = vld [vmem:[%s0 + $0x1a8] sm:$0xff]
  %v68 = vld [vmem:[%s0 + $0x1b0] sm:$0xff]
  %v69 = vld [vmem:[%s0 + $0x1b8] sm:$0xff]
  %v70 = vld [vmem:[%s0 + $0x1c0] sm:$0xff]
  %v71 = vld [vmem:[%s0 + $0x1c8] sm:$0xff]
  %v72 = vld [vmem:[%s0 + $0x1d0] sm:$0xff]
  %v73 = vld [vmem:[%s0 + $0x1d8] sm:$0xff]
  %v74 = vld [vmem:[%s0 + $0x1e0] sm:$0xff]
  %v75 = vld [vmem:[%s0 + $0x1e8] sm:$0xff]
  %v76 = vld [vmem:[%s0 + $0x1f0] sm:$0xff]
  %v77 = vld [vmem:[%s0 + $0x1f8] sm:$0xff]
  %v78 = vld [vmem:[%s0 + $0x200] sm:$0xff]
  %v79 = vld [vmem:[%s0 + $0x208] sm:$0xff]
  %v80 = vld [vmem:[%s0 + $0x210] sm:$0xff]
  %v81 = vld [vmem:[%s0 + $0x218] sm:$0xff]
  %v82 = vld [vmem:[%s0 + $0x220] sm:$0xff]
  %v83 = vld [vmem:[%s0 + $0x228] sm:$0xff]
  %v84 = vld [vmem:[%s0 + $0x230] sm:$0xff]
  %v85 = vld [vmem:[%s0 + $0x238] sm:$0xff]
  %v86 = vld [vmem:[%s0 + $0x240] sm:$0xff]
  %v87 = vld [vmem:[%s0 + $0x248] sm:$0xff]
  %v88 = vld [vmem:[%s0 + $0x250] sm:$0xff]
  %v89 = vld [vmem:[%s0 + $0x258] sm:$0xff]
  %v90 = vld [vmem:[%s0 + $0x260] sm:$0xff]
  %v91 = vld [vmem:[%s0 + $0x268] sm:$0xff]
  %v92 = vld [vmem:[%s0 + $0x270] sm:$0xff]
  %v93 = vld [vmem:[%s0 + $0x278] sm:$0xff]
  %v94 = vld [vmem:[%s0 + $0x280] sm:$0xff]
  %v95 = vld [vmem:[%s0 + $0x288] sm:$0xff]
  %v96 = vld [vmem:[%s0 + $0x290] sm:$0xff]
  %v97 = vld [vmem:[%s0 + $0x298] sm:$0xff]
  %v98 = vld [vmem:[%s0 + $0x2a0] sm:$0xff]
  %v99 = vld [vmem:[%s0 + $0x2a8] sm:$0xff]
  %v100 = vld [vmem:[%s0 + $0x2b0] sm:$0xff]
  %v101 = vld [vmem:[%s0 + $0x2b8] sm:$0xff]
  %v102 = vld [vmem:[%s0 + $0x2c0] sm:$0xff]
  %v103 = vld [vmem:[%s0 + $0x2c8] sm:$0xff]
  %v104 = vld [vmem:[%s0 + $0x2d0] sm:$0xff]
  %v105 = vld [vmem:[%s0 + $0x2d8] sm:$0xff]
  %v106 = vld [vmem:[%s0 + $0x2e0] sm:$0xff]
  %v107 = vld [vmem:[%s0 + $0x2e8] sm:$0xff]
  %v108 = vld [vmem:[%s0 + $0x2f0] sm:$0xff]
  %v109 = vld [vmem:[%s0 + $0x2f8] sm:$0xff]
  %v110 = vld [vmem:[%s0 + $0x300] sm:$0xff]
  %v111 = vld [vmem:[%s0 + $0x308] sm:$0xff]
  %v112 = vld [vmem:[%s0 + $0x310] sm:$0xff]
  %v113 = vld [vmem:[%s0 + $0x318] sm:$0xff]
  %v114 = vld [vmem:[%s1] sm:$0xf]
  %v115 = vld [vmem:[%s1 + $0x4] sm:$0xf]
  %v116 = vld [vmem:[%s1 + $0x8] sm:$0xf]
  %v117 = vld [vmem:[%s1 + $0xc] sm:$0xf]
  %v118 = vld [vmem:[%s1 + $0x10] sm:$0xf]
  %v119 = vld [vmem:[%s1 + $0x14] sm:$0xf]
  %v120 = vld [vmem:[%s1 + $0x18] sm:$0xf]
  %v121 = vld [vmem:[%s1 + $0x1c] sm:$0xf]
  %v122 = vld [vmem:[%s1 + $0x20] sm:$0xf]
  %v123 = vld [vmem:[%s1 + $0x24] sm:$0xf]
  %v124 = vld [vmem:[%s1 + $0x28] sm:$0xf]
  %v125 = vld [vmem:[%s1 + $0x2c] sm:$0xf]
  %v126 = vld [vmem:[%s1 + $0x30] sm:$0xf]
  %v127 = vld [vmem:[%s1 + $0x34] sm:$0xf]
  %v128 = vld [vmem:[%s1 + $0x38] sm:$0xf]
  %v129 = vld [vmem:[%s1 + $0x3c] sm:$0xf]
  %v130 = vld [vmem:[%s1 + $0x40] sm:$0xf]
  %v131 = vld [vmem:[%s1 + $0x44] sm:$0xf]
  %v132 = vld [vmem:[%s1 + $0x48] sm:$0xf]
  %v133 = vld [vmem:[%s1 + $0x4c] sm:$0xf]
  %v134 = vld [vmem:[%s1 + $0x50] sm:$0xf]
  %v135 = vld [vmem:[%s1 + $0x54] sm:$0xf]
  %v136 = vld [vmem:[%s1 + $0x58] sm:$0xf]
  %v137 = vld [vmem:[%s1 + $0x5c] sm:$0xf]
  %v138 = vld [vmem:[%s1 + $0x60] sm:$0xf]
  %v139 = vld [vmem:[%s1 + $0x64] sm:$0xf]
  %v140 = vld [vmem:[%s1 + $0x68] sm:$0xf]
  %v141 = vld [vmem:[%s1 + $0x6c] sm:$0xf]
  %v142 = vld [vmem:[%s1 + $0x70] sm:$0xf]
  %v143 = vld [vmem:[%s1 + $0x74] sm:$0xf]
  %v144 = vld [vmem:[%s1 + $0x78] sm:$0xf]
  %v145 = vld [vmem:[%s1 + $0x7c] sm:$0xf]
  %v146 = vld [vmem:[%s2] sm:$0x1]
  %v148 = vperm.slane %v146, 0
  %v250 = vunpack.c.l.b16 %v14
  %v251 = vunpack.c.h.b16 %v14
  %v252 = vunpack.c.l.b16 %v15
  %v253 = vunpack.c.h.b16 %v15
  %v254 = vunpack.c.l.b16 %v16
  %v255 = vunpack.c.h.b16 %v16
  %v256 = vunpack.c.l.b16 %v17
  %v257 = vunpack.c.h.b16 %v17
  %v258 = vunpack.c.l.b16 %v18
  %v259 = vunpack.c.h.b16 %v18
  %v260 = vunpack.c.l.b16 %v19
  %v261 = vunpack.c.h.b16 %v19
  %v262 = vunpack.c.l.b16 %v20
  %v263 = vunpack.c.h.b16 %v20
  %v264 = vunpack.c.l.b16 %v21
  %v265 = vunpack.c.h.b16 %v21
  %v266 = vunpack.c.l.b16 %v22
  %v267 = vunpack.c.h.b16 %v22
  %v268 = vunpack.c.l.b16 %v23
  %v269 = vunpack.c.h.b16 %v23
  %v270 = vunpack.c.l.b16 %v24
  %v271 = vunpack.c.h.b16 %v24
  %v272 = vunpack.c.l.b16 %v25
  %v273 = vunpack.c.h.b16 %v25
  %v274 = vunpack.c.l.b16 %v26
  %v275 = vunpack.c.h.b16 %v26
  %v276 = vunpack.c.l.b16 %v27
  %v277 = vunpack.c.h.b16 %v27
  %v278 = vunpack.c.l.b16 %v28
  %v279 = vunpack.c.h.b16 %v28
  %v280 = vunpack.c.l.b16 %v29
  %v281 = vunpack.c.h.b16 %v29
  %v282 = vunpack.c.l.b16 %v30
  %v283 = vunpack.c.h.b16 %v30
  %v284 = vunpack.c.l.b16 %v31
  %v285 = vunpack.c.h.b16 %v31
  %v286 = vunpack.c.l.b16 %v32
  %v287 = vunpack.c.h.b16 %v32
  %v288 = vunpack.c.l.b16 %v33
  %v289 = vunpack.c.h.b16 %v33
  %v290 = vunpack.c.l.b16 %v34
  %v291 = vunpack.c.h.b16 %v34
  %v292 = vunpack.c.l.b16 %v35
  %v293 = vunpack.c.h.b16 %v35
  %v294 = vunpack.c.l.b16 %v36
  %v295 = vunpack.c.h.b16 %v36
  %v296 = vunpack.c.l.b16 %v37
  %v297 = vunpack.c.h.b16 %v37
  %v298 = vunpack.c.l.b16 %v38
  %v299 = vunpack.c.h.b16 %v38
  %v300 = vunpack.c.l.b16 %v39
  %v301 = vunpack.c.h.b16 %v39
  %v302 = vunpack.c.l.b16 %v40
  %v303 = vunpack.c.h.b16 %v40
  %v304 = vunpack.c.l.b16 %v41
  %v305 = vunpack.c.h.b16 %v41
  %v306 = vunpack.c.l.b16 %v42
  %v307 = vunpack.c.h.b16 %v42
  %v308 = vunpack.c.l.b16 %v43
  %v309 = vunpack.c.h.b16 %v43
  %v310 = vunpack.c.l.b16 %v44
  %v311 = vunpack.c.h.b16 %v44
  %v312 = vunpack.c.l.b16 %v45
  %v313 = vunpack.c.h.b16 %v45
  %v314 = vunpack.c.l.b16 %v46
  %v315 = vunpack.c.h.b16 %v46
  %v316 = vunpack.c.l.b16 %v47
  %v317 = vunpack.c.h.b16 %v47
  %v318 = vunpack.c.l.b16 %v48
  %v319 = vunpack.c.h.b16 %v48
  %v320 = vunpack.c.l.b16 %v49
  %v321 = vunpack.c.h.b16 %v49
  %v322 = vunpack.c.l.b16 %v50
  %v323 = vunpack.c.h.b16 %v50
  %v324 = vunpack.c.l.b16 %v51
  %v325 = vunpack.c.h.b16 %v51
  %v326 = vunpack.c.l.b16 %v52
  %v327 = vunpack.c.h.b16 %v52
  %v328 = vunpack.c.l.b16 %v53
  %v329 = vunpack.c.h.b16 %v53
  %v330 = vunpack.c.l.b16 %v54
  %v331 = vunpack.c.h.b16 %v54
  %v332 = vunpack.c.l.b16 %v55
  %v333 = vunpack.c.h.b16 %v55
  %v334 = vunpack.c.l.b16 %v56
  %v335 = vunpack.c.h.b16 %v56
  %v336 = vunpack.c.l.b16 %v57
  %v337 = vunpack.c.h.b16 %v57
  %v338 = vunpack.c.l.b16 %v58
  %v339 = vunpack.c.h.b16 %v58
  %v340 = vunpack.c.l.b16 %v59
  %v341 = vunpack.c.h.b16 %v59
  %v342 = vunpack.c.l.b16 %v60
  %v343 = vunpack.c.h.b16 %v60
  %v344 = vunpack.c.l.b16 %v61
  %v345 = vunpack.c.h.b16 %v61
  %v346 = vunpack.c.l.b16 %v62
  %v347 = vunpack.c.h.b16 %v62
  %v348 = vunpack.c.l.b16 %v63
  %v349 = vunpack.c.h.b16 %v63
  %v350 = vunpack.c.l.b16 %v64
  %v351 = vunpack.c.h.b16 %v64
  %v352 = vunpack.c.l.b16 %v65
  %v353 = vunpack.c.h.b16 %v65
  %v354 = vunpack.c.l.b16 %v66
  %v355 = vunpack.c.h.b16 %v66
  %v356 = vunpack.c.l.b16 %v67
  %v357 = vunpack.c.h.b16 %v67
  %v358 = vunpack.c.l.b16 %v68
  %v359 = vunpack.c.h.b16 %v68
  %v360 = vunpack.c.l.b16 %v69
  %v361 = vunpack.c.h.b16 %v69
  %v362 = vunpack.c.l.b16 %v70
  %v363 = vunpack.c.h.b16 %v70
  %v364 = vunpack.c.l.b16 %v71
  %v365 = vunpack.c.h.b16 %v71
  %v366 = vunpack.c.l.b16 %v72
  %v367 = vunpack.c.h.b16 %v72
  %v368 = vunpack.c.l.b16 %v73
  %v369 = vunpack.c.h.b16 %v73
  %v370 = vunpack.c.l.b16 %v74
  %v371 = vunpack.c.h.b16 %v74
  %v372 = vunpack.c.l.b16 %v75
  %v373 = vunpack.c.h.b16 %v75
  %v374 = vunpack.c.l.b16 %v76
  %v375 = vunpack.c.h.b16 %v76
  %v376 = vunpack.c.l.b16 %v77
  %v377 = vunpack.c.h.b16 %v77
  %v378 = vunpack.c.l.b16 %v78
  %v379 = vunpack.c.h.b16 %v78
  %v380 = vunpack.c.l.b16 %v79
  %v381 = vunpack.c.h.b16 %v79
  %v382 = vunpack.c.l.b16 %v80
  %v383 = vunpack.c.h.b16 %v80
  %v384 = vunpack.c.l.b16 %v81
  %v385 = vunpack.c.h.b16 %v81
  %v386 = vunpack.c.l.b16 %v82
  %v387 = vunpack.c.h.b16 %v82
  %v388 = vunpack.c.l.b16 %v83
  %v389 = vunpack.c.h.b16 %v83
  %v390 = vunpack.c.l.b16 %v84
  %v391 = vunpack.c.h.b16 %v84
  %v392 = vunpack.c.l.b16 %v85
  %v393 = vunpack.c.h.b16 %v85
  %v394 = vunpack.c.l.b16 %v86
  %v395 = vunpack.c.h.b16 %v86
  %v396 = vunpack.c.l.b16 %v87
  %v397 = vunpack.c.h.b16 %v87
  %v398 = vunpack.c.l.b16 %v88
  %v399 = vunpack.c.h.b16 %v88
  %v400 = vunpack.c.l.b16 %v89
  %v401 = vunpack.c.h.b16 %v89
  %v402 = vunpack.c.l.b16 %v90
  %v403 = vunpack.c.h.b16 %v90
  %v404 = vunpack.c.l.b16 %v91
  %v405 = vunpack.c.h.b16 %v91
  %v406 = vunpack.c.l.b16 %v92
  %v407 = vunpack.c.h.b16 %v92
  %v408 = vunpack.c.l.b16 %v93
  %v409 = vunpack.c.h.b16 %v93
  %v410 = vunpack.c.l.b16 %v94
  %v411 = vunpack.c.h.b16 %v94
  %v412 = vunpack.c.l.b16 %v95
  %v413 = vunpack.c.h.b16 %v95
  %v414 = vunpack.c.l.b16 %v96
  %v415 = vunpack.c.h.b16 %v96
  %v416 = vunpack.c.l.b16 %v97
  %v417 = vunpack.c.h.b16 %v97
  %v418 = vunpack.c.l.b16 %v98
  %v419 = vunpack.c.h.b16 %v98
  %v420 = vunpack.c.l.b16 %v99
  %v421 = vunpack.c.h.b16 %v99
  %v422 = vunpack.c.l.b16 %v100
  %v423 = vunpack.c.h.b16 %v100
  %v424 = vunpack.c.l.b16 %v101
  %v425 = vunpack.c.h.b16 %v101
  %v426 = vunpack.c.l.b16 %v102
  %v427 = vunpack.c.h.b16 %v102
  %v428 = vunpack.c.l.b16 %v103
  %v429 = vunpack.c.h.b16 %v103
  %v430 = vunpack.c.l.b16 %v104
  %v431 = vunpack.c.h.b16 %v104
  %v432 = vunpack.c.l.b16 %v105
  %v433 = vunpack.c.h.b16 %v105
  %v434 = vunpack.c.l.b16 %v106
  %v435 = vunpack.c.h.b16 %v106
  %v436 = vunpack.c.l.b16 %v107
  %v437 = vunpack.c.h.b16 %v107
  %v438 = vunpack.c.l.b16 %v108
  %v439 = vunpack.c.h.b16 %v108
  %v440 = vunpack.c.l.b16 %v109
  %v441 = vunpack.c.h.b16 %v109
  %v442 = vunpack.c.l.b16 %v110
  %v443 = vunpack.c.h.b16 %v110
  %v444 = vunpack.c.l.b16 %v111
  %v445 = vunpack.c.h.b16 %v111
  %v446 = vunpack.c.l.b16 %v112
  %v447 = vunpack.c.h.b16 %v112
  %v448 = vunpack.c.l.b16 %v113
  %v449 = vunpack.c.h.b16 %v113
  %v450 = vpack.c.b16 %v252, %v250
  %v451 = vpack.c.b16 %v253, %v251
  %v452 = vpack.c.b16 %v256, %v254
  %v453 = vpack.c.b16 %v257, %v255
  %v454 = vpack.c.b16 %v260, %v258
  %v455 = vpack.c.b16 %v261, %v259
  %v456 = vpack.c.b16 %v264, %v262
  %v457 = vpack.c.b16 %v265, %v263
  %v458 = vpack.c.b16 %v268, %v266
  %v459 = vpack.c.b16 %v269, %v267
  %v460 = vpack.c.b16 %v272, %v270
  %v461 = vpack.c.b16 %v273, %v271
  %v462 = vpack.c.b16 %v276, %v274
  %v463 = vpack.c.b16 %v277, %v275
  %v464 = vpack.c.b16 %v280, %v278
  %v465 = vpack.c.b16 %v281, %v279
  %v466 = vpack.c.b16 %v284, %v282
  %v467 = vpack.c.b16 %v285, %v283
  %v468 = vpack.c.b16 %v288, %v286
  %v469 = vpack.c.b16 %v289, %v287
  %v470 = vpack.c.b16 %v292, %v290
  %v471 = vpack.c.b16 %v293, %v291
  %v472 = vpack.c.b16 %v296, %v294
  %v473 = vpack.c.b16 %v297, %v295
  %v474 = vpack.c.b16 %v300, %v298
  %v475 = vpack.c.b16 %v301, %v299
  %v476 = vpack.c.b16 %v304, %v302
  %v477 = vpack.c.b16 %v305, %v303
  %v478 = vpack.c.b16 %v308, %v306
  %v479 = vpack.c.b16 %v309, %v307
  %v480 = vpack.c.b16 %v312, %v310
  %v481 = vpack.c.b16 %v313, %v311
  %v482 = vpack.c.b16 %v316, %v314
  %v483 = vpack.c.b16 %v317, %v315
  %v484 = vpack.c.b16 %v320, %v318
  %v485 = vpack.c.b16 %v321, %v319
  %v486 = vpack.c.b16 %v324, %v322
  %v487 = vpack.c.b16 %v325, %v323
  %v488 = vpack.c.b16 %v328, %v326
  %v489 = vpack.c.b16 %v329, %v327
  %v490 = vpack.c.b16 %v332, %v330
  %v491 = vpack.c.b16 %v333, %v331
  %v492 = vpack.c.b16 %v336, %v334
  %v493 = vpack.c.b16 %v337, %v335
  %v494 = vpack.c.b16 %v340, %v338
  %v495 = vpack.c.b16 %v341, %v339
  %v496 = vpack.c.b16 %v344, %v342
  %v497 = vpack.c.b16 %v345, %v343
  %v498 = vpack.c.b16 %v348, %v346
  %v499 = vpack.c.b16 %v349, %v347
  %v500 = vpack.c.b16 %v352, %v350
  %v501 = vpack.c.b16 %v353, %v351
  %v502 = vpack.c.b16 %v356, %v354
  %v503 = vpack.c.b16 %v357, %v355
  %v504 = vpack.c.b16 %v360, %v358
  %v505 = vpack.c.b16 %v361, %v359
  %v506 = vpack.c.b16 %v364, %v362
  %v507 = vpack.c.b16 %v365, %v363
  %v508 = vpack.c.b16 %v368, %v366
  %v509 = vpack.c.b16 %v369, %v367
  %v510 = vpack.c.b16 %v372, %v370
  %v511 = vpack.c.b16 %v373, %v371
  %v512 = vpack.c.b16 %v376, %v374
  %v513 = vpack.c.b16 %v377, %v375
  %v514 = vpack.c.b16 %v380, %v378
  %v515 = vpack.c.b16 %v381, %v379
  %v516 = vpack.c.b16 %v384, %v382
  %v517 = vpack.c.b16 %v385, %v383
  %v518 = vpack.c.b16 %v388, %v386
  %v519 = vpack.c.b16 %v389, %v387
  %v520 = vpack.c.b16 %v392, %v390
  %v521 = vpack.c.b16 %v393, %v391
  %v522 = vpack.c.b16 %v396, %v394
  %v523 = vpack.c.b16 %v397, %v395
  %v524 = vpack.c.b16 %v400, %v398
  %v525 = vpack.c.b16 %v401, %v399
  %v526 = vpack.c.b16 %v404, %v402
  %v527 = vpack.c.b16 %v405, %v403
  %v528 = vpack.c.b16 %v408, %v406
  %v529 = vpack.c.b16 %v409, %v407
  %v530 = vpack.c.b16 %v412, %v410
  %v531 = vpack.c.b16 %v413, %v411
  %v532 = vpack.c.b16 %v416, %v414
  %v533 = vpack.c.b16 %v417, %v415
  %v534 = vpack.c.b16 %v420, %v418
  %v535 = vpack.c.b16 %v421, %v419
  %v536 = vpack.c.b16 %v424, %v422
  %v537 = vpack.c.b16 %v425, %v423
  %v538 = vpack.c.b16 %v428, %v426
  %v539 = vpack.c.b16 %v429, %v427
  %v540 = vpack.c.b16 %v432, %v430
  %v541 = vpack.c.b16 %v433, %v431
  %v542 = vpack.c.b16 %v436, %v434
  %v543 = vpack.c.b16 %v437, %v435
  %v544 = vpack.c.b16 %v440, %v438
  %v545 = vpack.c.b16 %v441, %v439
  %v546 = vpack.c.b16 %v444, %v442
  %v547 = vpack.c.b16 %v445, %v443
  %v548 = vpack.c.b16 %v448, %v446
  %v549 = vpack.c.b16 %v449, %v447
  %v682 = vunpack.c.l.b16 %v114
  %v683 = vunpack.c.l.b16 %v115
  %v684 = vunpack.c.l.b16 %v116
  %v685 = vunpack.c.l.b16 %v117
  %v686 = vunpack.c.l.b16 %v118
  %v687 = vunpack.c.l.b16 %v119
  %v688 = vunpack.c.l.b16 %v120
  %v689 = vunpack.c.l.b16 %v121
  %v690 = vunpack.c.l.b16 %v122
  %v691 = vunpack.c.l.b16 %v123
  %v692 = vunpack.c.l.b16 %v124
  %v693 = vunpack.c.l.b16 %v125
  %v694 = vunpack.c.l.b16 %v126
  %v695 = vunpack.c.l.b16 %v127
  %v696 = vunpack.c.l.b16 %v128
  %v697 = vunpack.c.l.b16 %v129
  %v698 = vunpack.c.l.b16 %v130
  %v699 = vunpack.c.l.b16 %v131
  %v700 = vunpack.c.l.b16 %v132
  %v701 = vunpack.c.l.b16 %v133
  %v702 = vunpack.c.l.b16 %v134
  %v703 = vunpack.c.l.b16 %v135
  %v704 = vunpack.c.l.b16 %v136
  %v705 = vunpack.c.l.b16 %v137
  %v706 = vunpack.c.l.b16 %v138
  %v707 = vunpack.c.l.b16 %v139
  %v708 = vunpack.c.l.b16 %v140
  %v709 = vunpack.c.l.b16 %v141
  %v710 = vunpack.c.l.b16 %v142
  %v711 = vunpack.c.l.b16 %v143
  %v712 = vunpack.c.l.b16 %v144
  %v713 = vunpack.c.l.b16 %v145
  %v714 = vpack.c.b16 %v683, %v682
  %v715 = vpack.c.b16 %v685, %v684
  %v716 = vpack.c.b16 %v687, %v686
  %v717 = vpack.c.b16 %v689, %v688
  %v718 = vpack.c.b16 %v691, %v690
  %v719 = vpack.c.b16 %v693, %v692
  %v720 = vpack.c.b16 %v695, %v694
  %v721 = vpack.c.b16 %v697, %v696
  %v722 = vpack.c.b16 %v699, %v698
  %v723 = vpack.c.b16 %v701, %v700
  %v724 = vpack.c.b16 %v703, %v702
  %v725 = vpack.c.b16 %v705, %v704
  %v726 = vpack.c.b16 %v707, %v706
  %v727 = vpack.c.b16 %v709, %v708
  %v728 = vpack.c.b16 %v711, %v710
  %v729 = vpack.c.b16 %v713, %v712
  %746 = vmatpush.bf16.msra.mxu0 %v721
  %747 = vmatpush.bf16.msra.mxu0 %v720
  %748 = vmatpush.bf16.msra.mxu0 %v719
  %749 = vmatpush.bf16.msra.mxu0 %v718
  %750 = vmatpush.bf16.msra.mxu0 %v717
  %751 = vmatpush.bf16.msra.mxu0 %v716
  %752 = vmatpush.bf16.msra.mxu0 %v715
  %753 = vmatpush.bf16.msra.mxu0 %v714
  %754 = vmatmul.bf16.gmra.mxu0 %v450
  %v755 = vpop.f32.mrf.mxu0
  %v756 = vadd.f32 %v148, %v755
  %v757 = vpop.f32.mrf.mxu0
  %v758 = vadd.f32 %v148, %v757
  %759 = vmatmul.bf16.gmra.mxu0 %v452
  %v760 = vpop.f32.mrf.mxu0
  %v761 = vadd.f32 %v148, %v760
  %v762 = vpop.f32.mrf.mxu0
  %v763 = vadd.f32 %v148, %v762
  %764 = vmatmul.bf16.gmra.mxu0 %v454
  %v765 = vpop.f32.mrf.mxu0
  %v766 = vadd.f32 %v148, %v765
  %v767 = vpop.f32.mrf.mxu0
  %v768 = vadd.f32 %v148, %v767
  %769 = vmatmul.bf16.gmra.mxu0 %v456
  %v770 = vpop.f32.mrf.mxu0
  %v771 = vadd.f32 %v148, %v770
  %v772 = vpop.f32.mrf.mxu0
  %v773 = vadd.f32 %v148, %v772
  %774 = vmatmul.bf16.gmra.mxu0 %v458
  %v775 = vpop.f32.mrf.mxu0
  %v776 = vadd.f32 %v148, %v775
  %v777 = vpop.f32.mrf.mxu0
  %v778 = vadd.f32 %v148, %v777
  %779 = vmatmul.bf16.gmra.mxu0 %v460
  %v780 = vpop.f32.mrf.mxu0
  %v781 = vadd.f32 %v148, %v780
  %v782 = vpop.f32.mrf.mxu0
  %v783 = vadd.f32 %v148, %v782
  %784 = vmatmul.bf16.gmra.mxu0 %v462
  %v785 = vpop.f32.mrf.mxu0
  %v786 = vadd.f32 %v148, %v785
  %v787 = vpop.f32.mrf.mxu0
  %v788 = vadd.f32 %v148, %v787
  %789 = vmatmul.bf16.gmra.mxu0 %v464
  %v790 = vpop.f32.mrf.mxu0
  %v791 = vadd.f32 %v148, %v790
  %v792 = vpop.f32.mrf.mxu0
  %v793 = vadd.f32 %v148, %v792
  %794 = vmatmul.bf16.gmra.mxu0 %v466
  %v795 = vpop.f32.mrf.mxu0
  %v796 = vadd.f32 %v148, %v795
  %v797 = vpop.f32.mrf.mxu0
  %v798 = vadd.f32 %v148, %v797
  %799 = vmatmul.bf16.gmra.mxu0 %v468
  %v800 = vpop.f32.mrf.mxu0
  %v801 = vadd.f32 %v148, %v800
  %v802 = vpop.f32.mrf.mxu0
  %v803 = vadd.f32 %v148, %v802
  %804 = vmatmul.bf16.gmra.mxu0 %v470
  %v805 = vpop.f32.mrf.mxu0
  %v806 = vadd.f32 %v148, %v805
  %v807 = vpop.f32.mrf.mxu0
  %v808 = vadd.f32 %v148, %v807
  %809 = vmatmul.bf16.gmra.mxu0 %v472
  %v810 = vpop.f32.mrf.mxu0
  %v811 = vadd.f32 %v148, %v810
  %v812 = vpop.f32.mrf.mxu0
  %v813 = vadd.f32 %v148, %v812
  %814 = vmatmul.bf16.gmra.mxu0 %v474
  %v815 = vpop.f32.mrf.mxu0
  %v816 = vadd.f32 %v148, %v815
  %v817 = vpop.f32.mrf.mxu0
  %v818 = vadd.f32 %v148, %v817
  %819 = vmatmul.bf16.gmra.mxu0 %v476
  %v820 = vpop.f32.mrf.mxu0
  %v821 = vadd.f32 %v148, %v820
  %v822 = vpop.f32.mrf.mxu0
  %v823 = vadd.f32 %v148, %v822
  %824 = vmatmul.bf16.gmra.mxu0 %v478
  %v825 = vpop.f32.mrf.mxu0
  %v826 = vadd.f32 %v148, %v825
  %v827 = vpop.f32.mrf.mxu0
  %v828 = vadd.f32 %v148, %v827
  %829 = vmatmul.bf16.gmra.mxu0 %v480
  %v830 = vpop.f32.mrf.mxu0
  %v831 = vadd.f32 %v148, %v830
  %v832 = vpop.f32.mrf.mxu0
  %v833 = vadd.f32 %v148, %v832
  %834 = vmatmul.bf16.gmra.mxu0 %v482
  %v835 = vpop.f32.mrf.mxu0
  %v836 = vadd.f32 %v148, %v835
  %v837 = vpop.f32.mrf.mxu0
  %v838 = vadd.f32 %v148, %v837
  %839 = vmatmul.bf16.gmra.mxu0 %v484
  %v840 = vpop.f32.mrf.mxu0
  %v841 = vadd.f32 %v148, %v840
  %v842 = vpop.f32.mrf.mxu0
  %v843 = vadd.f32 %v148, %v842
  %844 = vmatmul.bf16.gmra.mxu0 %v486
  %v845 = vpop.f32.mrf.mxu0
  %v846 = vadd.f32 %v148, %v845
  %v847 = vpop.f32.mrf.mxu0
  %v848 = vadd.f32 %v148, %v847
  %849 = vmatmul.bf16.gmra.mxu0 %v488
  %v850 = vpop.f32.mrf.mxu0
  %v851 = vadd.f32 %v148, %v850
  %v852 = vpop.f32.mrf.mxu0
  %v853 = vadd.f32 %v148, %v852
  %854 = vmatmul.bf16.gmra.mxu0 %v490
  %v855 = vpop.f32.mrf.mxu0
  %v856 = vadd.f32 %v148, %v855
  %v857 = vpop.f32.mrf.mxu0
  %v858 = vadd.f32 %v148, %v857
  %859 = vmatmul.bf16.gmra.mxu0 %v492
  %v860 = vpop.f32.mrf.mxu0
  %v861 = vadd.f32 %v148, %v860
  %v862 = vpop.f32.mrf.mxu0
  %v863 = vadd.f32 %v148, %v862
  %864 = vmatmul.bf16.gmra.mxu0 %v494
  %v865 = vpop.f32.mrf.mxu0
  %v866 = vadd.f32 %v148, %v865
  %v867 = vpop.f32.mrf.mxu0
  %v868 = vadd.f32 %v148, %v867
  %869 = vmatmul.bf16.gmra.mxu0 %v496
  %v870 = vpop.f32.mrf.mxu0
  %v871 = vadd.f32 %v148, %v870
  %v872 = vpop.f32.mrf.mxu0
  %v873 = vadd.f32 %v148, %v872
  %874 = vmatmul.bf16.gmra.mxu0 %v498
  %v875 = vpop.f32.mrf.mxu0
  %v876 = vadd.f32 %v148, %v875
  %v877 = vpop.f32.mrf.mxu0
  %v878 = vadd.f32 %v148, %v877
  %879 = vmatmul.bf16.gmra.mxu0 %v500
  %v880 = vpop.f32.mrf.mxu0
  %v881 = vadd.f32 %v148, %v880
  %v882 = vpop.f32.mrf.mxu0
  %v883 = vadd.f32 %v148, %v882
  %884 = vmatmul.bf16.gmra.mxu0 %v502
  %v885 = vpop.f32.mrf.mxu0
  %v886 = vadd.f32 %v148, %v885
  %v887 = vpop.f32.mrf.mxu0
  %v888 = vadd.f32 %v148, %v887
  %889 = vmatmul.bf16.gmra.mxu0 %v504
  %v890 = vpop.f32.mrf.mxu0
  %v891 = vadd.f32 %v148, %v890
  %v892 = vpop.f32.mrf.mxu0
  %v893 = vadd.f32 %v148, %v892
  %894 = vmatmul.bf16.gmra.mxu0 %v506
  %v895 = vpop.f32.mrf.mxu0
  %v896 = vadd.f32 %v148, %v895
  %v897 = vpop.f32.mrf.mxu0
  %v898 = vadd.f32 %v148, %v897
  %899 = vmatmul.bf16.gmra.mxu0 %v508
  %v900 = vpop.f32.mrf.mxu0
  %v901 = vadd.f32 %v148, %v900
  %v902 = vpop.f32.mrf.mxu0
  %v903 = vadd.f32 %v148, %v902
  %904 = vmatmul.bf16.gmra.mxu0 %v510
  %v905 = vpop.f32.mrf.mxu0
  %v906 = vadd.f32 %v148, %v905
  %v907 = vpop.f32.mrf.mxu0
  %v908 = vadd.f32 %v148, %v907
  %909 = vmatmul.bf16.gmra.mxu0 %v512
  %v910 = vpop.f32.mrf.mxu0
  %v911 = vadd.f32 %v148, %v910
  %v912 = vpop.f32.mrf.mxu0
  %v913 = vadd.f32 %v148, %v912
  %914 = vmatmul.bf16.gmra.mxu0 %v514
  %v915 = vpop.f32.mrf.mxu0
  %v916 = vadd.f32 %v148, %v915
  %v917 = vpop.f32.mrf.mxu0
  %v918 = vadd.f32 %v148, %v917
  %919 = vmatmul.bf16.gmra.mxu0 %v516
  %v920 = vpop.f32.mrf.mxu0
  %v921 = vadd.f32 %v148, %v920
  %v922 = vpop.f32.mrf.mxu0
  %v923 = vadd.f32 %v148, %v922
  %924 = vmatmul.bf16.gmra.mxu0 %v518
  %v925 = vpop.f32.mrf.mxu0
  %v926 = vadd.f32 %v148, %v925
  %v927 = vpop.f32.mrf.mxu0
  %v928 = vadd.f32 %v148, %v927
  %929 = vmatmul.bf16.gmra.mxu0 %v520
  %v930 = vpop.f32.mrf.mxu0
  %v931 = vadd.f32 %v148, %v930
  %v932 = vpop.f32.mrf.mxu0
  %v933 = vadd.f32 %v148, %v932
  %934 = vmatmul.bf16.gmra.mxu0 %v522
  %v935 = vpop.f32.mrf.mxu0
  %v936 = vadd.f32 %v148, %v935
  %v937 = vpop.f32.mrf.mxu0
  %v938 = vadd.f32 %v148, %v937
  %939 = vmatmul.bf16.gmra.mxu0 %v524
  %v940 = vpop.f32.mrf.mxu0
  %v941 = vadd.f32 %v148, %v940
  %v942 = vpop.f32.mrf.mxu0
  %v943 = vadd.f32 %v148, %v942
  %944 = vmatmul.bf16.gmra.mxu0 %v526
  %v945 = vpop.f32.mrf.mxu0
  %v946 = vadd.f32 %v148, %v945
  %v947 = vpop.f32.mrf.mxu0
  %v948 = vadd.f32 %v148, %v947
  %949 = vmatmul.bf16.gmra.mxu0 %v528
  %v950 = vpop.f32.mrf.mxu0
  %v951 = vadd.f32 %v148, %v950
  %v952 = vpop.f32.mrf.mxu0
  %v953 = vadd.f32 %v148, %v952
  %954 = vmatmul.bf16.gmra.mxu0 %v530
  %v955 = vpop.f32.mrf.mxu0
  %v956 = vadd.f32 %v148, %v955
  %v957 = vpop.f32.mrf.mxu0
  %v958 = vadd.f32 %v148, %v957
  %959 = vmatmul.bf16.gmra.mxu0 %v532
  %v960 = vpop.f32.mrf.mxu0
  %v961 = vadd.f32 %v148, %v960
  %v962 = vpop.f32.mrf.mxu0
  %v963 = vadd.f32 %v148, %v962
  %964 = vmatmul.bf16.gmra.mxu0 %v534
  %v965 = vpop.f32.mrf.mxu0
  %v966 = vadd.f32 %v148, %v965
  %v967 = vpop.f32.mrf.mxu0
  %v968 = vadd.f32 %v148, %v967
  %969 = vmatmul.bf16.gmra.mxu0 %v536
  %v970 = vpop.f32.mrf.mxu0
  %v971 = vadd.f32 %v148, %v970
  %v972 = vpop.f32.mrf.mxu0
  %v973 = vadd.f32 %v148, %v972
  %974 = vmatmul.bf16.gmra.mxu0 %v538
  %v975 = vpop.f32.mrf.mxu0
  %v976 = vadd.f32 %v148, %v975
  %v977 = vpop.f32.mrf.mxu0
  %v978 = vadd.f32 %v148, %v977
  %979 = vmatmul.bf16.gmra.mxu0 %v540
  %v980 = vpop.f32.mrf.mxu0
  %v981 = vadd.f32 %v148, %v980
  %v982 = vpop.f32.mrf.mxu0
  %v983 = vadd.f32 %v148, %v982
  %984 = vmatmul.bf16.gmra.mxu0 %v542
  %v985 = vpop.f32.mrf.mxu0
  %v986 = vadd.f32 %v148, %v985
  %v987 = vpop.f32.mrf.mxu0
  %v988 = vadd.f32 %v148, %v987
  %989 = vmatmul.bf16.gmra.mxu0 %v544
  %v990 = vpop.f32.mrf.mxu0
  %v991 = vadd.f32 %v148, %v990
  %v992 = vpop.f32.mrf.mxu0
  %v993 = vadd.f32 %v148, %v992
  %994 = vmatmul.bf16.gmra.mxu0 %v546
  %v995 = vpop.f32.mrf.mxu0
  %v996 = vadd.f32 %v148, %v995
  %v997 = vpop.f32.mrf.mxu0
  %v998 = vadd.f32 %v148, %v997
  %999 = vmatmul.bf16.gmra.mxu0 %v548
  %v1000 = vpop.f32.mrf.mxu0
  %v1001 = vadd.f32 %v148, %v1000
  %v1002 = vpop.f32.mrf.mxu0
  %v1003 = vadd.f32 %v148, %v1002
  %1004 = vdwg.mxu0
  %1005 = vmatpush.bf16.msra.mxu0 %v729
  %1006 = vmatpush.bf16.msra.mxu0 %v728
  %1007 = vmatpush.bf16.msra.mxu0 %v727
  %1008 = vmatpush.bf16.msra.mxu0 %v726
  %1009 = vmatpush.bf16.msra.mxu0 %v725
  %1010 = vmatpush.bf16.msra.mxu0 %v724
  %1011 = vmatpush.bf16.msra.mxu0 %v723
  %1012 = vmatpush.bf16.msra.mxu0 %v722
  %1013 = vmatmul.bf16.gmra.mxu0 %v451
  %v1014 = vpop.f32.mrf.mxu0
  %v1015 = vadd.f32 %v756, %v1014
  %v1016 = vpop.f32.mrf.mxu0
  %v1017 = vadd.f32 %v758, %v1016
  %1018 = vmatmul.bf16.gmra.mxu0 %v453
  %v1019 = vpop.f32.mrf.mxu0
  %v1020 = vadd.f32 %v761, %v1019
  %v1021 = vpop.f32.mrf.mxu0
  %v1022 = vadd.f32 %v763, %v1021
  %1023 = vmatmul.bf16.gmra.mxu0 %v455
  %v1024 = vpop.f32.mrf.mxu0
  %v1025 = vadd.f32 %v766, %v1024
  %v1026 = vpop.f32.mrf.mxu0
  %v1027 = vadd.f32 %v768, %v1026
  %1028 = vmatmul.bf16.gmra.mxu0 %v457
  %v1029 = vpop.f32.mrf.mxu0
  %v1030 = vadd.f32 %v771, %v1029
  %v1031 = vpop.f32.mrf.mxu0
  %v1032 = vadd.f32 %v773, %v1031
  %1033 = vmatmul.bf16.gmra.mxu0 %v459
  %v1034 = vpop.f32.mrf.mxu0
  %v1035 = vadd.f32 %v776, %v1034
  %v1036 = vpop.f32.mrf.mxu0
  %v1037 = vadd.f32 %v778, %v1036
  %1038 = vmatmul.bf16.gmra.mxu0 %v461
  %v1039 = vpop.f32.mrf.mxu0
  %v1040 = vadd.f32 %v781, %v1039
  %v1041 = vpop.f32.mrf.mxu0
  %v1042 = vadd.f32 %v783, %v1041
  %1043 = vmatmul.bf16.gmra.mxu0 %v463
  %v1044 = vpop.f32.mrf.mxu0
  %v1045 = vadd.f32 %v786, %v1044
  %v1046 = vpop.f32.mrf.mxu0
  %v1047 = vadd.f32 %v788, %v1046
  %1048 = vmatmul.bf16.gmra.mxu0 %v465
  %v1049 = vpop.f32.mrf.mxu0
  %v1050 = vadd.f32 %v791, %v1049
  %v1051 = vpop.f32.mrf.mxu0
  %v1052 = vadd.f32 %v793, %v1051
  %1053 = vmatmul.bf16.gmra.mxu0 %v467
  %v1054 = vpop.f32.mrf.mxu0
  %v1055 = vadd.f32 %v796, %v1054
  %v1056 = vpop.f32.mrf.mxu0
  %v1057 = vadd.f32 %v798, %v1056
  %1058 = vmatmul.bf16.gmra.mxu0 %v469
  %v1059 = vpop.f32.mrf.mxu0
  %v1060 = vadd.f32 %v801, %v1059
  %v1061 = vpop.f32.mrf.mxu0
  %v1062 = vadd.f32 %v803, %v1061
  %1063 = vmatmul.bf16.gmra.mxu0 %v471
  %v1064 = vpop.f32.mrf.mxu0
  %v1065 = vadd.f32 %v806, %v1064
  %v1066 = vpop.f32.mrf.mxu0
  %v1067 = vadd.f32 %v808, %v1066
  %1068 = vmatmul.bf16.gmra.mxu0 %v473
  %v1069 = vpop.f32.mrf.mxu0
  %v1070 = vadd.f32 %v811, %v1069
  %v1071 = vpop.f32.mrf.mxu0
  %v1072 = vadd.f32 %v813, %v1071
  %1073 = vmatmul.bf16.gmra.mxu0 %v475
  %v1074 = vpop.f32.mrf.mxu0
  %v1075 = vadd.f32 %v816, %v1074
  %v1076 = vpop.f32.mrf.mxu0
  %v1077 = vadd.f32 %v818, %v1076
  %1078 = vmatmul.bf16.gmra.mxu0 %v477
  %v1079 = vpop.f32.mrf.mxu0
  %v1080 = vadd.f32 %v821, %v1079
  %v1081 = vpop.f32.mrf.mxu0
  %v1082 = vadd.f32 %v823, %v1081
  %1083 = vmatmul.bf16.gmra.mxu0 %v479
  %v1084 = vpop.f32.mrf.mxu0
  %v1085 = vadd.f32 %v826, %v1084
  %v1086 = vpop.f32.mrf.mxu0
  %v1087 = vadd.f32 %v828, %v1086
  %1088 = vmatmul.bf16.gmra.mxu0 %v481
  %v1089 = vpop.f32.mrf.mxu0
  %v1090 = vadd.f32 %v831, %v1089
  %v1091 = vpop.f32.mrf.mxu0
  %v1092 = vadd.f32 %v833, %v1091
  %1093 = vmatmul.bf16.gmra.mxu0 %v483
  %v1094 = vpop.f32.mrf.mxu0
  %v1095 = vadd.f32 %v836, %v1094
  %v1096 = vpop.f32.mrf.mxu0
  %v1097 = vadd.f32 %v838, %v1096
  %1098 = vmatmul.bf16.gmra.mxu0 %v485
  %v1099 = vpop.f32.mrf.mxu0
  %v1100 = vadd.f32 %v841, %v1099
  %v1101 = vpop.f32.mrf.mxu0
  %v1102 = vadd.f32 %v843, %v1101
  %1103 = vmatmul.bf16.gmra.mxu0 %v487
  %v1104 = vpop.f32.mrf.mxu0
  %v1105 = vadd.f32 %v846, %v1104
  %v1106 = vpop.f32.mrf.mxu0
  %v1107 = vadd.f32 %v848, %v1106
  %1108 = vmatmul.bf16.gmra.mxu0 %v489
  %v1109 = vpop.f32.mrf.mxu0
  %v1110 = vadd.f32 %v851, %v1109
  %v1111 = vpop.f32.mrf.mxu0
  %v1112 = vadd.f32 %v853, %v1111
  %1113 = vmatmul.bf16.gmra.mxu0 %v491
  %v1114 = vpop.f32.mrf.mxu0
  %v1115 = vadd.f32 %v856, %v1114
  %v1116 = vpop.f32.mrf.mxu0
  %v1117 = vadd.f32 %v858, %v1116
  %1118 = vmatmul.bf16.gmra.mxu0 %v493
  %v1119 = vpop.f32.mrf.mxu0
  %v1120 = vadd.f32 %v861, %v1119
  %v1121 = vpop.f32.mrf.mxu0
  %v1122 = vadd.f32 %v863, %v1121
  %1123 = vmatmul.bf16.gmra.mxu0 %v495
  %v1124 = vpop.f32.mrf.mxu0
  %v1125 = vadd.f32 %v866, %v1124
  %v1126 = vpop.f32.mrf.mxu0
  %v1127 = vadd.f32 %v868, %v1126
  %1128 = vmatmul.bf16.gmra.mxu0 %v497
  %v1129 = vpop.f32.mrf.mxu0
  %v1130 = vadd.f32 %v871, %v1129
  %v1131 = vpop.f32.mrf.mxu0
  %v1132 = vadd.f32 %v873, %v1131
  %1133 = vmatmul.bf16.gmra.mxu0 %v499
  %v1134 = vpop.f32.mrf.mxu0
  %v1135 = vadd.f32 %v876, %v1134
  %v1136 = vpop.f32.mrf.mxu0
  %v1137 = vadd.f32 %v878, %v1136
  %1138 = vmatmul.bf16.gmra.mxu0 %v501
  %v1139 = vpop.f32.mrf.mxu0
  %v1140 = vadd.f32 %v881, %v1139
  %v1141 = vpop.f32.mrf.mxu0
  %v1142 = vadd.f32 %v883, %v1141
  %1143 = vmatmul.bf16.gmra.mxu0 %v503
  %v1144 = vpop.f32.mrf.mxu0
  %v1145 = vadd.f32 %v886, %v1144
  %v1146 = vpop.f32.mrf.mxu0
  %v1147 = vadd.f32 %v888, %v1146
  %1148 = vmatmul.bf16.gmra.mxu0 %v505
  %v1149 = vpop.f32.mrf.mxu0
  %v1150 = vadd.f32 %v891, %v1149
  %v1151 = vpop.f32.mrf.mxu0
  %v1152 = vadd.f32 %v893, %v1151
  %1153 = vmatmul.bf16.gmra.mxu0 %v507
  %v1154 = vpop.f32.mrf.mxu0
  %v1155 = vadd.f32 %v896, %v1154
  %v1156 = vpop.f32.mrf.mxu0
  %v1157 = vadd.f32 %v898, %v1156
  %1158 = vmatmul.bf16.gmra.mxu0 %v509
  %v1159 = vpop.f32.mrf.mxu0
  %v1160 = vadd.f32 %v901, %v1159
  %v1161 = vpop.f32.mrf.mxu0
  %v1162 = vadd.f32 %v903, %v1161
  %1163 = vmatmul.bf16.gmra.mxu0 %v511
  %v1164 = vpop.f32.mrf.mxu0
  %v1165 = vadd.f32 %v906, %v1164
  %v1166 = vpop.f32.mrf.mxu0
  %v1167 = vadd.f32 %v908, %v1166
  %1168 = vmatmul.bf16.gmra.mxu0 %v513
  %v1169 = vpop.f32.mrf.mxu0
  %v1170 = vadd.f32 %v911, %v1169
  %v1171 = vpop.f32.mrf.mxu0
  %v1172 = vadd.f32 %v913, %v1171
  %1173 = vmatmul.bf16.gmra.mxu0 %v515
  %v1174 = vpop.f32.mrf.mxu0
  %v1175 = vadd.f32 %v916, %v1174
  %v1176 = vpop.f32.mrf.mxu0
  %v1177 = vadd.f32 %v918, %v1176
  %1178 = vmatmul.bf16.gmra.mxu0 %v517
  %v1179 = vpop.f32.mrf.mxu0
  %v1180 = vadd.f32 %v921, %v1179
  %v1181 = vpop.f32.mrf.mxu0
  %v1182 = vadd.f32 %v923, %v1181
  %1183 = vmatmul.bf16.gmra.mxu0 %v519
  %v1184 = vpop.f32.mrf.mxu0
  %v1185 = vadd.f32 %v926, %v1184
  %v1186 = vpop.f32.mrf.mxu0
  %v1187 = vadd.f32 %v928, %v1186
  %1188 = vmatmul.bf16.gmra.mxu0 %v521
  %v1189 = vpop.f32.mrf.mxu0
  %v1190 = vadd.f32 %v931, %v1189
  %v1191 = vpop.f32.mrf.mxu0
  %v1192 = vadd.f32 %v933, %v1191
  %1193 = vmatmul.bf16.gmra.mxu0 %v523
  %v1194 = vpop.f32.mrf.mxu0
  %v1195 = vadd.f32 %v936, %v1194
  %v1196 = vpop.f32.mrf.mxu0
  %v1197 = vadd.f32 %v938, %v1196
  %1198 = vmatmul.bf16.gmra.mxu0 %v525
  %v1199 = vpop.f32.mrf.mxu0
  %v1200 = vadd.f32 %v941, %v1199
  %v1201 = vpop.f32.mrf.mxu0
  %v1202 = vadd.f32 %v943, %v1201
  %1203 = vmatmul.bf16.gmra.mxu0 %v527
  %v1204 = vpop.f32.mrf.mxu0
  %v1205 = vadd.f32 %v946, %v1204
  %v1206 = vpop.f32.mrf.mxu0
  %v1207 = vadd.f32 %v948, %v1206
  %1208 = vmatmul.bf16.gmra.mxu0 %v529
  %v1209 = vpop.f32.mrf.mxu0
  %v1210 = vadd.f32 %v951, %v1209
  %v1211 = vpop.f32.mrf.mxu0
  %v1212 = vadd.f32 %v953, %v1211
  %1213 = vmatmul.bf16.gmra.mxu0 %v531
  %v1214 = vpop.f32.mrf.mxu0
  %v1215 = vadd.f32 %v956, %v1214
  %v1216 = vpop.f32.mrf.mxu0
  %v1217 = vadd.f32 %v958, %v1216
  %1218 = vmatmul.bf16.gmra.mxu0 %v533
  %v1219 = vpop.f32.mrf.mxu0
  %v1220 = vadd.f32 %v961, %v1219
  %v1221 = vpop.f32.mrf.mxu0
  %v1222 = vadd.f32 %v963, %v1221
  %1223 = vmatmul.bf16.gmra.mxu0 %v535
  %v1224 = vpop.f32.mrf.mxu0
  %v1225 = vadd.f32 %v966, %v1224
  %v1226 = vpop.f32.mrf.mxu0
  %v1227 = vadd.f32 %v968, %v1226
  %1228 = vmatmul.bf16.gmra.mxu0 %v537
  %v1229 = vpop.f32.mrf.mxu0
  %v1230 = vadd.f32 %v971, %v1229
  %v1231 = vpop.f32.mrf.mxu0
  %v1232 = vadd.f32 %v973, %v1231
  %1233 = vmatmul.bf16.gmra.mxu0 %v539
  %v1234 = vpop.f32.mrf.mxu0
  %v1235 = vadd.f32 %v976, %v1234
  %v1236 = vpop.f32.mrf.mxu0
  %v1237 = vadd.f32 %v978, %v1236
  %1238 = vmatmul.bf16.gmra.mxu0 %v541
  %v1239 = vpop.f32.mrf.mxu0
  %v1240 = vadd.f32 %v981, %v1239
  %v1241 = vpop.f32.mrf.mxu0
  %v1242 = vadd.f32 %v983, %v1241
  %1243 = vmatmul.bf16.gmra.mxu0 %v543
  %v1244 = vpop.f32.mrf.mxu0
  %v1245 = vadd.f32 %v986, %v1244
  %v1246 = vpop.f32.mrf.mxu0
  %v1247 = vadd.f32 %v988, %v1246
  %1248 = vmatmul.bf16.gmra.mxu0 %v545
  %v1249 = vpop.f32.mrf.mxu0
  %v1250 = vadd.f32 %v991, %v1249
  %v1251 = vpop.f32.mrf.mxu0
  %v1252 = vadd.f32 %v993, %v1251
  %1253 = vmatmul.bf16.gmra.mxu0 %v547
  %v1254 = vpop.f32.mrf.mxu0
  %v1255 = vadd.f32 %v996, %v1254
  %v1256 = vpop.f32.mrf.mxu0
  %v1257 = vadd.f32 %v998, %v1256
  %1258 = vmatmul.bf16.gmra.mxu0 %v549
  %v1259 = vpop.f32.mrf.mxu0
  %v1260 = vadd.f32 %v1001, %v1259
  %v1261 = vpop.f32.mrf.mxu0
  %v1262 = vadd.f32 %v1003, %v1261
  %1263 = vdwg.mxu0
  %v1264 = vmax.f32 %v1015, 0.0
  %v1265 = vmax.f32 %v1017, 0.0
  %v1266 = vmax.f32 %v1020, 0.0
  %v1267 = vmax.f32 %v1022, 0.0
  %v1268 = vmax.f32 %v1025, 0.0
  %v1269 = vmax.f32 %v1027, 0.0
  %v1270 = vmax.f32 %v1030, 0.0
  %v1271 = vmax.f32 %v1032, 0.0
  %v1272 = vmax.f32 %v1035, 0.0
  %v1273 = vmax.f32 %v1037, 0.0
  %v1274 = vmax.f32 %v1040, 0.0
  %v1275 = vmax.f32 %v1042, 0.0
  %v1276 = vmax.f32 %v1045, 0.0
  %v1277 = vmax.f32 %v1047, 0.0
  %v1278 = vmax.f32 %v1050, 0.0
  %v1279 = vmax.f32 %v1052, 0.0
  %v1280 = vmax.f32 %v1055, 0.0
  %v1281 = vmax.f32 %v1057, 0.0
  %v1282 = vmax.f32 %v1060, 0.0
  %v1283 = vmax.f32 %v1062, 0.0
  %v1284 = vmax.f32 %v1065, 0.0
  %v1285 = vmax.f32 %v1067, 0.0
  %v1286 = vmax.f32 %v1070, 0.0
  %v1287 = vmax.f32 %v1072, 0.0
  %v1288 = vmax.f32 %v1075, 0.0
  %v1289 = vmax.f32 %v1077, 0.0
  %v1290 = vmax.f32 %v1080, 0.0
  %v1291 = vmax.f32 %v1082, 0.0
  %v1292 = vmax.f32 %v1085, 0.0
  %v1293 = vmax.f32 %v1087, 0.0
  %v1294 = vmax.f32 %v1090, 0.0
  %v1295 = vmax.f32 %v1092, 0.0
  %v1296 = vmax.f32 %v1095, 0.0
  %v1297 = vmax.f32 %v1097, 0.0
  %v1298 = vmax.f32 %v1100, 0.0
  %v1299 = vmax.f32 %v1102, 0.0
  %v1300 = vmax.f32 %v1105, 0.0
  %v1301 = vmax.f32 %v1107, 0.0
  %v1302 = vmax.f32 %v1110, 0.0
  %v1303 = vmax.f32 %v1112, 0.0
  %v1304 = vmax.f32 %v1115, 0.0
  %v1305 = vmax.f32 %v1117, 0.0
  %v1306 = vmax.f32 %v1120, 0.0
  %v1307 = vmax.f32 %v1122, 0.0
  %v1308 = vmax.f32 %v1125, 0.0
  %v1309 = vmax.f32 %v1127, 0.0
  %v1310 = vmax.f32 %v1130, 0.0
  %v1311 = vmax.f32 %v1132, 0.0
  %v1312 = vmax.f32 %v1135, 0.0
  %v1313 = vmax.f32 %v1137, 0.0
  %v1314 = vmax.f32 %v1140, 0.0
  %v1315 = vmax.f32 %v1142, 0.0
  %v1316 = vmax.f32 %v1145, 0.0
  %v1317 = vmax.f32 %v1147, 0.0
  %v1318 = vmax.f32 %v1150, 0.0
  %v1319 = vmax.f32 %v1152, 0.0
  %v1320 = vmax.f32 %v1155, 0.0
  %v1321 = vmax.f32 %v1157, 0.0
  %v1322 = vmax.f32 %v1160, 0.0
  %v1323 = vmax.f32 %v1162, 0.0
  %v1324 = vmax.f32 %v1165, 0.0
  %v1325 = vmax.f32 %v1167, 0.0
  %v1326 = vmax.f32 %v1170, 0.0
  %v1327 = vmax.f32 %v1172, 0.0
  %v1328 = vmax.f32 %v1175, 0.0
  %v1329 = vmax.f32 %v1177, 0.0
  %v1330 = vmax.f32 %v1180, 0.0
  %v1331 = vmax.f32 %v1182, 0.0
  %v1332 = vmax.f32 %v1185, 0.0
  %v1333 = vmax.f32 %v1187, 0.0
  %v1334 = vmax.f32 %v1190, 0.0
  %v1335 = vmax.f32 %v1192, 0.0
  %v1336 = vmax.f32 %v1195, 0.0
  %v1337 = vmax.f32 %v1197, 0.0
  %v1338 = vmax.f32 %v1200, 0.0
  %v1339 = vmax.f32 %v1202, 0.0
  %v1340 = vmax.f32 %v1205, 0.0
  %v1341 = vmax.f32 %v1207, 0.0
  %v1342 = vmax.f32 %v1210, 0.0
  %v1343 = vmax.f32 %v1212, 0.0
  %v1344 = vmax.f32 %v1215, 0.0
  %v1345 = vmax.f32 %v1217, 0.0
  %v1346 = vmax.f32 %v1220, 0.0
  %v1347 = vmax.f32 %v1222, 0.0
  %v1348 = vmax.f32 %v1225, 0.0
  %v1349 = vmax.f32 %v1227, 0.0
  %v1350 = vmax.f32 %v1230, 0.0
  %v1351 = vmax.f32 %v1232, 0.0
  %v1352 = vmax.f32 %v1235, 0.0
  %v1353 = vmax.f32 %v1237, 0.0
  %v1354 = vmax.f32 %v1240, 0.0
  %v1355 = vmax.f32 %v1242, 0.0
  %v1356 = vmax.f32 %v1245, 0.0
  %v1357 = vmax.f32 %v1247, 0.0
  %v1358 = vmax.f32 %v1250, 0.0
  %v1359 = vmax.f32 %v1252, 0.0
  %v1360 = vmax.f32 %v1255, 0.0
  %v1361 = vmax.f32 %v1257, 0.0
  %v1362 = vmax.f32 %v1260, 0.0
  %v1363 = vmax.f32 %v1262, 0.0
  %v1364 = vpack.c.bf16 %v1264, %v1264
  %v1365 = vpack.c.bf16 %v1265, %v1265
  %v1366 = vpack.c.bf16 %v1266, %v1266
  %v1367 = vpack.c.bf16 %v1267, %v1267
  %v1368 = vpack.c.bf16 %v1268, %v1268
  %v1369 = vpack.c.bf16 %v1269, %v1269
  %v1370 = vpack.c.bf16 %v1270, %v1270
  %v1371 = vpack.c.bf16 %v1271, %v1271
  %v1372 = vpack.c.bf16 %v1272, %v1272
  %v1373 = vpack.c.bf16 %v1273, %v1273
  %v1374 = vpack.c.bf16 %v1274, %v1274
  %v1375 = vpack.c.bf16 %v1275, %v1275
  %v1376 = vpack.c.bf16 %v1276, %v1276
  %v1377 = vpack.c.bf16 %v1277, %v1277
  %v1378 = vpack.c.bf16 %v1278, %v1278
  %v1379 = vpack.c.bf16 %v1279, %v1279
  %v1380 = vpack.c.bf16 %v1280, %v1280
  %v1381 = vpack.c.bf16 %v1281, %v1281
  %v1382 = vpack.c.bf16 %v1282, %v1282
  %v1383 = vpack.c.bf16 %v1283, %v1283
  %v1384 = vpack.c.bf16 %v1284, %v1284
  %v1385 = vpack.c.bf16 %v1285, %v1285
  %v1386 = vpack.c.bf16 %v1286, %v1286
  %v1387 = vpack.c.bf16 %v1287, %v1287
  %v1388 = vpack.c.bf16 %v1288, %v1288
  %v1389 = vpack.c.bf16 %v1289, %v1289
  %v1390 = vpack.c.bf16 %v1290, %v1290
  %v1391 = vpack.c.bf16 %v1291, %v1291
  %v1392 = vpack.c.bf16 %v1292, %v1292
  %v1393 = vpack.c.bf16 %v1293, %v1293
  %v1394 = vpack.c.bf16 %v1294, %v1294
  %v1395 = vpack.c.bf16 %v1295, %v1295
  %v1396 = vpack.c.bf16 %v1296, %v1296
  %v1397 = vpack.c.bf16 %v1297, %v1297
  %v1398 = vpack.c.bf16 %v1298, %v1298
  %v1399 = vpack.c.bf16 %v1299, %v1299
  %v1400 = vpack.c.bf16 %v1300, %v1300
  %v1401 = vpack.c.bf16 %v1301, %v1301
  %v1402 = vpack.c.bf16 %v1302, %v1302
  %v1403 = vpack.c.bf16 %v1303, %v1303
  %v1404 = vpack.c.bf16 %v1304, %v1304
  %v1405 = vpack.c.bf16 %v1305, %v1305
  %v1406 = vpack.c.bf16 %v1306, %v1306
  %v1407 = vpack.c.bf16 %v1307, %v1307
  %v1408 = vpack.c.bf16 %v1308, %v1308
  %v1409 = vpack.c.bf16 %v1309, %v1309
  %v1410 = vpack.c.bf16 %v1310, %v1310
  %v1411 = vpack.c.bf16 %v1311, %v1311
  %v1412 = vpack.c.bf16 %v1312, %v1312
  %v1413 = vpack.c.bf16 %v1313, %v1313
  %v1414 = vpack.c.bf16 %v1314, %v1314
  %v1415 = vpack.c.bf16 %v1315, %v1315
  %v1416 = vpack.c.bf16 %v1316, %v1316
  %v1417 = vpack.c.bf16 %v1317, %v1317
  %v1418 = vpack.c.bf16 %v1318, %v1318
  %v1419 = vpack.c.bf16 %v1319, %v1319
  %v1420 = vpack.c.bf16 %v1320, %v1320
  %v1421 = vpack.c.bf16 %v1321, %v1321
  %v1422 = vpack.c.bf16 %v1322, %v1322
  %v1423 = vpack.c.bf16 %v1323, %v1323
  %v1424 = vpack.c.bf16 %v1324, %v1324
  %v1425 = vpack.c.bf16 %v1325, %v1325
  %v1426 = vpack.c.bf16 %v1326, %v1326
  %v1427 = vpack.c.bf16 %v1327, %v1327
  %v1428 = vpack.c.bf16 %v1328, %v1328
  %v1429 = vpack.c.bf16 %v1329, %v1329
  %v1430 = vpack.c.bf16 %v1330, %v1330
  %v1431 = vpack.c.bf16 %v1331, %v1331
  %v1432 = vpack.c.bf16 %v1332, %v1332
  %v1433 = vpack.c.bf16 %v1333, %v1333
  %v1434 = vpack.c.bf16 %v1334, %v1334
  %v1435 = vpack.c.bf16 %v1335, %v1335
  %v1436 = vpack.c.bf16 %v1336, %v1336
  %v1437 = vpack.c.bf16 %v1337, %v1337
  %v1438 = vpack.c.bf16 %v1338, %v1338
  %v1439 = vpack.c.bf16 %v1339, %v1339
  %v1440 = vpack.c.bf16 %v1340, %v1340
  %v1441 = vpack.c.bf16 %v1341, %v1341
  %v1442 = vpack.c.bf16 %v1342, %v1342
  %v1443 = vpack.c.bf16 %v1343, %v1343
  %v1444 = vpack.c.bf16 %v1344, %v1344
  %v1445 = vpack.c.bf16 %v1345, %v1345
  %v1446 = vpack.c.bf16 %v1346, %v1346
  %v1447 = vpack.c.bf16 %v1347, %v1347
  %v1448 = vpack.c.bf16 %v1348, %v1348
  %v1449 = vpack.c.bf16 %v1349, %v1349
  %v1450 = vpack.c.bf16 %v1350, %v1350
  %v1451 = vpack.c.bf16 %v1351, %v1351
  %v1452 = vpack.c.bf16 %v1352, %v1352
  %v1453 = vpack.c.bf16 %v1353, %v1353
  %v1454 = vpack.c.bf16 %v1354, %v1354
  %v1455 = vpack.c.bf16 %v1355, %v1355
  %v1456 = vpack.c.bf16 %v1356, %v1356
  %v1457 = vpack.c.bf16 %v1357, %v1357
  %v1458 = vpack.c.bf16 %v1358, %v1358
  %v1459 = vpack.c.bf16 %v1359, %v1359
  %v1460 = vpack.c.bf16 %v1360, %v1360
  %v1461 = vpack.c.bf16 %v1361, %v1361
  %v1462 = vpack.c.bf16 %v1362, %v1362
  %v1463 = vpack.c.bf16 %v1363, %v1363
  %vm1464 = vcmask 519168
  %1465 = vst.msk [vmem:[%s3] sm:$0xf] %vm1464, %v1364
  %1466 = vst.msk [vmem:[%s3 + $0x4] sm:$0xf] %vm1464, %v1365
  %1467 = vst.msk [vmem:[%s3 + $0x8] sm:$0xf] %vm1464, %v1366
  %1468 = vst.msk [vmem:[%s3 + $0xc] sm:$0xf] %vm1464, %v1367
  %1469 = vst.msk [vmem:[%s3 + $0x10] sm:$0xf] %vm1464, %v1368
  %1470 = vst.msk [vmem:[%s3 + $0x14] sm:$0xf] %vm1464, %v1369
  %1471 = vst.msk [vmem:[%s3 + $0x18] sm:$0xf] %vm1464, %v1370
  %1472 = vst.msk [vmem:[%s3 + $0x1c] sm:$0xf] %vm1464, %v1371
  %1473 = vst.msk [vmem:[%s3 + $0x20] sm:$0xf] %vm1464, %v1372
  %1474 = vst.msk [vmem:[%s3 + $0x24] sm:$0xf] %vm1464, %v1373
  %1475 = vst.msk [vmem:[%s3 + $0x28] sm:$0xf] %vm1464, %v1374
  %1476 = vst.msk [vmem:[%s3 + $0x2c] sm:$0xf] %vm1464, %v1375
  %1477 = vst.msk [vmem:[%s3 + $0x30] sm:$0xf] %vm1464, %v1376
  %1478 = vst.msk [vmem:[%s3 + $0x34] sm:$0xf] %vm1464, %v1377
  %1479 = vst.msk [vmem:[%s3 + $0x38] sm:$0xf] %vm1464, %v1378
  %1480 = vst.msk [vmem:[%s3 + $0x3c] sm:$0xf] %vm1464, %v1379
  %1481 = vst.msk [vmem:[%s3 + $0x40] sm:$0xf] %vm1464, %v1380
  %1482 = vst.msk [vmem:[%s3 + $0x44] sm:$0xf] %vm1464, %v1381
  %1483 = vst.msk [vmem:[%s3 + $0x48] sm:$0xf] %vm1464, %v1382
  %1484 = vst.msk [vmem:[%s3 + $0x4c] sm:$0xf] %vm1464, %v1383
  %1485 = vst.msk [vmem:[%s3 + $0x50] sm:$0xf] %vm1464, %v1384
  %1486 = vst.msk [vmem:[%s3 + $0x54] sm:$0xf] %vm1464, %v1385
  %1487 = vst.msk [vmem:[%s3 + $0x58] sm:$0xf] %vm1464, %v1386
  %1488 = vst.msk [vmem:[%s3 + $0x5c] sm:$0xf] %vm1464, %v1387
  %1489 = vst.msk [vmem:[%s3 + $0x60] sm:$0xf] %vm1464, %v1388
  %1490 = vst.msk [vmem:[%s3 + $0x64] sm:$0xf] %vm1464, %v1389
  %1491 = vst.msk [vmem:[%s3 + $0x68] sm:$0xf] %vm1464, %v1390
  %1492 = vst.msk [vmem:[%s3 + $0x6c] sm:$0xf] %vm1464, %v1391
  %1493 = vst.msk [vmem:[%s3 + $0x70] sm:$0xf] %vm1464, %v1392
  %1494 = vst.msk [vmem:[%s3 + $0x74] sm:$0xf] %vm1464, %v1393
  %1495 = vst.msk [vmem:[%s3 + $0x78] sm:$0xf] %vm1464, %v1394
  %1496 = vst.msk [vmem:[%s3 + $0x7c] sm:$0xf] %vm1464, %v1395
  %1497 = vst.msk [vmem:[%s3 + $0x80] sm:$0xf] %vm1464, %v1396
  %1498 = vst.msk [vmem:[%s3 + $0x84] sm:$0xf] %vm1464, %v1397
  %1499 = vst.msk [vmem:[%s3 + $0x88] sm:$0xf] %vm1464, %v1398
  %1500 = vst.msk [vmem:[%s3 + $0x8c] sm:$0xf] %vm1464, %v1399
  %1501 = vst.msk [vmem:[%s3 + $0x90] sm:$0xf] %vm1464, %v1400
  %1502 = vst.msk [vmem:[%s3 + $0x94] sm:$0xf] %vm1464, %v1401
  %1503 = vst.msk [vmem:[%s3 + $0x98] sm:$0xf] %vm1464, %v1402
  %1504 = vst.msk [vmem:[%s3 + $0x9c] sm:$0xf] %vm1464, %v1403
  %1505 = vst.msk [vmem:[%s3 + $0xa0] sm:$0xf] %vm1464, %v1404
  %1506 = vst.msk [vmem:[%s3 + $0xa4] sm:$0xf] %vm1464, %v1405
  %1507 = vst.msk [vmem:[%s3 + $0xa8] sm:$0xf] %vm1464, %v1406
  %1508 = vst.msk [vmem:[%s3 + $0xac] sm:$0xf] %vm1464, %v1407
  %1509 = vst.msk [vmem:[%s3 + $0xb0] sm:$0xf] %vm1464, %v1408
  %1510 = vst.msk [vmem:[%s3 + $0xb4] sm:$0xf] %vm1464, %v1409
  %1511 = vst.msk [vmem:[%s3 + $0xb8] sm:$0xf] %vm1464, %v1410
  %1512 = vst.msk [vmem:[%s3 + $0xbc] sm:$0xf] %vm1464, %v1411
  %1513 = vst.msk [vmem:[%s3 + $0xc0] sm:$0xf] %vm1464, %v1412
  %1514 = vst.msk [vmem:[%s3 + $0xc4] sm:$0xf] %vm1464, %v1413
  %1515 = vst.msk [vmem:[%s3 + $0xc8] sm:$0xf] %vm1464, %v1414
  %1516 = vst.msk [vmem:[%s3 + $0xcc] sm:$0xf] %vm1464, %v1415
  %1517 = vst.msk [vmem:[%s3 + $0xd0] sm:$0xf] %vm1464, %v1416
  %1518 = vst.msk [vmem:[%s3 + $0xd4] sm:$0xf] %vm1464, %v1417
  %1519 = vst.msk [vmem:[%s3 + $0xd8] sm:$0xf] %vm1464, %v1418
  %1520 = vst.msk [vmem:[%s3 + $0xdc] sm:$0xf] %vm1464, %v1419
  %1521 = vst.msk [vmem:[%s3 + $0xe0] sm:$0xf] %vm1464, %v1420
  %1522 = vst.msk [vmem:[%s3 + $0xe4] sm:$0xf] %vm1464, %v1421
  %1523 = vst.msk [vmem:[%s3 + $0xe8] sm:$0xf] %vm1464, %v1422
  %1524 = vst.msk [vmem:[%s3 + $0xec] sm:$0xf] %vm1464, %v1423
  %1525 = vst.msk [vmem:[%s3 + $0xf0] sm:$0xf] %vm1464, %v1424
  %1526 = vst.msk [vmem:[%s3 + $0xf4] sm:$0xf] %vm1464, %v1425
  %1527 = vst.msk [vmem:[%s3 + $0xf8] sm:$0xf] %vm1464, %v1426
  %1528 = vst.msk [vmem:[%s3 + $0xfc] sm:$0xf] %vm1464, %v1427
  %1529 = vst.msk [vmem:[%s3 + $0x100] sm:$0xf] %vm1464, %v1428
  %1530 = vst.msk [vmem:[%s3 + $0x104] sm:$0xf] %vm1464, %v1429
  %1531 = vst.msk [vmem:[%s3 + $0x108] sm:$0xf] %vm1464, %v1430
  %1532 = vst.msk [vmem:[%s3 + $0x10c] sm:$0xf] %vm1464, %v1431
  %1533 = vst.msk [vmem:[%s3 + $0x110] sm:$0xf] %vm1464, %v1432
  %1534 = vst.msk [vmem:[%s3 + $0x114] sm:$0xf] %vm1464, %v1433
  %1535 = vst.msk [vmem:[%s3 + $0x118] sm:$0xf] %vm1464, %v1434
  %1536 = vst.msk [vmem:[%s3 + $0x11c] sm:$0xf] %vm1464, %v1435
  %1537 = vst.msk [vmem:[%s3 + $0x120] sm:$0xf] %vm1464, %v1436
  %1538 = vst.msk [vmem:[%s3 + $0x124] sm:$0xf] %vm1464, %v1437
  %1539 = vst.msk [vmem:[%s3 + $0x128] sm:$0xf] %vm1464, %v1438
  %1540 = vst.msk [vmem:[%s3 + $0x12c] sm:$0xf] %vm1464, %v1439
  %1541 = vst.msk [vmem:[%s3 + $0x130] sm:$0xf] %vm1464, %v1440
  %1542 = vst.msk [vmem:[%s3 + $0x134] sm:$0xf] %vm1464, %v1441
  %1543 = vst.msk [vmem:[%s3 + $0x138] sm:$0xf] %vm1464, %v1442
  %1544 = vst.msk [vmem:[%s3 + $0x13c] sm:$0xf] %vm1464, %v1443
  %1545 = vst.msk [vmem:[%s3 + $0x140] sm:$0xf] %vm1464, %v1444
  %1546 = vst.msk [vmem:[%s3 + $0x144] sm:$0xf] %vm1464, %v1445
  %1547 = vst.msk [vmem:[%s3 + $0x148] sm:$0xf] %vm1464, %v1446
  %1548 = vst.msk [vmem:[%s3 + $0x14c] sm:$0xf] %vm1464, %v1447
  %1549 = vst.msk [vmem:[%s3 + $0x150] sm:$0xf] %vm1464, %v1448
  %1550 = vst.msk [vmem:[%s3 + $0x154] sm:$0xf] %vm1464, %v1449
  %1551 = vst.msk [vmem:[%s3 + $0x158] sm:$0xf] %vm1464, %v1450
  %1552 = vst.msk [vmem:[%s3 + $0x15c] sm:$0xf] %vm1464, %v1451
  %1553 = vst.msk [vmem:[%s3 + $0x160] sm:$0xf] %vm1464, %v1452
  %1554 = vst.msk [vmem:[%s3 + $0x164] sm:$0xf] %vm1464, %v1453
  %1555 = vst.msk [vmem:[%s3 + $0x168] sm:$0xf] %vm1464, %v1454
  %1556 = vst.msk [vmem:[%s3 + $0x16c] sm:$0xf] %vm1464, %v1455
  %1557 = vst.msk [vmem:[%s3 + $0x170] sm:$0xf] %vm1464, %v1456
  %1558 = vst.msk [vmem:[%s3 + $0x174] sm:$0xf] %vm1464, %v1457
  %1559 = vst.msk [vmem:[%s3 + $0x178] sm:$0xf] %vm1464, %v1458
  %1560 = vst.msk [vmem:[%s3 + $0x17c] sm:$0xf] %vm1464, %v1459
  %1561 = vst.msk [vmem:[%s3 + $0x180] sm:$0xf] %vm1464, %v1460
  %1562 = vst.msk [vmem:[%s3 + $0x184] sm:$0xf] %vm1464, %v1461
  %1563 = vst.msk [vmem:[%s3 + $0x188] sm:$0xf] %vm1464, %v1462
  %1564 = vst.msk [vmem:[%s3 + $0x18c] sm:$0xf] %vm1464, %v1463
  // Predicated region
  $region14: #{actor_critic_forward.4} parent=0 // pred_check
    _
  $region15: #{actor_critic_forward.4} parent=0 // pred_check_branch
    %1566 = sbr.rel (0) target = $region17
  $region16: #{actor_critic_forward.4} parent=0 // pred_region
    _
  $region17: #{actor_critic_forward.4} parent=0 // pred_fallthru
    _
  // Predicated region
  $region18: #{actor_critic_forward.4} parent=0 // pred_check
    _
  $region19: #{actor_critic_forward.4} parent=0 // pred_check_branch
    %1568 = sbr.rel (0) target = $region21
  $region20: #{actor_critic_forward.4} parent=0 // pred_region
    _
  $region21: #{actor_critic_forward.4} parent=0 // pred_fallthru
    _

// kernel: actor_critic_forward.5
$region0: #{actor_critic_forward.5}
  #allocation0 [shape = 'u32[]', space=smem, size = 0x4, offset = 0x4, fixed_abs, tag = 'smem constant byte address 0x4 - core index']
  #allocation1 [shape = 'u32[72,128]{1,0:T(1,128)}', space=vmem, size = 0x9000, scoped, tag = 'internal scratch']
  %s0 = inlined_call_operand.vmem [shape: bf16[162,1024], index: 0, kind: input, shape index: {}]
  %s1 = inlined_call_operand.vmem [shape: bf16[1024,128], index: 1, kind: input, shape index: {}]
  %s2 = inlined_call_operand.vmem [shape: f32[1,128], index: 2, kind: input, shape index: {}]
  %s3 = inlined_call_operand.vmem [shape: bf16[162,128], index: 3, kind: output, shape index: {}]
  %s4 = sld [smem:[#allocation0]]
  $region22: #{actor_critic_forward.5} parent=0
    _
  %s6 = ssub.s32 1, %s4
  %s7 = scalar_select 0, %s6, %s4
  // Predicated region
  $region2: #{actor_critic_forward.5} parent=0 // pred_check
    _
  $region3: #{actor_critic_forward.5} parent=0 // pred_check_branch
    %9 = sbr.rel (0) target = $region5
  $region4: #{actor_critic_forward.5} parent=0 // pred_region
    _
  $region5: #{actor_critic_forward.5} parent=0 // pred_fallthru
    _
  // Predicated region
  $region6: #{actor_critic_forward.5} parent=0 // pred_check
    _
  $region7: #{actor_critic_forward.5} parent=0 // pred_check_branch
    %11 = sbr.rel (0) target = $region9
  $region8: #{actor_critic_forward.5} parent=0 // pred_region
    _
  $region9: #{actor_critic_forward.5} parent=0 // pred_fallthru
    _
  // Predicated region
  $region10: #{actor_critic_forward.5} parent=0 // pred_check
    _
  $region11: #{actor_critic_forward.5} parent=0 // pred_check_branch
    %13 = sbr.rel (0) target = $region13
  $region12: #{actor_critic_forward.5} parent=0 // pred_region
    _
  $region13: #{actor_critic_forward.5} parent=0 // pred_fallthru
    _
  %v14 = vld [vmem:[%s0] sm:$0xff]
  %v15 = vld [vmem:[%s0 + $0x8] sm:$0xff]
  %v16 = vld [vmem:[%s0 + $0x10] sm:$0xff]
  %v17 = vld [vmem:[%s0 + $0x18] sm:$0xff]
  %v18 = vld [vmem:[%s0 + $0x20] sm:$0xff]
  %v19 = vld [vmem:[%s0 + $0x28] sm:$0xff]
  %v20 = vld [vmem:[%s0 + $0x30] sm:$0xff]
  %v21 = vld [vmem:[%s0 + $0x38] sm:$0xff]
  %v22 = vld [vmem:[%s0 + $0x40] sm:$0xff]
  %v23 = vld [vmem:[%s0 + $0x48] sm:$0xff]
  %v24 = vld [vmem:[%s0 + $0x50] sm:$0xff]
  %v25 = vld [vmem:[%s0 + $0x58] sm:$0xff]
  %v26 = vld [vmem:[%s0 + $0x60] sm:$0xff]
  %v27 = vld [vmem:[%s0 + $0x68] sm:$0xff]
  %v28 = vld [vmem:[%s0 + $0x70] sm:$0xff]
  %v29 = vld [vmem:[%s0 + $0x78] sm:$0xff]
  %v30 = vld [vmem:[%s0 + $0x80] sm:$0xff]
  %v31 = vld [vmem:[%s0 + $0x88] sm:$0xff]
  %v32 = vld [vmem:[%s0 + $0x90] sm:$0xff]
  %v33 = vld [vmem:[%s0 + $0x98] sm:$0xff]
  %v34 = vld [vmem:[%s0 + $0xa0] sm:$0xff]
  %v35 = vld [vmem:[%s0 + $0xa8] sm:$0xff]
  %v36 = vld [vmem:[%s0 + $0xb0] sm:$0xff]
  %v37 = vld [vmem:[%s0 + $0xb8] sm:$0xff]
  %v38 = vld [vmem:[%s0 + $0xc0] sm:$0xff]
  %v39 = vld [vmem:[%s0 + $0xc8] sm:$0xff]
  %v40 = vld [vmem:[%s0 + $0xd0] sm:$0xff]
  %v41 = vld [vmem:[%s0 + $0xd8] sm:$0xff]
  %v42 = vld [vmem:[%s0 + $0xe0] sm:$0xff]
  %v43 = vld [vmem:[%s0 + $0xe8] sm:$0xff]
  %v44 = vld [vmem:[%s0 + $0xf0] sm:$0xff]
  %v45 = vld [vmem:[%s0 + $0xf8] sm:$0xff]
  %v46 = vld [vmem:[%s0 + $0x100] sm:$0xff]
  %v47 = vld [vmem:[%s0 + $0x108] sm:$0xff]
  %v48 = vld [vmem:[%s0 + $0x110] sm:$0xff]
  %v49 = vld [vmem:[%s0 + $0x118] sm:$0xff]
  %v50 = vld [vmem:[%s0 + $0x120] sm:$0xff]
  %v51 = vld [vmem:[%s0 + $0x128] sm:$0xff]
  %v52 = vld [vmem:[%s0 + $0x130] sm:$0xff]
  %v53 = vld [vmem:[%s0 + $0x138] sm:$0xff]
  %v54 = vld [vmem:[%s0 + $0x140] sm:$0xff]
  %v55 = vld [vmem:[%s0 + $0x148] sm:$0xff]
  %v56 = vld [vmem:[%s0 + $0x150] sm:$0xff]
  %v57 = vld [vmem:[%s0 + $0x158] sm:$0xff]
  %v58 = vld [vmem:[%s0 + $0x160] sm:$0xff]
  %v59 = vld [vmem:[%s0 + $0x168] sm:$0xff]
  %v60 = vld [vmem:[%s0 + $0x170] sm:$0xff]
  %v61 = vld [vmem:[%s0 + $0x178] sm:$0xff]
  %v62 = vld [vmem:[%s0 + $0x180] sm:$0xff]
  %v63 = vld [vmem:[%s0 + $0x188] sm:$0xff]
  %v64 = vld [vmem:[%s0 + $0x190] sm:$0xff]
  %v65 = vld [vmem:[%s0 + $0x198] sm:$0xff]
  %v66 = vld [vmem:[%s0 + $0x1a0] sm:$0xff]
  %v67 = vld [vmem:[%s0 + $0x1a8] sm:$0xff]
  %v68 = vld [vmem:[%s0 + $0x1b0] sm:$0xff]
  %v69 = vld [vmem:[%s0 + $0x1b8] sm:$0xff]
  %v70 = vld [vmem:[%s0 + $0x1c0] sm:$0xff]
  %v71 = vld [vmem:[%s0 + $0x1c8] sm:$0xff]
  %v72 = vld [vmem:[%s0 + $0x1d0] sm:$0xff]
  %v73 = vld [vmem:[%s0 + $0x1d8] sm:$0xff]
  %v74 = vld [vmem:[%s0 + $0x1e0] sm:$0xff]
  %v75 = vld [vmem:[%s0 + $0x1e8] sm:$0xff]
  %v76 = vld [vmem:[%s0 + $0x1f0] sm:$0xff]
  %v77 = vld [vmem:[%s0 + $0x1f8] sm:$0xff]
  %v78 = vld [vmem:[%s0 + $0x200] sm:$0xff]
  %v79 = vld [vmem:[%s0 + $0x208] sm:$0xff]
  %v80 = vld [vmem:[%s0 + $0x210] sm:$0xff]
  %v81 = vld [vmem:[%s0 + $0x218] sm:$0xff]
  %v82 = vld [vmem:[%s0 + $0x220] sm:$0xff]
  %v83 = vld [vmem:[%s0 + $0x228] sm:$0xff]
  %v84 = vld [vmem:[%s0 + $0x230] sm:$0xff]
  %v85 = vld [vmem:[%s0 + $0x238] sm:$0xff]
  %v86 = vld [vmem:[%s0 + $0x240] sm:$0xff]
  %v87 = vld [vmem:[%s0 + $0x248] sm:$0xff]
  %v88 = vld [vmem:[%s0 + $0x250] sm:$0xff]
  %v89 = vld [vmem:[%s0 + $0x258] sm:$0xff]
  %v90 = vld [vmem:[%s0 + $0x260] sm:$0xff]
  %v91 = vld [vmem:[%s0 + $0x268] sm:$0xff]
  %v92 = vld [vmem:[%s0 + $0x270] sm:$0xff]
  %v93 = vld [vmem:[%s0 + $0x278] sm:$0xff]
  %v94 = vld [vmem:[%s0 + $0x280] sm:$0x11]
  %v95 = vld [vmem:[%s0 + $0x288] sm:$0x11]
  %v96 = vld [vmem:[%s0 + $0x290] sm:$0x11]
  %v97 = vld [vmem:[%s0 + $0x298] sm:$0x11]
  %v98 = vld [vmem:[%s1] sm:$0xf]
  %v99 = vld [vmem:[%s1 + $0x4] sm:$0xf]
  %v100 = vld [vmem:[%s1 + $0x8] sm:$0xf]
  %v101 = vld [vmem:[%s1 + $0xc] sm:$0xf]
  %v102 = vld [vmem:[%s1 + $0x10] sm:$0xf]
  %v103 = vld [vmem:[%s1 + $0x14] sm:$0xf]
  %v104 = vld [vmem:[%s1 + $0x18] sm:$0xf]
  %v105 = vld [vmem:[%s1 + $0x1c] sm:$0xf]
  %v106 = vld [vmem:[%s1 + $0x20] sm:$0xf]
  %v107 = vld [vmem:[%s1 + $0x24] sm:$0xf]
  %v108 = vld [vmem:[%s1 + $0x28] sm:$0xf]
  %v109 = vld [vmem:[%s1 + $0x2c] sm:$0xf]
  %v110 = vld [vmem:[%s1 + $0x30] sm:$0xf]
  %v111 = vld [vmem:[%s1 + $0x34] sm:$0xf]
  %v112 = vld [vmem:[%s1 + $0x38] sm:$0xf]
  %v113 = vld [vmem:[%s1 + $0x3c] sm:$0xf]
  %v114 = vld [vmem:[%s1 + $0x40] sm:$0xf]
  %v115 = vld [vmem:[%s1 + $0x44] sm:$0xf]
  %v116 = vld [vmem:[%s1 + $0x48] sm:$0xf]
  %v117 = vld [vmem:[%s1 + $0x4c] sm:$0xf]
  %v118 = vld [vmem:[%s1 + $0x50] sm:$0xf]
  %v119 = vld [vmem:[%s1 + $0x54] sm:$0xf]
  %v120 = vld [vmem:[%s1 + $0x58] sm:$0xf]
  %v121 = vld [vmem:[%s1 + $0x5c] sm:$0xf]
  %v122 = vld [vmem:[%s1 + $0x60] sm:$0xf]
  %v123 = vld [vmem:[%s1 + $0x64] sm:$0xf]
  %v124 = vld [vmem:[%s1 + $0x68] sm:$0xf]
  %v125 = vld [vmem:[%s1 + $0x6c] sm:$0xf]
  %v126 = vld [vmem:[%s1 + $0x70] sm:$0xf]
  %v127 = vld [vmem:[%s1 + $0x74] sm:$0xf]
  %v128 = vld [vmem:[%s1 + $0x78] sm:$0xf]
  %v129 = vld [vmem:[%s1 + $0x7c] sm:$0xf]
  %v130 = vld [vmem:[%s1 + $0x80] sm:$0xf]
  %v131 = vld [vmem:[%s1 + $0x84] sm:$0xf]
  %v132 = vld [vmem:[%s1 + $0x88] sm:$0xf]
  %v133 = vld [vmem:[%s1 + $0x8c] sm:$0xf]
  %v134 = vld [vmem:[%s1 + $0x90] sm:$0xf]
  %v135 = vld [vmem:[%s1 + $0x94] sm:$0xf]
  %v136 = vld [vmem:[%s1 + $0x98] sm:$0xf]
  %v137 = vld [vmem:[%s1 + $0x9c] sm:$0xf]
  %v138 = vld [vmem:[%s1 + $0xa0] sm:$0xf]
  %v139 = vld [vmem:[%s1 + $0xa4] sm:$0xf]
  %v140 = vld [vmem:[%s1 + $0xa8] sm:$0xf]
  %v141 = vld [vmem:[%s1 + $0xac] sm:$0xf]
  %v142 = vld [vmem:[%s1 + $0xb0] sm:$0xf]
  %v143 = vld [vmem:[%s1 + $0xb4] sm:$0xf]
  %v144 = vld [vmem:[%s1 + $0xb8] sm:$0xf]
  %v145 = vld [vmem:[%s1 + $0xbc] sm:$0xf]
  %v146 = vld [vmem:[%s1 + $0xc0] sm:$0xf]
  %v147 = vld [vmem:[%s1 + $0xc4] sm:$0xf]
  %v148 = vld [vmem:[%s1 + $0xc8] sm:$0xf]
  %v149 = vld [vmem:[%s1 + $0xcc] sm:$0xf]
  %v150 = vld [vmem:[%s1 + $0xd0] sm:$0xf]
  %v151 = vld [vmem:[%s1 + $0xd4] sm:$0xf]
  %v152 = vld [vmem:[%s1 + $0xd8] sm:$0xf]
  %v153 = vld [vmem:[%s1 + $0xdc] sm:$0xf]
  %v154 = vld [vmem:[%s1 + $0xe0] sm:$0xf]
  %v155 = vld [vmem:[%s1 + $0xe4] sm:$0xf]
  %v156 = vld [vmem:[%s1 + $0xe8] sm:$0xf]
  %v157 = vld [vmem:[%s1 + $0xec] sm:$0xf]
  %v158 = vld [vmem:[%s1 + $0xf0] sm:$0xf]
  %v159 = vld [vmem:[%s1 + $0xf4] sm:$0xf]
  %v160 = vld [vmem:[%s1 + $0xf8] sm:$0xf]
  %v161 = vld [vmem:[%s1 + $0xfc] sm:$0xf]
  %v162 = vld [vmem:[%s1 + $0x100] sm:$0xf]
  %v163 = vld [vmem:[%s1 + $0x104] sm:$0xf]
  %v164 = vld [vmem:[%s1 + $0x108] sm:$0xf]
  %v165 = vld [vmem:[%s1 + $0x10c] sm:$0xf]
  %v166 = vld [vmem:[%s1 + $0x110] sm:$0xf]
  %v167 = vld [vmem:[%s1 + $0x114] sm:$0xf]
  %v168 = vld [vmem:[%s1 + $0x118] sm:$0xf]
  %v169 = vld [vmem:[%s1 + $0x11c] sm:$0xf]
  %v170 = vld [vmem:[%s1 + $0x120] sm:$0xf]
  %v171 = vld [vmem:[%s1 + $0x124] sm:$0xf]
  %v172 = vld [vmem:[%s1 + $0x128] sm:$0xf]
  %v173 = vld [vmem:[%s1 + $0x12c] sm:$0xf]
  %v174 = vld [vmem:[%s1 + $0x130] sm:$0xf]
  %v175 = vld [vmem:[%s1 + $0x134] sm:$0xf]
  %v176 = vld [vmem:[%s1 + $0x138] sm:$0xf]
  %v177 = vld [vmem:[%s1 + $0x13c] sm:$0xf]
  %v178 = vld [vmem:[%s1 + $0x140] sm:$0xf]
  %v179 = vld [vmem:[%s1 + $0x144] sm:$0xf]
  %v180 = vld [vmem:[%s1 + $0x148] sm:$0xf]
  %v181 = vld [vmem:[%s1 + $0x14c] sm:$0xf]
  %v182 = vld [vmem:[%s1 + $0x150] sm:$0xf]
  %v183 = vld [vmem:[%s1 + $0x154] sm:$0xf]
  %v184 = vld [vmem:[%s1 + $0x158] sm:$0xf]
  %v185 = vld [vmem:[%s1 + $0x15c] sm:$0xf]
  %v186 = vld [vmem:[%s1 + $0x160] sm:$0xf]
  %v187 = vld [vmem:[%s1 + $0x164] sm:$0xf]
  %v188 = vld [vmem:[%s1 + $0x168] sm:$0xf]
  %v189 = vld [vmem:[%s1 + $0x16c] sm:$0xf]
  %v190 = vld [vmem:[%s1 + $0x170] sm:$0xf]
  %v191 = vld [vmem:[%s1 + $0x174] sm:$0xf]
  %v192 = vld [vmem:[%s1 + $0x178] sm:$0xf]
  %v193 = vld [vmem:[%s1 + $0x17c] sm:$0xf]
  %v194 = vld [vmem:[%s1 + $0x180] sm:$0xf]
  %v195 = vld [vmem:[%s1 + $0x184] sm:$0xf]
  %v196 = vld [vmem:[%s1 + $0x188] sm:$0xf]
  %v197 = vld [vmem:[%s1 + $0x18c] sm:$0xf]
  %v198 = vld [vmem:[%s1 + $0x190] sm:$0xf]
  %v199 = vld [vmem:[%s1 + $0x194] sm:$0xf]
  %v200 = vld [vmem:[%s1 + $0x198] sm:$0xf]
  %v201 = vld [vmem:[%s1 + $0x19c] sm:$0xf]
  %v202 = vld [vmem:[%s1 + $0x1a0] sm:$0xf]
  %v203 = vld [vmem:[%s1 + $0x1a4] sm:$0xf]
  %v204 = vld [vmem:[%s1 + $0x1a8] sm:$0xf]
  %v205 = vld [vmem:[%s1 + $0x1ac] sm:$0xf]
  %v206 = vld [vmem:[%s1 + $0x1b0] sm:$0xf]
  %v207 = vld [vmem:[%s1 + $0x1b4] sm:$0xf]
  %v208 = vld [vmem:[%s1 + $0x1b8] sm:$0xf]
  %v209 = vld [vmem:[%s1 + $0x1bc] sm:$0xf]
  %v210 = vld [vmem:[%s1 + $0x1c0] sm:$0xf]
  %v211 = vld [vmem:[%s1 + $0x1c4] sm:$0xf]
  %v212 = vld [vmem:[%s1 + $0x1c8] sm:$0xf]
  %v213 = vld [vmem:[%s1 + $0x1cc] sm:$0xf]
  %v214 = vld [vmem:[%s1 + $0x1d0] sm:$0xf]
  %v215 = vld [vmem:[%s1 + $0x1d4] sm:$0xf]
  %v216 = vld [vmem:[%s1 + $0x1d8] sm:$0xf]
  %v217 = vld [vmem:[%s1 + $0x1dc] sm:$0xf]
  %v218 = vld [vmem:[%s1 + $0x1e0] sm:$0xf]
  %v219 = vld [vmem:[%s1 + $0x1e4] sm:$0xf]
  %v220 = vld [vmem:[%s1 + $0x1e8] sm:$0xf]
  %v221 = vld [vmem:[%s1 + $0x1ec] sm:$0xf]
  %v222 = vld [vmem:[%s1 + $0x1f0] sm:$0xf]
  %v223 = vld [vmem:[%s1 + $0x1f4] sm:$0xf]
  %v224 = vld [vmem:[%s1 + $0x1f8] sm:$0xf]
  %v225 = vld [vmem:[%s1 + $0x1fc] sm:$0xf]
  %v226 = vld [vmem:[%s2] sm:$0x1]
  %v228 = vperm.slane %v226, 0
  %v314 = vunpack.c.l.b16 %v14
  %v315 = vunpack.c.h.b16 %v14
  %v316 = vunpack.c.l.b16 %v15
  %v317 = vunpack.c.h.b16 %v15
  %v318 = vunpack.c.l.b16 %v16
  %v319 = vunpack.c.h.b16 %v16
  %v320 = vunpack.c.l.b16 %v17
  %v321 = vunpack.c.h.b16 %v17
  %v322 = vunpack.c.l.b16 %v18
  %v323 = vunpack.c.h.b16 %v18
  %v324 = vunpack.c.l.b16 %v19
  %v325 = vunpack.c.h.b16 %v19
  %v326 = vunpack.c.l.b16 %v20
  %v327 = vunpack.c.h.b16 %v20
  %v328 = vunpack.c.l.b16 %v21
  %v329 = vunpack.c.h.b16 %v21
  %v330 = vunpack.c.l.b16 %v22
  %v331 = vunpack.c.h.b16 %v22
  %v332 = vunpack.c.l.b16 %v23
  %v333 = vunpack.c.h.b16 %v23
  %v334 = vunpack.c.l.b16 %v24
  %v335 = vunpack.c.h.b16 %v24
  %v336 = vunpack.c.l.b16 %v25
  %v337 = vunpack.c.h.b16 %v25
  %v338 = vunpack.c.l.b16 %v26
  %v339 = vunpack.c.h.b16 %v26
  %v340 = vunpack.c.l.b16 %v27
  %v341 = vunpack.c.h.b16 %v27
  %v342 = vunpack.c.l.b16 %v28
  %v343 = vunpack.c.h.b16 %v28
  %v344 = vunpack.c.l.b16 %v29
  %v345 = vunpack.c.h.b16 %v29
  %v346 = vunpack.c.l.b16 %v30
  %v347 = vunpack.c.h.b16 %v30
  %v348 = vunpack.c.l.b16 %v31
  %v349 = vunpack.c.h.b16 %v31
  %v350 = vunpack.c.l.b16 %v32
  %v351 = vunpack.c.h.b16 %v32
  %v352 = vunpack.c.l.b16 %v33
  %v353 = vunpack.c.h.b16 %v33
  %v354 = vunpack.c.l.b16 %v34
  %v355 = vunpack.c.h.b16 %v34
  %v356 = vunpack.c.l.b16 %v35
  %v357 = vunpack.c.h.b16 %v35
  %v358 = vunpack.c.l.b16 %v36
  %v359 = vunpack.c.h.b16 %v36
  %v360 = vunpack.c.l.b16 %v37
  %v361 = vunpack.c.h.b16 %v37
  %v362 = vunpack.c.l.b16 %v38
  %v363 = vunpack.c.h.b16 %v38
  %v364 = vunpack.c.l.b16 %v39
  %v365 = vunpack.c.h.b16 %v39
  %v366 = vunpack.c.l.b16 %v40
  %v367 = vunpack.c.h.b16 %v40
  %v368 = vunpack.c.l.b16 %v41
  %v369 = vunpack.c.h.b16 %v41
  %v370 = vunpack.c.l.b16 %v42
  %v371 = vunpack.c.h.b16 %v42
  %v372 = vunpack.c.l.b16 %v43
  %v373 = vunpack.c.h.b16 %v43
  %v374 = vunpack.c.l.b16 %v44
  %v375 = vunpack.c.h.b16 %v44
  %v376 = vunpack.c.l.b16 %v45
  %v377 = vunpack.c.h.b16 %v45
  %v378 = vunpack.c.l.b16 %v46
  %v379 = vunpack.c.h.b16 %v46
  %v380 = vunpack.c.l.b16 %v47
  %v381 = vunpack.c.h.b16 %v47
  %v382 = vunpack.c.l.b16 %v48
  %v383 = vunpack.c.h.b16 %v48
  %v384 = vunpack.c.l.b16 %v49
  %v385 = vunpack.c.h.b16 %v49
  %v386 = vunpack.c.l.b16 %v50
  %v387 = vunpack.c.h.b16 %v50
  %v388 = vunpack.c.l.b16 %v51
  %v389 = vunpack.c.h.b16 %v51
  %v390 = vunpack.c.l.b16 %v52
  %v391 = vunpack.c.h.b16 %v52
  %v392 = vunpack.c.l.b16 %v53
  %v393 = vunpack.c.h.b16 %v53
  %v394 = vunpack.c.l.b16 %v54
  %v395 = vunpack.c.h.b16 %v54
  %v396 = vunpack.c.l.b16 %v55
  %v397 = vunpack.c.h.b16 %v55
  %v398 = vunpack.c.l.b16 %v56
  %v399 = vunpack.c.h.b16 %v56
  %v400 = vunpack.c.l.b16 %v57
  %v401 = vunpack.c.h.b16 %v57
  %v402 = vunpack.c.l.b16 %v58
  %v403 = vunpack.c.h.b16 %v58
  %v404 = vunpack.c.l.b16 %v59
  %v405 = vunpack.c.h.b16 %v59
  %v406 = vunpack.c.l.b16 %v60
  %v407 = vunpack.c.h.b16 %v60
  %v408 = vunpack.c.l.b16 %v61
  %v409 = vunpack.c.h.b16 %v61
  %v410 = vunpack.c.l.b16 %v62
  %v411 = vunpack.c.h.b16 %v62
  %v412 = vunpack.c.l.b16 %v63
  %v413 = vunpack.c.h.b16 %v63
  %v414 = vunpack.c.l.b16 %v64
  %v415 = vunpack.c.h.b16 %v64
  %v416 = vunpack.c.l.b16 %v65
  %v417 = vunpack.c.h.b16 %v65
  %v418 = vunpack.c.l.b16 %v66
  %v419 = vunpack.c.h.b16 %v66
  %v420 = vunpack.c.l.b16 %v67
  %v421 = vunpack.c.h.b16 %v67
  %v422 = vunpack.c.l.b16 %v68
  %v423 = vunpack.c.h.b16 %v68
  %v424 = vunpack.c.l.b16 %v69
  %v425 = vunpack.c.h.b16 %v69
  %v426 = vunpack.c.l.b16 %v70
  %v427 = vunpack.c.h.b16 %v70
  %v428 = vunpack.c.l.b16 %v71
  %v429 = vunpack.c.h.b16 %v71
  %v430 = vunpack.c.l.b16 %v72
  %v431 = vunpack.c.h.b16 %v72
  %v432 = vunpack.c.l.b16 %v73
  %v433 = vunpack.c.h.b16 %v73
  %v434 = vunpack.c.l.b16 %v74
  %v435 = vunpack.c.h.b16 %v74
  %v436 = vunpack.c.l.b16 %v75
  %v437 = vunpack.c.h.b16 %v75
  %v438 = vunpack.c.l.b16 %v76
  %v439 = vunpack.c.h.b16 %v76
  %v440 = vunpack.c.l.b16 %v77
  %v441 = vunpack.c.h.b16 %v77
  %v442 = vunpack.c.l.b16 %v78
  %v443 = vunpack.c.h.b16 %v78
  %v444 = vunpack.c.l.b16 %v79
  %v445 = vunpack.c.h.b16 %v79
  %v446 = vunpack.c.l.b16 %v80
  %v447 = vunpack.c.h.b16 %v80
  %v448 = vunpack.c.l.b16 %v81
  %v449 = vunpack.c.h.b16 %v81
  %v450 = vunpack.c.l.b16 %v82
  %v451 = vunpack.c.h.b16 %v82
  %v452 = vunpack.c.l.b16 %v83
  %v453 = vunpack.c.h.b16 %v83
  %v454 = vunpack.c.l.b16 %v84
  %v455 = vunpack.c.h.b16 %v84
  %v456 = vunpack.c.l.b16 %v85
  %v457 = vunpack.c.h.b16 %v85
  %v458 = vunpack.c.l.b16 %v86
  %v459 = vunpack.c.h.b16 %v86
  %v460 = vunpack.c.l.b16 %v87
  %v461 = vunpack.c.h.b16 %v87
  %v462 = vunpack.c.l.b16 %v88
  %v463 = vunpack.c.h.b16 %v88
  %v464 = vunpack.c.l.b16 %v89
  %v465 = vunpack.c.h.b16 %v89
  %v466 = vunpack.c.l.b16 %v90
  %v467 = vunpack.c.h.b16 %v90
  %v468 = vunpack.c.l.b16 %v91
  %v469 = vunpack.c.h.b16 %v91
  %v470 = vunpack.c.l.b16 %v92
  %v471 = vunpack.c.h.b16 %v92
  %v472 = vunpack.c.l.b16 %v93
  %v473 = vunpack.c.h.b16 %v93
  %v474 = vunpack.c.l.b16 %v94
  %v475 = vunpack.c.h.b16 %v94
  %v476 = vunpack.c.l.b16 %v95
  %v477 = vunpack.c.h.b16 %v95
  %v478 = vunpack.c.l.b16 %v96
  %v479 = vunpack.c.h.b16 %v96
  %v480 = vunpack.c.l.b16 %v97
  %v481 = vunpack.c.h.b16 %v97
  %v482 = vpack.c.b16 %v322, %v314
  %v483 = vpack.c.b16 %v323, %v315
  %v484 = vpack.c.b16 %v324, %v316
  %v485 = vpack.c.b16 %v325, %v317
  %v486 = vpack.c.b16 %v326, %v318
  %v487 = vpack.c.b16 %v327, %v319
  %v488 = vpack.c.b16 %v328, %v320
  %v489 = vpack.c.b16 %v329, %v321
  %v490 = vpack.c.b16 %v338, %v330
  %v491 = vpack.c.b16 %v339, %v331
  %v492 = vpack.c.b16 %v340, %v332
  %v493 = vpack.c.b16 %v341, %v333
  %v494 = vpack.c.b16 %v342, %v334
  %v495 = vpack.c.b16 %v343, %v335
  %v496 = vpack.c.b16 %v344, %v336
  %v497 = vpack.c.b16 %v345, %v337
  %v498 = vpack.c.b16 %v354, %v346
  %v499 = vpack.c.b16 %v355, %v347
  %v500 = vpack.c.b16 %v356, %v348
  %v501 = vpack.c.b16 %v357, %v349
  %v502 = vpack.c.b16 %v358, %v350
  %v503 = vpack.c.b16 %v359, %v351
  %v504 = vpack.c.b16 %v360, %v352
  %v505 = vpack.c.b16 %v361, %v353
  %v506 = vpack.c.b16 %v370, %v362
  %v507 = vpack.c.b16 %v371, %v363
  %v508 = vpack.c.b16 %v372, %v364
  %v509 = vpack.c.b16 %v373, %v365
  %v510 = vpack.c.b16 %v374, %v366
  %v511 = vpack.c.b16 %v375, %v367
  %v512 = vpack.c.b16 %v376, %v368
  %v513 = vpack.c.b16 %v377, %v369
  %v514 = vpack.c.b16 %v386, %v378
  %v515 = vpack.c.b16 %v387, %v379
  %v516 = vpack.c.b16 %v388, %v380
  %v517 = vpack.c.b16 %v389, %v381
  %v518 = vpack.c.b16 %v390, %v382
  %v519 = vpack.c.b16 %v391, %v383
  %v520 = vpack.c.b16 %v392, %v384
  %v521 = vpack.c.b16 %v393, %v385
  %v522 = vpack.c.b16 %v402, %v394
  %v523 = vpack.c.b16 %v403, %v395
  %v524 = vpack.c.b16 %v404, %v396
  %v525 = vpack.c.b16 %v405, %v397
  %v526 = vpack.c.b16 %v406, %v398
  %v527 = vpack.c.b16 %v407, %v399
  %v528 = vpack.c.b16 %v408, %v400
  %v529 = vpack.c.b16 %v409, %v401
  %v530 = vpack.c.b16 %v418, %v410
  %v531 = vpack.c.b16 %v419, %v411
  %v532 = vpack.c.b16 %v420, %v412
  %v533 = vpack.c.b16 %v421, %v413
  %v534 = vpack.c.b16 %v422, %v414
  %v535 = vpack.c.b16 %v423, %v415
  %v536 = vpack.c.b16 %v424, %v416
  %v537 = vpack.c.b16 %v425, %v417
  %v538 = vpack.c.b16 %v434, %v426
  %v539 = vpack.c.b16 %v435, %v427
  %v540 = vpack.c.b16 %v436, %v428
  %v541 = vpack.c.b16 %v437, %v429
  %v542 = vpack.c.b16 %v438, %v430
  %v543 = vpack.c.b16 %v439, %v431
  %v544 = vpack.c.b16 %v440, %v432
  %v545 = vpack.c.b16 %v441, %v433
  %v546 = vpack.c.b16 %v450, %v442
  %v547 = vpack.c.b16 %v451, %v443
  %v548 = vpack.c.b16 %v452, %v444
  %v549 = vpack.c.b16 %v453, %v445
  %v550 = vpack.c.b16 %v454, %v446
  %v551 = vpack.c.b16 %v455, %v447
  %v552 = vpack.c.b16 %v456, %v448
  %v553 = vpack.c.b16 %v457, %v449
  %v554 = vpack.c.b16 %v466, %v458
  %v555 = vpack.c.b16 %v467, %v459
  %v556 = vpack.c.b16 %v468, %v460
  %v557 = vpack.c.b16 %v469, %v461
  %v558 = vpack.c.b16 %v470, %v462
  %v559 = vpack.c.b16 %v471, %v463
  %v560 = vpack.c.b16 %v472, %v464
  %v561 = vpack.c.b16 %v473, %v465
  %v562 = vpack.c.b16 %v474, %v474
  %v563 = vpack.c.b16 %v475, %v475
  %v564 = vpack.c.b16 %v476, %v476
  %v565 = vpack.c.b16 %v477, %v477
  %v566 = vpack.c.b16 %v478, %v478
  %v567 = vpack.c.b16 %v479, %v479
  %v568 = vpack.c.b16 %v480, %v480
  %v569 = vpack.c.b16 %v481, %v481
  %v786 = vunpack.c.l.b16 %v98
  %v787 = vunpack.c.l.b16 %v99
  %v788 = vunpack.c.l.b16 %v100
  %v789 = vunpack.c.l.b16 %v101
  %v790 = vunpack.c.l.b16 %v102
  %v791 = vunpack.c.l.b16 %v103
  %v792 = vunpack.c.l.b16 %v104
  %v793 = vunpack.c.l.b16 %v105
  %v794 = vunpack.c.l.b16 %v106
  %v795 = vunpack.c.l.b16 %v107
  %v796 = vunpack.c.l.b16 %v108
  %v797 = vunpack.c.l.b16 %v109
  %v798 = vunpack.c.l.b16 %v110
  %v799 = vunpack.c.l.b16 %v111
  %v800 = vunpack.c.l.b16 %v112
  %v801 = vunpack.c.l.b16 %v113
  %v802 = vunpack.c.l.b16 %v114
  %v803 = vunpack.c.l.b16 %v115
  %v804 = vunpack.c.l.b16 %v116
  %v805 = vunpack.c.l.b16 %v117
  %v806 = vunpack.c.l.b16 %v118
  %v807 = vunpack.c.l.b16 %v119
  %v808 = vunpack.c.l.b16 %v120
  %v809 = vunpack.c.l.b16 %v121
  %v810 = vunpack.c.l.b16 %v122
  %v811 = vunpack.c.l.b16 %v123
  %v812 = vunpack.c.l.b16 %v124
  %v813 = vunpack.c.l.b16 %v125
  %v814 = vunpack.c.l.b16 %v126
  %v815 = vunpack.c.l.b16 %v127
  %v816 = vunpack.c.l.b16 %v128
  %v817 = vunpack.c.l.b16 %v129
  %v818 = vunpack.c.l.b16 %v130
  %v819 = vunpack.c.l.b16 %v131
  %v820 = vunpack.c.l.b16 %v132
  %v821 = vunpack.c.l.b16 %v133
  %v822 = vunpack.c.l.b16 %v134
  %v823 = vunpack.c.l.b16 %v135
  %v824 = vunpack.c.l.b16 %v136
  %v825 = vunpack.c.l.b16 %v137
  %v826 = vunpack.c.l.b16 %v138
  %v827 = vunpack.c.l.b16 %v139
  %v828 = vunpack.c.l.b16 %v140
  %v829 = vunpack.c.l.b16 %v141
  %v830 = vunpack.c.l.b16 %v142
  %v831 = vunpack.c.l.b16 %v143
  %v832 = vunpack.c.l.b16 %v144
  %v833 = vunpack.c.l.b16 %v145
  %v834 = vunpack.c.l.b16 %v146
  %v835 = vunpack.c.l.b16 %v147
  %v836 = vunpack.c.l.b16 %v148
  %v837 = vunpack.c.l.b16 %v149
  %v838 = vunpack.c.l.b16 %v150
  %v839 = vunpack.c.l.b16 %v151
  %v840 = vunpack.c.l.b16 %v152
  %v841 = vunpack.c.l.b16 %v153
  %v842 = vunpack.c.l.b16 %v154
  %v843 = vunpack.c.l.b16 %v155
  %v844 = vunpack.c.l.b16 %v156
  %v845 = vunpack.c.l.b16 %v157
  %v846 = vunpack.c.l.b16 %v158
  %v847 = vunpack.c.l.b16 %v159
  %v848 = vunpack.c.l.b16 %v160
  %v849 = vunpack.c.l.b16 %v161
  %v850 = vunpack.c.l.b16 %v162
  %v851 = vunpack.c.l.b16 %v163
  %v852 = vunpack.c.l.b16 %v164
  %v853 = vunpack.c.l.b16 %v165
  %v854 = vunpack.c.l.b16 %v166
  %v855 = vunpack.c.l.b16 %v167
  %v856 = vunpack.c.l.b16 %v168
  %v857 = vunpack.c.l.b16 %v169
  %v858 = vunpack.c.l.b16 %v170
  %v859 = vunpack.c.l.b16 %v171
  %v860 = vunpack.c.l.b16 %v172
  %v861 = vunpack.c.l.b16 %v173
  %v862 = vunpack.c.l.b16 %v174
  %v863 = vunpack.c.l.b16 %v175
  %v864 = vunpack.c.l.b16 %v176
  %v865 = vunpack.c.l.b16 %v177
  %v866 = vunpack.c.l.b16 %v178
  %v867 = vunpack.c.l.b16 %v179
  %v868 = vunpack.c.l.b16 %v180
  %v869 = vunpack.c.l.b16 %v181
  %v870 = vunpack.c.l.b16 %v182
  %v871 = vunpack.c.l.b16 %v183
  %v872 = vunpack.c.l.b16 %v184
  %v873 = vunpack.c.l.b16 %v185
  %v874 = vunpack.c.l.b16 %v186
  %v875 = vunpack.c.l.b16 %v187
  %v876 = vunpack.c.l.b16 %v188
  %v877 = vunpack.c.l.b16 %v189
  %v878 = vunpack.c.l.b16 %v190
  %v879 = vunpack.c.l.b16 %v191
  %v880 = vunpack.c.l.b16 %v192
  %v881 = vunpack.c.l.b16 %v193
  %v882 = vunpack.c.l.b16 %v194
  %v883 = vunpack.c.l.b16 %v195
  %v884 = vunpack.c.l.b16 %v196
  %v885 = vunpack.c.l.b16 %v197
  %v886 = vunpack.c.l.b16 %v198
  %v887 = vunpack.c.l.b16 %v199
  %v888 = vunpack.c.l.b16 %v200
  %v889 = vunpack.c.l.b16 %v201
  %v890 = vunpack.c.l.b16 %v202
  %v891 = vunpack.c.l.b16 %v203
  %v892 = vunpack.c.l.b16 %v204
  %v893 = vunpack.c.l.b16 %v205
  %v894 = vunpack.c.l.b16 %v206
  %v895 = vunpack.c.l.b16 %v207
  %v896 = vunpack.c.l.b16 %v208
  %v897 = vunpack.c.l.b16 %v209
  %v898 = vunpack.c.l.b16 %v210
  %v899 = vunpack.c.l.b16 %v211
  %v900 = vunpack.c.l.b16 %v212
  %v901 = vunpack.c.l.b16 %v213
  %v902 = vunpack.c.l.b16 %v214
  %v903 = vunpack.c.l.b16 %v215
  %v904 = vunpack.c.l.b16 %v216
  %v905 = vunpack.c.l.b16 %v217
  %v906 = vunpack.c.l.b16 %v218
  %v907 = vunpack.c.l.b16 %v219
  %v908 = vunpack.c.l.b16 %v220
  %v909 = vunpack.c.l.b16 %v221
  %v910 = vunpack.c.l.b16 %v222
  %v911 = vunpack.c.l.b16 %v223
  %v912 = vunpack.c.l.b16 %v224
  %v913 = vunpack.c.l.b16 %v225
  %v914 = vpack.c.b16 %v787, %v786
  %v915 = vpack.c.b16 %v789, %v788
  %v916 = vpack.c.b16 %v791, %v790
  %v917 = vpack.c.b16 %v793, %v792
  %v918 = vpack.c.b16 %v795, %v794
  %v919 = vpack.c.b16 %v797, %v796
  %v920 = vpack.c.b16 %v799, %v798
  %v921 = vpack.c.b16 %v801, %v800
  %v922 = vpack.c.b16 %v803, %v802
  %v923 = vpack.c.b16 %v805, %v804
  %v924 = vpack.c.b16 %v807, %v806
  %v925 = vpack.c.b16 %v809, %v808
  %v926 = vpack.c.b16 %v811, %v810
  %v927 = vpack.c.b16 %v813, %v812
  %v928 = vpack.c.b16 %v815, %v814
  %v929 = vpack.c.b16 %v817, %v816
  %v930 = vpack.c.b16 %v819, %v818
  %v931 = vpack.c.b16 %v821, %v820
  %v932 = vpack.c.b16 %v823, %v822
  %v933 = vpack.c.b16 %v825, %v824
  %v934 = vpack.c.b16 %v827, %v826
  %v935 = vpack.c.b16 %v829, %v828
  %v936 = vpack.c.b16 %v831, %v830
  %v937 = vpack.c.b16 %v833, %v832
  %v938 = vpack.c.b16 %v835, %v834
  %v939 = vpack.c.b16 %v837, %v836
  %v940 = vpack.c.b16 %v839, %v838
  %v941 = vpack.c.b16 %v841, %v840
  %v942 = vpack.c.b16 %v843, %v842
  %v943 = vpack.c.b16 %v845, %v844
  %v944 = vpack.c.b16 %v847, %v846
  %v945 = vpack.c.b16 %v849, %v848
  %v946 = vpack.c.b16 %v851, %v850
  %v947 = vpack.c.b16 %v853, %v852
  %v948 = vpack.c.b16 %v855, %v854
  %v949 = vpack.c.b16 %v857, %v856
  %v950 = vpack.c.b16 %v859, %v858
  %v951 = vpack.c.b16 %v861, %v860
  %v952 = vpack.c.b16 %v863, %v862
  %v953 = vpack.c.b16 %v865, %v864
  %v954 = vpack.c.b16 %v867, %v866
  %v955 = vpack.c.b16 %v869, %v868
  %v956 = vpack.c.b16 %v871, %v870
  %v957 = vpack.c.b16 %v873, %v872
  %v958 = vpack.c.b16 %v875, %v874
  %v959 = vpack.c.b16 %v877, %v876
  %v960 = vpack.c.b16 %v879, %v878
  %v961 = vpack.c.b16 %v881, %v880
  %v962 = vpack.c.b16 %v883, %v882
  %v963 = vpack.c.b16 %v885, %v884
  %v964 = vpack.c.b16 %v887, %v886
  %v965 = vpack.c.b16 %v889, %v888
  %v966 = vpack.c.b16 %v891, %v890
  %v967 = vpack.c.b16 %v893, %v892
  %v968 = vpack.c.b16 %v895, %v894
  %v969 = vpack.c.b16 %v897, %v896
  %v970 = vpack.c.b16 %v899, %v898
  %v971 = vpack.c.b16 %v901, %v900
  %v972 = vpack.c.b16 %v903, %v902
  %v973 = vpack.c.b16 %v905, %v904
  %v974 = vpack.c.b16 %v907, %v906
  %v975 = vpack.c.b16 %v909, %v908
  %v976 = vpack.c.b16 %v911, %v910
  %v977 = vpack.c.b16 %v913, %v912
  %1042 = vmatpush.bf16.msra.mxu0 %v921
  %1043 = vmatpush.bf16.msra.mxu0 %v920
  %1044 = vmatpush.bf16.msra.mxu0 %v919
  %1045 = vmatpush.bf16.msra.mxu0 %v918
  %1046 = vmatpush.bf16.msra.mxu0 %v917
  %1047 = vmatpush.bf16.msra.mxu0 %v916
  %1048 = vmatpush.bf16.msra.mxu0 %v915
  %1049 = vmatpush.bf16.msra.mxu0 %v914
  %1050 = vmatmul.bf16.gmra.mxu0 %v482
  %v1051 = vpop.f32.mrf.mxu0
  %v1052 = vadd.f32 %v228, %v1051
  %v1053 = vpop.f32.mrf.mxu0
  %v1054 = vadd.f32 %v228, %v1053
  %1055 = vmatmul.bf16.gmra.mxu0 %v490
  %v1056 = vpop.f32.mrf.mxu0
  %v1057 = vadd.f32 %v228, %v1056
  %v1058 = vpop.f32.mrf.mxu0
  %v1059 = vadd.f32 %v228, %v1058
  %1060 = vmatmul.bf16.gmra.mxu0 %v498
  %v1061 = vpop.f32.mrf.mxu0
  %v1062 = vadd.f32 %v228, %v1061
  %v1063 = vpop.f32.mrf.mxu0
  %v1064 = vadd.f32 %v228, %v1063
  %1065 = vmatmul.bf16.gmra.mxu0 %v506
  %v1066 = vpop.f32.mrf.mxu0
  %v1067 = vadd.f32 %v228, %v1066
  %v1068 = vpop.f32.mrf.mxu0
  %v1069 = vadd.f32 %v228, %v1068
  %1070 = vmatmul.bf16.gmra.mxu0 %v514
  %v1071 = vpop.f32.mrf.mxu0
  %v1072 = vadd.f32 %v228, %v1071
  %v1073 = vpop.f32.mrf.mxu0
  %v1074 = vadd.f32 %v228, %v1073
  %1075 = vmatmul.bf16.gmra.mxu0 %v522
  %v1076 = vpop.f32.mrf.mxu0
  %v1077 = vadd.f32 %v228, %v1076
  %v1078 = vpop.f32.mrf.mxu0
  %v1079 = vadd.f32 %v228, %v1078
  %1080 = vmatmul.bf16.gmra.mxu0 %v530
  %v1081 = vpop.f32.mrf.mxu0
  %v1082 = vadd.f32 %v228, %v1081
  %v1083 = vpop.f32.mrf.mxu0
  %v1084 = vadd.f32 %v228, %v1083
  %1085 = vmatmul.bf16.gmra.mxu0 %v538
  %v1086 = vpop.f32.mrf.mxu0
  %v1087 = vadd.f32 %v228, %v1086
  %v1088 = vpop.f32.mrf.mxu0
  %v1089 = vadd.f32 %v228, %v1088
  %1090 = vmatmul.bf16.gmra.mxu0 %v546
  %v1091 = vpop.f32.mrf.mxu0
  %v1092 = vadd.f32 %v228, %v1091
  %v1093 = vpop.f32.mrf.mxu0
  %v1094 = vadd.f32 %v228, %v1093
  %1095 = vmatmul.bf16.gmra.mxu0 %v554
  %v1096 = vpop.f32.mrf.mxu0
  %v1097 = vadd.f32 %v228, %v1096
  %v1098 = vpop.f32.mrf.mxu0
  %v1099 = vadd.f32 %v228, %v1098
  %1100 = vmatmul.bf16.gmra.mxu0 %v562
  %v1101 = vpop.f32.mrf.mxu0
  %v1102 = vadd.f32 %v228, %v1101
  %v1103 = vpop.f32.mrf.mxu0
  %1104 = vdwg.mxu0
  %1105 = vmatpush.bf16.msra.mxu0 %v929
  %1106 = vmatpush.bf16.msra.mxu0 %v928
  %1107 = vmatpush.bf16.msra.mxu0 %v927
  %1108 = vmatpush.bf16.msra.mxu0 %v926
  %1109 = vmatpush.bf16.msra.mxu0 %v925
  %1110 = vmatpush.bf16.msra.mxu0 %v924
  %1111 = vmatpush.bf16.msra.mxu0 %v923
  %1112 = vmatpush.bf16.msra.mxu0 %v922
  %1113 = vmatmul.bf16.gmra.mxu0 %v483
  %v1114 = vpop.f32.mrf.mxu0
  %v1115 = vadd.f32 %v1052, %v1114
  %v1116 = vpop.f32.mrf.mxu0
  %v1117 = vadd.f32 %v1054, %v1116
  %1118 = vmatmul.bf16.gmra.mxu0 %v491
  %v1119 = vpop.f32.mrf.mxu0
  %v1120 = vadd.f32 %v1057, %v1119
  %v1121 = vpop.f32.mrf.mxu0
  %v1122 = vadd.f32 %v1059, %v1121
  %1123 = vmatmul.bf16.gmra.mxu0 %v499
  %v1124 = vpop.f32.mrf.mxu0
  %v1125 = vadd.f32 %v1062, %v1124
  %v1126 = vpop.f32.mrf.mxu0
  %v1127 = vadd.f32 %v1064, %v1126
  %1128 = vmatmul.bf16.gmra.mxu0 %v507
  %v1129 = vpop.f32.mrf.mxu0
  %v1130 = vadd.f32 %v1067, %v1129
  %v1131 = vpop.f32.mrf.mxu0
  %v1132 = vadd.f32 %v1069, %v1131
  %1133 = vmatmul.bf16.gmra.mxu0 %v515
  %v1134 = vpop.f32.mrf.mxu0
  %v1135 = vadd.f32 %v1072, %v1134
  %v1136 = vpop.f32.mrf.mxu0
  %v1137 = vadd.f32 %v1074, %v1136
  %1138 = vmatmul.bf16.gmra.mxu0 %v523
  %v1139 = vpop.f32.mrf.mxu0
  %v1140 = vadd.f32 %v1077, %v1139
  %v1141 = vpop.f32.mrf.mxu0
  %v1142 = vadd.f32 %v1079, %v1141
  %1143 = vmatmul.bf16.gmra.mxu0 %v531
  %v1144 = vpop.f32.mrf.mxu0
  %v1145 = vadd.f32 %v1082, %v1144
  %v1146 = vpop.f32.mrf.mxu0
  %v1147 = vadd.f32 %v1084, %v1146
  %1148 = vmatmul.bf16.gmra.mxu0 %v539
  %v1149 = vpop.f32.mrf.mxu0
  %v1150 = vadd.f32 %v1087, %v1149
  %v1151 = vpop.f32.mrf.mxu0
  %v1152 = vadd.f32 %v1089, %v1151
  %1153 = vmatmul.bf16.gmra.mxu0 %v547
  %v1154 = vpop.f32.mrf.mxu0
  %v1155 = vadd.f32 %v1092, %v1154
  %v1156 = vpop.f32.mrf.mxu0
  %v1157 = vadd.f32 %v1094, %v1156
  %1158 = vmatmul.bf16.gmra.mxu0 %v555
  %v1159 = vpop.f32.mrf.mxu0
  %v1160 = vadd.f32 %v1097, %v1159
  %v1161 = vpop.f32.mrf.mxu0
  %v1162 = vadd.f32 %v1099, %v1161
  %1163 = vmatmul.bf16.gmra.mxu0 %v563
  %v1164 = vpop.f32.mrf.mxu0
  %v1165 = vadd.f32 %v1102, %v1164
  %v1166 = vpop.f32.mrf.mxu0
  %1167 = vdwg.mxu0
  %1168 = vmatpush.bf16.msra.mxu0 %v937
  %1169 = vmatpush.bf16.msra.mxu0 %v936
  %1170 = vmatpush.bf16.msra.mxu0 %v935
  %1171 = vmatpush.bf16.msra.mxu0 %v934
  %1172 = vmatpush.bf16.msra.mxu0 %v933
  %1173 = vmatpush.bf16.msra.mxu0 %v932
  %1174 = vmatpush.bf16.msra.mxu0 %v931
  %1175 = vmatpush.bf16.msra.mxu0 %v930
  %1176 = vmatmul.bf16.gmra.mxu0 %v484
  %v1177 = vpop.f32.mrf.mxu0
  %v1178 = vadd.f32 %v1115, %v1177
  %v1179 = vpop.f32.mrf.mxu0
  %v1180 = vadd.f32 %v1117, %v1179
  %1181 = vmatmul.bf16.gmra.mxu0 %v492
  %v1182 = vpop.f32.mrf.mxu0
  %v1183 = vadd.f32 %v1120, %v1182
  %v1184 = vpop.f32.mrf.mxu0
  %v1185 = vadd.f32 %v1122, %v1184
  %1186 = vmatmul.bf16.gmra.mxu0 %v500
  %v1187 = vpop.f32.mrf.mxu0
  %v1188 = vadd.f32 %v1125, %v1187
  %v1189 = vpop.f32.mrf.mxu0
  %v1190 = vadd.f32 %v1127, %v1189
  %1191 = vmatmul.bf16.gmra.mxu0 %v508
  %v1192 = vpop.f32.mrf.mxu0
  %v1193 = vadd.f32 %v1130, %v1192
  %v1194 = vpop.f32.mrf.mxu0
  %v1195 = vadd.f32 %v1132, %v1194
  %1196 = vmatmul.bf16.gmra.mxu0 %v516
  %v1197 = vpop.f32.mrf.mxu0
  %v1198 = vadd.f32 %v1135, %v1197
  %v1199 = vpop.f32.mrf.mxu0
  %v1200 = vadd.f32 %v1137, %v1199
  %1201 = vmatmul.bf16.gmra.mxu0 %v524
  %v1202 = vpop.f32.mrf.mxu0
  %v1203 = vadd.f32 %v1140, %v1202
  %v1204 = vpop.f32.mrf.mxu0
  %v1205 = vadd.f32 %v1142, %v1204
  %1206 = vmatmul.bf16.gmra.mxu0 %v532
  %v1207 = vpop.f32.mrf.mxu0
  %v1208 = vadd.f32 %v1145, %v1207
  %v1209 = vpop.f32.mrf.mxu0
  %v1210 = vadd.f32 %v1147, %v1209
  %1211 = vmatmul.bf16.gmra.mxu0 %v540
  %v1212 = vpop.f32.mrf.mxu0
  %v1213 = vadd.f32 %v1150, %v1212
  %v1214 = vpop.f32.mrf.mxu0
  %v1215 = vadd.f32 %v1152, %v1214
  %1216 = vmatmul.bf16.gmra.mxu0 %v548
  %v1217 = vpop.f32.mrf.mxu0
  %v1218 = vadd.f32 %v1155, %v1217
  %v1219 = vpop.f32.mrf.mxu0
  %v1220 = vadd.f32 %v1157, %v1219
  %1221 = vmatmul.bf16.gmra.mxu0 %v556
  %v1222 = vpop.f32.mrf.mxu0
  %v1223 = vadd.f32 %v1160, %v1222
  %v1224 = vpop.f32.mrf.mxu0
  %v1225 = vadd.f32 %v1162, %v1224
  %1226 = vmatmul.bf16.gmra.mxu0 %v564
  %v1227 = vpop.f32.mrf.mxu0
  %v1228 = vadd.f32 %v1165, %v1227
  %v1229 = vpop.f32.mrf.mxu0
  %1230 = vdwg.mxu0
  %1231 = vmatpush.bf16.msra.mxu0 %v945
  %1232 = vmatpush.bf16.msra.mxu0 %v944
  %1233 = vmatpush.bf16.msra.mxu0 %v943
  %1234 = vmatpush.bf16.msra.mxu0 %v942
  %1235 = vmatpush.bf16.msra.mxu0 %v941
  %1236 = vmatpush.bf16.msra.mxu0 %v940
  %1237 = vmatpush.bf16.msra.mxu0 %v939
  %1238 = vmatpush.bf16.msra.mxu0 %v938
  %1239 = vmatmul.bf16.gmra.mxu0 %v485
  %v1240 = vpop.f32.mrf.mxu0
  %v1241 = vadd.f32 %v1178, %v1240
  %v1242 = vpop.f32.mrf.mxu0
  %v1243 = vadd.f32 %v1180, %v1242
  %1244 = vmatmul.bf16.gmra.mxu0 %v493
  %v1245 = vpop.f32.mrf.mxu0
  %v1246 = vadd.f32 %v1183, %v1245
  %v1247 = vpop.f32.mrf.mxu0
  %v1248 = vadd.f32 %v1185, %v1247
  %1249 = vmatmul.bf16.gmra.mxu0 %v501
  %v1250 = vpop.f32.mrf.mxu0
  %v1251 = vadd.f32 %v1188, %v1250
  %v1252 = vpop.f32.mrf.mxu0
  %v1253 = vadd.f32 %v1190, %v1252
  %1254 = vmatmul.bf16.gmra.mxu0 %v509
  %v1255 = vpop.f32.mrf.mxu0
  %v1256 = vadd.f32 %v1193, %v1255
  %v1257 = vpop.f32.mrf.mxu0
  %v1258 = vadd.f32 %v1195, %v1257
  %1259 = vmatmul.bf16.gmra.mxu0 %v517
  %v1260 = vpop.f32.mrf.mxu0
  %v1261 = vadd.f32 %v1198, %v1260
  %v1262 = vpop.f32.mrf.mxu0
  %v1263 = vadd.f32 %v1200, %v1262
  %1264 = vmatmul.bf16.gmra.mxu0 %v525
  %v1265 = vpop.f32.mrf.mxu0
  %v1266 = vadd.f32 %v1203, %v1265
  %v1267 = vpop.f32.mrf.mxu0
  %v1268 = vadd.f32 %v1205, %v1267
  %1269 = vmatmul.bf16.gmra.mxu0 %v533
  %v1270 = vpop.f32.mrf.mxu0
  %v1271 = vadd.f32 %v1208, %v1270
  %v1272 = vpop.f32.mrf.mxu0
  %v1273 = vadd.f32 %v1210, %v1272
  %1274 = vmatmul.bf16.gmra.mxu0 %v541
  %v1275 = vpop.f32.mrf.mxu0
  %v1276 = vadd.f32 %v1213, %v1275
  %v1277 = vpop.f32.mrf.mxu0
  %v1278 = vadd.f32 %v1215, %v1277
  %1279 = vmatmul.bf16.gmra.mxu0 %v549
  %v1280 = vpop.f32.mrf.mxu0
  %v1281 = vadd.f32 %v1218, %v1280
  %v1282 = vpop.f32.mrf.mxu0
  %v1283 = vadd.f32 %v1220, %v1282
  %1284 = vmatmul.bf16.gmra.mxu0 %v557
  %v1285 = vpop.f32.mrf.mxu0
  %v1286 = vadd.f32 %v1223, %v1285
  %v1287 = vpop.f32.mrf.mxu0
  %v1288 = vadd.f32 %v1225, %v1287
  %1289 = vmatmul.bf16.gmra.mxu0 %v565
  %v1290 = vpop.f32.mrf.mxu0
  %v1291 = vadd.f32 %v1228, %v1290
  %v1292 = vpop.f32.mrf.mxu0
  %1293 = vdwg.mxu0
  %1294 = vmatpush.bf16.msra.mxu0 %v953
  %1295 = vmatpush.bf16.msra.mxu0 %v952
  %1296 = vmatpush.bf16.msra.mxu0 %v951
  %1297 = vmatpush.bf16.msra.mxu0 %v950
  %1298 = vmatpush.bf16.msra.mxu0 %v949
  %1299 = vmatpush.bf16.msra.mxu0 %v948
  %1300 = vmatpush.bf16.msra.mxu0 %v947
  %1301 = vmatpush.bf16.msra.mxu0 %v946
  %1302 = vmatmul.bf16.gmra.mxu0 %v486
  %v1303 = vpop.f32.mrf.mxu0
  %v1304 = vadd.f32 %v1241, %v1303
  %v1305 = vpop.f32.mrf.mxu0
  %v1306 = vadd.f32 %v1243, %v1305
  %1307 = vmatmul.bf16.gmra.mxu0 %v494
  %v1308 = vpop.f32.mrf.mxu0
  %v1309 = vadd.f32 %v1246, %v1308
  %v1310 = vpop.f32.mrf.mxu0
  %v1311 = vadd.f32 %v1248, %v1310
  %1312 = vmatmul.bf16.gmra.mxu0 %v502
  %v1313 = vpop.f32.mrf.mxu0
  %v1314 = vadd.f32 %v1251, %v1313
  %v1315 = vpop.f32.mrf.mxu0
  %v1316 = vadd.f32 %v1253, %v1315
  %1317 = vmatmul.bf16.gmra.mxu0 %v510
  %v1318 = vpop.f32.mrf.mxu0
  %v1319 = vadd.f32 %v1256, %v1318
  %v1320 = vpop.f32.mrf.mxu0
  %v1321 = vadd.f32 %v1258, %v1320
  %1322 = vmatmul.bf16.gmra.mxu0 %v518
  %v1323 = vpop.f32.mrf.mxu0
  %v1324 = vadd.f32 %v1261, %v1323
  %v1325 = vpop.f32.mrf.mxu0
  %v1326 = vadd.f32 %v1263, %v1325
  %1327 = vmatmul.bf16.gmra.mxu0 %v526
  %v1328 = vpop.f32.mrf.mxu0
  %v1329 = vadd.f32 %v1266, %v1328
  %v1330 = vpop.f32.mrf.mxu0
  %v1331 = vadd.f32 %v1268, %v1330
  %1332 = vmatmul.bf16.gmra.mxu0 %v534
  %v1333 = vpop.f32.mrf.mxu0
  %v1334 = vadd.f32 %v1271, %v1333
  %v1335 = vpop.f32.mrf.mxu0
  %v1336 = vadd.f32 %v1273, %v1335
  %1337 = vmatmul.bf16.gmra.mxu0 %v542
  %v1338 = vpop.f32.mrf.mxu0
  %v1339 = vadd.f32 %v1276, %v1338
  %v1340 = vpop.f32.mrf.mxu0
  %v1341 = vadd.f32 %v1278, %v1340
  %1342 = vmatmul.bf16.gmra.mxu0 %v550
  %v1343 = vpop.f32.mrf.mxu0
  %v1344 = vadd.f32 %v1281, %v1343
  %v1345 = vpop.f32.mrf.mxu0
  %v1346 = vadd.f32 %v1283, %v1345
  %1347 = vmatmul.bf16.gmra.mxu0 %v558
  %v1348 = vpop.f32.mrf.mxu0
  %v1349 = vadd.f32 %v1286, %v1348
  %v1350 = vpop.f32.mrf.mxu0
  %v1351 = vadd.f32 %v1288, %v1350
  %1352 = vmatmul.bf16.gmra.mxu0 %v566
  %v1353 = vpop.f32.mrf.mxu0
  %v1354 = vadd.f32 %v1291, %v1353
  %v1355 = vpop.f32.mrf.mxu0
  %1356 = vdwg.mxu0
  %1357 = vmatpush.bf16.msra.mxu0 %v961
  %1358 = vmatpush.bf16.msra.mxu0 %v960
  %1359 = vmatpush.bf16.msra.mxu0 %v959
  %1360 = vmatpush.bf16.msra.mxu0 %v958
  %1361 = vmatpush.bf16.msra.mxu0 %v957
  %1362 = vmatpush.bf16.msra.mxu0 %v956
  %1363 = vmatpush.bf16.msra.mxu0 %v955
  %1364 = vmatpush.bf16.msra.mxu0 %v954
  %1365 = vmatmul.bf16.gmra.mxu0 %v487
  %v1366 = vpop.f32.mrf.mxu0
  %v1367 = vadd.f32 %v1304, %v1366
  %v1368 = vpop.f32.mrf.mxu0
  %v1369 = vadd.f32 %v1306, %v1368
  %1370 = vmatmul.bf16.gmra.mxu0 %v495
  %v1371 = vpop.f32.mrf.mxu0
  %v1372 = vadd.f32 %v1309, %v1371
  %v1373 = vpop.f32.mrf.mxu0
  %v1374 = vadd.f32 %v1311, %v1373
  %1375 = vmatmul.bf16.gmra.mxu0 %v503
  %v1376 = vpop.f32.mrf.mxu0
  %v1377 = vadd.f32 %v1314, %v1376
  %v1378 = vpop.f32.mrf.mxu0
  %v1379 = vadd.f32 %v1316, %v1378
  %1380 = vmatmul.bf16.gmra.mxu0 %v511
  %v1381 = vpop.f32.mrf.mxu0
  %v1382 = vadd.f32 %v1319, %v1381
  %v1383 = vpop.f32.mrf.mxu0
  %v1384 = vadd.f32 %v1321, %v1383
  %1385 = vmatmul.bf16.gmra.mxu0 %v519
  %v1386 = vpop.f32.mrf.mxu0
  %v1387 = vadd.f32 %v1324, %v1386
  %v1388 = vpop.f32.mrf.mxu0
  %v1389 = vadd.f32 %v1326, %v1388
  %1390 = vmatmul.bf16.gmra.mxu0 %v527
  %v1391 = vpop.f32.mrf.mxu0
  %v1392 = vadd.f32 %v1329, %v1391
  %v1393 = vpop.f32.mrf.mxu0
  %v1394 = vadd.f32 %v1331, %v1393
  %1395 = vmatmul.bf16.gmra.mxu0 %v535
  %v1396 = vpop.f32.mrf.mxu0
  %v1397 = vadd.f32 %v1334, %v1396
  %v1398 = vpop.f32.mrf.mxu0
  %v1399 = vadd.f32 %v1336, %v1398
  %1400 = vmatmul.bf16.gmra.mxu0 %v543
  %v1401 = vpop.f32.mrf.mxu0
  %v1402 = vadd.f32 %v1339, %v1401
  %v1403 = vpop.f32.mrf.mxu0
  %v1404 = vadd.f32 %v1341, %v1403
  %1405 = vmatmul.bf16.gmra.mxu0 %v551
  %v1406 = vpop.f32.mrf.mxu0
  %v1407 = vadd.f32 %v1344, %v1406
  %v1408 = vpop.f32.mrf.mxu0
  %v1409 = vadd.f32 %v1346, %v1408
  %1410 = vmatmul.bf16.gmra.mxu0 %v559
  %v1411 = vpop.f32.mrf.mxu0
  %v1412 = vadd.f32 %v1349, %v1411
  %v1413 = vpop.f32.mrf.mxu0
  %v1414 = vadd.f32 %v1351, %v1413
  %1415 = vmatmul.bf16.gmra.mxu0 %v567
  %v1416 = vpop.f32.mrf.mxu0
  %v1417 = vadd.f32 %v1354, %v1416
  %v1418 = vpop.f32.mrf.mxu0
  %1419 = vdwg.mxu0
  %1420 = vmatpush.bf16.msra.mxu0 %v969
  %1421 = vmatpush.bf16.msra.mxu0 %v968
  %1422 = vmatpush.bf16.msra.mxu0 %v967
  %1423 = vmatpush.bf16.msra.mxu0 %v966
  %1424 = vmatpush.bf16.msra.mxu0 %v965
  %1425 = vmatpush.bf16.msra.mxu0 %v964
  %1426 = vmatpush.bf16.msra.mxu0 %v963
  %1427 = vmatpush.bf16.msra.mxu0 %v962
  %1428 = vmatmul.bf16.gmra.mxu0 %v488
  %v1429 = vpop.f32.mrf.mxu0
  %v1430 = vadd.f32 %v1367, %v1429
  %v1431 = vpop.f32.mrf.mxu0
  %v1432 = vadd.f32 %v1369, %v1431
  %1433 = vmatmul.bf16.gmra.mxu0 %v496
  %v1434 = vpop.f32.mrf.mxu0
  %v1435 = vadd.f32 %v1372, %v1434
  %v1436 = vpop.f32.mrf.mxu0
  %v1437 = vadd.f32 %v1374, %v1436
  %1438 = vmatmul.bf16.gmra.mxu0 %v504
  %v1439 = vpop.f32.mrf.mxu0
  %v1440 = vadd.f32 %v1377, %v1439
  %v1441 = vpop.f32.mrf.mxu0
  %v1442 = vadd.f32 %v1379, %v1441
  %1443 = vmatmul.bf16.gmra.mxu0 %v512
  %v1444 = vpop.f32.mrf.mxu0
  %v1445 = vadd.f32 %v1382, %v1444
  %v1446 = vpop.f32.mrf.mxu0
  %v1447 = vadd.f32 %v1384, %v1446
  %1448 = vmatmul.bf16.gmra.mxu0 %v520
  %v1449 = vpop.f32.mrf.mxu0
  %v1450 = vadd.f32 %v1387, %v1449
  %v1451 = vpop.f32.mrf.mxu0
  %v1452 = vadd.f32 %v1389, %v1451
  %1453 = vmatmul.bf16.gmra.mxu0 %v528
  %v1454 = vpop.f32.mrf.mxu0
  %v1455 = vadd.f32 %v1392, %v1454
  %v1456 = vpop.f32.mrf.mxu0
  %v1457 = vadd.f32 %v1394, %v1456
  %1458 = vmatmul.bf16.gmra.mxu0 %v536
  %v1459 = vpop.f32.mrf.mxu0
  %v1460 = vadd.f32 %v1397, %v1459
  %v1461 = vpop.f32.mrf.mxu0
  %v1462 = vadd.f32 %v1399, %v1461
  %1463 = vmatmul.bf16.gmra.mxu0 %v544
  %v1464 = vpop.f32.mrf.mxu0
  %v1465 = vadd.f32 %v1402, %v1464
  %v1466 = vpop.f32.mrf.mxu0
  %v1467 = vadd.f32 %v1404, %v1466
  %1468 = vmatmul.bf16.gmra.mxu0 %v552
  %v1469 = vpop.f32.mrf.mxu0
  %v1470 = vadd.f32 %v1407, %v1469
  %v1471 = vpop.f32.mrf.mxu0
  %v1472 = vadd.f32 %v1409, %v1471
  %1473 = vmatmul.bf16.gmra.mxu0 %v560
  %v1474 = vpop.f32.mrf.mxu0
  %v1475 = vadd.f32 %v1412, %v1474
  %v1476 = vpop.f32.mrf.mxu0
  %v1477 = vadd.f32 %v1414, %v1476
  %1478 = vmatmul.bf16.gmra.mxu0 %v568
  %v1479 = vpop.f32.mrf.mxu0
  %v1480 = vadd.f32 %v1417, %v1479
  %v1481 = vpop.f32.mrf.mxu0
  %1482 = vdwg.mxu0
  %1483 = vmatpush.bf16.msra.mxu0 %v977
  %1484 = vmatpush.bf16.msra.mxu0 %v976
  %1485 = vmatpush.bf16.msra.mxu0 %v975
  %1486 = vmatpush.bf16.msra.mxu0 %v974
  %1487 = vmatpush.bf16.msra.mxu0 %v973
  %1488 = vmatpush.bf16.msra.mxu0 %v972
  %1489 = vmatpush.bf16.msra.mxu0 %v971
  %1490 = vmatpush.bf16.msra.mxu0 %v970
  %1491 = vmatmul.bf16.gmra.mxu0 %v489
  %v1492 = vpop.f32.mrf.mxu0
  %v1493 = vadd.f32 %v1430, %v1492
  %v1494 = vpop.f32.mrf.mxu0
  %v1495 = vadd.f32 %v1432, %v1494
  %1496 = vmatmul.bf16.gmra.mxu0 %v497
  %v1497 = vpop.f32.mrf.mxu0
  %v1498 = vadd.f32 %v1435, %v1497
  %v1499 = vpop.f32.mrf.mxu0
  %v1500 = vadd.f32 %v1437, %v1499
  %1501 = vmatmul.bf16.gmra.mxu0 %v505
  %v1502 = vpop.f32.mrf.mxu0
  %v1503 = vadd.f32 %v1440, %v1502
  %v1504 = vpop.f32.mrf.mxu0
  %v1505 = vadd.f32 %v1442, %v1504
  %1506 = vmatmul.bf16.gmra.mxu0 %v513
  %v1507 = vpop.f32.mrf.mxu0
  %v1508 = vadd.f32 %v1445, %v1507
  %v1509 = vpop.f32.mrf.mxu0
  %v1510 = vadd.f32 %v1447, %v1509
  %1511 = vmatmul.bf16.gmra.mxu0 %v521
  %v1512 = vpop.f32.mrf.mxu0
  %v1513 = vadd.f32 %v1450, %v1512
  %v1514 = vpop.f32.mrf.mxu0
  %v1515 = vadd.f32 %v1452, %v1514
  %1516 = vmatmul.bf16.gmra.mxu0 %v529
  %v1517 = vpop.f32.mrf.mxu0
  %v1518 = vadd.f32 %v1455, %v1517
  %v1519 = vpop.f32.mrf.mxu0
  %v1520 = vadd.f32 %v1457, %v1519
  %1521 = vmatmul.bf16.gmra.mxu0 %v537
  %v1522 = vpop.f32.mrf.mxu0
  %v1523 = vadd.f32 %v1460, %v1522
  %v1524 = vpop.f32.mrf.mxu0
  %v1525 = vadd.f32 %v1462, %v1524
  %1526 = vmatmul.bf16.gmra.mxu0 %v545
  %v1527 = vpop.f32.mrf.mxu0
  %v1528 = vadd.f32 %v1465, %v1527
  %v1529 = vpop.f32.mrf.mxu0
  %v1530 = vadd.f32 %v1467, %v1529
  %1531 = vmatmul.bf16.gmra.mxu0 %v553
  %v1532 = vpop.f32.mrf.mxu0
  %v1533 = vadd.f32 %v1470, %v1532
  %v1534 = vpop.f32.mrf.mxu0
  %v1535 = vadd.f32 %v1472, %v1534
  %1536 = vmatmul.bf16.gmra.mxu0 %v561
  %v1537 = vpop.f32.mrf.mxu0
  %v1538 = vadd.f32 %v1475, %v1537
  %v1539 = vpop.f32.mrf.mxu0
  %v1540 = vadd.f32 %v1477, %v1539
  %1541 = vmatmul.bf16.gmra.mxu0 %v569
  %v1542 = vpop.f32.mrf.mxu0
  %v1543 = vadd.f32 %v1480, %v1542
  %v1544 = vpop.f32.mrf.mxu0
  %1545 = vdwg.mxu0
  %v1546 = vmax.f32 %v1493, 0.0
  %v1547 = vmax.f32 %v1495, 0.0
  %v1548 = vmax.f32 %v1498, 0.0
  %v1549 = vmax.f32 %v1500, 0.0
  %v1550 = vmax.f32 %v1503, 0.0
  %v1551 = vmax.f32 %v1505, 0.0
  %v1552 = vmax.f32 %v1508, 0.0
  %v1553 = vmax.f32 %v1510, 0.0
  %v1554 = vmax.f32 %v1513, 0.0
  %v1555 = vmax.f32 %v1515, 0.0
  %v1556 = vmax.f32 %v1518, 0.0
  %v1557 = vmax.f32 %v1520, 0.0
  %v1558 = vmax.f32 %v1523, 0.0
  %v1559 = vmax.f32 %v1525, 0.0
  %v1560 = vmax.f32 %v1528, 0.0
  %v1561 = vmax.f32 %v1530, 0.0
  %v1562 = vmax.f32 %v1533, 0.0
  %v1563 = vmax.f32 %v1535, 0.0
  %v1564 = vmax.f32 %v1538, 0.0
  %v1565 = vmax.f32 %v1540, 0.0
  %v1566 = vmax.f32 %v1543, 0.0
  %v1567 = vpack.c.bf16 %v1546, %v1546
  %v1568 = vpack.c.bf16 %v1547, %v1547
  %v1569 = vpack.c.bf16 %v1548, %v1548
  %v1570 = vpack.c.bf16 %v1549, %v1549
  %v1571 = vpack.c.bf16 %v1550, %v1550
  %v1572 = vpack.c.bf16 %v1551, %v1551
  %v1573 = vpack.c.bf16 %v1552, %v1552
  %v1574 = vpack.c.bf16 %v1553, %v1553
  %v1575 = vpack.c.bf16 %v1554, %v1554
  %v1576 = vpack.c.bf16 %v1555, %v1555
  %v1577 = vpack.c.bf16 %v1556, %v1556
  %v1578 = vpack.c.bf16 %v1557, %v1557
  %v1579 = vpack.c.bf16 %v1558, %v1558
  %v1580 = vpack.c.bf16 %v1559, %v1559
  %v1581 = vpack.c.bf16 %v1560, %v1560
  %v1582 = vpack.c.bf16 %v1561, %v1561
  %v1583 = vpack.c.bf16 %v1562, %v1562
  %v1584 = vpack.c.bf16 %v1563, %v1563
  %v1585 = vpack.c.bf16 %v1564, %v1564
  %v1586 = vpack.c.bf16 %v1565, %v1565
  %v1587 = vpack.c.bf16 %v1566, %v1566
  %1588 = vst [vmem:[%s3] sm:$0xf] %v1567
  %1589 = vst [vmem:[%s3 + $0x4] sm:$0xf] %v1568
  %1590 = vst [vmem:[%s3 + $0x8] sm:$0xf] %v1569
  %1591 = vst [vmem:[%s3 + $0xc] sm:$0xf] %v1570
  %1592 = vst [vmem:[%s3 + $0x10] sm:$0xf] %v1571
  %1593 = vst [vmem:[%s3 + $0x14] sm:$0xf] %v1572
  %1594 = vst [vmem:[%s3 + $0x18] sm:$0xf] %v1573
  %1595 = vst [vmem:[%s3 + $0x1c] sm:$0xf] %v1574
  %1596 = vst [vmem:[%s3 + $0x20] sm:$0xf] %v1575
  %1597 = vst [vmem:[%s3 + $0x24] sm:$0xf] %v1576
  %1598 = vst [vmem:[%s3 + $0x28] sm:$0xf] %v1577
  %1599 = vst [vmem:[%s3 + $0x2c] sm:$0xf] %v1578
  %1600 = vst [vmem:[%s3 + $0x30] sm:$0xf] %v1579
  %1601 = vst [vmem:[%s3 + $0x34] sm:$0xf] %v1580
  %1602 = vst [vmem:[%s3 + $0x38] sm:$0xf] %v1581
  %1603 = vst [vmem:[%s3 + $0x3c] sm:$0xf] %v1582
  %1604 = vst [vmem:[%s3 + $0x40] sm:$0xf] %v1583
  %1605 = vst [vmem:[%s3 + $0x44] sm:$0xf] %v1584
  %1606 = vst [vmem:[%s3 + $0x48] sm:$0xf] %v1585
  %1607 = vst [vmem:[%s3 + $0x4c] sm:$0xf] %v1586
  %1608 = vst [vmem:[%s3 + $0x50] sm:$0x1] %v1587
  // Predicated region
  $region14: #{actor_critic_forward.5} parent=0 // pred_check
    _
  $region15: #{actor_critic_forward.5} parent=0 // pred_check_branch
    %1610 = sbr.rel (0) target = $region17
  $region16: #{actor_critic_forward.5} parent=0 // pred_region
    _
  $region17: #{actor_critic_forward.5} parent=0 // pred_fallthru
    _
  // Predicated region
  $region18: #{actor_critic_forward.5} parent=0 // pred_check
    _
  $region19: #{actor_critic_forward.5} parent=0 // pred_check_branch
    %1612 = sbr.rel (0) target = $region21
  $region20: #{actor_critic_forward.5} parent=0 // pred_region
    _
  $region21: #{actor_critic_forward.5} parent=0 // pred_fallthru
    _

// kernel: actor_critic_forward.6
$region0: #{actor_critic_forward.6}
  #allocation0 [shape = 'u32[]', space=smem, size = 0x4, offset = 0x4, fixed_abs, tag = 'smem constant byte address 0x4 - core index']
  #allocation1 [shape = 'u32[72,128]{1,0:T(1,128)}', space=vmem, size = 0x9000, scoped, tag = 'internal scratch']
  %s0 = inlined_call_operand.vmem [shape: bf16[98,1152], index: 0, kind: input, shape index: {}]
  %s1 = inlined_call_operand.vmem [shape: bf16[1152,128], index: 1, kind: input, shape index: {}]
  %s2 = inlined_call_operand.vmem [shape: f32[1,128], index: 2, kind: input, shape index: {}]
  %s3 = inlined_call_operand.vmem [shape: bf16[98,128], index: 3, kind: output, shape index: {}]
  %s4 = sld [smem:[#allocation0]]
  $region22: #{actor_critic_forward.6} parent=0
    _
  %s6 = ssub.s32 1, %s4
  %s7 = scalar_select 0, %s6, %s4
  // Predicated region
  $region2: #{actor_critic_forward.6} parent=0 // pred_check
    _
  $region3: #{actor_critic_forward.6} parent=0 // pred_check_branch
    %9 = sbr.rel (0) target = $region5
  $region4: #{actor_critic_forward.6} parent=0 // pred_region
    _
  $region5: #{actor_critic_forward.6} parent=0 // pred_fallthru
    _
  // Predicated region
  $region6: #{actor_critic_forward.6} parent=0 // pred_check
    _
  $region7: #{actor_critic_forward.6} parent=0 // pred_check_branch
    %11 = sbr.rel (0) target = $region9
  $region8: #{actor_critic_forward.6} parent=0 // pred_region
    _
  $region9: #{actor_critic_forward.6} parent=0 // pred_fallthru
    _
  // Predicated region
  $region10: #{actor_critic_forward.6} parent=0 // pred_check
    _
  $region11: #{actor_critic_forward.6} parent=0 // pred_check_branch
    %13 = sbr.rel (0) target = $region13
  $region12: #{actor_critic_forward.6} parent=0 // pred_region
    _
  $region13: #{actor_critic_forward.6} parent=0 // pred_fallthru
    _
  %v14 = vld [vmem:[%s0] sm:$0xff]
  %v15 = vld [vmem:[%s0 + $0x8] sm:$0xff]
  %v16 = vld [vmem:[%s0 + $0x10] sm:$0xff]
  %v17 = vld [vmem:[%s0 + $0x18] sm:$0xff]
  %v18 = vld [vmem:[%s0 + $0x20] sm:$0xf]
  %v19 = vld [vmem:[%s0 + $0x24] sm:$0xff]
  %v20 = vld [vmem:[%s0 + $0x2c] sm:$0xff]
  %v21 = vld [vmem:[%s0 + $0x34] sm:$0xff]
  %v22 = vld [vmem:[%s0 + $0x3c] sm:$0xff]
  %v23 = vld [vmem:[%s0 + $0x44] sm:$0xf]
  %v24 = vld [vmem:[%s0 + $0x48] sm:$0xff]
  %v25 = vld [vmem:[%s0 + $0x50] sm:$0xff]
  %v26 = vld [vmem:[%s0 + $0x58] sm:$0xff]
  %v27 = vld [vmem:[%s0 + $0x60] sm:$0xff]
  %v28 = vld [vmem:[%s0 + $0x68] sm:$0xf]
  %v29 = vld [vmem:[%s0 + $0x6c] sm:$0xff]
  %v30 = vld [vmem:[%s0 + $0x74] sm:$0xff]
  %v31 = vld [vmem:[%s0 + $0x7c] sm:$0xff]
  %v32 = vld [vmem:[%s0 + $0x84] sm:$0xff]
  %v33 = vld [vmem:[%s0 + $0x8c] sm:$0xf]
  %v34 = vld [vmem:[%s0 + $0x90] sm:$0xff]
  %v35 = vld [vmem:[%s0 + $0x98] sm:$0xff]
  %v36 = vld [vmem:[%s0 + $0xa0] sm:$0xff]
  %v37 = vld [vmem:[%s0 + $0xa8] sm:$0xff]
  %v38 = vld [vmem:[%s0 + $0xb0] sm:$0xf]
  %v39 = vld [vmem:[%s0 + $0xb4] sm:$0xff]
  %v40 = vld [vmem:[%s0 + $0xbc] sm:$0xff]
  %v41 = vld [vmem:[%s0 + $0xc4] sm:$0xff]
  %v42 = vld [vmem:[%s0 + $0xcc] sm:$0xff]
  %v43 = vld [vmem:[%s0 + $0xd4] sm:$0xf]
  %v44 = vld [vmem:[%s0 + $0xd8] sm:$0xff]
  %v45 = vld [vmem:[%s0 + $0xe0] sm:$0xff]
  %v46 = vld [vmem:[%s0 + $0xe8] sm:$0xff]
  %v47 = vld [vmem:[%s0 + $0xf0] sm:$0xff]
  %v48 = vld [vmem:[%s0 + $0xf8] sm:$0xf]
  %v49 = vld [vmem:[%s0 + $0xfc] sm:$0xff]
  %v50 = vld [vmem:[%s0 + $0x104] sm:$0xff]
  %v51 = vld [vmem:[%s0 + $0x10c] sm:$0xff]
  %v52 = vld [vmem:[%s0 + $0x114] sm:$0xff]
  %v53 = vld [vmem:[%s0 + $0x11c] sm:$0xf]
  %v54 = vld [vmem:[%s0 + $0x120] sm:$0xff]
  %v55 = vld [vmem:[%s0 + $0x128] sm:$0xff]
  %v56 = vld [vmem:[%s0 + $0x130] sm:$0xff]
  %v57 = vld [vmem:[%s0 + $0x138] sm:$0xff]
  %v58 = vld [vmem:[%s0 + $0x140] sm:$0xf]
  %v59 = vld [vmem:[%s0 + $0x144] sm:$0xff]
  %v60 = vld [vmem:[%s0 + $0x14c] sm:$0xff]
  %v61 = vld [vmem:[%s0 + $0x154] sm:$0xff]
  %v62 = vld [vmem:[%s0 + $0x15c] sm:$0xff]
  %v63 = vld [vmem:[%s0 + $0x164] sm:$0xf]
  %v64 = vld [vmem:[%s0 + $0x168] sm:$0xff]
  %v65 = vld [vmem:[%s0 + $0x170] sm:$0xff]
  %v66 = vld [vmem:[%s0 + $0x178] sm:$0xff]
  %v67 = vld [vmem:[%s0 + $0x180] sm:$0xff]
  %v68 = vld [vmem:[%s0 + $0x188] sm:$0xf]
  %v69 = vld [vmem:[%s0 + $0x18c] sm:$0xff]
  %v70 = vld [vmem:[%s0 + $0x194] sm:$0xff]
  %v71 = vld [vmem:[%s0 + $0x19c] sm:$0xff]
  %v72 = vld [vmem:[%s0 + $0x1a4] sm:$0xff]
  %v73 = vld [vmem:[%s0 + $0x1ac] sm:$0xf]
  %v74 = vld [vmem:[%s0 + $0x1b0] sm:$0x11]
  %v75 = vld [vmem:[%s0 + $0x1b8] sm:$0x11]
  %v76 = vld [vmem:[%s0 + $0x1c0] sm:$0x11]
  %v77 = vld [vmem:[%s0 + $0x1c8] sm:$0x11]
  %v78 = vld [vmem:[%s0 + $0x1d0] sm:$0x1]
  %v79 = vld [vmem:[%s1] sm:$0xf]
  %v80 = vld [vmem:[%s1 + $0x4] sm:$0xf]
  %v81 = vld [vmem:[%s1 + $0x8] sm:$0xf]
  %v82 = vld [vmem:[%s1 + $0xc] sm:$0xf]
  %v83 = vld [vmem:[%s1 + $0x10] sm:$0xf]
  %v84 = vld [vmem:[%s1 + $0x14] sm:$0xf]
  %v85 = vld [vmem:[%s1 + $0x18] sm:$0xf]
  %v86 = vld [vmem:[%s1 + $0x1c] sm:$0xf]
  %v87 = vld [vmem:[%s1 + $0x20] sm:$0xf]
  %v88 = vld [vmem:[%s1 + $0x24] sm:$0xf]
  %v89 = vld [vmem:[%s1 + $0x28] sm:$0xf]
  %v90 = vld [vmem:[%s1 + $0x2c] sm:$0xf]
  %v91 = vld [vmem:[%s1 + $0x30] sm:$0xf]
  %v92 = vld [vmem:[%s1 + $0x34] sm:$0xf]
  %v93 = vld [vmem:[%s1 + $0x38] sm:$0xf]
  %v94 = vld [vmem:[%s1 + $0x3c] sm:$0xf]
  %v95 = vld [vmem:[%s1 + $0x40] sm:$0xf]
  %v96 = vld [vmem:[%s1 + $0x44] sm:$0xf]
  %v97 = vld [vmem:[%s1 + $0x48] sm:$0xf]
  %v98 = vld [vmem:[%s1 + $0x4c] sm:$0xf]
  %v99 = vld [vmem:[%s1 + $0x50] sm:$0xf]
  %v100 = vld [vmem:[%s1 + $0x54] sm:$0xf]
  %v101 = vld [vmem:[%s1 + $0x58] sm:$0xf]
  %v102 = vld [vmem:[%s1 + $0x5c] sm:$0xf]
  %v103 = vld [vmem:[%s1 + $0x60] sm:$0xf]
  %v104 = vld [vmem:[%s1 + $0x64] sm:$0xf]
  %v105 = vld [vmem:[%s1 + $0x68] sm:$0xf]
  %v106 = vld [vmem:[%s1 + $0x6c] sm:$0xf]
  %v107 = vld [vmem:[%s1 + $0x70] sm:$0xf]
  %v108 = vld [vmem:[%s1 + $0x74] sm:$0xf]
  %v109 = vld [vmem:[%s1 + $0x78] sm:$0xf]
  %v110 = vld [vmem:[%s1 + $0x7c] sm:$0xf]
  %v111 = vld [vmem:[%s1 + $0x80] sm:$0xf]
  %v112 = vld [vmem:[%s1 + $0x84] sm:$0xf]
  %v113 = vld [vmem:[%s1 + $0x88] sm:$0xf]
  %v114 = vld [vmem:[%s1 + $0x8c] sm:$0xf]
  %v115 = vld [vmem:[%s1 + $0x90] sm:$0xf]
  %v116 = vld [vmem:[%s1 + $0x94] sm:$0xf]
  %v117 = vld [vmem:[%s1 + $0x98] sm:$0xf]
  %v118 = vld [vmem:[%s1 + $0x9c] sm:$0xf]
  %v119 = vld [vmem:[%s1 + $0xa0] sm:$0xf]
  %v120 = vld [vmem:[%s1 + $0xa4] sm:$0xf]
  %v121 = vld [vmem:[%s1 + $0xa8] sm:$0xf]
  %v122 = vld [vmem:[%s1 + $0xac] sm:$0xf]
  %v123 = vld [vmem:[%s1 + $0xb0] sm:$0xf]
  %v124 = vld [vmem:[%s1 + $0xb4] sm:$0xf]
  %v125 = vld [vmem:[%s1 + $0xb8] sm:$0xf]
  %v126 = vld [vmem:[%s1 + $0xbc] sm:$0xf]
  %v127 = vld [vmem:[%s1 + $0xc0] sm:$0xf]
  %v128 = vld [vmem:[%s1 + $0xc4] sm:$0xf]
  %v129 = vld [vmem:[%s1 + $0xc8] sm:$0xf]
  %v130 = vld [vmem:[%s1 + $0xcc] sm:$0xf]
  %v131 = vld [vmem:[%s1 + $0xd0] sm:$0xf]
  %v132 = vld [vmem:[%s1 + $0xd4] sm:$0xf]
  %v133 = vld [vmem:[%s1 + $0xd8] sm:$0xf]
  %v134 = vld [vmem:[%s1 + $0xdc] sm:$0xf]
  %v135 = vld [vmem:[%s1 + $0xe0] sm:$0xf]
  %v136 = vld [vmem:[%s1 + $0xe4] sm:$0xf]
  %v137 = vld [vmem:[%s1 + $0xe8] sm:$0xf]
  %v138 = vld [vmem:[%s1 + $0xec] sm:$0xf]
  %v139 = vld [vmem:[%s1 + $0xf0] sm:$0xf]
  %v140 = vld [vmem:[%s1 + $0xf4] sm:$0xf]
  %v141 = vld [vmem:[%s1 + $0xf8] sm:$0xf]
  %v142 = vld [vmem:[%s1 + $0xfc] sm:$0xf]
  %v143 = vld [vmem:[%s1 + $0x100] sm:$0xf]
  %v144 = vld [vmem:[%s1 + $0x104] sm:$0xf]
  %v145 = vld [vmem:[%s1 + $0x108] sm:$0xf]
  %v146 = vld [vmem:[%s1 + $0x10c] sm:$0xf]
  %v147 = vld [vmem:[%s1 + $0x110] sm:$0xf]
  %v148 = vld [vmem:[%s1 + $0x114] sm:$0xf]
  %v149 = vld [vmem:[%s1 + $0x118] sm:$0xf]
  %v150 = vld [vmem:[%s1 + $0x11c] sm:$0xf]
  %v151 = vld [vmem:[%s1 + $0x120] sm:$0xf]
  %v152 = vld [vmem:[%s1 + $0x124] sm:$0xf]
  %v153 = vld [vmem:[%s1 + $0x128] sm:$0xf]
  %v154 = vld [vmem:[%s1 + $0x12c] sm:$0xf]
  %v155 = vld [vmem:[%s1 + $0x130] sm:$0xf]
  %v156 = vld [vmem:[%s1 + $0x134] sm:$0xf]
  %v157 = vld [vmem:[%s1 + $0x138] sm:$0xf]
  %v158 = vld [vmem:[%s1 + $0x13c] sm:$0xf]
  %v159 = vld [vmem:[%s1 + $0x140] sm:$0xf]
  %v160 = vld [vmem:[%s1 + $0x144] sm:$0xf]
  %v161 = vld [vmem:[%s1 + $0x148] sm:$0xf]
  %v162 = vld [vmem:[%s1 + $0x14c] sm:$0xf]
  %v163 = vld [vmem:[%s1 + $0x150] sm:$0xf]
  %v164 = vld [vmem:[%s1 + $0x154] sm:$0xf]
  %v165 = vld [vmem:[%s1 + $0x158] sm:$0xf]
  %v166 = vld [vmem:[%s1 + $0x15c] sm:$0xf]
  %v167 = vld [vmem:[%s1 + $0x160] sm:$0xf]
  %v168 = vld [vmem:[%s1 + $0x164] sm:$0xf]
  %v169 = vld [vmem:[%s1 + $0x168] sm:$0xf]
  %v170 = vld [vmem:[%s1 + $0x16c] sm:$0xf]
  %v171 = vld [vmem:[%s1 + $0x170] sm:$0xf]
  %v172 = vld [vmem:[%s1 + $0x174] sm:$0xf]
  %v173 = vld [vmem:[%s1 + $0x178] sm:$0xf]
  %v174 = vld [vmem:[%s1 + $0x17c] sm:$0xf]
  %v175 = vld [vmem:[%s1 + $0x180] sm:$0xf]
  %v176 = vld [vmem:[%s1 + $0x184] sm:$0xf]
  %v177 = vld [vmem:[%s1 + $0x188] sm:$0xf]
  %v178 = vld [vmem:[%s1 + $0x18c] sm:$0xf]
  %v179 = vld [vmem:[%s1 + $0x190] sm:$0xf]
  %v180 = vld [vmem:[%s1 + $0x194] sm:$0xf]
  %v181 = vld [vmem:[%s1 + $0x198] sm:$0xf]
  %v182 = vld [vmem:[%s1 + $0x19c] sm:$0xf]
  %v183 = vld [vmem:[%s1 + $0x1a0] sm:$0xf]
  %v184 = vld [vmem:[%s1 + $0x1a4] sm:$0xf]
  %v185 = vld [vmem:[%s1 + $0x1a8] sm:$0xf]
  %v186 = vld [vmem:[%s1 + $0x1ac] sm:$0xf]
  %v187 = vld [vmem:[%s1 + $0x1b0] sm:$0xf]
  %v188 = vld [vmem:[%s1 + $0x1b4] sm:$0xf]
  %v189 = vld [vmem:[%s1 + $0x1b8] sm:$0xf]
  %v190 = vld [vmem:[%s1 + $0x1bc] sm:$0xf]
  %v191 = vld [vmem:[%s1 + $0x1c0] sm:$0xf]
  %v192 = vld [vmem:[%s1 + $0x1c4] sm:$0xf]
  %v193 = vld [vmem:[%s1 + $0x1c8] sm:$0xf]
  %v194 = vld [vmem:[%s1 + $0x1cc] sm:$0xf]
  %v195 = vld [vmem:[%s1 + $0x1d0] sm:$0xf]
  %v196 = vld [vmem:[%s1 + $0x1d4] sm:$0xf]
  %v197 = vld [vmem:[%s1 + $0x1d8] sm:$0xf]
  %v198 = vld [vmem:[%s1 + $0x1dc] sm:$0xf]
  %v199 = vld [vmem:[%s1 + $0x1e0] sm:$0xf]
  %v200 = vld [vmem:[%s1 + $0x1e4] sm:$0xf]
  %v201 = vld [vmem:[%s1 + $0x1e8] sm:$0xf]
  %v202 = vld [vmem:[%s1 + $0x1ec] sm:$0xf]
  %v203 = vld [vmem:[%s1 + $0x1f0] sm:$0xf]
  %v204 = vld [vmem:[%s1 + $0x1f4] sm:$0xf]
  %v205 = vld [vmem:[%s1 + $0x1f8] sm:$0xf]
  %v206 = vld [vmem:[%s1 + $0x1fc] sm:$0xf]
  %v207 = vld [vmem:[%s1 + $0x200] sm:$0xf]
  %v208 = vld [vmem:[%s1 + $0x204] sm:$0xf]
  %v209 = vld [vmem:[%s1 + $0x208] sm:$0xf]
  %v210 = vld [vmem:[%s1 + $0x20c] sm:$0xf]
  %v211 = vld [vmem:[%s1 + $0x210] sm:$0xf]
  %v212 = vld [vmem:[%s1 + $0x214] sm:$0xf]
  %v213 = vld [vmem:[%s1 + $0x218] sm:$0xf]
  %v214 = vld [vmem:[%s1 + $0x21c] sm:$0xf]
  %v215 = vld [vmem:[%s1 + $0x220] sm:$0xf]
  %v216 = vld [vmem:[%s1 + $0x224] sm:$0xf]
  %v217 = vld [vmem:[%s1 + $0x228] sm:$0xf]
  %v218 = vld [vmem:[%s1 + $0x22c] sm:$0xf]
  %v219 = vld [vmem:[%s1 + $0x230] sm:$0xf]
  %v220 = vld [vmem:[%s1 + $0x234] sm:$0xf]
  %v221 = vld [vmem:[%s1 + $0x238] sm:$0xf]
  %v222 = vld [vmem:[%s1 + $0x23c] sm:$0xf]
  %v223 = vld [vmem:[%s2] sm:$0x1]
  %v225 = vperm.slane %v223, 0
  %v292 = vunpack.c.l.b16 %v14
  %v293 = vunpack.c.h.b16 %v14
  %v294 = vunpack.c.l.b16 %v15
  %v295 = vunpack.c.h.b16 %v15
  %v296 = vunpack.c.l.b16 %v16
  %v297 = vunpack.c.h.b16 %v16
  %v298 = vunpack.c.l.b16 %v17
  %v299 = vunpack.c.h.b16 %v17
  %v300 = vunpack.c.l.b16 %v18
  %v301 = vunpack.c.l.b16 %v19
  %v302 = vunpack.c.h.b16 %v19
  %v303 = vunpack.c.l.b16 %v20
  %v304 = vunpack.c.h.b16 %v20
  %v305 = vunpack.c.l.b16 %v21
  %v306 = vunpack.c.h.b16 %v21
  %v307 = vunpack.c.l.b16 %v22
  %v308 = vunpack.c.h.b16 %v22
  %v309 = vunpack.c.l.b16 %v23
  %v310 = vunpack.c.l.b16 %v24
  %v311 = vunpack.c.h.b16 %v24
  %v312 = vunpack.c.l.b16 %v25
  %v313 = vunpack.c.h.b16 %v25
  %v314 = vunpack.c.l.b16 %v26
  %v315 = vunpack.c.h.b16 %v26
  %v316 = vunpack.c.l.b16 %v27
  %v317 = vunpack.c.h.b16 %v27
  %v318 = vunpack.c.l.b16 %v28
  %v319 = vunpack.c.l.b16 %v29
  %v320 = vunpack.c.h.b16 %v29
  %v321 = vunpack.c.l.b16 %v30
  %v322 = vunpack.c.h.b16 %v30
  %v323 = vunpack.c.l.b16 %v31
  %v324 = vunpack.c.h.b16 %v31
  %v325 = vunpack.c.l.b16 %v32
  %v326 = vunpack.c.h.b16 %v32
  %v327 = vunpack.c.l.b16 %v33
  %v328 = vunpack.c.l.b16 %v34
  %v329 = vunpack.c.h.b16 %v34
  %v330 = vunpack.c.l.b16 %v35
  %v331 = vunpack.c.h.b16 %v35
  %v332 = vunpack.c.l.b16 %v36
  %v333 = vunpack.c.h.b16 %v36
  %v334 = vunpack.c.l.b16 %v37
  %v335 = vunpack.c.h.b16 %v37
  %v336 = vunpack.c.l.b16 %v38
  %v337 = vunpack.c.l.b16 %v39
  %v338 = vunpack.c.h.b16 %v39
  %v339 = vunpack.c.l.b16 %v40
  %v340 = vunpack.c.h.b16 %v40
  %v341 = vunpack.c.l.b16 %v41
  %v342 = vunpack.c.h.b16 %v41
  %v343 = vunpack.c.l.b16 %v42
  %v344 = vunpack.c.h.b16 %v42
  %v345 = vunpack.c.l.b16 %v43
  %v346 = vunpack.c.l.b16 %v44
  %v347 = vunpack.c.h.b16 %v44
  %v348 = vunpack.c.l.b16 %v45
  %v349 = vunpack.c.h.b16 %v45
  %v350 = vunpack.c.l.b16 %v46
  %v351 = vunpack.c.h.b16 %v46
  %v352 = vunpack.c.l.b16 %v47
  %v353 = vunpack.c.h.b16 %v47
  %v354 = vunpack.c.l.b16 %v48
  %v355 = vunpack.c.l.b16 %v49
  %v356 = vunpack.c.h.b16 %v49
  %v357 = vunpack.c.l.b16 %v50
  %v358 = vunpack.c.h.b16 %v50
  %v359 = vunpack.c.l.b16 %v51
  %v360 = vunpack.c.h.b16 %v51
  %v361 = vunpack.c.l.b16 %v52
  %v362 = vunpack.c.h.b16 %v52
  %v363 = vunpack.c.l.b16 %v53
  %v364 = vunpack.c.l.b16 %v54
  %v365 = vunpack.c.h.b16 %v54
  %v366 = vunpack.c.l.b16 %v55
  %v367 = vunpack.c.h.b16 %v55
  %v368 = vunpack.c.l.b16 %v56
  %v369 = vunpack.c.h.b16 %v56
  %v370 = vunpack.c.l.b16 %v57
  %v371 = vunpack.c.h.b16 %v57
  %v372 = vunpack.c.l.b16 %v58
  %v373 = vunpack.c.l.b16 %v59
  %v374 = vunpack.c.h.b16 %v59
  %v375 = vunpack.c.l.b16 %v60
  %v376 = vunpack.c.h.b16 %v60
  %v377 = vunpack.c.l.b16 %v61
  %v378 = vunpack.c.h.b16 %v61
  %v379 = vunpack.c.l.b16 %v62
  %v380 = vunpack.c.h.b16 %v62
  %v381 = vunpack.c.l.b16 %v63
  %v382 = vunpack.c.l.b16 %v64
  %v383 = vunpack.c.h.b16 %v64
  %v384 = vunpack.c.l.b16 %v65
  %v385 = vunpack.c.h.b16 %v65
  %v386 = vunpack.c.l.b16 %v66
  %v387 = vunpack.c.h.b16 %v66
  %v388 = vunpack.c.l.b16 %v67
  %v389 = vunpack.c.h.b16 %v67
  %v390 = vunpack.c.l.b16 %v68
  %v391 = vunpack.c.l.b16 %v69
  %v392 = vunpack.c.h.b16 %v69
  %v393 = vunpack.c.l.b16 %v70
  %v394 = vunpack.c.h.b16 %v70
  %v395 = vunpack.c.l.b16 %v71
  %v396 = vunpack.c.h.b16 %v71
  %v397 = vunpack.c.l.b16 %v72
  %v398 = vunpack.c.h.b16 %v72
  %v399 = vunpack.c.l.b16 %v73
  %v400 = vunpack.c.l.b16 %v74
  %v401 = vunpack.c.h.b16 %v74
  %v402 = vunpack.c.l.b16 %v75
  %v403 = vunpack.c.h.b16 %v75
  %v404 = vunpack.c.l.b16 %v76
  %v405 = vunpack.c.h.b16 %v76
  %v406 = vunpack.c.l.b16 %v77
  %v407 = vunpack.c.h.b16 %v77
  %v408 = vunpack.c.l.b16 %v78
  %v409 = vpack.c.b16 %v301, %v292
  %v410 = vpack.c.b16 %v302, %v293
  %v411 = vpack.c.b16 %v303, %v294
  %v412 = vpack.c.b16 %v304, %v295
  %v413 = vpack.c.b16 %v305, %v296
  %v414 = vpack.c.b16 %v306, %v297
  %v415 = vpack.c.b16 %v307, %v298
  %v416 = vpack.c.b16 %v308, %v299
  %v417 = vpack.c.b16 %v309, %v300
  %v418 = vpack.c.b16 %v319, %v310
  %v419 = vpack.c.b16 %v320, %v311
  %v420 = vpack.c.b16 %v321, %v312
  %v421 = vpack.c.b16 %v322, %v313
  %v422 = vpack.c.b16 %v323, %v314
  %v423 = vpack.c.b16 %v324, %v315
  %v424 = vpack.c.b16 %v325, %v316
  %v425 = vpack.c.b16 %v326, %v317
  %v426 = vpack.c.b16 %v327, %v318
  %v427 = vpack.c.b16 %v337, %v328
  %v428 = vpack.c.b16 %v338, %v329
  %v429 = vpack.c.b16 %v339, %v330
  %v430 = vpack.c.b16 %v340, %v331
  %v431 = vpack.c.b16 %v341, %v332
  %v432 = vpack.c.b16 %v342, %v333
  %v433 = vpack.c.b16 %v343, %v334
  %v434 = vpack.c.b16 %v344, %v335
  %v435 = vpack.c.b16 %v345, %v336
  %v436 = vpack.c.b16 %v355, %v346
  %v437 = vpack.c.b16 %v356, %v347
  %v438 = vpack.c.b16 %v357, %v348
  %v439 = vpack.c.b16 %v358, %v349
  %v440 = vpack.c.b16 %v359, %v350
  %v441 = vpack.c.b16 %v360, %v351
  %v442 = vpack.c.b16 %v361, %v352
  %v443 = vpack.c.b16 %v362, %v353
  %v444 = vpack.c.b16 %v363, %v354
  %v445 = vpack.c.b16 %v373, %v364
  %v446 = vpack.c.b16 %v374, %v365
  %v447 = vpack.c.b16 %v375, %v366
  %v448 = vpack.c.b16 %v376, %v367
  %v449 = vpack.c.b16 %v377, %v368
  %v450 = vpack.c.b16 %v378, %v369
  %v451 = vpack.c.b16 %v379, %v370
  %v452 = vpack.c.b16 %v380, %v371
  %v453 = vpack.c.b16 %v381, %v372
  %v454 = vpack.c.b16 %v391, %v382
  %v455 = vpack.c.b16 %v392, %v383
  %v456 = vpack.c.b16 %v393, %v384
  %v457 = vpack.c.b16 %v394, %v385
  %v458 = vpack.c.b16 %v395, %v386
  %v459 = vpack.c.b16 %v396, %v387
  %v460 = vpack.c.b16 %v397, %v388
  %v461 = vpack.c.b16 %v398, %v389
  %v462 = vpack.c.b16 %v399, %v390
  %v463 = vpack.c.b16 %v400, %v400
  %v464 = vpack.c.b16 %v401, %v401
  %v465 = vpack.c.b16 %v402, %v402
  %v466 = vpack.c.b16 %v403, %v403
  %v467 = vpack.c.b16 %v404, %v404
  %v468 = vpack.c.b16 %v405, %v405
  %v469 = vpack.c.b16 %v406, %v406
  %v470 = vpack.c.b16 %v407, %v407
  %v471 = vpack.c.b16 %v408, %v408
  %v679 = vunpack.c.l.b16 %v79
  %v680 = vunpack.c.l.b16 %v80
  %v681 = vunpack.c.l.b16 %v81
  %v682 = vunpack.c.l.b16 %v82
  %v683 = vunpack.c.l.b16 %v83
  %v684 = vunpack.c.l.b16 %v84
  %v685 = vunpack.c.l.b16 %v85
  %v686 = vunpack.c.l.b16 %v86
  %v687 = vunpack.c.l.b16 %v87
  %v688 = vunpack.c.l.b16 %v88
  %v689 = vunpack.c.l.b16 %v89
  %v690 = vunpack.c.l.b16 %v90
  %v691 = vunpack.c.l.b16 %v91
  %v692 = vunpack.c.l.b16 %v92
  %v693 = vunpack.c.l.b16 %v93
  %v694 = vunpack.c.l.b16 %v94
  %v695 = vunpack.c.l.b16 %v95
  %v696 = vunpack.c.l.b16 %v96
  %v697 = vunpack.c.l.b16 %v97
  %v698 = vunpack.c.l.b16 %v98
  %v699 = vunpack.c.l.b16 %v99
  %v700 = vunpack.c.l.b16 %v100
  %v701 = vunpack.c.l.b16 %v101
  %v702 = vunpack.c.l.b16 %v102
  %v703 = vunpack.c.l.b16 %v103
  %v704 = vunpack.c.l.b16 %v104
  %v705 = vunpack.c.l.b16 %v105
  %v706 = vunpack.c.l.b16 %v106
  %v707 = vunpack.c.l.b16 %v107
  %v708 = vunpack.c.l.b16 %v108
  %v709 = vunpack.c.l.b16 %v109
  %v710 = vunpack.c.l.b16 %v110
  %v711 = vunpack.c.l.b16 %v111
  %v712 = vunpack.c.l.b16 %v112
  %v713 = vunpack.c.l.b16 %v113
  %v714 = vunpack.c.l.b16 %v114
  %v715 = vunpack.c.l.b16 %v115
  %v716 = vunpack.c.l.b16 %v116
  %v717 = vunpack.c.l.b16 %v117
  %v718 = vunpack.c.l.b16 %v118
  %v719 = vunpack.c.l.b16 %v119
  %v720 = vunpack.c.l.b16 %v120
  %v721 = vunpack.c.l.b16 %v121
  %v722 = vunpack.c.l.b16 %v122
  %v723 = vunpack.c.l.b16 %v123
  %v724 = vunpack.c.l.b16 %v124
  %v725 = vunpack.c.l.b16 %v125
  %v726 = vunpack.c.l.b16 %v126
  %v727 = vunpack.c.l.b16 %v127
  %v728 = vunpack.c.l.b16 %v128
  %v729 = vunpack.c.l.b16 %v129
  %v730 = vunpack.c.l.b16 %v130
  %v731 = vunpack.c.l.b16 %v131
  %v732 = vunpack.c.l.b16 %v132
  %v733 = vunpack.c.l.b16 %v133
  %v734 = vunpack.c.l.b16 %v134
  %v735 = vunpack.c.l.b16 %v135
  %v736 = vunpack.c.l.b16 %v136
  %v737 = vunpack.c.l.b16 %v137
  %v738 = vunpack.c.l.b16 %v138
  %v739 = vunpack.c.l.b16 %v139
  %v740 = vunpack.c.l.b16 %v140
  %v741 = vunpack.c.l.b16 %v141
  %v742 = vunpack.c.l.b16 %v142
  %v743 = vunpack.c.l.b16 %v143
  %v744 = vunpack.c.l.b16 %v144
  %v745 = vunpack.c.l.b16 %v145
  %v746 = vunpack.c.l.b16 %v146
  %v747 = vunpack.c.l.b16 %v147
  %v748 = vunpack.c.l.b16 %v148
  %v749 = vunpack.c.l.b16 %v149
  %v750 = vunpack.c.l.b16 %v150
  %v751 = vunpack.c.l.b16 %v151
  %v752 = vunpack.c.l.b16 %v152
  %v753 = vunpack.c.l.b16 %v153
  %v754 = vunpack.c.l.b16 %v154
  %v755 = vunpack.c.l.b16 %v155
  %v756 = vunpack.c.l.b16 %v156
  %v757 = vunpack.c.l.b16 %v157
  %v758 = vunpack.c.l.b16 %v158
  %v759 = vunpack.c.l.b16 %v159
  %v760 = vunpack.c.l.b16 %v160
  %v761 = vunpack.c.l.b16 %v161
  %v762 = vunpack.c.l.b16 %v162
  %v763 = vunpack.c.l.b16 %v163
  %v764 = vunpack.c.l.b16 %v164
  %v765 = vunpack.c.l.b16 %v165
  %v766 = vunpack.c.l.b16 %v166
  %v767 = vunpack.c.l.b16 %v167
  %v768 = vunpack.c.l.b16 %v168
  %v769 = vunpack.c.l.b16 %v169
  %v770 = vunpack.c.l.b16 %v170
  %v771 = vunpack.c.l.b16 %v171
  %v772 = vunpack.c.l.b16 %v172
  %v773 = vunpack.c.l.b16 %v173
  %v774 = vunpack.c.l.b16 %v174
  %v775 = vunpack.c.l.b16 %v175
  %v776 = vunpack.c.l.b16 %v176
  %v777 = vunpack.c.l.b16 %v177
  %v778 = vunpack.c.l.b16 %v178
  %v779 = vunpack.c.l.b16 %v179
  %v780 = vunpack.c.l.b16 %v180
  %v781 = vunpack.c.l.b16 %v181
  %v782 = vunpack.c.l.b16 %v182
  %v783 = vunpack.c.l.b16 %v183
  %v784 = vunpack.c.l.b16 %v184
  %v785 = vunpack.c.l.b16 %v185
  %v786 = vunpack.c.l.b16 %v186
  %v787 = vunpack.c.l.b16 %v187
  %v788 = vunpack.c.l.b16 %v188
  %v789 = vunpack.c.l.b16 %v189
  %v790 = vunpack.c.l.b16 %v190
  %v791 = vunpack.c.l.b16 %v191
  %v792 = vunpack.c.l.b16 %v192
  %v793 = vunpack.c.l.b16 %v193
  %v794 = vunpack.c.l.b16 %v194
  %v795 = vunpack.c.l.b16 %v195
  %v796 = vunpack.c.l.b16 %v196
  %v797 = vunpack.c.l.b16 %v197
  %v798 = vunpack.c.l.b16 %v198
  %v799 = vunpack.c.l.b16 %v199
  %v800 = vunpack.c.l.b16 %v200
  %v801 = vunpack.c.l.b16 %v201
  %v802 = vunpack.c.l.b16 %v202
  %v803 = vunpack.c.l.b16 %v203
  %v804 = vunpack.c.l.b16 %v204
  %v805 = vunpack.c.l.b16 %v205
  %v806 = vunpack.c.l.b16 %v206
  %v807 = vunpack.c.l.b16 %v207
  %v808 = vunpack.c.l.b16 %v208
  %v809 = vunpack.c.l.b16 %v209
  %v810 = vunpack.c.l.b16 %v210
  %v811 = vunpack.c.l.b16 %v211
  %v812 = vunpack.c.l.b16 %v212
  %v813 = vunpack.c.l.b16 %v213
  %v814 = vunpack.c.l.b16 %v214
  %v815 = vunpack.c.l.b16 %v215
  %v816 = vunpack.c.l.b16 %v216
  %v817 = vunpack.c.l.b16 %v217
  %v818 = vunpack.c.l.b16 %v218
  %v819 = vunpack.c.l.b16 %v219
  %v820 = vunpack.c.l.b16 %v220
  %v821 = vunpack.c.l.b16 %v221
  %v822 = vunpack.c.l.b16 %v222
  %v823 = vpack.c.b16 %v680, %v679
  %v824 = vpack.c.b16 %v682, %v681
  %v825 = vpack.c.b16 %v684, %v683
  %v826 = vpack.c.b16 %v686, %v685
  %v827 = vpack.c.b16 %v688, %v687
  %v828 = vpack.c.b16 %v690, %v689
  %v829 = vpack.c.b16 %v692, %v691
  %v830 = vpack.c.b16 %v694, %v693
  %v831 = vpack.c.b16 %v696, %v695
  %v832 = vpack.c.b16 %v698, %v697
  %v833 = vpack.c.b16 %v700, %v699
  %v834 = vpack.c.b16 %v702, %v701
  %v835 = vpack.c.b16 %v704, %v703
  %v836 = vpack.c.b16 %v706, %v705
  %v837 = vpack.c.b16 %v708, %v707
  %v838 = vpack.c.b16 %v710, %v709
  %v839 = vpack.c.b16 %v712, %v711
  %v840 = vpack.c.b16 %v714, %v713
  %v841 = vpack.c.b16 %v716, %v715
  %v842 = vpack.c.b16 %v718, %v717
  %v843 = vpack.c.b16 %v720, %v719
  %v844 = vpack.c.b16 %v722, %v721
  %v845 = vpack.c.b16 %v724, %v723
  %v846 = vpack.c.b16 %v726, %v725
  %v847 = vpack.c.b16 %v728, %v727
  %v848 = vpack.c.b16 %v730, %v729
  %v849 = vpack.c.b16 %v732, %v731
  %v850 = vpack.c.b16 %v734, %v733
  %v851 = vpack.c.b16 %v736, %v735
  %v852 = vpack.c.b16 %v738, %v737
  %v853 = vpack.c.b16 %v740, %v739
  %v854 = vpack.c.b16 %v742, %v741
  %v855 = vpack.c.b16 %v744, %v743
  %v856 = vpack.c.b16 %v746, %v745
  %v857 = vpack.c.b16 %v748, %v747
  %v858 = vpack.c.b16 %v750, %v749
  %v859 = vpack.c.b16 %v752, %v751
  %v860 = vpack.c.b16 %v754, %v753
  %v861 = vpack.c.b16 %v756, %v755
  %v862 = vpack.c.b16 %v758, %v757
  %v863 = vpack.c.b16 %v760, %v759
  %v864 = vpack.c.b16 %v762, %v761
  %v865 = vpack.c.b16 %v764, %v763
  %v866 = vpack.c.b16 %v766, %v765
  %v867 = vpack.c.b16 %v768, %v767
  %v868 = vpack.c.b16 %v770, %v769
  %v869 = vpack.c.b16 %v772, %v771
  %v870 = vpack.c.b16 %v774, %v773
  %v871 = vpack.c.b16 %v776, %v775
  %v872 = vpack.c.b16 %v778, %v777
  %v873 = vpack.c.b16 %v780, %v779
  %v874 = vpack.c.b16 %v782, %v781
  %v875 = vpack.c.b16 %v784, %v783
  %v876 = vpack.c.b16 %v786, %v785
  %v877 = vpack.c.b16 %v788, %v787
  %v878 = vpack.c.b16 %v790, %v789
  %v879 = vpack.c.b16 %v792, %v791
  %v880 = vpack.c.b16 %v794, %v793
  %v881 = vpack.c.b16 %v796, %v795
  %v882 = vpack.c.b16 %v798, %v797
  %v883 = vpack.c.b16 %v800, %v799
  %v884 = vpack.c.b16 %v802, %v801
  %v885 = vpack.c.b16 %v804, %v803
  %v886 = vpack.c.b16 %v806, %v805
  %v887 = vpack.c.b16 %v808, %v807
  %v888 = vpack.c.b16 %v810, %v809
  %v889 = vpack.c.b16 %v812, %v811
  %v890 = vpack.c.b16 %v814, %v813
  %v891 = vpack.c.b16 %v816, %v815
  %v892 = vpack.c.b16 %v818, %v817
  %v893 = vpack.c.b16 %v820, %v819
  %v894 = vpack.c.b16 %v822, %v821
  %967 = vmatpush.bf16.msra.mxu0 %v830
  %968 = vmatpush.bf16.msra.mxu0 %v829
  %969 = vmatpush.bf16.msra.mxu0 %v828
  %970 = vmatpush.bf16.msra.mxu0 %v827
  %971 = vmatpush.bf16.msra.mxu0 %v826
  %972 = vmatpush.bf16.msra.mxu0 %v825
  %973 = vmatpush.bf16.msra.mxu0 %v824
  %974 = vmatpush.bf16.msra.mxu0 %v823
  %975 = vmatmul.bf16.gmra.mxu0 %v409
  %v976 = vpop.f32.mrf.mxu0
  %v977 = vadd.f32 %v225, %v976
  %v978 = vpop.f32.mrf.mxu0
  %v979 = vadd.f32 %v225, %v978
  %980 = vmatmul.bf16.gmra.mxu0 %v418
  %v981 = vpop.f32.mrf.mxu0
  %v982 = vadd.f32 %v225, %v981
  %v983 = vpop.f32.mrf.mxu0
  %v984 = vadd.f32 %v225, %v983
  %985 = vmatmul.bf16.gmra.mxu0 %v427
  %v986 = vpop.f32.mrf.mxu0
  %v987 = vadd.f32 %v225, %v986
  %v988 = vpop.f32.mrf.mxu0
  %v989 = vadd.f32 %v225, %v988
  %990 = vmatmul.bf16.gmra.mxu0 %v436
  %v991 = vpop.f32.mrf.mxu0
  %v992 = vadd.f32 %v225, %v991
  %v993 = vpop.f32.mrf.mxu0
  %v994 = vadd.f32 %v225, %v993
  %995 = vmatmul.bf16.gmra.mxu0 %v445
  %v996 = vpop.f32.mrf.mxu0
  %v997 = vadd.f32 %v225, %v996
  %v998 = vpop.f32.mrf.mxu0
  %v999 = vadd.f32 %v225, %v998
  %1000 = vmatmul.bf16.gmra.mxu0 %v454
  %v1001 = vpop.f32.mrf.mxu0
  %v1002 = vadd.f32 %v225, %v1001
  %v1003 = vpop.f32.mrf.mxu0
  %v1004 = vadd.f32 %v225, %v1003
  %1005 = vmatmul.bf16.gmra.mxu0 %v463
  %v1006 = vpop.f32.mrf.mxu0
  %v1007 = vadd.f32 %v225, %v1006
  %v1008 = vpop.f32.mrf.mxu0
  %1009 = vdwg.mxu0
  %1010 = vmatpush.bf16.msra.mxu0 %v838
  %1011 = vmatpush.bf16.msra.mxu0 %v837
  %1012 = vmatpush.bf16.msra.mxu0 %v836
  %1013 = vmatpush.bf16.msra.mxu0 %v835
  %1014 = vmatpush.bf16.msra.mxu0 %v834
  %1015 = vmatpush.bf16.msra.mxu0 %v833
  %1016 = vmatpush.bf16.msra.mxu0 %v832
  %1017 = vmatpush.bf16.msra.mxu0 %v831
  %1018 = vmatmul.bf16.gmra.mxu0 %v410
  %v1019 = vpop.f32.mrf.mxu0
  %v1020 = vadd.f32 %v977, %v1019
  %v1021 = vpop.f32.mrf.mxu0
  %v1022 = vadd.f32 %v979, %v1021
  %1023 = vmatmul.bf16.gmra.mxu0 %v419
  %v1024 = vpop.f32.mrf.mxu0
  %v1025 = vadd.f32 %v982, %v1024
  %v1026 = vpop.f32.mrf.mxu0
  %v1027 = vadd.f32 %v984, %v1026
  %1028 = vmatmul.bf16.gmra.mxu0 %v428
  %v1029 = vpop.f32.mrf.mxu0
  %v1030 = vadd.f32 %v987, %v1029
  %v1031 = vpop.f32.mrf.mxu0
  %v1032 = vadd.f32 %v989, %v1031
  %1033 = vmatmul.bf16.gmra.mxu0 %v437
  %v1034 = vpop.f32.mrf.mxu0
  %v1035 = vadd.f32 %v992, %v1034
  %v1036 = vpop.f32.mrf.mxu0
  %v1037 = vadd.f32 %v994, %v1036
  %1038 = vmatmul.bf16.gmra.mxu0 %v446
  %v1039 = vpop.f32.mrf.mxu0
  %v1040 = vadd.f32 %v997, %v1039
  %v1041 = vpop.f32.mrf.mxu0
  %v1042 = vadd.f32 %v999, %v1041
  %1043 = vmatmul.bf16.gmra.mxu0 %v455
  %v1044 = vpop.f32.mrf.mxu0
  %v1045 = vadd.f32 %v1002, %v1044
  %v1046 = vpop.f32.mrf.mxu0
  %v1047 = vadd.f32 %v1004, %v1046
  %1048 = vmatmul.bf16.gmra.mxu0 %v464
  %v1049 = vpop.f32.mrf.mxu0
  %v1050 = vadd.f32 %v1007, %v1049
  %v1051 = vpop.f32.mrf.mxu0
  %1052 = vdwg.mxu0
  %1053 = vmatpush.bf16.msra.mxu0 %v846
  %1054 = vmatpush.bf16.msra.mxu0 %v845
  %1055 = vmatpush.bf16.msra.mxu0 %v844
  %1056 = vmatpush.bf16.msra.mxu0 %v843
  %1057 = vmatpush.bf16.msra.mxu0 %v842
  %1058 = vmatpush.bf16.msra.mxu0 %v841
  %1059 = vmatpush.bf16.msra.mxu0 %v840
  %1060 = vmatpush.bf16.msra.mxu0 %v839
  %1061 = vmatmul.bf16.gmra.mxu0 %v411
  %v1062 = vpop.f32.mrf.mxu0
  %v1063 = vadd.f32 %v1020, %v1062
  %v1064 = vpop.f32.mrf.mxu0
  %v1065 = vadd.f32 %v1022, %v1064
  %1066 = vmatmul.bf16.gmra.mxu0 %v420
  %v1067 = vpop.f32.mrf.mxu0
  %v1068 = vadd.f32 %v1025, %v1067
  %v1069 = vpop.f32.mrf.mxu0
  %v1070 = vadd.f32 %v1027, %v1069
  %1071 = vmatmul.bf16.gmra.mxu0 %v429
  %v1072 = vpop.f32.mrf.mxu0
  %v1073 = vadd.f32 %v1030, %v1072
  %v1074 = vpop.f32.mrf.mxu0
  %v1075 = vadd.f32 %v1032, %v1074
  %1076 = vmatmul.bf16.gmra.mxu0 %v438
  %v1077 = vpop.f32.mrf.mxu0
  %v1078 = vadd.f32 %v1035, %v1077
  %v1079 = vpop.f32.mrf.mxu0
  %v1080 = vadd.f32 %v1037, %v1079
  %1081 = vmatmul.bf16.gmra.mxu0 %v447
  %v1082 = vpop.f32.mrf.mxu0
  %v1083 = vadd.f32 %v1040, %v1082
  %v1084 = vpop.f32.mrf.mxu0
  %v1085 = vadd.f32 %v1042, %v1084
  %1086 = vmatmul.bf16.gmra.mxu0 %v456
  %v1087 = vpop.f32.mrf.mxu0
  %v1088 = vadd.f32 %v1045, %v1087
  %v1089 = vpop.f32.mrf.mxu0
  %v1090 = vadd.f32 %v1047, %v1089
  %1091 = vmatmul.bf16.gmra.mxu0 %v465
  %v1092 = vpop.f32.mrf.mxu0
  %v1093 = vadd.f32 %v1050, %v1092
  %v1094 = vpop.f32.mrf.mxu0
  %1095 = vdwg.mxu0
  %1096 = vmatpush.bf16.msra.mxu0 %v854
  %1097 = vmatpush.bf16.msra.mxu0 %v853
  %1098 = vmatpush.bf16.msra.mxu0 %v852
  %1099 = vmatpush.bf16.msra.mxu0 %v851
  %1100 = vmatpush.bf16.msra.mxu0 %v850
  %1101 = vmatpush.bf16.msra.mxu0 %v849
  %1102 = vmatpush.bf16.msra.mxu0 %v848
  %1103 = vmatpush.bf16.msra.mxu0 %v847
  %1104 = vmatmul.bf16.gmra.mxu0 %v412
  %v1105 = vpop.f32.mrf.mxu0
  %v1106 = vadd.f32 %v1063, %v1105
  %v1107 = vpop.f32.mrf.mxu0
  %v1108 = vadd.f32 %v1065, %v1107
  %1109 = vmatmul.bf16.gmra.mxu0 %v421
  %v1110 = vpop.f32.mrf.mxu0
  %v1111 = vadd.f32 %v1068, %v1110
  %v1112 = vpop.f32.mrf.mxu0
  %v1113 = vadd.f32 %v1070, %v1112
  %1114 = vmatmul.bf16.gmra.mxu0 %v430
  %v1115 = vpop.f32.mrf.mxu0
  %v1116 = vadd.f32 %v1073, %v1115
  %v1117 = vpop.f32.mrf.mxu0
  %v1118 = vadd.f32 %v1075, %v1117
  %1119 = vmatmul.bf16.gmra.mxu0 %v439
  %v1120 = vpop.f32.mrf.mxu0
  %v1121 = vadd.f32 %v1078, %v1120
  %v1122 = vpop.f32.mrf.mxu0
  %v1123 = vadd.f32 %v1080, %v1122
  %1124 = vmatmul.bf16.gmra.mxu0 %v448
  %v1125 = vpop.f32.mrf.mxu0
  %v1126 = vadd.f32 %v1083, %v1125
  %v1127 = vpop.f32.mrf.mxu0
  %v1128 = vadd.f32 %v1085, %v1127
  %1129 = vmatmul.bf16.gmra.mxu0 %v457
  %v1130 = vpop.f32.mrf.mxu0
  %v1131 = vadd.f32 %v1088, %v1130
  %v1132 = vpop.f32.mrf.mxu0
  %v1133 = vadd.f32 %v1090, %v1132
  %1134 = vmatmul.bf16.gmra.mxu0 %v466
  %v1135 = vpop.f32.mrf.mxu0
  %v1136 = vadd.f32 %v1093, %v1135
  %v1137 = vpop.f32.mrf.mxu0
  %1138 = vdwg.mxu0
  %1139 = vmatpush.bf16.msra.mxu0 %v862
  %1140 = vmatpush.bf16.msra.mxu0 %v861
  %1141 = vmatpush.bf16.msra.mxu0 %v860
  %1142 = vmatpush.bf16.msra.mxu0 %v859
  %1143 = vmatpush.bf16.msra.mxu0 %v858
  %1144 = vmatpush.bf16.msra.mxu0 %v857
  %1145 = vmatpush.bf16.msra.mxu0 %v856
  %1146 = vmatpush.bf16.msra.mxu0 %v855
  %1147 = vmatmul.bf16.gmra.mxu0 %v413
  %v1148 = vpop.f32.mrf.mxu0
  %v1149 = vadd.f32 %v1106, %v1148
  %v1150 = vpop.f32.mrf.mxu0
  %v1151 = vadd.f32 %v1108, %v1150
  %1152 = vmatmul.bf16.gmra.mxu0 %v422
  %v1153 = vpop.f32.mrf.mxu0
  %v1154 = vadd.f32 %v1111, %v1153
  %v1155 = vpop.f32.mrf.mxu0
  %v1156 = vadd.f32 %v1113, %v1155
  %1157 = vmatmul.bf16.gmra.mxu0 %v431
  %v1158 = vpop.f32.mrf.mxu0
  %v1159 = vadd.f32 %v1116, %v1158
  %v1160 = vpop.f32.mrf.mxu0
  %v1161 = vadd.f32 %v1118, %v1160
  %1162 = vmatmul.bf16.gmra.mxu0 %v440
  %v1163 = vpop.f32.mrf.mxu0
  %v1164 = vadd.f32 %v1121, %v1163
  %v1165 = vpop.f32.mrf.mxu0
  %v1166 = vadd.f32 %v1123, %v1165
  %1167 = vmatmul.bf16.gmra.mxu0 %v449
  %v1168 = vpop.f32.mrf.mxu0
  %v1169 = vadd.f32 %v1126, %v1168
  %v1170 = vpop.f32.mrf.mxu0
  %v1171 = vadd.f32 %v1128, %v1170
  %1172 = vmatmul.bf16.gmra.mxu0 %v458
  %v1173 = vpop.f32.mrf.mxu0
  %v1174 = vadd.f32 %v1131, %v1173
  %v1175 = vpop.f32.mrf.mxu0
  %v1176 = vadd.f32 %v1133, %v1175
  %1177 = vmatmul.bf16.gmra.mxu0 %v467
  %v1178 = vpop.f32.mrf.mxu0
  %v1179 = vadd.f32 %v1136, %v1178
  %v1180 = vpop.f32.mrf.mxu0
  %1181 = vdwg.mxu0
  %1182 = vmatpush.bf16.msra.mxu0 %v870
  %1183 = vmatpush.bf16.msra.mxu0 %v869
  %1184 = vmatpush.bf16.msra.mxu0 %v868
  %1185 = vmatpush.bf16.msra.mxu0 %v867
  %1186 = vmatpush.bf16.msra.mxu0 %v866
  %1187 = vmatpush.bf16.msra.mxu0 %v865
  %1188 = vmatpush.bf16.msra.mxu0 %v864
  %1189 = vmatpush.bf16.msra.mxu0 %v863
  %1190 = vmatmul.bf16.gmra.mxu0 %v414
  %v1191 = vpop.f32.mrf.mxu0
  %v1192 = vadd.f32 %v1149, %v1191
  %v1193 = vpop.f32.mrf.mxu0
  %v1194 = vadd.f32 %v1151, %v1193
  %1195 = vmatmul.bf16.gmra.mxu0 %v423
  %v1196 = vpop.f32.mrf.mxu0
  %v1197 = vadd.f32 %v1154, %v1196
  %v1198 = vpop.f32.mrf.mxu0
  %v1199 = vadd.f32 %v1156, %v1198
  %1200 = vmatmul.bf16.gmra.mxu0 %v432
  %v1201 = vpop.f32.mrf.mxu0
  %v1202 = vadd.f32 %v1159, %v1201
  %v1203 = vpop.f32.mrf.mxu0
  %v1204 = vadd.f32 %v1161, %v1203
  %1205 = vmatmul.bf16.gmra.mxu0 %v441
  %v1206 = vpop.f32.mrf.mxu0
  %v1207 = vadd.f32 %v1164, %v1206
  %v1208 = vpop.f32.mrf.mxu0
  %v1209 = vadd.f32 %v1166, %v1208
  %1210 = vmatmul.bf16.gmra.mxu0 %v450
  %v1211 = vpop.f32.mrf.mxu0
  %v1212 = vadd.f32 %v1169, %v1211
  %v1213 = vpop.f32.mrf.mxu0
  %v1214 = vadd.f32 %v1171, %v1213
  %1215 = vmatmul.bf16.gmra.mxu0 %v459
  %v1216 = vpop.f32.mrf.mxu0
  %v1217 = vadd.f32 %v1174, %v1216
  %v1218 = vpop.f32.mrf.mxu0
  %v1219 = vadd.f32 %v1176, %v1218
  %1220 = vmatmul.bf16.gmra.mxu0 %v468
  %v1221 = vpop.f32.mrf.mxu0
  %v1222 = vadd.f32 %v1179, %v1221
  %v1223 = vpop.f32.mrf.mxu0
  %1224 = vdwg.mxu0
  %1225 = vmatpush.bf16.msra.mxu0 %v878
  %1226 = vmatpush.bf16.msra.mxu0 %v877
  %1227 = vmatpush.bf16.msra.mxu0 %v876
  %1228 = vmatpush.bf16.msra.mxu0 %v875
  %1229 = vmatpush.bf16.msra.mxu0 %v874
  %1230 = vmatpush.bf16.msra.mxu0 %v873
  %1231 = vmatpush.bf16.msra.mxu0 %v872
  %1232 = vmatpush.bf16.msra.mxu0 %v871
  %1233 = vmatmul.bf16.gmra.mxu0 %v415
  %v1234 = vpop.f32.mrf.mxu0
  %v1235 = vadd.f32 %v1192, %v1234
  %v1236 = vpop.f32.mrf.mxu0
  %v1237 = vadd.f32 %v1194, %v1236
  %1238 = vmatmul.bf16.gmra.mxu0 %v424
  %v1239 = vpop.f32.mrf.mxu0
  %v1240 = vadd.f32 %v1197, %v1239
  %v1241 = vpop.f32.mrf.mxu0
  %v1242 = vadd.f32 %v1199, %v1241
  %1243 = vmatmul.bf16.gmra.mxu0 %v433
  %v1244 = vpop.f32.mrf.mxu0
  %v1245 = vadd.f32 %v1202, %v1244
  %v1246 = vpop.f32.mrf.mxu0
  %v1247 = vadd.f32 %v1204, %v1246
  %1248 = vmatmul.bf16.gmra.mxu0 %v442
  %v1249 = vpop.f32.mrf.mxu0
  %v1250 = vadd.f32 %v1207, %v1249
  %v1251 = vpop.f32.mrf.mxu0
  %v1252 = vadd.f32 %v1209, %v1251
  %1253 = vmatmul.bf16.gmra.mxu0 %v451
  %v1254 = vpop.f32.mrf.mxu0
  %v1255 = vadd.f32 %v1212, %v1254
  %v1256 = vpop.f32.mrf.mxu0
  %v1257 = vadd.f32 %v1214, %v1256
  %1258 = vmatmul.bf16.gmra.mxu0 %v460
  %v1259 = vpop.f32.mrf.mxu0
  %v1260 = vadd.f32 %v1217, %v1259
  %v1261 = vpop.f32.mrf.mxu0
  %v1262 = vadd.f32 %v1219, %v1261
  %1263 = vmatmul.bf16.gmra.mxu0 %v469
  %v1264 = vpop.f32.mrf.mxu0
  %v1265 = vadd.f32 %v1222, %v1264
  %v1266 = vpop.f32.mrf.mxu0
  %1267 = vdwg.mxu0
  %1268 = vmatpush.bf16.msra.mxu0 %v886
  %1269 = vmatpush.bf16.msra.mxu0 %v885
  %1270 = vmatpush.bf16.msra.mxu0 %v884
  %1271 = vmatpush.bf16.msra.mxu0 %v883
  %1272 = vmatpush.bf16.msra.mxu0 %v882
  %1273 = vmatpush.bf16.msra.mxu0 %v881
  %1274 = vmatpush.bf16.msra.mxu0 %v880
  %1275 = vmatpush.bf16.msra.mxu0 %v879
  %1276 = vmatmul.bf16.gmra.mxu0 %v416
  %v1277 = vpop.f32.mrf.mxu0
  %v1278 = vadd.f32 %v1235, %v1277
  %v1279 = vpop.f32.mrf.mxu0
  %v1280 = vadd.f32 %v1237, %v1279
  %1281 = vmatmul.bf16.gmra.mxu0 %v425
  %v1282 = vpop.f32.mrf.mxu0
  %v1283 = vadd.f32 %v1240, %v1282
  %v1284 = vpop.f32.mrf.mxu0
  %v1285 = vadd.f32 %v1242, %v1284
  %1286 = vmatmul.bf16.gmra.mxu0 %v434
  %v1287 = vpop.f32.mrf.mxu0
  %v1288 = vadd.f32 %v1245, %v1287
  %v1289 = vpop.f32.mrf.mxu0
  %v1290 = vadd.f32 %v1247, %v1289
  %1291 = vmatmul.bf16.gmra.mxu0 %v443
  %v1292 = vpop.f32.mrf.mxu0
  %v1293 = vadd.f32 %v1250, %v1292
  %v1294 = vpop.f32.mrf.mxu0
  %v1295 = vadd.f32 %v1252, %v1294
  %1296 = vmatmul.bf16.gmra.mxu0 %v452
  %v1297 = vpop.f32.mrf.mxu0
  %v1298 = vadd.f32 %v1255, %v1297
  %v1299 = vpop.f32.mrf.mxu0
  %v1300 = vadd.f32 %v1257, %v1299
  %1301 = vmatmul.bf16.gmra.mxu0 %v461
  %v1302 = vpop.f32.mrf.mxu0
  %v1303 = vadd.f32 %v1260, %v1302
  %v1304 = vpop.f32.mrf.mxu0
  %v1305 = vadd.f32 %v1262, %v1304
  %1306 = vmatmul.bf16.gmra.mxu0 %v470
  %v1307 = vpop.f32.mrf.mxu0
  %v1308 = vadd.f32 %v1265, %v1307
  %v1309 = vpop.f32.mrf.mxu0
  %1310 = vdwg.mxu0
  %1311 = vmatpush.bf16.msra.mxu0 %v894
  %1312 = vmatpush.bf16.msra.mxu0 %v893
  %1313 = vmatpush.bf16.msra.mxu0 %v892
  %1314 = vmatpush.bf16.msra.mxu0 %v891
  %1315 = vmatpush.bf16.msra.mxu0 %v890
  %1316 = vmatpush.bf16.msra.mxu0 %v889
  %1317 = vmatpush.bf16.msra.mxu0 %v888
  %1318 = vmatpush.bf16.msra.mxu0 %v887
  %1319 = vmatmul.bf16.gmra.mxu0 %v417
  %v1320 = vpop.f32.mrf.mxu0
  %v1321 = vadd.f32 %v1278, %v1320
  %v1322 = vpop.f32.mrf.mxu0
  %v1323 = vadd.f32 %v1280, %v1322
  %1324 = vmatmul.bf16.gmra.mxu0 %v426
  %v1325 = vpop.f32.mrf.mxu0
  %v1326 = vadd.f32 %v1283, %v1325
  %v1327 = vpop.f32.mrf.mxu0
  %v1328 = vadd.f32 %v1285, %v1327
  %1329 = vmatmul.bf16.gmra.mxu0 %v435
  %v1330 = vpop.f32.mrf.mxu0
  %v1331 = vadd.f32 %v1288, %v1330
  %v1332 = vpop.f32.mrf.mxu0
  %v1333 = vadd.f32 %v1290, %v1332
  %1334 = vmatmul.bf16.gmra.mxu0 %v444
  %v1335 = vpop.f32.mrf.mxu0
  %v1336 = vadd.f32 %v1293, %v1335
  %v1337 = vpop.f32.mrf.mxu0
  %v1338 = vadd.f32 %v1295, %v1337
  %1339 = vmatmul.bf16.gmra.mxu0 %v453
  %v1340 = vpop.f32.mrf.mxu0
  %v1341 = vadd.f32 %v1298, %v1340
  %v1342 = vpop.f32.mrf.mxu0
  %v1343 = vadd.f32 %v1300, %v1342
  %1344 = vmatmul.bf16.gmra.mxu0 %v462
  %v1345 = vpop.f32.mrf.mxu0
  %v1346 = vadd.f32 %v1303, %v1345
  %v1347 = vpop.f32.mrf.mxu0
  %v1348 = vadd.f32 %v1305, %v1347
  %1349 = vmatmul.bf16.gmra.mxu0 %v471
  %v1350 = vpop.f32.mrf.mxu0
  %v1351 = vadd.f32 %v1308, %v1350
  %v1352 = vpop.f32.mrf.mxu0
  %1353 = vdwg.mxu0
  %v1354 = vmax.f32 %v1321, 0.0
  %v1355 = vmax.f32 %v1323, 0.0
  %v1356 = vmax.f32 %v1326, 0.0
  %v1357 = vmax.f32 %v1328, 0.0
  %v1358 = vmax.f32 %v1331, 0.0
  %v1359 = vmax.f32 %v1333, 0.0
  %v1360 = vmax.f32 %v1336, 0.0
  %v1361 = vmax.f32 %v1338, 0.0
  %v1362 = vmax.f32 %v1341, 0.0
  %v1363 = vmax.f32 %v1343, 0.0
  %v1364 = vmax.f32 %v1346, 0.0
  %v1365 = vmax.f32 %v1348, 0.0
  %v1366 = vmax.f32 %v1351, 0.0
  %v1367 = vpack.c.bf16 %v1354, %v1354
  %v1368 = vpack.c.bf16 %v1355, %v1355
  %v1369 = vpack.c.bf16 %v1356, %v1356
  %v1370 = vpack.c.bf16 %v1357, %v1357
  %v1371 = vpack.c.bf16 %v1358, %v1358
  %v1372 = vpack.c.bf16 %v1359, %v1359
  %v1373 = vpack.c.bf16 %v1360, %v1360
  %v1374 = vpack.c.bf16 %v1361, %v1361
  %v1375 = vpack.c.bf16 %v1362, %v1362
  %v1376 = vpack.c.bf16 %v1363, %v1363
  %v1377 = vpack.c.bf16 %v1364, %v1364
  %v1378 = vpack.c.bf16 %v1365, %v1365
  %v1379 = vpack.c.bf16 %v1366, %v1366
  %1380 = vst [vmem:[%s3] sm:$0xf] %v1367
  %1381 = vst [vmem:[%s3 + $0x4] sm:$0xf] %v1368
  %1382 = vst [vmem:[%s3 + $0x8] sm:$0xf] %v1369
  %1383 = vst [vmem:[%s3 + $0xc] sm:$0xf] %v1370
  %1384 = vst [vmem:[%s3 + $0x10] sm:$0xf] %v1371
  %1385 = vst [vmem:[%s3 + $0x14] sm:$0xf] %v1372
  %1386 = vst [vmem:[%s3 + $0x18] sm:$0xf] %v1373
  %1387 = vst [vmem:[%s3 + $0x1c] sm:$0xf] %v1374
  %1388 = vst [vmem:[%s3 + $0x20] sm:$0xf] %v1375
  %1389 = vst [vmem:[%s3 + $0x24] sm:$0xf] %v1376
  %1390 = vst [vmem:[%s3 + $0x28] sm:$0xf] %v1377
  %1391 = vst [vmem:[%s3 + $0x2c] sm:$0xf] %v1378
  %1392 = vst [vmem:[%s3 + $0x30] sm:$0x1] %v1379
  // Predicated region
  $region14: #{actor_critic_forward.6} parent=0 // pred_check
    _
  $region15: #{actor_critic_forward.6} parent=0 // pred_check_branch
    %1394 = sbr.rel (0) target = $region17
  $region16: #{actor_critic_forward.6} parent=0 // pred_region
    _
  $region17: #{actor_critic_forward.6} parent=0 // pred_fallthru
    _
  // Predicated region
  $region18: #{actor_critic_forward.6} parent=0 // pred_check
    _
  $region19: #{actor_critic_forward.6} parent=0 // pred_check_branch
    %1396 = sbr.rel (0) target = $region21
  $region20: #{actor_critic_forward.6} parent=0 // pred_region
    _
  $region21: #{actor_critic_forward.6} parent=0 // pred_fallthru
    _

// kernel: actor_critic_forward.7
$region0: #{actor_critic_forward.7}
  #allocation0 [shape = 'u32[]', space=smem, size = 0x4, offset = 0x4, fixed_abs, tag = 'smem constant byte address 0x4 - core index']
  #allocation1 [shape = 'u32[72,128]{1,0:T(1,128)}', space=vmem, size = 0x9000, scoped, tag = 'internal scratch']
  %s0 = inlined_call_operand.vmem [shape: bf16[2,2,3136], index: 0, kind: input, shape index: {}]
  %s1 = inlined_call_operand.vmem [shape: bf16[2,3136,512], index: 1, kind: input, shape index: {}]
  %s2 = inlined_call_operand.vmem [shape: f32[2,1,512], index: 2, kind: input, shape index: {}]
  %s3 = inlined_call_operand.vmem [shape: bf16[2,512,128], index: 3, kind: input, shape index: {}]
  %s4 = inlined_call_operand.vmem [shape: f32[2,1,128], index: 4, kind: input, shape index: {}]
  %s5 = inlined_call_operand.vmem [shape: f32[2,2,128], index: 5, kind: output, shape index: {}]
  %s6 = sld [smem:[#allocation0]]
  $region61: #{actor_critic_forward.7} parent=0
    _
  %s8 = ssub.s32 1, %s6
  %s9 = scalar_select 0, %s8, %s6
  loop: start=0, step=1, limit=4
  $region2: #{actor_critic_forward.7} parent=0 // loop_pre_header
    _
  $region3: #{actor_critic_forward.7} parent=0 // loop_header
    %s11 = sphi 0, %s15
    %p12 = scmp.ge.s32.totalorder %s11, 4
    %s21 = sphi 0, %s23
    %s24 = sphi 0, %s21
    %s25 = sphi 0, %s24
    %s41 = sphi 0, %s25
    %s47 = sphi 0, %s49
    %s50 = sphi 0, %s47
    %s51 = sphi 0, %s50
    %s67 = sphi 0, %s51
    %s73 = sphi 0, %s75
    %s76 = sphi 0, %s73
    %s77 = sphi 0, %s76
    %s93 = sphi 0, %s77
    %s99 = sphi 0, %s101
    %s102 = sphi 0, %s99
    %s103 = sphi 0, %s102
    %s119 = sphi 0, %s103
    %s125 = sphi 0, %s127
    %s128 = sphi 0, %s125
    %s129 = sphi 0, %s128
    %s145 = sphi 0, %s129
    %s151 = sphi 0, %s153
    %s154 = sphi 0, %s151
    %s155 = sphi 0, %s154
    %s171 = sphi 0, %s155
  $region4: #{actor_critic_forward.7} parent=0 // loop_header_branch
    %14 = sbr.rel (%p12) target = $region8
  $region5: #{actor_critic_forward.7} parent=0 // loop_body
    %s16 = ssub.s32 %s11, 1
    %s17 = ssub.s32 %s11, 2
    %s18 = sadd.s32 %s11, 1
    %s19 = ssub.s32 %s11, %s18
    %p20 = scmp.eq.s32.totalorder %s19, 0
    %s22 = sadd.s32 %s21, 1
    %s23 = scalar_select %p20, %s21, %s22
    %p26 = pneg %p20
    %p27 = scmp.eq.s32.totalorder %s11, 1
    %p28 = por %p26, %p27
    %p29 = scmp.ne.s32.totalorder %s21, %s24
    %p30 = scmp.eq.s32.totalorder %s11, 0
    %p31 = por %p29, %p30
    %p32 = scmp.ne.s32.totalorder %s21, %s24
    %p33 = scmp.eq.s32.totalorder %s16, 1
    %p34 = por %p32, %p33
    %p35 = scmp.ne.s32.totalorder %s24, %s25
    %p36 = scmp.eq.s32.totalorder %s16, 0
    %p37 = por %p35, %p36
    %p38 = scmp.ne.s32.totalorder %s24, %s25
    %p39 = scmp.eq.s32.totalorder %s17, 1
    %p40 = por %p38, %p39
    %p42 = scmp.ne.s32.totalorder %s25, %s41
    %p43 = scmp.eq.s32.totalorder %s17, 0
    %p44 = por %p42, %p43
    %s45 = ssub.s32 %s11, %s18
    %p46 = scmp.eq.s32.totalorder %s45, 0
    %s48 = sadd.s32 %s47, 1
    %s49 = scalar_select %p46, %s47, %s48
    %p52 = pneg %p46
    %p53 = scmp.eq.s32.totalorder %s11, 1
    %p54 = por %p52, %p53
    %p55 = scmp.ne.s32.totalorder %s47, %s50
    %p56 = scmp.eq.s32.totalorder %s11, 0
    %p57 = por %p55, %p56
    %p58 = scmp.ne.s32.totalorder %s47, %s50
    %p59 = scmp.eq.s32.totalorder %s16, 1
    %p60 = por %p58, %p59
    %p61 = scmp.ne.s32.totalorder %s50, %s51
    %p62 = scmp.eq.s32.totalorder %s16, 0
    %p63 = por %p61, %p62
    %p64 = scmp.ne.s32.totalorder %s50, %s51
    %p65 = scmp.eq.s32.totalorder %s17, 1
    %p66 = por %p64, %p65
    %p68 = scmp.ne.s32.totalorder %s51, %s67
    %p69 = scmp.eq.s32.totalorder %s17, 0
    %p70 = por %p68, %p69
    %s71 = ssub.s32 %s11, %s18
    %p72 = scmp.eq.s32.totalorder %s71, 0
    %s74 = sadd.s32 %s73, 1
    %s75 = scalar_select %p72, %s73, %s74
    %p78 = pneg %p72
    %p79 = scmp.eq.s32.totalorder %s11, 1
    %p80 = por %p78, %p79
    %p81 = scmp.ne.s32.totalorder %s73, %s76
    %p82 = scmp.eq.s32.totalorder %s11, 0
    %p83 = por %p81, %p82
    %p84 = scmp.ne.s32.totalorder %s73, %s76
    %p85 = scmp.eq.s32.totalorder %s16, 1
    %p86 = por %p84, %p85
    %p87 = scmp.ne.s32.totalorder %s76, %s77
    %p88 = scmp.eq.s32.totalorder %s16, 0
    %p89 = por %p87, %p88
    %p90 = scmp.ne.s32.totalorder %s76, %s77
    %p91 = scmp.eq.s32.totalorder %s17, 1
    %p92 = por %p90, %p91
    %p94 = scmp.ne.s32.totalorder %s77, %s93
    %p95 = scmp.eq.s32.totalorder %s17, 0
    %p96 = por %p94, %p95
    %s97 = ssub.s32 %s11, %s18
    %p98 = scmp.eq.s32.totalorder %s97, 0
    %s100 = sadd.s32 %s99, 1
    %s101 = scalar_select %p98, %s99, %s100
    %p104 = pneg %p98
    %p105 = scmp.eq.s32.totalorder %s11, 1
    %p106 = por %p104, %p105
    %p107 = scmp.ne.s32.totalorder %s99, %s102
    %p108 = scmp.eq.s32.totalorder %s11, 0
    %p109 = por %p107, %p108
    %p110 = scmp.ne.s32.totalorder %s99, %s102
    %p111 = scmp.eq.s32.totalorder %s16, 1
    %p112 = por %p110, %p111
    %p113 = scmp.ne.s32.totalorder %s102, %s103
    %p114 = scmp.eq.s32.totalorder %s16, 0
    %p115 = por %p113, %p114
    %p116 = scmp.ne.s32.totalorder %s102, %s103
    %p117 = scmp.eq.s32.totalorder %s17, 1
    %p118 = por %p116, %p117
    %p120 = scmp.ne.s32.totalorder %s103, %s119
    %p121 = scmp.eq.s32.totalorder %s17, 0
    %p122 = por %p120, %p121
    %s123 = ssub.s32 %s11, %s18
    %p124 = scmp.eq.s32.totalorder %s123, 0
    %s126 = sadd.s32 %s125, 1
    %s127 = scalar_select %p124, %s125, %s126
    %p130 = pneg %p124
    %p131 = scmp.eq.s32.totalorder %s11, 1
    %p132 = por %p130, %p131
    %p133 = scmp.ne.s32.totalorder %s125, %s128
    %p134 = scmp.eq.s32.totalorder %s11, 0
    %p135 = por %p133, %p134
    %p136 = scmp.ne.s32.totalorder %s125, %s128
    %p137 = scmp.eq.s32.totalorder %s16, 1
    %p138 = por %p136, %p137
    %p139 = scmp.ne.s32.totalorder %s128, %s129
    %p140 = scmp.eq.s32.totalorder %s16, 0
    %p141 = por %p139, %p140
    %p142 = scmp.ne.s32.totalorder %s128, %s129
    %p143 = scmp.eq.s32.totalorder %s17, 1
    %p144 = por %p142, %p143
    %p146 = scmp.ne.s32.totalorder %s129, %s145
    %p147 = scmp.eq.s32.totalorder %s17, 0
    %p148 = por %p146, %p147
    %s149 = ssub.s32 %s11, %s18
    %p150 = scmp.eq.s32.totalorder %s149, 0
    %s152 = sadd.s32 %s151, 1
    %s153 = scalar_select %p150, %s151, %s152
    %p156 = pneg %p150
    %p157 = scmp.eq.s32.totalorder %s11, 1
    %p158 = por %p156, %p157
    %p159 = scmp.ne.s32.totalorder %s151, %s154
    %p160 = scmp.eq.s32.totalorder %s11, 0
    %p161 = por %p159, %p160
    %p162 = scmp.ne.s32.totalorder %s151, %s154
    %p163 = scmp.eq.s32.totalorder %s16, 1
    %p164 = por %p162, %p163
    %p165 = scmp.ne.s32.totalorder %s154, %s155
    %p166 = scmp.eq.s32.totalorder %s16, 0
    %p167 = por %p165, %p166
    %p168 = scmp.ne.s32.totalorder %s154, %s155
    %p169 = scmp.eq.s32.totalorder %s17, 1
    %p170 = por %p168, %p169
    %p172 = scmp.ne.s32.totalorder %s155, %s171
    %p173 = scmp.eq.s32.totalorder %s17, 0
    %p174 = por %p172, %p173
    %p175 = scmp.le.s32.totalorder 1, %s11
    %p176 = scmp.lt.s32.totalorder %s11, 3
    %p177 = pnand %p175, %p176
    %p178 = pneg %p177
    // Predicated region
    $region9: #{actor_critic_forward.7} parent=5 // pred_check
      _
    $region10: #{actor_critic_forward.7} parent=5 // pred_check_branch
      %180 = sbr.rel (%p177) target = $region12
    $region11: #{actor_critic_forward.7} parent=5 // pred_region
      %s181 = ssub.s32 %s11, 1
    $region12: #{actor_critic_forward.7} parent=5 // pred_fallthru
      _
    %p182 = scmp.lt.s32.totalorder %s11, 2
    // Predicated region
    $region13: #{actor_critic_forward.7} parent=5 // pred_check
      %p183 = pneg %p182
    $region14: #{actor_critic_forward.7} parent=5 // pred_check_branch
      %185 = sbr.rel (%p183) target = $region16
    $region15: #{actor_critic_forward.7} parent=5 // pred_region
      // Predicated region
      $region17: #{actor_critic_forward.7} parent=15 // pred_check
        %p186 = pneg %p31
      $region18: #{actor_critic_forward.7} parent=15 // pred_check_branch
        %188 = sbr.rel (%p186) target = $region20
      $region19: #{actor_critic_forward.7} parent=15 // pred_region
        %p189 = scmp.lt.s32.totalorder %s11, 1
        %s190 = scalar_select %p189, %s11, 1
        %s191 = smul.addr %s190, 25
        %s192 = scalar_lea.vmem %s0, %s191
      $region20: #{actor_critic_forward.7} parent=15 // pred_fallthru
        _
      // Predicated region
      $region21: #{actor_critic_forward.7} parent=15 // pred_check
        %p193 = pneg %p57
      $region22: #{actor_critic_forward.7} parent=15 // pred_check_branch
        %195 = sbr.rel (%p193) target = $region24
      $region23: #{actor_critic_forward.7} parent=15 // pred_region
        %p196 = scmp.lt.s32.totalorder %s11, 1
        %s197 = scalar_select %p196, %s11, 1
        %s198 = smul.addr %s197, 1568
        %s199 = smul.addr %s198, 4
        %s200 = scalar_lea.vmem %s1, %s199
      $region24: #{actor_critic_forward.7} parent=15 // pred_fallthru
        _
      // Predicated region
      $region25: #{actor_critic_forward.7} parent=15 // pred_check
        %p201 = pneg %p83
      $region26: #{actor_critic_forward.7} parent=15 // pred_check_branch
        %203 = sbr.rel (%p201) target = $region28
      $region27: #{actor_critic_forward.7} parent=15 // pred_region
        %p204 = scmp.lt.s32.totalorder %s11, 1
        %s205 = scalar_select %p204, %s11, 1
        %s206 = smul.addr %s205, 4
        %s207 = scalar_lea.vmem %s2, %s206
      $region28: #{actor_critic_forward.7} parent=15 // pred_fallthru
        _
      // Predicated region
      $region29: #{actor_critic_forward.7} parent=15 // pred_check
        %p208 = pneg %p109
      $region30: #{actor_critic_forward.7} parent=15 // pred_check_branch
        %210 = sbr.rel (%p208) target = $region32
      $region31: #{actor_critic_forward.7} parent=15 // pred_region
        %p211 = scmp.lt.s32.totalorder %s11, 1
        %s212 = scalar_select %p211, %s11, 1
        %s213 = smul.addr %s212, 64
        %s214 = smul.addr %s213, 4
        %s215 = scalar_lea.vmem %s3, %s214
      $region32: #{actor_critic_forward.7} parent=15 // pred_fallthru
        _
      // Predicated region
      $region33: #{actor_critic_forward.7} parent=15 // pred_check
        %p216 = pneg %p135
      $region34: #{actor_critic_forward.7} parent=15 // pred_check_branch
        %218 = sbr.rel (%p216) target = $region36
      $region35: #{actor_critic_forward.7} parent=15 // pred_region
        %p219 = scmp.lt.s32.totalorder %s11, 1
        %s220 = scalar_select %p219, %s11, 1
        %s221 = scalar_lea.vmem %s4, %s220
      $region36: #{actor_critic_forward.7} parent=15 // pred_fallthru
        _
    $region16: #{actor_critic_forward.7} parent=5 // pred_fallthru
      _
    %p222 = scmp.le.s32.totalorder 1, %s11
    %p223 = scmp.lt.s32.totalorder %s11, 3
    %p224 = pnand %p222, %p223
    %p225 = pneg %p224
    // Predicated region
    $region37: #{actor_critic_forward.7} parent=5 // pred_check
      _
    $region38: #{actor_critic_forward.7} parent=5 // pred_check_branch
      %227 = sbr.rel (%p224) target = $region40
    $region39: #{actor_critic_forward.7} parent=5 // pred_region
      %s228 = ssub.s32 %s11, 1
      %p229 = scmp.lt.s32.totalorder %s16, 1
      %s230 = scalar_select %p229, %s16, 1
      %s231 = smul.addr %s230, 25
      %s232 = scalar_lea.vmem %s0, %s231
      %p233 = pneg %p37
      %p234 = pneg %p34
      %p235 = scmp.lt.s32.totalorder %s16, 1
      %s236 = scalar_select %p235, %s16, 1
      %s237 = smul.addr %s236, 1568
      %s238 = smul.addr %s237, 4
      %s239 = scalar_lea.vmem %s1, %s238
      %p240 = pneg %p63
      %p241 = pneg %p60
      %p242 = scmp.lt.s32.totalorder %s16, 1
      %s243 = scalar_select %p242, %s16, 1
      %s244 = smul.addr %s243, 4
      %s245 = scalar_lea.vmem %s2, %s244
      %p246 = pneg %p89
      %p247 = pneg %p86
      %p248 = scmp.lt.s32.totalorder %s16, 1
      %s249 = scalar_select %p248, %s16, 1
      %s250 = smul.addr %s249, 64
      %s251 = smul.addr %s250, 4
      %s252 = scalar_lea.vmem %s3, %s251
      %p253 = pneg %p115
      %p254 = pneg %p112
      %p255 = scmp.lt.s32.totalorder %s16, 1
      %s256 = scalar_select %p255, %s16, 1
      %s257 = scalar_lea.vmem %s4, %s256
      %p258 = pneg %p141
      %p259 = pneg %p138
      %p260 = pneg %p167
      %p261 = pneg %p164
      %p262 = scmp.lt.s32.totalorder %s16, 1
      %s263 = scalar_select %p262, %s16, 1
      %s264 = smul.addr %s263, 2
      %s265 = scalar_lea.vmem %s5, %s264
      %p266 = scmp.lt.s32.totalorder %s16, 1
      %s267 = scalar_select %p266, %s16, 1
      %s268 = smul.addr %s267, 25
      %s269 = scalar_lea.vmem %s0, %s268
      %p270 = scmp.lt.s32.totalorder %s16, 1
      %s271 = scalar_select %p270, %s16, 1
      %s272 = smul.addr %s271, 1568
      %s273 = smul.addr %s272, 4
      %s274 = scalar_lea.vmem %s1, %s273
      %p275 = scmp.lt.s32.totalorder %s16, 1
      %s276 = scalar_select %p275, %s16, 1
      %s277 = smul.addr %s276, 4
      %s278 = scalar_lea.vmem %s2, %s277
      %p279 = scmp.lt.s32.totalorder %s16, 1
      %s280 = scalar_select %p279, %s16, 1
      %s281 = smul.addr %s280, 64
      %s282 = smul.addr %s281, 4
      %s283 = scalar_lea.vmem %s3, %s282
      %p284 = scmp.lt.s32.totalorder %s16, 1
      %s285 = scalar_select %p284, %s16, 1
      %s286 = scalar_lea.vmem %s4, %s285
      %p287 = scmp.lt.s32.totalorder %s16, 1
      %s288 = scalar_select %p287, %s16, 1
      %s289 = smul.addr %s288, 2
      %s290 = scalar_lea.vmem %s5, %s289
      %v292 = vld [vmem:[%s269] sm:$0xff]
      %v293 = vld [vmem:[%s269 + $0x8] sm:$0xff]
      %v294 = vld [vmem:[%s269 + $0x10] sm:$0xff]
      %v295 = vld [vmem:[%s269 + $0x18] sm:$0x1]
      %v296 = vld [vmem:[%s274] sm:$0xff]
      %v297 = vld [vmem:[%s274 + $0x8] sm:$0xff]
      %v298 = vld [vmem:[%s274 + $0x10] sm:$0xff]
      %v299 = vld [vmem:[%s274 + $0x18] sm:$0xff]
      %v300 = vld [vmem:[%s274 + $0x20] sm:$0xff]
      %v301 = vld [vmem:[%s274 + $0x28] sm:$0xff]
      %v302 = vld [vmem:[%s274 + $0x30] sm:$0xff]
      %v303 = vld [vmem:[%s274 + $0x38] sm:$0xff]
      %v304 = vld [vmem:[%s274 + $0x40] sm:$0xff]
      %v305 = vld [vmem:[%s274 + $0x48] sm:$0xff]
      %v306 = vld [vmem:[%s274 + $0x50] sm:$0xff]
      %v307 = vld [vmem:[%s274 + $0x58] sm:$0xff]
      %v308 = vld [vmem:[%s274 + $0x60] sm:$0xff]
      %v309 = vld [vmem:[%s274 + $0x68] sm:$0xff]
      %v310 = vld [vmem:[%s274 + $0x70] sm:$0xff]
      %v311 = vld [vmem:[%s274 + $0x78] sm:$0xff]
      %v312 = vld [vmem:[%s274 + $0x80] sm:$0xff]
      %v313 = vld [vmem:[%s274 + $0x88] sm:$0xff]
      %v314 = vld [vmem:[%s274 + $0x90] sm:$0xff]
      %v315 = vld [vmem:[%s274 + $0x98] sm:$0xff]
      %v316 = vld [vmem:[%s274 + $0xa0] sm:$0xff]
      %v317 = vld [vmem:[%s274 + $0xa8] sm:$0xff]
      %v318 = vld [vmem:[%s274 + $0xb0] sm:$0xff]
      %v319 = vld [vmem:[%s274 + $0xb8] sm:$0xff]
      %v320 = vld [vmem:[%s274 + $0xc0] sm:$0xff]
      %v321 = vld [vmem:[%s274 + $0xc8] sm:$0xff]
      %v322 = vld [vmem:[%s274 + $0xd0] sm:$0xff]
      %v323 = vld [vmem:[%s274 + $0xd8] sm:$0xff]
      %v324 = vld [vmem:[%s274 + $0xe0] sm:$0xff]
      %v325 = vld [vmem:[%s274 + $0xe8] sm:$0xff]
      %v326 = vld [vmem:[%s274 + $0xf0] sm:$0xff]
      %v327 = vld [vmem:[%s274 + $0xf8] sm:$0xff]
      %v328 = vld [vmem:[%s274 + $0x100] sm:$0xff]
      %v329 = vld [vmem:[%s274 + $0x108] sm:$0xff]
      %v330 = vld [vmem:[%s274 + $0x110] sm:$0xff]
      %v331 = vld [vmem:[%s274 + $0x118] sm:$0xff]
      %v332 = vld [vmem:[%s274 + $0x120] sm:$0xff]
      %v333 = vld [vmem:[%s274 + $0x128] sm:$0xff]
      %v334 = vld [vmem:[%s274 + $0x130] sm:$0xff]
      %v335 = vld [vmem:[%s274 + $0x138] sm:$0xff]
      %v336 = vld [vmem:[%s274 + $0x140] sm:$0xff]
      %v337 = vld [vmem:[%s274 + $0x148] sm:$0xff]
      %v338 = vld [vmem:[%s274 + $0x150] sm:$0xff]
      %v339 = vld [vmem:[%s274 + $0x158] sm:$0xff]
      %v340 = vld [vmem:[%s274 + $0x160] sm:$0xff]
      %v341 = vld [vmem:[%s274 + $0x168] sm:$0xff]
      %v342 = vld [vmem:[%s274 + $0x170] sm:$0xff]
      %v343 = vld [vmem:[%s274 + $0x178] sm:$0xff]
      %v344 = vld [vmem:[%s274 + $0x180] sm:$0xff]
      %v345 = vld [vmem:[%s274 + $0x188] sm:$0xff]
      %v346 = vld [vmem:[%s274 + $0x190] sm:$0xff]
      %v347 = vld [vmem:[%s274 + $0x198] sm:$0xff]
      %v348 = vld [vmem:[%s274 + $0x1a0] sm:$0xff]
      %v349 = vld [vmem:[%s274 + $0x1a8] sm:$0xff]
      %v350 = vld [vmem:[%s274 + $0x1b0] sm:$0xff]
      %v351 = vld [vmem:[%s274 + $0x1b8] sm:$0xff]
      %v352 = vld [vmem:[%s274 + $0x1c0] sm:$0xff]
      %v353 = vld [vmem:[%s274 + $0x1c8] sm:$0xff]
      %v354 = vld [vmem:[%s274 + $0x1d0] sm:$0xff]
      %v355 = vld [vmem:[%s274 + $0x1d8] sm:$0xff]
      %v356 = vld [vmem:[%s274 + $0x1e0] sm:$0xff]
      %v357 = vld [vmem:[%s274 + $0x1e8] sm:$0xff]
      %v358 = vld [vmem:[%s274 + $0x1f0] sm:$0xff]
      %v359 = vld [vmem:[%s274 + $0x1f8] sm:$0xff]
      %v360 = vld [vmem:[%s274 + $0x200] sm:$0xff]
      %v361 = vld [vmem:[%s274 + $0x208] sm:$0xff]
      %v362 = vld [vmem:[%s274 + $0x210] sm:$0xff]
      %v363 = vld [vmem:[%s274 + $0x218] sm:$0xff]
      %v364 = vld [vmem:[%s274 + $0x220] sm:$0xff]
      %v365 = vld [vmem:[%s274 + $0x228] sm:$0xff]
      %v366 = vld [vmem:[%s274 + $0x230] sm:$0xff]
      %v367 = vld [vmem:[%s274 + $0x238] sm:$0xff]
      %v368 = vld [vmem:[%s274 + $0x240] sm:$0xff]
      %v369 = vld [vmem:[%s274 + $0x248] sm:$0xff]
      %v370 = vld [vmem:[%s274 + $0x250] sm:$0xff]
      %v371 = vld [vmem:[%s274 + $0x258] sm:$0xff]
      %v372 = vld [vmem:[%s274 + $0x260] sm:$0xff]
      %v373 = vld [vmem:[%s274 + $0x268] sm:$0xff]
      %v374 = vld [vmem:[%s274 + $0x270] sm:$0xff]
      %v375 = vld [vmem:[%s274 + $0x278] sm:$0xff]
      %v376 = vld [vmem:[%s274 + $0x280] sm:$0xff]
      %v377 = vld [vmem:[%s274 + $0x288] sm:$0xff]
      %v378 = vld [vmem:[%s274 + $0x290] sm:$0xff]
      %v379 = vld [vmem:[%s274 + $0x298] sm:$0xff]
      %v380 = vld [vmem:[%s274 + $0x2a0] sm:$0xff]
      %v381 = vld [vmem:[%s274 + $0x2a8] sm:$0xff]
      %v382 = vld [vmem:[%s274 + $0x2b0] sm:$0xff]
      %v383 = vld [vmem:[%s274 + $0x2b8] sm:$0xff]
      %v384 = vld [vmem:[%s274 + $0x2c0] sm:$0xff]
      %v385 = vld [vmem:[%s274 + $0x2c8] sm:$0xff]
      %v386 = vld [vmem:[%s274 + $0x2d0] sm:$0xff]
      %v387 = vld [vmem:[%s274 + $0x2d8] sm:$0xff]
      %v388 = vld [vmem:[%s274 + $0x2e0] sm:$0xff]
      %v389 = vld [vmem:[%s274 + $0x2e8] sm:$0xff]
      %v390 = vld [vmem:[%s274 + $0x2f0] sm:$0xff]
      %v391 = vld [vmem:[%s274 + $0x2f8] sm:$0xff]
      %v392 = vld [vmem:[%s274 + $0x300] sm:$0xff]
      %v393 = vld [vmem:[%s274 + $0x308] sm:$0xff]
      %v394 = vld [vmem:[%s274 + $0x310] sm:$0xff]
      %v395 = vld [vmem:[%s274 + $0x318] sm:$0xff]
      %v396 = vld [vmem:[%s274 + $0x320] sm:$0xff]
      %v397 = vld [vmem:[%s274 + $0x328] sm:$0xff]
      %v398 = vld [vmem:[%s274 + $0x330] sm:$0xff]
      %v399 = vld [vmem:[%s274 + $0x338] sm:$0xff]
      %v400 = vld [vmem:[%s274 + $0x340] sm:$0xff]
      %v401 = vld [vmem:[%s274 + $0x348] sm:$0xff]
      %v402 = vld [vmem:[%s274 + $0x350] sm:$0xff]
      %v403 = vld [vmem:[%s274 + $0x358] sm:$0xff]
      %v404 = vld [vmem:[%s274 + $0x360] sm:$0xff]
      %v405 = vld [vmem:[%s274 + $0x368] sm:$0xff]
      %v406 = vld [vmem:[%s274 + $0x370] sm:$0xff]
      %v407 = vld [vmem:[%s274 + $0x378] sm:$0xff]
      %v408 = vld [vmem:[%s274 + $0x380] sm:$0xff]
      %v409 = vld [vmem:[%s274 + $0x388] sm:$0xff]
      %v410 = vld [vmem:[%s274 + $0x390] sm:$0xff]
      %v411 = vld [vmem:[%s274 + $0x398] sm:$0xff]
      %v412 = vld [vmem:[%s274 + $0x3a0] sm:$0xff]
      %v413 = vld [vmem:[%s274 + $0x3a8] sm:$0xff]
      %v414 = vld [vmem:[%s274 + $0x3b0] sm:$0xff]
      %v415 = vld [vmem:[%s274 + $0x3b8] sm:$0xff]
      %v416 = vld [vmem:[%s274 + $0x3c0] sm:$0xff]
      %v417 = vld [vmem:[%s274 + $0x3c8] sm:$0xff]
      %v418 = vld [vmem:[%s274 + $0x3d0] sm:$0xff]
      %v419 = vld [vmem:[%s274 + $0x3d8] sm:$0xff]
      %v420 = vld [vmem:[%s274 + $0x3e0] sm:$0xff]
      %v421 = vld [vmem:[%s274 + $0x3e8] sm:$0xff]
      %v422 = vld [vmem:[%s274 + $0x3f0] sm:$0xff]
      %v423 = vld [vmem:[%s274 + $0x3f8] sm:$0xff]
      %v424 = vld [vmem:[%s274 + $0x400] sm:$0xff]
      %v425 = vld [vmem:[%s274 + $0x408] sm:$0xff]
      %v426 = vld [vmem:[%s274 + $0x410] sm:$0xff]
      %v427 = vld [vmem:[%s274 + $0x418] sm:$0xff]
      %v428 = vld [vmem:[%s274 + $0x420] sm:$0xff]
      %v429 = vld [vmem:[%s274 + $0x428] sm:$0xff]
      %v430 = vld [vmem:[%s274 + $0x430] sm:$0xff]
      %v431 = vld [vmem:[%s274 + $0x438] sm:$0xff]
      %v432 = vld [vmem:[%s274 + $0x440] sm:$0xff]
      %v433 = vld [vmem:[%s274 + $0x448] sm:$0xff]
      %v434 = vld [vmem:[%s274 + $0x450] sm:$0xff]
      %v435 = vld [vmem:[%s274 + $0x458] sm:$0xff]
      %v436 = vld [vmem:[%s274 + $0x460] sm:$0xff]
      %v437 = vld [vmem:[%s274 + $0x468] sm:$0xff]
      %v438 = vld [vmem:[%s274 + $0x470] sm:$0xff]
      %v439 = vld [vmem:[%s274 + $0x478] sm:$0xff]
      %v440 = vld [vmem:[%s274 + $0x480] sm:$0xff]
      %v441 = vld [vmem:[%s274 + $0x488] sm:$0xff]
      %v442 = vld [vmem:[%s274 + $0x490] sm:$0xff]
      %v443 = vld [vmem:[%s274 + $0x498] sm:$0xff]
      %v444 = vld [vmem:[%s274 + $0x4a0] sm:$0xff]
      %v445 = vld [vmem:[%s274 + $0x4a8] sm:$0xff]
      %v446 = vld [vmem:[%s274 + $0x4b0] sm:$0xff]
      %v447 = vld [vmem:[%s274 + $0x4b8] sm:$0xff]
      %v448 = vld [vmem:[%s274 + $0x4c0] sm:$0xff]
      %v449 = vld [vmem:[%s274 + $0x4c8] sm:$0xff]
      %v450 = vld [vmem:[%s274 + $0x4d0] sm:$0xff]
      %v451 = vld [vmem:[%s274 + $0x4d8] sm:$0xff]
      %v452 = vld [vmem:[%s274 + $0x4e0] sm:$0xff]
      %v453 = vld [vmem:[%s274 + $0x4e8] sm:$0xff]
      %v454 = vld [vmem:[%s274 + $0x4f0] sm:$0xff]
      %v455 = vld [vmem:[%s274 + $0x4f8] sm:$0xff]
      %v456 = vld [vmem:[%s274 + $0x500] sm:$0xff]
      %v457 = vld [vmem:[%s274 + $0x508] sm:$0xff]
      %v458 = vld [vmem:[%s274 + $0x510] sm:$0xff]
      %v459 = vld [vmem:[%s274 + $0x518] sm:$0xff]
      %v460 = vld [vmem:[%s274 + $0x520] sm:$0xff]
      %v461 = vld [vmem:[%s274 + $0x528] sm:$0xff]
      %v462 = vld [vmem:[%s274 + $0x530] sm:$0xff]
      %v463 = vld [vmem:[%s274 + $0x538] sm:$0xff]
      %v464 = vld [vmem:[%s274 + $0x540] sm:$0xff]
      %v465 = vld [vmem:[%s274 + $0x548] sm:$0xff]
      %v466 = vld [vmem:[%s274 + $0x550] sm:$0xff]
      %v467 = vld [vmem:[%s274 + $0x558] sm:$0xff]
      %v468 = vld [vmem:[%s274 + $0x560] sm:$0xff]
      %v469 = vld [vmem:[%s274 + $0x568] sm:$0xff]
      %v470 = vld [vmem:[%s274 + $0x570] sm:$0xff]
      %v471 = vld [vmem:[%s274 + $0x578] sm:$0xff]
      %v472 = vld [vmem:[%s274 + $0x580] sm:$0xff]
      %v473 = vld [vmem:[%s274 + $0x588] sm:$0xff]
      %v474 = vld [vmem:[%s274 + $0x590] sm:$0xff]
      %v475 = vld [vmem:[%s274 + $0x598] sm:$0xff]
      %v476 = vld [vmem:[%s274 + $0x5a0] sm:$0xff]
      %v477 = vld [vmem:[%s274 + $0x5a8] sm:$0xff]
      %v478 = vld [vmem:[%s274 + $0x5b0] sm:$0xff]
      %v479 = vld [vmem:[%s274 + $0x5b8] sm:$0xff]
      %v480 = vld [vmem:[%s274 + $0x5c0] sm:$0xff]
      %v481 = vld [vmem:[%s274 + $0x5c8] sm:$0xff]
      %v482 = vld [vmem:[%s274 + $0x5d0] sm:$0xff]
      %v483 = vld [vmem:[%s274 + $0x5d8] sm:$0xff]
      %v484 = vld [vmem:[%s274 + $0x5e0] sm:$0xff]
      %v485 = vld [vmem:[%s274 + $0x5e8] sm:$0xff]
      %v486 = vld [vmem:[%s274 + $0x5f0] sm:$0xff]
      %v487 = vld [vmem:[%s274 + $0x5f8] sm:$0xff]
      %v488 = vld [vmem:[%s274 + $0x600] sm:$0xff]
      %v489 = vld [vmem:[%s274 + $0x608] sm:$0xff]
      %v490 = vld [vmem:[%s274 + $0x610] sm:$0xff]
      %v491 = vld [vmem:[%s274 + $0x618] sm:$0xff]
      %v492 = vld [vmem:[%s274 + $0x620] sm:$0xff]
      %v493 = vld [vmem:[%s274 + $0x628] sm:$0xff]
      %v494 = vld [vmem:[%s274 + $0x630] sm:$0xff]
      %v495 = vld [vmem:[%s274 + $0x638] sm:$0xff]
      %v496 = vld [vmem:[%s274 + $0x640] sm:$0xff]
      %v497 = vld [vmem:[%s274 + $0x648] sm:$0xff]
      %v498 = vld [vmem:[%s274 + $0x650] sm:$0xff]
      %v499 = vld [vmem:[%s274 + $0x658] sm:$0xff]
      %v500 = vld [vmem:[%s274 + $0x660] sm:$0xff]
      %v501 = vld [vmem:[%s274 + $0x668] sm:$0xff]
      %v502 = vld [vmem:[%s274 + $0x670] sm:$0xff]
      %v503 = vld [vmem:[%s274 + $0x678] sm:$0xff]
      %v504 = vld [vmem:[%s274 + $0x680] sm:$0xff]
      %v505 = vld [vmem:[%s274 + $0x688] sm:$0xff]
      %v506 = vld [vmem:[%s274 + $0x690] sm:$0xff]
      %v507 = vld [vmem:[%s274 + $0x698] sm:$0xff]
      %v508 = vld [vmem:[%s274 + $0x6a0] sm:$0xff]
      %v509 = vld [vmem:[%s274 + $0x6a8] sm:$0xff]
      %v510 = vld [vmem:[%s274 + $0x6b0] sm:$0xff]
      %v511 = vld [vmem:[%s274 + $0x6b8] sm:$0xff]
      %v512 = vld [vmem:[%s274 + $0x6c0] sm:$0xff]
      %v513 = vld [vmem:[%s274 + $0x6c8] sm:$0xff]
      %v514 = vld [vmem:[%s274 + $0x6d0] sm:$0xff]
      %v515 = vld [vmem:[%s274 + $0x6d8] sm:$0xff]
      %v516 = vld [vmem:[%s274 + $0x6e0] sm:$0xff]
      %v517 = vld [vmem:[%s274 + $0x6e8] sm:$0xff]
      %v518 = vld [vmem:[%s274 + $0x6f0] sm:$0xff]
      %v519 = vld [vmem:[%s274 + $0x6f8] sm:$0xff]
      %v520 = vld [vmem:[%s274 + $0x700] sm:$0xff]
      %v521 = vld [vmem:[%s274 + $0x708] sm:$0xff]
      %v522 = vld [vmem:[%s274 + $0x710] sm:$0xff]
      %v523 = vld [vmem:[%s274 + $0x718] sm:$0xff]
      %v524 = vld [vmem:[%s274 + $0x720] sm:$0xff]
      %v525 = vld [vmem:[%s274 + $0x728] sm:$0xff]
      %v526 = vld [vmem:[%s274 + $0x730] sm:$0xff]
      %v527 = vld [vmem:[%s274 + $0x738] sm:$0xff]
      %v528 = vld [vmem:[%s274 + $0x740] sm:$0xff]
      %v529 = vld [vmem:[%s274 + $0x748] sm:$0xff]
      %v530 = vld [vmem:[%s274 + $0x750] sm:$0xff]
      %v531 = vld [vmem:[%s274 + $0x758] sm:$0xff]
      %v532 = vld [vmem:[%s274 + $0x760] sm:$0xff]
      %v533 = vld [vmem:[%s274 + $0x768] sm:$0xff]
      %v534 = vld [vmem:[%s274 + $0x770] sm:$0xff]
      %v535 = vld [vmem:[%s274 + $0x778] sm:$0xff]
      %v536 = vld [vmem:[%s274 + $0x780] sm:$0xff]
      %v537 = vld [vmem:[%s274 + $0x788] sm:$0xff]
      %v538 = vld [vmem:[%s274 + $0x790] sm:$0xff]
      %v539 = vld [vmem:[%s274 + $0x798] sm:$0xff]
      %v540 = vld [vmem:[%s274 + $0x7a0] sm:$0xff]
      %v541 = vld [vmem:[%s274 + $0x7a8] sm:$0xff]
      %v542 = vld [vmem:[%s274 + $0x7b0] sm:$0xff]
      %v543 = vld [vmem:[%s274 + $0x7b8] sm:$0xff]
      %v544 = vld [vmem:[%s274 + $0x7c0] sm:$0xff]
      %v545 = vld [vmem:[%s274 + $0x7c8] sm:$0xff]
      %v546 = vld [vmem:[%s274 + $0x7d0] sm:$0xff]
      %v547 = vld [vmem:[%s274 + $0x7d8] sm:$0xff]
      %v548 = vld [vmem:[%s274 + $0x7e0] sm:$0xff]
      %v549 = vld [vmem:[%s274 + $0x7e8] sm:$0xff]
      %v550 = vld [vmem:[%s274 + $0x7f0] sm:$0xff]
      %v551 = vld [vmem:[%s274 + $0x7f8] sm:$0xff]
      %v552 = vld [vmem:[%s274 + $0x800] sm:$0xff]
      %v553 = vld [vmem:[%s274 + $0x808] sm:$0xff]
      %v554 = vld [vmem:[%s274 + $0x810] sm:$0xff]
      %v555 = vld [vmem:[%s274 + $0x818] sm:$0xff]
      %v556 = vld [vmem:[%s274 + $0x820] sm:$0xff]
      %v557 = vld [vmem:[%s274 + $0x828] sm:$0xff]
      %v558 = vld [vmem:[%s274 + $0x830] sm:$0xff]
      %v559 = vld [vmem:[%s274 + $0x838] sm:$0xff]
      %v560 = vld [vmem:[%s274 + $0x840] sm:$0xff]
      %v561 = vld [vmem:[%s274 + $0x848] sm:$0xff]
      %v562 = vld [vmem:[%s274 + $0x850] sm:$0xff]
      %v563 = vld [vmem:[%s274 + $0x858] sm:$0xff]
      %v564 = vld [vmem:[%s274 + $0x860] sm:$0xff]
      %v565 = vld [vmem:[%s274 + $0x868] sm:$0xff]
      %v566 = vld [vmem:[%s274 + $0x870] sm:$0xff]
      %v567 = vld [vmem:[%s274 + $0x878] sm:$0xff]
      %v568 = vld [vmem:[%s274 + $0x880] sm:$0xff]
      %v569 = vld [vmem:[%s274 + $0x888] sm:$0xff]
      %v570 = vld [vmem:[%s274 + $0x890] sm:$0xff]
      %v571 = vld [vmem:[%s274 + $0x898] sm:$0xff]
      %v572 = vld [vmem:[%s274 + $0x8a0] sm:$0xff]
      %v573 = vld [vmem:[%s274 + $0x8a8] sm:$0xff]
      %v574 = vld [vmem:[%s274 + $0x8b0] sm:$0xff]
      %v575 = vld [vmem:[%s274 + $0x8b8] sm:$0xff]
      %v576 = vld [vmem:[%s274 + $0x8c0] sm:$0xff]
      %v577 = vld [vmem:[%s274 + $0x8c8] sm:$0xff]
      %v578 = vld [vmem:[%s274 + $0x8d0] sm:$0xff]
      %v579 = vld [vmem:[%s274 + $0x8d8] sm:$0xff]
      %v580 = vld [vmem:[%s274 + $0x8e0] sm:$0xff]
      %v581 = vld [vmem:[%s274 + $0x8e8] sm:$0xff]
      %v582 = vld [vmem:[%s274 + $0x8f0] sm:$0xff]
      %v583 = vld [vmem:[%s274 + $0x8f8] sm:$0xff]
      %v584 = vld [vmem:[%s274 + $0x900] sm:$0xff]
      %v585 = vld [vmem:[%s274 + $0x908] sm:$0xff]
      %v586 = vld [vmem:[%s274 + $0x910] sm:$0xff]
      %v587 = vld [vmem:[%s274 + $0x918] sm:$0xff]
      %v588 = vld [vmem:[%s274 + $0x920] sm:$0xff]
      %v589 = vld [vmem:[%s274 + $0x928] sm:$0xff]
      %v590 = vld [vmem:[%s274 + $0x930] sm:$0xff]
      %v591 = vld [vmem:[%s274 + $0x938] sm:$0xff]
      %v592 = vld [vmem:[%s274 + $0x940] sm:$0xff]
      %v593 = vld [vmem:[%s274 + $0x948] sm:$0xff]
      %v594 = vld [vmem:[%s274 + $0x950] sm:$0xff]
      %v595 = vld [vmem:[%s274 + $0x958] sm:$0xff]
      %v596 = vld [vmem:[%s274 + $0x960] sm:$0xff]
      %v597 = vld [vmem:[%s274 + $0x968] sm:$0xff]
      %v598 = vld [vmem:[%s274 + $0x970] sm:$0xff]
      %v599 = vld [vmem:[%s274 + $0x978] sm:$0xff]
      %v600 = vld [vmem:[%s274 + $0x980] sm:$0xff]
      %v601 = vld [vmem:[%s274 + $0x988] sm:$0xff]
      %v602 = vld [vmem:[%s274 + $0x990] sm:$0xff]
      %v603 = vld [vmem:[%s274 + $0x998] sm:$0xff]
      %v604 = vld [vmem:[%s274 + $0x9a0] sm:$0xff]
      %v605 = vld [vmem:[%s274 + $0x9a8] sm:$0xff]
      %v606 = vld [vmem:[%s274 + $0x9b0] sm:$0xff]
      %v607 = vld [vmem:[%s274 + $0x9b8] sm:$0xff]
      %v608 = vld [vmem:[%s274 + $0x9c0] sm:$0xff]
      %v609 = vld [vmem:[%s274 + $0x9c8] sm:$0xff]
      %v610 = vld [vmem:[%s274 + $0x9d0] sm:$0xff]
      %v611 = vld [vmem:[%s274 + $0x9d8] sm:$0xff]
      %v612 = vld [vmem:[%s274 + $0x9e0] sm:$0xff]
      %v613 = vld [vmem:[%s274 + $0x9e8] sm:$0xff]
      %v614 = vld [vmem:[%s274 + $0x9f0] sm:$0xff]
      %v615 = vld [vmem:[%s274 + $0x9f8] sm:$0xff]
      %v616 = vld [vmem:[%s274 + $0xa00] sm:$0xff]
      %v617 = vld [vmem:[%s274 + $0xa08] sm:$0xff]
      %v618 = vld [vmem:[%s274 + $0xa10] sm:$0xff]
      %v619 = vld [vmem:[%s274 + $0xa18] sm:$0xff]
      %v620 = vld [vmem:[%s274 + $0xa20] sm:$0xff]
      %v621 = vld [vmem:[%s274 + $0xa28] sm:$0xff]
      %v622 = vld [vmem:[%s274 + $0xa30] sm:$0xff]
      %v623 = vld [vmem:[%s274 + $0xa38] sm:$0xff]
      %v624 = vld [vmem:[%s274 + $0xa40] sm:$0xff]
      %v625 = vld [vmem:[%s274 + $0xa48] sm:$0xff]
      %v626 = vld [vmem:[%s274 + $0xa50] sm:$0xff]
      %v627 = vld [vmem:[%s274 + $0xa58] sm:$0xff]
      %v628 = vld [vmem:[%s274 + $0xa60] sm:$0xff]
      %v629 = vld [vmem:[%s274 + $0xa68] sm:$0xff]
      %v630 = vld [vmem:[%s274 + $0xa70] sm:$0xff]
      %v631 = vld [vmem:[%s274 + $0xa78] sm:$0xff]
      %v632 = vld [vmem:[%s274 + $0xa80] sm:$0xff]
      %v633 = vld [vmem:[%s274 + $0xa88] sm:$0xff]
      %v634 = vld [vmem:[%s274 + $0xa90] sm:$0xff]
      %v635 = vld [vmem:[%s274 + $0xa98] sm:$0xff]
      %v636 = vld [vmem:[%s274 + $0xaa0] sm:$0xff]
      %v637 = vld [vmem:[%s274 + $0xaa8] sm:$0xff]
      %v638 = vld [vmem:[%s274 + $0xab0] sm:$0xff]
      %v639 = vld [vmem:[%s274 + $0xab8] sm:$0xff]
      %v640 = vld [vmem:[%s274 + $0xac0] sm:$0xff]
      %v641 = vld [vmem:[%s274 + $0xac8] sm:$0xff]
      %v642 = vld [vmem:[%s274 + $0xad0] sm:$0xff]
      %v643 = vld [vmem:[%s274 + $0xad8] sm:$0xff]
      %v644 = vld [vmem:[%s274 + $0xae0] sm:$0xff]
      %v645 = vld [vmem:[%s274 + $0xae8] sm:$0xff]
      %v646 = vld [vmem:[%s274 + $0xaf0] sm:$0xff]
      %v647 = vld [vmem:[%s274 + $0xaf8] sm:$0xff]
      %v648 = vld [vmem:[%s274 + $0xb00] sm:$0xff]
      %v649 = vld [vmem:[%s274 + $0xb08] sm:$0xff]
      %v650 = vld [vmem:[%s274 + $0xb10] sm:$0xff]
      %v651 = vld [vmem:[%s274 + $0xb18] sm:$0xff]
      %v652 = vld [vmem:[%s274 + $0xb20] sm:$0xff]
      %v653 = vld [vmem:[%s274 + $0xb28] sm:$0xff]
      %v654 = vld [vmem:[%s274 + $0xb30] sm:$0xff]
      %v655 = vld [vmem:[%s274 + $0xb38] sm:$0xff]
      %v656 = vld [vmem:[%s274 + $0xb40] sm:$0xff]
      %v657 = vld [vmem:[%s274 + $0xb48] sm:$0xff]
      %v658 = vld [vmem:[%s274 + $0xb50] sm:$0xff]
      %v659 = vld [vmem:[%s274 + $0xb58] sm:$0xff]
      %v660 = vld [vmem:[%s274 + $0xb60] sm:$0xff]
      %v661 = vld [vmem:[%s274 + $0xb68] sm:$0xff]
      %v662 = vld [vmem:[%s274 + $0xb70] sm:$0xff]
      %v663 = vld [vmem:[%s274 + $0xb78] sm:$0xff]
      %v664 = vld [vmem:[%s274 + $0xb80] sm:$0xff]
      %v665 = vld [vmem:[%s274 + $0xb88] sm:$0xff]
      %v666 = vld [vmem:[%s274 + $0xb90] sm:$0xff]
      %v667 = vld [vmem:[%s274 + $0xb98] sm:$0xff]
      %v668 = vld [vmem:[%s274 + $0xba0] sm:$0xff]
      %v669 = vld [vmem:[%s274 + $0xba8] sm:$0xff]
      %v670 = vld [vmem:[%s274 + $0xbb0] sm:$0xff]
      %v671 = vld [vmem:[%s274 + $0xbb8] sm:$0xff]
      %v672 = vld [vmem:[%s274 + $0xbc0] sm:$0xff]
      %v673 = vld [vmem:[%s274 + $0xbc8] sm:$0xff]
      %v674 = vld [vmem:[%s274 + $0xbd0] sm:$0xff]
      %v675 = vld [vmem:[%s274 + $0xbd8] sm:$0xff]
      %v676 = vld [vmem:[%s274 + $0xbe0] sm:$0xff]
      %v677 = vld [vmem:[%s274 + $0xbe8] sm:$0xff]
      %v678 = vld [vmem:[%s274 + $0xbf0] sm:$0xff]
      %v679 = vld [vmem:[%s274 + $0xbf8] sm:$0xff]
      %v680 = vld [vmem:[%s274 + $0xc00] sm:$0xff]
      %v681 = vld [vmem:[%s274 + $0xc08] sm:$0xff]
      %v682 = vld [vmem:[%s274 + $0xc10] sm:$0xff]
      %v683 = vld [vmem:[%s274 + $0xc18] sm:$0xff]
      %v684 = vld [vmem:[%s274 + $0xc20] sm:$0xff]
      %v685 = vld [vmem:[%s274 + $0xc28] sm:$0xff]
      %v686 = vld [vmem:[%s274 + $0xc30] sm:$0xff]
      %v687 = vld [vmem:[%s274 + $0xc38] sm:$0xff]
      %v688 = vld [vmem:[%s274 + $0xc40] sm:$0xff]
      %v689 = vld [vmem:[%s274 + $0xc48] sm:$0xff]
      %v690 = vld [vmem:[%s274 + $0xc50] sm:$0xff]
      %v691 = vld [vmem:[%s274 + $0xc58] sm:$0xff]
      %v692 = vld [vmem:[%s274 + $0xc60] sm:$0xff]
      %v693 = vld [vmem:[%s274 + $0xc68] sm:$0xff]
      %v694 = vld [vmem:[%s274 + $0xc70] sm:$0xff]
      %v695 = vld [vmem:[%s274 + $0xc78] sm:$0xff]
      %v696 = vld [vmem:[%s274 + $0xc80] sm:$0xff]
      %v697 = vld [vmem:[%s274 + $0xc88] sm:$0xff]
      %v698 = vld [vmem:[%s274 + $0xc90] sm:$0xff]
      %v699 = vld [vmem:[%s274 + $0xc98] sm:$0xff]
      %v700 = vld [vmem:[%s274 + $0xca0] sm:$0xff]
      %v701 = vld [vmem:[%s274 + $0xca8] sm:$0xff]
      %v702 = vld [vmem:[%s274 + $0xcb0] sm:$0xff]
      %v703 = vld [vmem:[%s274 + $0xcb8] sm:$0xff]
      %v704 = vld [vmem:[%s274 + $0xcc0] sm:$0xff]
      %v705 = vld [vmem:[%s274 + $0xcc8] sm:$0xff]
      %v706 = vld [vmem:[%s274 + $0xcd0] sm:$0xff]
      %v707 = vld [vmem:[%s274 + $0xcd8] sm:$0xff]
      %v708 = vld [vmem:[%s274 + $0xce0] sm:$0xff]
      %v709 = vld [vmem:[%s274 + $0xce8] sm:$0xff]
      %v710 = vld [vmem:[%s274 + $0xcf0] sm:$0xff]
      %v711 = vld [vmem:[%s274 + $0xcf8] sm:$0xff]
      %v712 = vld [vmem:[%s274 + $0xd00] sm:$0xff]
      %v713 = vld [vmem:[%s274 + $0xd08] sm:$0xff]
      %v714 = vld [vmem:[%s274 + $0xd10] sm:$0xff]
      %v715 = vld [vmem:[%s274 + $0xd18] sm:$0xff]
      %v716 = vld [vmem:[%s274 + $0xd20] sm:$0xff]
      %v717 = vld [vmem:[%s274 + $0xd28] sm:$0xff]
      %v718 = vld [vmem:[%s274 + $0xd30] sm:$0xff]
      %v719 = vld [vmem:[%s274 + $0xd38] sm:$0xff]
      %v720 = vld [vmem:[%s274 + $0xd40] sm:$0xff]
      %v721 = vld [vmem:[%s274 + $0xd48] sm:$0xff]
      %v722 = vld [vmem:[%s274 + $0xd50] sm:$0xff]
      %v723 = vld [vmem:[%s274 + $0xd58] sm:$0xff]
      %v724 = vld [vmem:[%s274 + $0xd60] sm:$0xff]
      %v725 = vld [vmem:[%s274 + $0xd68] sm:$0xff]
      %v726 = vld [vmem:[%s274 + $0xd70] sm:$0xff]
      %v727 = vld [vmem:[%s274 + $0xd78] sm:$0xff]
      %v728 = vld [vmem:[%s274 + $0xd80] sm:$0xff]
      %v729 = vld [vmem:[%s274 + $0xd88] sm:$0xff]
      %v730 = vld [vmem:[%s274 + $0xd90] sm:$0xff]
      %v731 = vld [vmem:[%s274 + $0xd98] sm:$0xff]
      %v732 = vld [vmem:[%s274 + $0xda0] sm:$0xff]
      %v733 = vld [vmem:[%s274 + $0xda8] sm:$0xff]
      %v734 = vld [vmem:[%s274 + $0xdb0] sm:$0xff]
      %v735 = vld [vmem:[%s274 + $0xdb8] sm:$0xff]
      %v736 = vld [vmem:[%s274 + $0xdc0] sm:$0xff]
      %v737 = vld [vmem:[%s274 + $0xdc8] sm:$0xff]
      %v738 = vld [vmem:[%s274 + $0xdd0] sm:$0xff]
      %v739 = vld [vmem:[%s274 + $0xdd8] sm:$0xff]
      %v740 = vld [vmem:[%s274 + $0xde0] sm:$0xff]
      %v741 = vld [vmem:[%s274 + $0xde8] sm:$0xff]
      %v742 = vld [vmem:[%s274 + $0xdf0] sm:$0xff]
      %v743 = vld [vmem:[%s274 + $0xdf8] sm:$0xff]
      %v744 = vld [vmem:[%s274 + $0xe00] sm:$0xff]
      %v745 = vld [vmem:[%s274 + $0xe08] sm:$0xff]
      %v746 = vld [vmem:[%s274 + $0xe10] sm:$0xff]
      %v747 = vld [vmem:[%s274 + $0xe18] sm:$0xff]
      %v748 = vld [vmem:[%s274 + $0xe20] sm:$0xff]
      %v749 = vld [vmem:[%s274 + $0xe28] sm:$0xff]
      %v750 = vld [vmem:[%s274 + $0xe30] sm:$0xff]
      %v751 = vld [vmem:[%s274 + $0xe38] sm:$0xff]
      %v752 = vld [vmem:[%s274 + $0xe40] sm:$0xff]
      %v753 = vld [vmem:[%s274 + $0xe48] sm:$0xff]
      %v754 = vld [vmem:[%s274 + $0xe50] sm:$0xff]
      %v755 = vld [vmem:[%s274 + $0xe58] sm:$0xff]
      %v756 = vld [vmem:[%s274 + $0xe60] sm:$0xff]
      %v757 = vld [vmem:[%s274 + $0xe68] sm:$0xff]
      %v758 = vld [vmem:[%s274 + $0xe70] sm:$0xff]
      %v759 = vld [vmem:[%s274 + $0xe78] sm:$0xff]
      %v760 = vld [vmem:[%s274 + $0xe80] sm:$0xff]
      %v761 = vld [vmem:[%s274 + $0xe88] sm:$0xff]
      %v762 = vld [vmem:[%s274 + $0xe90] sm:$0xff]
      %v763 = vld [vmem:[%s274 + $0xe98] sm:$0xff]
      %v764 = vld [vmem:[%s274 + $0xea0] sm:$0xff]
      %v765 = vld [vmem:[%s274 + $0xea8] sm:$0xff]
      %v766 = vld [vmem:[%s274 + $0xeb0] sm:$0xff]
      %v767 = vld [vmem:[%s274 + $0xeb8] sm:$0xff]
      %v768 = vld [vmem:[%s274 + $0xec0] sm:$0xff]
      %v769 = vld [vmem:[%s274 + $0xec8] sm:$0xff]
      %v770 = vld [vmem:[%s274 + $0xed0] sm:$0xff]
      %v771 = vld [vmem:[%s274 + $0xed8] sm:$0xff]
      %v772 = vld [vmem:[%s274 + $0xee0] sm:$0xff]
      %v773 = vld [vmem:[%s274 + $0xee8] sm:$0xff]
      %v774 = vld [vmem:[%s274 + $0xef0] sm:$0xff]
      %v775 = vld [vmem:[%s274 + $0xef8] sm:$0xff]
      %v776 = vld [vmem:[%s274 + $0xf00] sm:$0xff]
      %v777 = vld [vmem:[%s274 + $0xf08] sm:$0xff]
      %v778 = vld [vmem:[%s274 + $0xf10] sm:$0xff]
      %v779 = vld [vmem:[%s274 + $0xf18] sm:$0xff]
      %v780 = vld [vmem:[%s274 + $0xf20] sm:$0xff]
      %v781 = vld [vmem:[%s274 + $0xf28] sm:$0xff]
      %v782 = vld [vmem:[%s274 + $0xf30] sm:$0xff]
      %v783 = vld [vmem:[%s274 + $0xf38] sm:$0xff]
      %v784 = vld [vmem:[%s274 + $0xf40] sm:$0xff]
      %v785 = vld [vmem:[%s274 + $0xf48] sm:$0xff]
      %v786 = vld [vmem:[%s274 + $0xf50] sm:$0xff]
      %v787 = vld [vmem:[%s274 + $0xf58] sm:$0xff]
      %v788 = vld [vmem:[%s274 + $0xf60] sm:$0xff]
      %v789 = vld [vmem:[%s274 + $0xf68] sm:$0xff]
      %v790 = vld [vmem:[%s274 + $0xf70] sm:$0xff]
      %v791 = vld [vmem:[%s274 + $0xf78] sm:$0xff]
      %v792 = vld [vmem:[%s274 + $0xf80] sm:$0xff]
      %v793 = vld [vmem:[%s274 + $0xf88] sm:$0xff]
      %v794 = vld [vmem:[%s274 + $0xf90] sm:$0xff]
      %v795 = vld [vmem:[%s274 + $0xf98] sm:$0xff]
      %v796 = vld [vmem:[%s274 + $0xfa0] sm:$0xff]
      %v797 = vld [vmem:[%s274 + $0xfa8] sm:$0xff]
      %v798 = vld [vmem:[%s274 + $0xfb0] sm:$0xff]
      %v799 = vld [vmem:[%s274 + $0xfb8] sm:$0xff]
      %v800 = vld [vmem:[%s274 + $0xfc0] sm:$0xff]
      %v801 = vld [vmem:[%s274 + $0xfc8] sm:$0xff]
      %v802 = vld [vmem:[%s274 + $0xfd0] sm:$0xff]
      %v803 = vld [vmem:[%s274 + $0xfd8] sm:$0xff]
      %v804 = vld [vmem:[%s274 + $0xfe0] sm:$0xff]
      %v805 = vld [vmem:[%s274 + $0xfe8] sm:$0xff]
      %v806 = vld [vmem:[%s274 + $0xff0] sm:$0xff]
      %v807 = vld [vmem:[%s274 + $0xff8] sm:$0xff]
      %v808 = vld [vmem:[%s274 + $0x1000] sm:$0xff]
      %v809 = vld [vmem:[%s274 + $0x1008] sm:$0xff]
      %v810 = vld [vmem:[%s274 + $0x1010] sm:$0xff]
      %v811 = vld [vmem:[%s274 + $0x1018] sm:$0xff]
      %v812 = vld [vmem:[%s274 + $0x1020] sm:$0xff]
      %v813 = vld [vmem:[%s274 + $0x1028] sm:$0xff]
      %v814 = vld [vmem:[%s274 + $0x1030] sm:$0xff]
      %v815 = vld [vmem:[%s274 + $0x1038] sm:$0xff]
      %v816 = vld [vmem:[%s274 + $0x1040] sm:$0xff]
      %v817 = vld [vmem:[%s274 + $0x1048] sm:$0xff]
      %v818 = vld [vmem:[%s274 + $0x1050] sm:$0xff]
      %v819 = vld [vmem:[%s274 + $0x1058] sm:$0xff]
      %v820 = vld [vmem:[%s274 + $0x1060] sm:$0xff]
      %v821 = vld [vmem:[%s274 + $0x1068] sm:$0xff]
      %v822 = vld [vmem:[%s274 + $0x1070] sm:$0xff]
      %v823 = vld [vmem:[%s274 + $0x1078] sm:$0xff]
      %v824 = vld [vmem:[%s274 + $0x1080] sm:$0xff]
      %v825 = vld [vmem:[%s274 + $0x1088] sm:$0xff]
      %v826 = vld [vmem:[%s274 + $0x1090] sm:$0xff]
      %v827 = vld [vmem:[%s274 + $0x1098] sm:$0xff]
      %v828 = vld [vmem:[%s274 + $0x10a0] sm:$0xff]
      %v829 = vld [vmem:[%s274 + $0x10a8] sm:$0xff]
      %v830 = vld [vmem:[%s274 + $0x10b0] sm:$0xff]
      %v831 = vld [vmem:[%s274 + $0x10b8] sm:$0xff]
      %v832 = vld [vmem:[%s274 + $0x10c0] sm:$0xff]
      %v833 = vld [vmem:[%s274 + $0x10c8] sm:$0xff]
      %v834 = vld [vmem:[%s274 + $0x10d0] sm:$0xff]
      %v835 = vld [vmem:[%s274 + $0x10d8] sm:$0xff]
      %v836 = vld [vmem:[%s274 + $0x10e0] sm:$0xff]
      %v837 = vld [vmem:[%s274 + $0x10e8] sm:$0xff]
      %v838 = vld [vmem:[%s274 + $0x10f0] sm:$0xff]
      %v839 = vld [vmem:[%s274 + $0x10f8] sm:$0xff]
      %v840 = vld [vmem:[%s274 + $0x1100] sm:$0xff]
      %v841 = vld [vmem:[%s274 + $0x1108] sm:$0xff]
      %v842 = vld [vmem:[%s274 + $0x1110] sm:$0xff]
      %v843 = vld [vmem:[%s274 + $0x1118] sm:$0xff]
      %v844 = vld [vmem:[%s274 + $0x1120] sm:$0xff]
      %v845 = vld [vmem:[%s274 + $0x1128] sm:$0xff]
      %v846 = vld [vmem:[%s274 + $0x1130] sm:$0xff]
      %v847 = vld [vmem:[%s274 + $0x1138] sm:$0xff]
      %v848 = vld [vmem:[%s274 + $0x1140] sm:$0xff]
      %v849 = vld [vmem:[%s274 + $0x1148] sm:$0xff]
      %v850 = vld [vmem:[%s274 + $0x1150] sm:$0xff]
      %v851 = vld [vmem:[%s274 + $0x1158] sm:$0xff]
      %v852 = vld [vmem:[%s274 + $0x1160] sm:$0xff]
      %v853 = vld [vmem:[%s274 + $0x1168] sm:$0xff]
      %v854 = vld [vmem:[%s274 + $0x1170] sm:$0xff]
      %v855 = vld [vmem:[%s274 + $0x1178] sm:$0xff]
      %v856 = vld [vmem:[%s274 + $0x1180] sm:$0xff]
      %v857 = vld [vmem:[%s274 + $0x1188] sm:$0xff]
      %v858 = vld [vmem:[%s274 + $0x1190] sm:$0xff]
      %v859 = vld [vmem:[%s274 + $0x1198] sm:$0xff]
      %v860 = vld [vmem:[%s274 + $0x11a0] sm:$0xff]
      %v861 = vld [vmem:[%s274 + $0x11a8] sm:$0xff]
      %v862 = vld [vmem:[%s274 + $0x11b0] sm:$0xff]
      %v863 = vld [vmem:[%s274 + $0x11b8] sm:$0xff]
      %v864 = vld [vmem:[%s274 + $0x11c0] sm:$0xff]
      %v865 = vld [vmem:[%s274 + $0x11c8] sm:$0xff]
      %v866 = vld [vmem:[%s274 + $0x11d0] sm:$0xff]
      %v867 = vld [vmem:[%s274 + $0x11d8] sm:$0xff]
      %v868 = vld [vmem:[%s274 + $0x11e0] sm:$0xff]
      %v869 = vld [vmem:[%s274 + $0x11e8] sm:$0xff]
      %v870 = vld [vmem:[%s274 + $0x11f0] sm:$0xff]
      %v871 = vld [vmem:[%s274 + $0x11f8] sm:$0xff]
      %v872 = vld [vmem:[%s274 + $0x1200] sm:$0xff]
      %v873 = vld [vmem:[%s274 + $0x1208] sm:$0xff]
      %v874 = vld [vmem:[%s274 + $0x1210] sm:$0xff]
      %v875 = vld [vmem:[%s274 + $0x1218] sm:$0xff]
      %v876 = vld [vmem:[%s274 + $0x1220] sm:$0xff]
      %v877 = vld [vmem:[%s274 + $0x1228] sm:$0xff]
      %v878 = vld [vmem:[%s274 + $0x1230] sm:$0xff]
      %v879 = vld [vmem:[%s274 + $0x1238] sm:$0xff]
      %v880 = vld [vmem:[%s274 + $0x1240] sm:$0xff]
      %v881 = vld [vmem:[%s274 + $0x1248] sm:$0xff]
      %v882 = vld [vmem:[%s274 + $0x1250] sm:$0xff]
      %v883 = vld [vmem:[%s274 + $0x1258] sm:$0xff]
      %v884 = vld [vmem:[%s274 + $0x1260] sm:$0xff]
      %v885 = vld [vmem:[%s274 + $0x1268] sm:$0xff]
      %v886 = vld [vmem:[%s274 + $0x1270] sm:$0xff]
      %v887 = vld [vmem:[%s274 + $0x1278] sm:$0xff]
      %v888 = vld [vmem:[%s274 + $0x1280] sm:$0xff]
      %v889 = vld [vmem:[%s274 + $0x1288] sm:$0xff]
      %v890 = vld [vmem:[%s274 + $0x1290] sm:$0xff]
      %v891 = vld [vmem:[%s274 + $0x1298] sm:$0xff]
      %v892 = vld [vmem:[%s274 + $0x12a0] sm:$0xff]
      %v893 = vld [vmem:[%s274 + $0x12a8] sm:$0xff]
      %v894 = vld [vmem:[%s274 + $0x12b0] sm:$0xff]
      %v895 = vld [vmem:[%s274 + $0x12b8] sm:$0xff]
      %v896 = vld [vmem:[%s274 + $0x12c0] sm:$0xff]
      %v897 = vld [vmem:[%s274 + $0x12c8] sm:$0xff]
      %v898 = vld [vmem:[%s274 + $0x12d0] sm:$0xff]
      %v899 = vld [vmem:[%s274 + $0x12d8] sm:$0xff]
      %v900 = vld [vmem:[%s274 + $0x12e0] sm:$0xff]
      %v901 = vld [vmem:[%s274 + $0x12e8] sm:$0xff]
      %v902 = vld [vmem:[%s274 + $0x12f0] sm:$0xff]
      %v903 = vld [vmem:[%s274 + $0x12f8] sm:$0xff]
      %v904 = vld [vmem:[%s274 + $0x1300] sm:$0xff]
      %v905 = vld [vmem:[%s274 + $0x1308] sm:$0xff]
      %v906 = vld [vmem:[%s274 + $0x1310] sm:$0xff]
      %v907 = vld [vmem:[%s274 + $0x1318] sm:$0xff]
      %v908 = vld [vmem:[%s274 + $0x1320] sm:$0xff]
      %v909 = vld [vmem:[%s274 + $0x1328] sm:$0xff]
      %v910 = vld [vmem:[%s274 + $0x1330] sm:$0xff]
      %v911 = vld [vmem:[%s274 + $0x1338] sm:$0xff]
      %v912 = vld [vmem:[%s274 + $0x1340] sm:$0xff]
      %v913 = vld [vmem:[%s274 + $0x1348] sm:$0xff]
      %v914 = vld [vmem:[%s274 + $0x1350] sm:$0xff]
      %v915 = vld [vmem:[%s274 + $0x1358] sm:$0xff]
      %v916 = vld [vmem:[%s274 + $0x1360] sm:$0xff]
      %v917 = vld [vmem:[%s274 + $0x1368] sm:$0xff]
      %v918 = vld [vmem:[%s274 + $0x1370] sm:$0xff]
      %v919 = vld [vmem:[%s274 + $0x1378] sm:$0xff]
      %v920 = vld [vmem:[%s274 + $0x1380] sm:$0xff]
      %v921 = vld [vmem:[%s274 + $0x1388] sm:$0xff]
      %v922 = vld [vmem:[%s274 + $0x1390] sm:$0xff]
      %v923 = vld [vmem:[%s274 + $0x1398] sm:$0xff]
      %v924 = vld [vmem:[%s274 + $0x13a0] sm:$0xff]
      %v925 = vld [vmem:[%s274 + $0x13a8] sm:$0xff]
      %v926 = vld [vmem:[%s274 + $0x13b0] sm:$0xff]
      %v927 = vld [vmem:[%s274 + $0x13b8] sm:$0xff]
      %v928 = vld [vmem:[%s274 + $0x13c0] sm:$0xff]
      %v929 = vld [vmem:[%s274 + $0x13c8] sm:$0xff]
      %v930 = vld [vmem:[%s274 + $0x13d0] sm:$0xff]
      %v931 = vld [vmem:[%s274 + $0x13d8] sm:$0xff]
      %v932 = vld [vmem:[%s274 + $0x13e0] sm:$0xff]
      %v933 = vld [vmem:[%s274 + $0x13e8] sm:$0xff]
      %v934 = vld [vmem:[%s274 + $0x13f0] sm:$0xff]
      %v935 = vld [vmem:[%s274 + $0x13f8] sm:$0xff]
      %v936 = vld [vmem:[%s274 + $0x1400] sm:$0xff]
      %v937 = vld [vmem:[%s274 + $0x1408] sm:$0xff]
      %v938 = vld [vmem:[%s274 + $0x1410] sm:$0xff]
      %v939 = vld [vmem:[%s274 + $0x1418] sm:$0xff]
      %v940 = vld [vmem:[%s274 + $0x1420] sm:$0xff]
      %v941 = vld [vmem:[%s274 + $0x1428] sm:$0xff]
      %v942 = vld [vmem:[%s274 + $0x1430] sm:$0xff]
      %v943 = vld [vmem:[%s274 + $0x1438] sm:$0xff]
      %v944 = vld [vmem:[%s274 + $0x1440] sm:$0xff]
      %v945 = vld [vmem:[%s274 + $0x1448] sm:$0xff]
      %v946 = vld [vmem:[%s274 + $0x1450] sm:$0xff]
      %v947 = vld [vmem:[%s274 + $0x1458] sm:$0xff]
      %v948 = vld [vmem:[%s274 + $0x1460] sm:$0xff]
      %v949 = vld [vmem:[%s274 + $0x1468] sm:$0xff]
      %v950 = vld [vmem:[%s274 + $0x1470] sm:$0xff]
      %v951 = vld [vmem:[%s274 + $0x1478] sm:$0xff]
      %v952 = vld [vmem:[%s274 + $0x1480] sm:$0xff]
      %v953 = vld [vmem:[%s274 + $0x1488] sm:$0xff]
      %v954 = vld [vmem:[%s274 + $0x1490] sm:$0xff]
      %v955 = vld [vmem:[%s274 + $0x1498] sm:$0xff]
      %v956 = vld [vmem:[%s274 + $0x14a0] sm:$0xff]
      %v957 = vld [vmem:[%s274 + $0x14a8] sm:$0xff]
      %v958 = vld [vmem:[%s274 + $0x14b0] sm:$0xff]
      %v959 = vld [vmem:[%s274 + $0x14b8] sm:$0xff]
      %v960 = vld [vmem:[%s274 + $0x14c0] sm:$0xff]
      %v961 = vld [vmem:[%s274 + $0x14c8] sm:$0xff]
      %v962 = vld [vmem:[%s274 + $0x14d0] sm:$0xff]
      %v963 = vld [vmem:[%s274 + $0x14d8] sm:$0xff]
      %v964 = vld [vmem:[%s274 + $0x14e0] sm:$0xff]
      %v965 = vld [vmem:[%s274 + $0x14e8] sm:$0xff]
      %v966 = vld [vmem:[%s274 + $0x14f0] sm:$0xff]
      %v967 = vld [vmem:[%s274 + $0x14f8] sm:$0xff]
      %v968 = vld [vmem:[%s274 + $0x1500] sm:$0xff]
      %v969 = vld [vmem:[%s274 + $0x1508] sm:$0xff]
      %v970 = vld [vmem:[%s274 + $0x1510] sm:$0xff]
      %v971 = vld [vmem:[%s274 + $0x1518] sm:$0xff]
      %v972 = vld [vmem:[%s274 + $0x1520] sm:$0xff]
      %v973 = vld [vmem:[%s274 + $0x1528] sm:$0xff]
      %v974 = vld [vmem:[%s274 + $0x1530] sm:$0xff]
      %v975 = vld [vmem:[%s274 + $0x1538] sm:$0xff]
      %v976 = vld [vmem:[%s274 + $0x1540] sm:$0xff]
      %v977 = vld [vmem:[%s274 + $0x1548] sm:$0xff]
      %v978 = vld [vmem:[%s274 + $0x1550] sm:$0xff]
      %v979 = vld [vmem:[%s274 + $0x1558] sm:$0xff]
      %v980 = vld [vmem:[%s274 + $0x1560] sm:$0xff]
      %v981 = vld [vmem:[%s274 + $0x1568] sm:$0xff]
      %v982 = vld [vmem:[%s274 + $0x1570] sm:$0xff]
      %v983 = vld [vmem:[%s274 + $0x1578] sm:$0xff]
      %v984 = vld [vmem:[%s274 + $0x1580] sm:$0xff]
      %v985 = vld [vmem:[%s274 + $0x1588] sm:$0xff]
      %v986 = vld [vmem:[%s274 + $0x1590] sm:$0xff]
      %v987 = vld [vmem:[%s274 + $0x1598] sm:$0xff]
      %v988 = vld [vmem:[%s274 + $0x15a0] sm:$0xff]
      %v989 = vld [vmem:[%s274 + $0x15a8] sm:$0xff]
      %v990 = vld [vmem:[%s274 + $0x15b0] sm:$0xff]
      %v991 = vld [vmem:[%s274 + $0x15b8] sm:$0xff]
      %v992 = vld [vmem:[%s274 + $0x15c0] sm:$0xff]
      %v993 = vld [vmem:[%s274 + $0x15c8] sm:$0xff]
      %v994 = vld [vmem:[%s274 + $0x15d0] sm:$0xff]
      %v995 = vld [vmem:[%s274 + $0x15d8] sm:$0xff]
      %v996 = vld [vmem:[%s274 + $0x15e0] sm:$0xff]
      %v997 = vld [vmem:[%s274 + $0x15e8] sm:$0xff]
      %v998 = vld [vmem:[%s274 + $0x15f0] sm:$0xff]
      %v999 = vld [vmem:[%s274 + $0x15f8] sm:$0xff]
      %v1000 = vld [vmem:[%s274 + $0x1600] sm:$0xff]
      %v1001 = vld [vmem:[%s274 + $0x1608] sm:$0xff]
      %v1002 = vld [vmem:[%s274 + $0x1610] sm:$0xff]
      %v1003 = vld [vmem:[%s274 + $0x1618] sm:$0xff]
      %v1004 = vld [vmem:[%s274 + $0x1620] sm:$0xff]
      %v1005 = vld [vmem:[%s274 + $0x1628] sm:$0xff]
      %v1006 = vld [vmem:[%s274 + $0x1630] sm:$0xff]
      %v1007 = vld [vmem:[%s274 + $0x1638] sm:$0xff]
      %v1008 = vld [vmem:[%s274 + $0x1640] sm:$0xff]
      %v1009 = vld [vmem:[%s274 + $0x1648] sm:$0xff]
      %v1010 = vld [vmem:[%s274 + $0x1650] sm:$0xff]
      %v1011 = vld [vmem:[%s274 + $0x1658] sm:$0xff]
      %v1012 = vld [vmem:[%s274 + $0x1660] sm:$0xff]
      %v1013 = vld [vmem:[%s274 + $0x1668] sm:$0xff]
      %v1014 = vld [vmem:[%s274 + $0x1670] sm:$0xff]
      %v1015 = vld [vmem:[%s274 + $0x1678] sm:$0xff]
      %v1016 = vld [vmem:[%s274 + $0x1680] sm:$0xff]
      %v1017 = vld [vmem:[%s274 + $0x1688] sm:$0xff]
      %v1018 = vld [vmem:[%s274 + $0x1690] sm:$0xff]
      %v1019 = vld [vmem:[%s274 + $0x1698] sm:$0xff]
      %v1020 = vld [vmem:[%s274 + $0x16a0] sm:$0xff]
      %v1021 = vld [vmem:[%s274 + $0x16a8] sm:$0xff]
      %v1022 = vld [vmem:[%s274 + $0x16b0] sm:$0xff]
      %v1023 = vld [vmem:[%s274 + $0x16b8] sm:$0xff]
      %v1024 = vld [vmem:[%s274 + $0x16c0] sm:$0xff]
      %v1025 = vld [vmem:[%s274 + $0x16c8] sm:$0xff]
      %v1026 = vld [vmem:[%s274 + $0x16d0] sm:$0xff]
      %v1027 = vld [vmem:[%s274 + $0x16d8] sm:$0xff]
      %v1028 = vld [vmem:[%s274 + $0x16e0] sm:$0xff]
      %v1029 = vld [vmem:[%s274 + $0x16e8] sm:$0xff]
      %v1030 = vld [vmem:[%s274 + $0x16f0] sm:$0xff]
      %v1031 = vld [vmem:[%s274 + $0x16f8] sm:$0xff]
      %v1032 = vld [vmem:[%s274 + $0x1700] sm:$0xff]
      %v1033 = vld [vmem:[%s274 + $0x1708] sm:$0xff]
      %v1034 = vld [vmem:[%s274 + $0x1710] sm:$0xff]
      %v1035 = vld [vmem:[%s274 + $0x1718] sm:$0xff]
      %v1036 = vld [vmem:[%s274 + $0x1720] sm:$0xff]
      %v1037 = vld [vmem:[%s274 + $0x1728] sm:$0xff]
      %v1038 = vld [vmem:[%s274 + $0x1730] sm:$0xff]
      %v1039 = vld [vmem:[%s274 + $0x1738] sm:$0xff]
      %v1040 = vld [vmem:[%s274 + $0x1740] sm:$0xff]
      %v1041 = vld [vmem:[%s274 + $0x1748] sm:$0xff]
      %v1042 = vld [vmem:[%s274 + $0x1750] sm:$0xff]
      %v1043 = vld [vmem:[%s274 + $0x1758] sm:$0xff]
      %v1044 = vld [vmem:[%s274 + $0x1760] sm:$0xff]
      %v1045 = vld [vmem:[%s274 + $0x1768] sm:$0xff]
      %v1046 = vld [vmem:[%s274 + $0x1770] sm:$0xff]
      %v1047 = vld [vmem:[%s274 + $0x1778] sm:$0xff]
      %v1048 = vld [vmem:[%s274 + $0x1780] sm:$0xff]
      %v1049 = vld [vmem:[%s274 + $0x1788] sm:$0xff]
      %v1050 = vld [vmem:[%s274 + $0x1790] sm:$0xff]
      %v1051 = vld [vmem:[%s274 + $0x1798] sm:$0xff]
      %v1052 = vld [vmem:[%s274 + $0x17a0] sm:$0xff]
      %v1053 = vld [vmem:[%s274 + $0x17a8] sm:$0xff]
      %v1054 = vld [vmem:[%s274 + $0x17b0] sm:$0xff]
      %v1055 = vld [vmem:[%s274 + $0x17b8] sm:$0xff]
      %v1056 = vld [vmem:[%s274 + $0x17c0] sm:$0xff]
      %v1057 = vld [vmem:[%s274 + $0x17c8] sm:$0xff]
      %v1058 = vld [vmem:[%s274 + $0x17d0] sm:$0xff]
      %v1059 = vld [vmem:[%s274 + $0x17d8] sm:$0xff]
      %v1060 = vld [vmem:[%s274 + $0x17e0] sm:$0xff]
      %v1061 = vld [vmem:[%s274 + $0x17e8] sm:$0xff]
      %v1062 = vld [vmem:[%s274 + $0x17f0] sm:$0xff]
      %v1063 = vld [vmem:[%s274 + $0x17f8] sm:$0xff]
      %v1064 = vld [vmem:[%s274 + $0x1800] sm:$0xff]
      %v1065 = vld [vmem:[%s274 + $0x1808] sm:$0xff]
      %v1066 = vld [vmem:[%s274 + $0x1810] sm:$0xff]
      %v1067 = vld [vmem:[%s274 + $0x1818] sm:$0xff]
      %v1068 = vld [vmem:[%s274 + $0x1820] sm:$0xff]
      %v1069 = vld [vmem:[%s274 + $0x1828] sm:$0xff]
      %v1070 = vld [vmem:[%s274 + $0x1830] sm:$0xff]
      %v1071 = vld [vmem:[%s274 + $0x1838] sm:$0xff]
      %v1072 = vld [vmem:[%s274 + $0x1840] sm:$0xff]
      %v1073 = vld [vmem:[%s274 + $0x1848] sm:$0xff]
      %v1074 = vld [vmem:[%s274 + $0x1850] sm:$0xff]
      %v1075 = vld [vmem:[%s274 + $0x1858] sm:$0xff]
      %v1076 = vld [vmem:[%s274 + $0x1860] sm:$0xff]
      %v1077 = vld [vmem:[%s274 + $0x1868] sm:$0xff]
      %v1078 = vld [vmem:[%s274 + $0x1870] sm:$0xff]
      %v1079 = vld [vmem:[%s274 + $0x1878] sm:$0xff]
      %v1080 = vld [vmem:[%s278] sm:$0xf]
      %v1082 = vperm.slane %v1080, 0
      %v1083 = vperm.slane %v1080, 1
      %v1084 = vperm.slane %v1080, 2
      %v1085 = vperm.slane %v1080, 3
      %1091 = vst [vmem:[#allocation1] ss:$9 sm:$0xff] %v292
      %v1092 = vld [vmem:[#allocation1] sm:$0xff]
      %v1093 = vld [vmem:[#allocation1 + $0x9] sm:$0xff]
      %v1094 = vld [vmem:[#allocation1 + $0x12] sm:$0xff]
      %v1095 = vld [vmem:[#allocation1 + $0x1b] sm:$0xff]
      %v1096 = vld [vmem:[#allocation1 + $0x24] sm:$0xff]
      %v1097 = vld [vmem:[#allocation1 + $0x2d] sm:$0xff]
      %v1098 = vld [vmem:[#allocation1 + $0x36] sm:$0xff]
      %v1099 = vld [vmem:[#allocation1 + $0x3f] sm:$0xff]
      %1101 = vst [vmem:[#allocation1] ss:$9 sm:$0xff] %v293
      %v1102 = vld [vmem:[#allocation1] sm:$0xff]
      %v1103 = vld [vmem:[#allocation1 + $0x9] sm:$0xff]
      %v1104 = vld [vmem:[#allocation1 + $0x12] sm:$0xff]
      %v1105 = vld [vmem:[#allocation1 + $0x1b] sm:$0xff]
      %v1106 = vld [vmem:[#allocation1 + $0x24] sm:$0xff]
      %v1107 = vld [vmem:[#allocation1 + $0x2d] sm:$0xff]
      %v1108 = vld [vmem:[#allocation1 + $0x36] sm:$0xff]
      %v1109 = vld [vmem:[#allocation1 + $0x3f] sm:$0xff]
      %1111 = vst [vmem:[#allocation1] ss:$9 sm:$0xff] %v294
      %v1112 = vld [vmem:[#allocation1] sm:$0xff]
      %v1113 = vld [vmem:[#allocation1 + $0x9] sm:$0xff]
      %v1114 = vld [vmem:[#allocation1 + $0x12] sm:$0xff]
      %v1115 = vld [vmem:[#allocation1 + $0x1b] sm:$0xff]
      %v1116 = vld [vmem:[#allocation1 + $0x24] sm:$0xff]
      %v1117 = vld [vmem:[#allocation1 + $0x2d] sm:$0xff]
      %v1118 = vld [vmem:[#allocation1 + $0x36] sm:$0xff]
      %v1119 = vld [vmem:[#allocation1 + $0x3f] sm:$0xff]
      %1121 = vst [vmem:[#allocation1] ss:$9 sm:$0xff] %v295
      %v1122 = vld [vmem:[#allocation1] sm:$0xff]
      %v1931 = vunpack.c.l.b16 %v296
      %v1932 = vunpack.c.h.b16 %v296
      %v1933 = vunpack.c.l.b16 %v297
      %v1934 = vunpack.c.h.b16 %v297
      %v1935 = vunpack.c.l.b16 %v298
      %v1936 = vunpack.c.h.b16 %v298
      %v1937 = vunpack.c.l.b16 %v299
      %v1938 = vunpack.c.h.b16 %v299
      %v1939 = vunpack.c.l.b16 %v300
      %v1940 = vunpack.c.h.b16 %v300
      %v1941 = vunpack.c.l.b16 %v301
      %v1942 = vunpack.c.h.b16 %v301
      %v1943 = vunpack.c.l.b16 %v302
      %v1944 = vunpack.c.h.b16 %v302
      %v1945 = vunpack.c.l.b16 %v303
      %v1946 = vunpack.c.h.b16 %v303
      %v1947 = vunpack.c.l.b16 %v304
      %v1948 = vunpack.c.h.b16 %v304
      %v1949 = vunpack.c.l.b16 %v305
      %v1950 = vunpack.c.h.b16 %v305
      %v1951 = vunpack.c.l.b16 %v306
      %v1952 = vunpack.c.h.b16 %v306
      %v1953 = vunpack.c.l.b16 %v307
      %v1954 = vunpack.c.h.b16 %v307
      %v1955 = vunpack.c.l.b16 %v308
      %v1956 = vunpack.c.h.b16 %v308
      %v1957 = vunpack.c.l.b16 %v309
      %v1958 = vunpack.c.h.b16 %v309
      %v1959 = vunpack.c.l.b16 %v310
      %v1960 = vunpack.c.h.b16 %v310
      %v1961 = vunpack.c.l.b16 %v311
      %v1962 = vunpack.c.h.b16 %v311
      %v1963 = vunpack.c.l.b16 %v312
      %v1964 = vunpack.c.h.b16 %v312
      %v1965 = vunpack.c.l.b16 %v313
      %v1966 = vunpack.c.h.b16 %v313
      %v1967 = vunpack.c.l.b16 %v314
      %v1968 = vunpack.c.h.b16 %v314
      %v1969 = vunpack.c.l.b16 %v315
      %v1970 = vunpack.c.h.b16 %v315
      %v1971 = vunpack.c.l.b16 %v316
      %v1972 = vunpack.c.h.b16 %v316
      %v1973 = vunpack.c.l.b16 %v317
      %v1974 = vunpack.c.h.b16 %v317
      %v1975 = vunpack.c.l.b16 %v318
      %v1976 = vunpack.c.h.b16 %v318
      %v1977 = vunpack.c.l.b16 %v319
      %v1978 = vunpack.c.h.b16 %v319
      %v1979 = vunpack.c.l.b16 %v320
      %v1980 = vunpack.c.h.b16 %v320
      %v1981 = vunpack.c.l.b16 %v321
      %v1982 = vunpack.c.h.b16 %v321
      %v1983 = vunpack.c.l.b16 %v322
      %v1984 = vunpack.c.h.b16 %v322
      %v1985 = vunpack.c.l.b16 %v323
      %v1986 = vunpack.c.h.b16 %v323
      %v1987 = vunpack.c.l.b16 %v324
      %v1988 = vunpack.c.h.b16 %v324
      %v1989 = vunpack.c.l.b16 %v325
      %v1990 = vunpack.c.h.b16 %v325
      %v1991 = vunpack.c.l.b16 %v326
      %v1992 = vunpack.c.h.b16 %v326
      %v1993 = vunpack.c.l.b16 %v327
      %v1994 = vunpack.c.h.b16 %v327
      %v1995 = vunpack.c.l.b16 %v328
      %v1996 = vunpack.c.h.b16 %v328
      %v1997 = vunpack.c.l.b16 %v329
      %v1998 = vunpack.c.h.b16 %v329
      %v1999 = vunpack.c.l.b16 %v330
      %v2000 = vunpack.c.h.b16 %v330
      %v2001 = vunpack.c.l.b16 %v331
      %v2002 = vunpack.c.h.b16 %v331
      %v2003 = vunpack.c.l.b16 %v332
      %v2004 = vunpack.c.h.b16 %v332
      %v2005 = vunpack.c.l.b16 %v333
      %v2006 = vunpack.c.h.b16 %v333
      %v2007 = vunpack.c.l.b16 %v334
      %v2008 = vunpack.c.h.b16 %v334
      %v2009 = vunpack.c.l.b16 %v335
      %v2010 = vunpack.c.h.b16 %v335
      %v2011 = vunpack.c.l.b16 %v336
      %v2012 = vunpack.c.h.b16 %v336
      %v2013 = vunpack.c.l.b16 %v337
      %v2014 = vunpack.c.h.b16 %v337
      %v2015 = vunpack.c.l.b16 %v338
      %v2016 = vunpack.c.h.b16 %v338
      %v2017 = vunpack.c.l.b16 %v339
      %v2018 = vunpack.c.h.b16 %v339
      %v2019 = vunpack.c.l.b16 %v340
      %v2020 = vunpack.c.h.b16 %v340
      %v2021 = vunpack.c.l.b16 %v341
      %v2022 = vunpack.c.h.b16 %v341
      %v2023 = vunpack.c.l.b16 %v342
      %v2024 = vunpack.c.h.b16 %v342
      %v2025 = vunpack.c.l.b16 %v343
      %v2026 = vunpack.c.h.b16 %v343
      %v2027 = vunpack.c.l.b16 %v344
      %v2028 = vunpack.c.h.b16 %v344
      %v2029 = vunpack.c.l.b16 %v345
      %v2030 = vunpack.c.h.b16 %v345
      %v2031 = vunpack.c.l.b16 %v346
      %v2032 = vunpack.c.h.b16 %v346
      %v2033 = vunpack.c.l.b16 %v347
      %v2034 = vunpack.c.h.b16 %v347
      %v2035 = vunpack.c.l.b16 %v348
      %v2036 = vunpack.c.h.b16 %v348
      %v2037 = vunpack.c.l.b16 %v349
      %v2038 = vunpack.c.h.b16 %v349
      %v2039 = vunpack.c.l.b16 %v350
      %v2040 = vunpack.c.h.b16 %v350
      %v2041 = vunpack.c.l.b16 %v351
      %v2042 = vunpack.c.h.b16 %v351
      %v2043 = vunpack.c.l.b16 %v352
      %v2044 = vunpack.c.h.b16 %v352
      %v2045 = vunpack.c.l.b16 %v353
      %v2046 = vunpack.c.h.b16 %v353
      %v2047 = vunpack.c.l.b16 %v354
      %v2048 = vunpack.c.h.b16 %v354
      %v2049 = vunpack.c.l.b16 %v355
      %v2050 = vunpack.c.h.b16 %v355
      %v2051 = vunpack.c.l.b16 %v356
      %v2052 = vunpack.c.h.b16 %v356
      %v2053 = vunpack.c.l.b16 %v357
      %v2054 = vunpack.c.h.b16 %v357
      %v2055 = vunpack.c.l.b16 %v358
      %v2056 = vunpack.c.h.b16 %v358
      %v2057 = vunpack.c.l.b16 %v359
      %v2058 = vunpack.c.h.b16 %v359
      %v2059 = vunpack.c.l.b16 %v360
      %v2060 = vunpack.c.h.b16 %v360
      %v2061 = vunpack.c.l.b16 %v361
      %v2062 = vunpack.c.h.b16 %v361
      %v2063 = vunpack.c.l.b16 %v362
      %v2064 = vunpack.c.h.b16 %v362
      %v2065 = vunpack.c.l.b16 %v363
      %v2066 = vunpack.c.h.b16 %v363
      %v2067 = vunpack.c.l.b16 %v364
      %v2068 = vunpack.c.h.b16 %v364
      %v2069 = vunpack.c.l.b16 %v365
      %v2070 = vunpack.c.h.b16 %v365
      %v2071 = vunpack.c.l.b16 %v366
      %v2072 = vunpack.c.h.b16 %v366
      %v2073 = vunpack.c.l.b16 %v367
      %v2074 = vunpack.c.h.b16 %v367
      %v2075 = vunpack.c.l.b16 %v368
      %v2076 = vunpack.c.h.b16 %v368
      %v2077 = vunpack.c.l.b16 %v369
      %v2078 = vunpack.c.h.b16 %v369
      %v2079 = vunpack.c.l.b16 %v370
      %v2080 = vunpack.c.h.b16 %v370
      %v2081 = vunpack.c.l.b16 %v371
      %v2082 = vunpack.c.h.b16 %v371
      %v2083 = vunpack.c.l.b16 %v372
      %v2084 = vunpack.c.h.b16 %v372
      %v2085 = vunpack.c.l.b16 %v373
      %v2086 = vunpack.c.h.b16 %v373
      %v2087 = vunpack.c.l.b16 %v374
      %v2088 = vunpack.c.h.b16 %v374
      %v2089 = vunpack.c.l.b16 %v375
      %v2090 = vunpack.c.h.b16 %v375
      %v2091 = vunpack.c.l.b16 %v376
      %v2092 = vunpack.c.h.b16 %v376
      %v2093 = vunpack.c.l.b16 %v377
      %v2094 = vunpack.c.h.b16 %v377
      %v2095 = vunpack.c.l.b16 %v378
      %v2096 = vunpack.c.h.b16 %v378
      %v2097 = vunpack.c.l.b16 %v379
      %v2098 = vunpack.c.h.b16 %v379
      %v2099 = vunpack.c.l.b16 %v380
      %v2100 = vunpack.c.h.b16 %v380
      %v2101 = vunpack.c.l.b16 %v381
      %v2102 = vunpack.c.h.b16 %v381
      %v2103 = vunpack.c.l.b16 %v382
      %v2104 = vunpack.c.h.b16 %v382
      %v2105 = vunpack.c.l.b16 %v383
      %v2106 = vunpack.c.h.b16 %v383
      %v2107 = vunpack.c.l.b16 %v384
      %v2108 = vunpack.c.h.b16 %v384
      %v2109 = vunpack.c.l.b16 %v385
      %v2110 = vunpack.c.h.b16 %v385
      %v2111 = vunpack.c.l.b16 %v386
      %v2112 = vunpack.c.h.b16 %v386
      %v2113 = vunpack.c.l.b16 %v387
      %v2114 = vunpack.c.h.b16 %v387
      %v2115 = vunpack.c.l.b16 %v388
      %v2116 = vunpack.c.h.b16 %v388
      %v2117 = vunpack.c.l.b16 %v389
      %v2118 = vunpack.c.h.b16 %v389
      %v2119 = vunpack.c.l.b16 %v390
      %v2120 = vunpack.c.h.b16 %v390
      %v2121 = vunpack.c.l.b16 %v391
      %v2122 = vunpack.c.h.b16 %v391
      %v2123 = vunpack.c.l.b16 %v392
      %v2124 = vunpack.c.h.b16 %v392
      %v2125 = vunpack.c.l.b16 %v393
      %v2126 = vunpack.c.h.b16 %v393
      %v2127 = vunpack.c.l.b16 %v394
      %v2128 = vunpack.c.h.b16 %v394
      %v2129 = vunpack.c.l.b16 %v395
      %v2130 = vunpack.c.h.b16 %v395
      %v2131 = vunpack.c.l.b16 %v396
      %v2132 = vunpack.c.h.b16 %v396
      %v2133 = vunpack.c.l.b16 %v397
      %v2134 = vunpack.c.h.b16 %v397
      %v2135 = vunpack.c.l.b16 %v398
      %v2136 = vunpack.c.h.b16 %v398
      %v2137 = vunpack.c.l.b16 %v399
      %v2138 = vunpack.c.h.b16 %v399
      %v2139 = vunpack.c.l.b16 %v400
      %v2140 = vunpack.c.h.b16 %v400
      %v2141 = vunpack.c.l.b16 %v401
      %v2142 = vunpack.c.h.b16 %v401
      %v2143 = vunpack.c.l.b16 %v402
      %v2144 = vunpack.c.h.b16 %v402
      %v2145 = vunpack.c.l.b16 %v403
      %v2146 = vunpack.c.h.b16 %v403
      %v2147 = vunpack.c.l.b16 %v404
      %v2148 = vunpack.c.h.b16 %v404
      %v2149 = vunpack.c.l.b16 %v405
      %v2150 = vunpack.c.h.b16 %v405
      %v2151 = vunpack.c.l.b16 %v406
      %v2152 = vunpack.c.h.b16 %v406
      %v2153 = vunpack.c.l.b16 %v407
      %v2154 = vunpack.c.h.b16 %v407
      %v2155 = vunpack.c.l.b16 %v408
      %v2156 = vunpack.c.h.b16 %v408
      %v2157 = vunpack.c.l.b16 %v409
      %v2158 = vunpack.c.h.b16 %v409
      %v2159 = vunpack.c.l.b16 %v410
      %v2160 = vunpack.c.h.b16 %v410
      %v2161 = vunpack.c.l.b16 %v411
      %v2162 = vunpack.c.h.b16 %v411
      %v2163 = vunpack.c.l.b16 %v412
      %v2164 = vunpack.c.h.b16 %v412
      %v2165 = vunpack.c.l.b16 %v413
      %v2166 = vunpack.c.h.b16 %v413
      %v2167 = vunpack.c.l.b16 %v414
      %v2168 = vunpack.c.h.b16 %v414
      %v2169 = vunpack.c.l.b16 %v415
      %v2170 = vunpack.c.h.b16 %v415
      %v2171 = vunpack.c.l.b16 %v416
      %v2172 = vunpack.c.h.b16 %v416
      %v2173 = vunpack.c.l.b16 %v417
      %v2174 = vunpack.c.h.b16 %v417
      %v2175 = vunpack.c.l.b16 %v418
      %v2176 = vunpack.c.h.b16 %v418
      %v2177 = vunpack.c.l.b16 %v419
      %v2178 = vunpack.c.h.b16 %v419
      %v2179 = vunpack.c.l.b16 %v420
      %v2180 = vunpack.c.h.b16 %v420
      %v2181 = vunpack.c.l.b16 %v421
      %v2182 = vunpack.c.h.b16 %v421
      %v2183 = vunpack.c.l.b16 %v422
      %v2184 = vunpack.c.h.b16 %v422
      %v2185 = vunpack.c.l.b16 %v423
      %v2186 = vunpack.c.h.b16 %v423
      %v2187 = vunpack.c.l.b16 %v424
      %v2188 = vunpack.c.h.b16 %v424
      %v2189 = vunpack.c.l.b16 %v425
      %v2190 = vunpack.c.h.b16 %v425
      %v2191 = vunpack.c.l.b16 %v426
      %v2192 = vunpack.c.h.b16 %v426
      %v2193 = vunpack.c.l.b16 %v427
      %v2194 = vunpack.c.h.b16 %v427
      %v2195 = vunpack.c.l.b16 %v428
      %v2196 = vunpack.c.h.b16 %v428
      %v2197 = vunpack.c.l.b16 %v429
      %v2198 = vunpack.c.h.b16 %v429
      %v2199 = vunpack.c.l.b16 %v430
      %v2200 = vunpack.c.h.b16 %v430
      %v2201 = vunpack.c.l.b16 %v431
      %v2202 = vunpack.c.h.b16 %v431
      %v2203 = vunpack.c.l.b16 %v432
      %v2204 = vunpack.c.h.b16 %v432
      %v2205 = vunpack.c.l.b16 %v433
      %v2206 = vunpack.c.h.b16 %v433
      %v2207 = vunpack.c.l.b16 %v434
      %v2208 = vunpack.c.h.b16 %v434
      %v2209 = vunpack.c.l.b16 %v435
      %v2210 = vunpack.c.h.b16 %v435
      %v2211 = vunpack.c.l.b16 %v436
      %v2212 = vunpack.c.h.b16 %v436
      %v2213 = vunpack.c.l.b16 %v437
      %v2214 = vunpack.c.h.b16 %v437
      %v2215 = vunpack.c.l.b16 %v438
      %v2216 = vunpack.c.h.b16 %v438
      %v2217 = vunpack.c.l.b16 %v439
      %v2218 = vunpack.c.h.b16 %v439
      %v2219 = vunpack.c.l.b16 %v440
      %v2220 = vunpack.c.h.b16 %v440
      %v2221 = vunpack.c.l.b16 %v441
      %v2222 = vunpack.c.h.b16 %v441
      %v2223 = vunpack.c.l.b16 %v442
      %v2224 = vunpack.c.h.b16 %v442
      %v2225 = vunpack.c.l.b16 %v443
      %v2226 = vunpack.c.h.b16 %v443
      %v2227 = vunpack.c.l.b16 %v444
      %v2228 = vunpack.c.h.b16 %v444
      %v2229 = vunpack.c.l.b16 %v445
      %v2230 = vunpack.c.h.b16 %v445
      %v2231 = vunpack.c.l.b16 %v446
      %v2232 = vunpack.c.h.b16 %v446
      %v2233 = vunpack.c.l.b16 %v447
      %v2234 = vunpack.c.h.b16 %v447
      %v2235 = vunpack.c.l.b16 %v448
      %v2236 = vunpack.c.h.b16 %v448
      %v2237 = vunpack.c.l.b16 %v449
      %v2238 = vunpack.c.h.b16 %v449
      %v2239 = vunpack.c.l.b16 %v450
      %v2240 = vunpack.c.h.b16 %v450
      %v2241 = vunpack.c.l.b16 %v451
      %v2242 = vunpack.c.h.b16 %v451
      %v2243 = vunpack.c.l.b16 %v452
      %v2244 = vunpack.c.h.b16 %v452
      %v2245 = vunpack.c.l.b16 %v453
      %v2246 = vunpack.c.h.b16 %v453
      %v2247 = vunpack.c.l.b16 %v454
      %v2248 = vunpack.c.h.b16 %v454
      %v2249 = vunpack.c.l.b16 %v455
      %v2250 = vunpack.c.h.b16 %v455
      %v2251 = vunpack.c.l.b16 %v456
      %v2252 = vunpack.c.h.b16 %v456
      %v2253 = vunpack.c.l.b16 %v457
      %v2254 = vunpack.c.h.b16 %v457
      %v2255 = vunpack.c.l.b16 %v458
      %v2256 = vunpack.c.h.b16 %v458
      %v2257 = vunpack.c.l.b16 %v459
      %v2258 = vunpack.c.h.b16 %v459
      %v2259 = vunpack.c.l.b16 %v460
      %v2260 = vunpack.c.h.b16 %v460
      %v2261 = vunpack.c.l.b16 %v461
      %v2262 = vunpack.c.h.b16 %v461
      %v2263 = vunpack.c.l.b16 %v462
      %v2264 = vunpack.c.h.b16 %v462
      %v2265 = vunpack.c.l.b16 %v463
      %v2266 = vunpack.c.h.b16 %v463
      %v2267 = vunpack.c.l.b16 %v464
      %v2268 = vunpack.c.h.b16 %v464
      %v2269 = vunpack.c.l.b16 %v465
      %v2270 = vunpack.c.h.b16 %v465
      %v2271 = vunpack.c.l.b16 %v466
      %v2272 = vunpack.c.h.b16 %v466
      %v2273 = vunpack.c.l.b16 %v467
      %v2274 = vunpack.c.h.b16 %v467
      %v2275 = vunpack.c.l.b16 %v468
      %v2276 = vunpack.c.h.b16 %v468
      %v2277 = vunpack.c.l.b16 %v469
      %v2278 = vunpack.c.h.b16 %v469
      %v2279 = vunpack.c.l.b16 %v470
      %v2280 = vunpack.c.h.b16 %v470
      %v2281 = vunpack.c.l.b16 %v471
      %v2282 = vunpack.c.h.b16 %v471
      %v2283 = vunpack.c.l.b16 %v472
      %v2284 = vunpack.c.h.b16 %v472
      %v2285 = vunpack.c.l.b16 %v473
      %v2286 = vunpack.c.h.b16 %v473
      %v2287 = vunpack.c.l.b16 %v474
      %v2288 = vunpack.c.h.b16 %v474
      %v2289 = vunpack.c.l.b16 %v475
      %v2290 = vunpack.c.h.b16 %v475
      %v2291 = vunpack.c.l.b16 %v476
      %v2292 = vunpack.c.h.b16 %v476
      %v2293 = vunpack.c.l.b16 %v477
      %v2294 = vunpack.c.h.b16 %v477
      %v2295 = vunpack.c.l.b16 %v478
      %v2296 = vunpack.c.h.b16 %v478
      %v2297 = vunpack.c.l.b16 %v479
      %v2298 = vunpack.c.h.b16 %v479
      %v2299 = vunpack.c.l.b16 %v480
      %v2300 = vunpack.c.h.b16 %v480
      %v2301 = vunpack.c.l.b16 %v481
      %v2302 = vunpack.c.h.b16 %v481
      %v2303 = vunpack.c.l.b16 %v482
      %v2304 = vunpack.c.h.b16 %v482
      %v2305 = vunpack.c.l.b16 %v483
      %v2306 = vunpack.c.h.b16 %v483
      %v2307 = vunpack.c.l.b16 %v484
      %v2308 = vunpack.c.h.b16 %v484
      %v2309 = vunpack.c.l.b16 %v485
      %v2310 = vunpack.c.h.b16 %v485
      %v2311 = vunpack.c.l.b16 %v486
      %v2312 = vunpack.c.h.b16 %v486
      %v2313 = vunpack.c.l.b16 %v487
      %v2314 = vunpack.c.h.b16 %v487
      %v2315 = vunpack.c.l.b16 %v488
      %v2316 = vunpack.c.h.b16 %v488
      %v2317 = vunpack.c.l.b16 %v489
      %v2318 = vunpack.c.h.b16 %v489
      %v2319 = vunpack.c.l.b16 %v490
      %v2320 = vunpack.c.h.b16 %v490
      %v2321 = vunpack.c.l.b16 %v491
      %v2322 = vunpack.c.h.b16 %v491
      %v2323 = vunpack.c.l.b16 %v492
      %v2324 = vunpack.c.h.b16 %v492
      %v2325 = vunpack.c.l.b16 %v493
      %v2326 = vunpack.c.h.b16 %v493
      %v2327 = vunpack.c.l.b16 %v494
      %v2328 = vunpack.c.h.b16 %v494
      %v2329 = vunpack.c.l.b16 %v495
      %v2330 = vunpack.c.h.b16 %v495
      %v2331 = vunpack.c.l.b16 %v496
      %v2332 = vunpack.c.h.b16 %v496
      %v2333 = vunpack.c.l.b16 %v497
      %v2334 = vunpack.c.h.b16 %v497
      %v2335 = vunpack.c.l.b16 %v498
      %v2336 = vunpack.c.h.b16 %v498
      %v2337 = vunpack.c.l.b16 %v499
      %v2338 = vunpack.c.h.b16 %v499
      %v2339 = vunpack.c.l.b16 %v500
      %v2340 = vunpack.c.h.b16 %v500
      %v2341 = vunpack.c.l.b16 %v501
      %v2342 = vunpack.c.h.b16 %v501
      %v2343 = vunpack.c.l.b16 %v502
      %v2344 = vunpack.c.h.b16 %v502
      %v2345 = vunpack.c.l.b16 %v503
      %v2346 = vunpack.c.h.b16 %v503
      %v2347 = vunpack.c.l.b16 %v504
      %v2348 = vunpack.c.h.b16 %v504
      %v2349 = vunpack.c.l.b16 %v505
      %v2350 = vunpack.c.h.b16 %v505
      %v2351 = vunpack.c.l.b16 %v506
      %v2352 = vunpack.c.h.b16 %v506
      %v2353 = vunpack.c.l.b16 %v507
      %v2354 = vunpack.c.h.b16 %v507
      %v2355 = vunpack.c.l.b16 %v508
      %v2356 = vunpack.c.h.b16 %v508
      %v2357 = vunpack.c.l.b16 %v509
      %v2358 = vunpack.c.h.b16 %v509
      %v2359 = vunpack.c.l.b16 %v510
      %v2360 = vunpack.c.h.b16 %v510
      %v2361 = vunpack.c.l.b16 %v511
      %v2362 = vunpack.c.h.b16 %v511
      %v2363 = vunpack.c.l.b16 %v512
      %v2364 = vunpack.c.h.b16 %v512
      %v2365 = vunpack.c.l.b16 %v513
      %v2366 = vunpack.c.h.b16 %v513
      %v2367 = vunpack.c.l.b16 %v514
      %v2368 = vunpack.c.h.b16 %v514
      %v2369 = vunpack.c.l.b16 %v515
      %v2370 = vunpack.c.h.b16 %v515
      %v2371 = vunpack.c.l.b16 %v516
      %v2372 = vunpack.c.h.b16 %v516
      %v2373 = vunpack.c.l.b16 %v517
      %v2374 = vunpack.c.h.b16 %v517
      %v2375 = vunpack.c.l.b16 %v518
      %v2376 = vunpack.c.h.b16 %v518
      %v2377 = vunpack.c.l.b16 %v519
      %v2378 = vunpack.c.h.b16 %v519
      %v2379 = vunpack.c.l.b16 %v520
      %v2380 = vunpack.c.h.b16 %v520
      %v2381 = vunpack.c.l.b16 %v521
      %v2382 = vunpack.c.h.b16 %v521
      %v2383 = vunpack.c.l.b16 %v522
      %v2384 = vunpack.c.h.b16 %v522
      %v2385 = vunpack.c.l.b16 %v523
      %v2386 = vunpack.c.h.b16 %v523
      %v2387 = vunpack.c.l.b16 %v524
      %v2388 = vunpack.c.h.b16 %v524
      %v2389 = vunpack.c.l.b16 %v525
      %v2390 = vunpack.c.h.b16 %v525
      %v2391 = vunpack.c.l.b16 %v526
      %v2392 = vunpack.c.h.b16 %v526
      %v2393 = vunpack.c.l.b16 %v527
      %v2394 = vunpack.c.h.b16 %v527
      %v2395 = vunpack.c.l.b16 %v528
      %v2396 = vunpack.c.h.b16 %v528
      %v2397 = vunpack.c.l.b16 %v529
      %v2398 = vunpack.c.h.b16 %v529
      %v2399 = vunpack.c.l.b16 %v530
      %v2400 = vunpack.c.h.b16 %v530
      %v2401 = vunpack.c.l.b16 %v531
      %v2402 = vunpack.c.h.b16 %v531
      %v2403 = vunpack.c.l.b16 %v532
      %v2404 = vunpack.c.h.b16 %v532
      %v2405 = vunpack.c.l.b16 %v533
      %v2406 = vunpack.c.h.b16 %v533
      %v2407 = vunpack.c.l.b16 %v534
      %v2408 = vunpack.c.h.b16 %v534
      %v2409 = vunpack.c.l.b16 %v535
      %v2410 = vunpack.c.h.b16 %v535
      %v2411 = vunpack.c.l.b16 %v536
      %v2412 = vunpack.c.h.b16 %v536
      %v2413 = vunpack.c.l.b16 %v537
      %v2414 = vunpack.c.h.b16 %v537
      %v2415 = vunpack.c.l.b16 %v538
      %v2416 = vunpack.c.h.b16 %v538
      %v2417 = vunpack.c.l.b16 %v539
      %v2418 = vunpack.c.h.b16 %v539
      %v2419 = vunpack.c.l.b16 %v540
      %v2420 = vunpack.c.h.b16 %v540
      %v2421 = vunpack.c.l.b16 %v541
      %v2422 = vunpack.c.h.b16 %v541
      %v2423 = vunpack.c.l.b16 %v542
      %v2424 = vunpack.c.h.b16 %v542
      %v2425 = vunpack.c.l.b16 %v543
      %v2426 = vunpack.c.h.b16 %v543
      %v2427 = vunpack.c.l.b16 %v544
      %v2428 = vunpack.c.h.b16 %v544
      %v2429 = vunpack.c.l.b16 %v545
      %v2430 = vunpack.c.h.b16 %v545
      %v2431 = vunpack.c.l.b16 %v546
      %v2432 = vunpack.c.h.b16 %v546
      %v2433 = vunpack.c.l.b16 %v547
      %v2434 = vunpack.c.h.b16 %v547
      %v2435 = vunpack.c.l.b16 %v548
      %v2436 = vunpack.c.h.b16 %v548
      %v2437 = vunpack.c.l.b16 %v549
      %v2438 = vunpack.c.h.b16 %v549
      %v2439 = vunpack.c.l.b16 %v550
      %v2440 = vunpack.c.h.b16 %v550
      %v2441 = vunpack.c.l.b16 %v551
      %v2442 = vunpack.c.h.b16 %v551
      %v2443 = vunpack.c.l.b16 %v552
      %v2444 = vunpack.c.h.b16 %v552
      %v2445 = vunpack.c.l.b16 %v553
      %v2446 = vunpack.c.h.b16 %v553
      %v2447 = vunpack.c.l.b16 %v554
      %v2448 = vunpack.c.h.b16 %v554
      %v2449 = vunpack.c.l.b16 %v555
      %v2450 = vunpack.c.h.b16 %v555
      %v2451 = vunpack.c.l.b16 %v556
      %v2452 = vunpack.c.h.b16 %v556
      %v2453 = vunpack.c.l.b16 %v557
      %v2454 = vunpack.c.h.b16 %v557
      %v2455 = vunpack.c.l.b16 %v558
      %v2456 = vunpack.c.h.b16 %v558
      %v2457 = vunpack.c.l.b16 %v559
      %v2458 = vunpack.c.h.b16 %v559
      %v2459 = vunpack.c.l.b16 %v560
      %v2460 = vunpack.c.h.b16 %v560
      %v2461 = vunpack.c.l.b16 %v561
      %v2462 = vunpack.c.h.b16 %v561
      %v2463 = vunpack.c.l.b16 %v562
      %v2464 = vunpack.c.h.b16 %v562
      %v2465 = vunpack.c.l.b16 %v563
      %v2466 = vunpack.c.h.b16 %v563
      %v2467 = vunpack.c.l.b16 %v564
      %v2468 = vunpack.c.h.b16 %v564
      %v2469 = vunpack.c.l.b16 %v565
      %v2470 = vunpack.c.h.b16 %v565
      %v2471 = vunpack.c.l.b16 %v566
      %v2472 = vunpack.c.h.b16 %v566
      %v2473 = vunpack.c.l.b16 %v567
      %v2474 = vunpack.c.h.b16 %v567
      %v2475 = vunpack.c.l.b16 %v568
      %v2476 = vunpack.c.h.b16 %v568
      %v2477 = vunpack.c.l.b16 %v569
      %v2478 = vunpack.c.h.b16 %v569
      %v2479 = vunpack.c.l.b16 %v570
      %v2480 = vunpack.c.h.b16 %v570
      %v2481 = vunpack.c.l.b16 %v571
      %v2482 = vunpack.c.h.b16 %v571
      %v2483 = vunpack.c.l.b16 %v572
      %v2484 = vunpack.c.h.b16 %v572
      %v2485 = vunpack.c.l.b16 %v573
      %v2486 = vunpack.c.h.b16 %v573
      %v2487 = vunpack.c.l.b16 %v574
      %v2488 = vunpack.c.h.b16 %v574
      %v2489 = vunpack.c.l.b16 %v575
      %v2490 = vunpack.c.h.b16 %v575
      %v2491 = vunpack.c.l.b16 %v576
      %v2492 = vunpack.c.h.b16 %v576
      %v2493 = vunpack.c.l.b16 %v577
      %v2494 = vunpack.c.h.b16 %v577
      %v2495 = vunpack.c.l.b16 %v578
      %v2496 = vunpack.c.h.b16 %v578
      %v2497 = vunpack.c.l.b16 %v579
      %v2498 = vunpack.c.h.b16 %v579
      %v2499 = vunpack.c.l.b16 %v580
      %v2500 = vunpack.c.h.b16 %v580
      %v2501 = vunpack.c.l.b16 %v581
      %v2502 = vunpack.c.h.b16 %v581
      %v2503 = vunpack.c.l.b16 %v582
      %v2504 = vunpack.c.h.b16 %v582
      %v2505 = vunpack.c.l.b16 %v583
      %v2506 = vunpack.c.h.b16 %v583
      %v2507 = vunpack.c.l.b16 %v584
      %v2508 = vunpack.c.h.b16 %v584
      %v2509 = vunpack.c.l.b16 %v585
      %v2510 = vunpack.c.h.b16 %v585
      %v2511 = vunpack.c.l.b16 %v586
      %v2512 = vunpack.c.h.b16 %v586
      %v2513 = vunpack.c.l.b16 %v587
      %v2514 = vunpack.c.h.b16 %v587
      %v2515 = vunpack.c.l.b16 %v588
      %v2516 = vunpack.c.h.b16 %v588
      %v2517 = vunpack.c.l.b16 %v589
      %v2518 = vunpack.c.h.b16 %v589
      %v2519 = vunpack.c.l.b16 %v590
      %v2520 = vunpack.c.h.b16 %v590
      %v2521 = vunpack.c.l.b16 %v591
      %v2522 = vunpack.c.h.b16 %v591
      %v2523 = vunpack.c.l.b16 %v592
      %v2524 = vunpack.c.h.b16 %v592
      %v2525 = vunpack.c.l.b16 %v593
      %v2526 = vunpack.c.h.b16 %v593
      %v2527 = vunpack.c.l.b16 %v594
      %v2528 = vunpack.c.h.b16 %v594
      %v2529 = vunpack.c.l.b16 %v595
      %v2530 = vunpack.c.h.b16 %v595
      %v2531 = vunpack.c.l.b16 %v596
      %v2532 = vunpack.c.h.b16 %v596
      %v2533 = vunpack.c.l.b16 %v597
      %v2534 = vunpack.c.h.b16 %v597
      %v2535 = vunpack.c.l.b16 %v598
      %v2536 = vunpack.c.h.b16 %v598
      %v2537 = vunpack.c.l.b16 %v599
      %v2538 = vunpack.c.h.b16 %v599
      %v2539 = vunpack.c.l.b16 %v600
      %v2540 = vunpack.c.h.b16 %v600
      %v2541 = vunpack.c.l.b16 %v601
      %v2542 = vunpack.c.h.b16 %v601
      %v2543 = vunpack.c.l.b16 %v602
      %v2544 = vunpack.c.h.b16 %v602
      %v2545 = vunpack.c.l.b16 %v603
      %v2546 = vunpack.c.h.b16 %v603
      %v2547 = vunpack.c.l.b16 %v604
      %v2548 = vunpack.c.h.b16 %v604
      %v2549 = vunpack.c.l.b16 %v605
      %v2550 = vunpack.c.h.b16 %v605
      %v2551 = vunpack.c.l.b16 %v606
      %v2552 = vunpack.c.h.b16 %v606
      %v2553 = vunpack.c.l.b16 %v607
      %v2554 = vunpack.c.h.b16 %v607
      %v2555 = vunpack.c.l.b16 %v608
      %v2556 = vunpack.c.h.b16 %v608
      %v2557 = vunpack.c.l.b16 %v609
      %v2558 = vunpack.c.h.b16 %v609
      %v2559 = vunpack.c.l.b16 %v610
      %v2560 = vunpack.c.h.b16 %v610
      %v2561 = vunpack.c.l.b16 %v611
      %v2562 = vunpack.c.h.b16 %v611
      %v2563 = vunpack.c.l.b16 %v612
      %v2564 = vunpack.c.h.b16 %v612
      %v2565 = vunpack.c.l.b16 %v613
      %v2566 = vunpack.c.h.b16 %v613
      %v2567 = vunpack.c.l.b16 %v614
      %v2568 = vunpack.c.h.b16 %v614
      %v2569 = vunpack.c.l.b16 %v615
      %v2570 = vunpack.c.h.b16 %v615
      %v2571 = vunpack.c.l.b16 %v616
      %v2572 = vunpack.c.h.b16 %v616
      %v2573 = vunpack.c.l.b16 %v617
      %v2574 = vunpack.c.h.b16 %v617
      %v2575 = vunpack.c.l.b16 %v618
      %v2576 = vunpack.c.h.b16 %v618
      %v2577 = vunpack.c.l.b16 %v619
      %v2578 = vunpack.c.h.b16 %v619
      %v2579 = vunpack.c.l.b16 %v620
      %v2580 = vunpack.c.h.b16 %v620
      %v2581 = vunpack.c.l.b16 %v621
      %v2582 = vunpack.c.h.b16 %v621
      %v2583 = vunpack.c.l.b16 %v622
      %v2584 = vunpack.c.h.b16 %v622
      %v2585 = vunpack.c.l.b16 %v623
      %v2586 = vunpack.c.h.b16 %v623
      %v2587 = vunpack.c.l.b16 %v624
      %v2588 = vunpack.c.h.b16 %v624
      %v2589 = vunpack.c.l.b16 %v625
      %v2590 = vunpack.c.h.b16 %v625
      %v2591 = vunpack.c.l.b16 %v626
      %v2592 = vunpack.c.h.b16 %v626
      %v2593 = vunpack.c.l.b16 %v627
      %v2594 = vunpack.c.h.b16 %v627
      %v2595 = vunpack.c.l.b16 %v628
      %v2596 = vunpack.c.h.b16 %v628
      %v2597 = vunpack.c.l.b16 %v629
      %v2598 = vunpack.c.h.b16 %v629
      %v2599 = vunpack.c.l.b16 %v630
      %v2600 = vunpack.c.h.b16 %v630
      %v2601 = vunpack.c.l.b16 %v631
      %v2602 = vunpack.c.h.b16 %v631
      %v2603 = vunpack.c.l.b16 %v632
      %v2604 = vunpack.c.h.b16 %v632
      %v2605 = vunpack.c.l.b16 %v633
      %v2606 = vunpack.c.h.b16 %v633
      %v2607 = vunpack.c.l.b16 %v634
      %v2608 = vunpack.c.h.b16 %v634
      %v2609 = vunpack.c.l.b16 %v635
      %v2610 = vunpack.c.h.b16 %v635
      %v2611 = vunpack.c.l.b16 %v636
      %v2612 = vunpack.c.h.b16 %v636
      %v2613 = vunpack.c.l.b16 %v637
      %v2614 = vunpack.c.h.b16 %v637
      %v2615 = vunpack.c.l.b16 %v638
      %v2616 = vunpack.c.h.b16 %v638
      %v2617 = vunpack.c.l.b16 %v639
      %v2618 = vunpack.c.h.b16 %v639
      %v2619 = vunpack.c.l.b16 %v640
      %v2620 = vunpack.c.h.b16 %v640
      %v2621 = vunpack.c.l.b16 %v641
      %v2622 = vunpack.c.h.b16 %v641
      %v2623 = vunpack.c.l.b16 %v642
      %v2624 = vunpack.c.h.b16 %v642
      %v2625 = vunpack.c.l.b16 %v643
      %v2626 = vunpack.c.h.b16 %v643
      %v2627 = vunpack.c.l.b16 %v644
      %v2628 = vunpack.c.h.b16 %v644
      %v2629 = vunpack.c.l.b16 %v645
      %v2630 = vunpack.c.h.b16 %v645
      %v2631 = vunpack.c.l.b16 %v646
      %v2632 = vunpack.c.h.b16 %v646
      %v2633 = vunpack.c.l.b16 %v647
      %v2634 = vunpack.c.h.b16 %v647
      %v2635 = vunpack.c.l.b16 %v648
      %v2636 = vunpack.c.h.b16 %v648
      %v2637 = vunpack.c.l.b16 %v649
      %v2638 = vunpack.c.h.b16 %v649
      %v2639 = vunpack.c.l.b16 %v650
      %v2640 = vunpack.c.h.b16 %v650
      %v2641 = vunpack.c.l.b16 %v651
      %v2642 = vunpack.c.h.b16 %v651
      %v2643 = vunpack.c.l.b16 %v652
      %v2644 = vunpack.c.h.b16 %v652
      %v2645 = vunpack.c.l.b16 %v653
      %v2646 = vunpack.c.h.b16 %v653
      %v2647 = vunpack.c.l.b16 %v654
      %v2648 = vunpack.c.h.b16 %v654
      %v2649 = vunpack.c.l.b16 %v655
      %v2650 = vunpack.c.h.b16 %v655
      %v2651 = vunpack.c.l.b16 %v656
      %v2652 = vunpack.c.h.b16 %v656
      %v2653 = vunpack.c.l.b16 %v657
      %v2654 = vunpack.c.h.b16 %v657
      %v2655 = vunpack.c.l.b16 %v658
      %v2656 = vunpack.c.h.b16 %v658
      %v2657 = vunpack.c.l.b16 %v659
      %v2658 = vunpack.c.h.b16 %v659
      %v2659 = vunpack.c.l.b16 %v660
      %v2660 = vunpack.c.h.b16 %v660
      %v2661 = vunpack.c.l.b16 %v661
      %v2662 = vunpack.c.h.b16 %v661
      %v2663 = vunpack.c.l.b16 %v662
      %v2664 = vunpack.c.h.b16 %v662
      %v2665 = vunpack.c.l.b16 %v663
      %v2666 = vunpack.c.h.b16 %v663
      %v2667 = vunpack.c.l.b16 %v664
      %v2668 = vunpack.c.h.b16 %v664
      %v2669 = vunpack.c.l.b16 %v665
      %v2670 = vunpack.c.h.b16 %v665
      %v2671 = vunpack.c.l.b16 %v666
      %v2672 = vunpack.c.h.b16 %v666
      %v2673 = vunpack.c.l.b16 %v667
      %v2674 = vunpack.c.h.b16 %v667
      %v2675 = vunpack.c.l.b16 %v668
      %v2676 = vunpack.c.h.b16 %v668
      %v2677 = vunpack.c.l.b16 %v669
      %v2678 = vunpack.c.h.b16 %v669
      %v2679 = vunpack.c.l.b16 %v670
      %v2680 = vunpack.c.h.b16 %v670
      %v2681 = vunpack.c.l.b16 %v671
      %v2682 = vunpack.c.h.b16 %v671
      %v2683 = vunpack.c.l.b16 %v672
      %v2684 = vunpack.c.h.b16 %v672
      %v2685 = vunpack.c.l.b16 %v673
      %v2686 = vunpack.c.h.b16 %v673
      %v2687 = vunpack.c.l.b16 %v674
      %v2688 = vunpack.c.h.b16 %v674
      %v2689 = vunpack.c.l.b16 %v675
      %v2690 = vunpack.c.h.b16 %v675
      %v2691 = vunpack.c.l.b16 %v676
      %v2692 = vunpack.c.h.b16 %v676
      %v2693 = vunpack.c.l.b16 %v677
      %v2694 = vunpack.c.h.b16 %v677
      %v2695 = vunpack.c.l.b16 %v678
      %v2696 = vunpack.c.h.b16 %v678
      %v2697 = vunpack.c.l.b16 %v679
      %v2698 = vunpack.c.h.b16 %v679
      %v2699 = vunpack.c.l.b16 %v680
      %v2700 = vunpack.c.h.b16 %v680
      %v2701 = vunpack.c.l.b16 %v681
      %v2702 = vunpack.c.h.b16 %v681
      %v2703 = vunpack.c.l.b16 %v682
      %v2704 = vunpack.c.h.b16 %v682
      %v2705 = vunpack.c.l.b16 %v683
      %v2706 = vunpack.c.h.b16 %v683
      %v2707 = vunpack.c.l.b16 %v684
      %v2708 = vunpack.c.h.b16 %v684
      %v2709 = vunpack.c.l.b16 %v685
      %v2710 = vunpack.c.h.b16 %v685
      %v2711 = vunpack.c.l.b16 %v686
      %v2712 = vunpack.c.h.b16 %v686
      %v2713 = vunpack.c.l.b16 %v687
      %v2714 = vunpack.c.h.b16 %v687
      %v2715 = vunpack.c.l.b16 %v688
      %v2716 = vunpack.c.h.b16 %v688
      %v2717 = vunpack.c.l.b16 %v689
      %v2718 = vunpack.c.h.b16 %v689
      %v2719 = vunpack.c.l.b16 %v690
      %v2720 = vunpack.c.h.b16 %v690
      %v2721 = vunpack.c.l.b16 %v691
      %v2722 = vunpack.c.h.b16 %v691
      %v2723 = vunpack.c.l.b16 %v692
      %v2724 = vunpack.c.h.b16 %v692
      %v2725 = vunpack.c.l.b16 %v693
      %v2726 = vunpack.c.h.b16 %v693
      %v2727 = vunpack.c.l.b16 %v694
      %v2728 = vunpack.c.h.b16 %v694
      %v2729 = vunpack.c.l.b16 %v695
      %v2730 = vunpack.c.h.b16 %v695
      %v2731 = vunpack.c.l.b16 %v696
      %v2732 = vunpack.c.h.b16 %v696
      %v2733 = vunpack.c.l.b16 %v697
      %v2734 = vunpack.c.h.b16 %v697
      %v2735 = vunpack.c.l.b16 %v698
      %v2736 = vunpack.c.h.b16 %v698
      %v2737 = vunpack.c.l.b16 %v699
      %v2738 = vunpack.c.h.b16 %v699
      %v2739 = vunpack.c.l.b16 %v700
      %v2740 = vunpack.c.h.b16 %v700
      %v2741 = vunpack.c.l.b16 %v701
      %v2742 = vunpack.c.h.b16 %v701
      %v2743 = vunpack.c.l.b16 %v702
      %v2744 = vunpack.c.h.b16 %v702
      %v2745 = vunpack.c.l.b16 %v703
      %v2746 = vunpack.c.h.b16 %v703
      %v2747 = vunpack.c.l.b16 %v704
      %v2748 = vunpack.c.h.b16 %v704
      %v2749 = vunpack.c.l.b16 %v705
      %v2750 = vunpack.c.h.b16 %v705
      %v2751 = vunpack.c.l.b16 %v706
      %v2752 = vunpack.c.h.b16 %v706
      %v2753 = vunpack.c.l.b16 %v707
      %v2754 = vunpack.c.h.b16 %v707
      %v2755 = vunpack.c.l.b16 %v708
      %v2756 = vunpack.c.h.b16 %v708
      %v2757 = vunpack.c.l.b16 %v709
      %v2758 = vunpack.c.h.b16 %v709
      %v2759 = vunpack.c.l.b16 %v710
      %v2760 = vunpack.c.h.b16 %v710
      %v2761 = vunpack.c.l.b16 %v711
      %v2762 = vunpack.c.h.b16 %v711
      %v2763 = vunpack.c.l.b16 %v712
      %v2764 = vunpack.c.h.b16 %v712
      %v2765 = vunpack.c.l.b16 %v713
      %v2766 = vunpack.c.h.b16 %v713
      %v2767 = vunpack.c.l.b16 %v714
      %v2768 = vunpack.c.h.b16 %v714
      %v2769 = vunpack.c.l.b16 %v715
      %v2770 = vunpack.c.h.b16 %v715
      %v2771 = vunpack.c.l.b16 %v716
      %v2772 = vunpack.c.h.b16 %v716
      %v2773 = vunpack.c.l.b16 %v717
      %v2774 = vunpack.c.h.b16 %v717
      %v2775 = vunpack.c.l.b16 %v718
      %v2776 = vunpack.c.h.b16 %v718
      %v2777 = vunpack.c.l.b16 %v719
      %v2778 = vunpack.c.h.b16 %v719
      %v2779 = vunpack.c.l.b16 %v720
      %v2780 = vunpack.c.h.b16 %v720
      %v2781 = vunpack.c.l.b16 %v721
      %v2782 = vunpack.c.h.b16 %v721
      %v2783 = vunpack.c.l.b16 %v722
      %v2784 = vunpack.c.h.b16 %v722
      %v2785 = vunpack.c.l.b16 %v723
      %v2786 = vunpack.c.h.b16 %v723
      %v2787 = vunpack.c.l.b16 %v724
      %v2788 = vunpack.c.h.b16 %v724
      %v2789 = vunpack.c.l.b16 %v725
      %v2790 = vunpack.c.h.b16 %v725
      %v2791 = vunpack.c.l.b16 %v726
      %v2792 = vunpack.c.h.b16 %v726
      %v2793 = vunpack.c.l.b16 %v727
      %v2794 = vunpack.c.h.b16 %v727
      %v2795 = vunpack.c.l.b16 %v728
      %v2796 = vunpack.c.h.b16 %v728
      %v2797 = vunpack.c.l.b16 %v729
      %v2798 = vunpack.c.h.b16 %v729
      %v2799 = vunpack.c.l.b16 %v730
      %v2800 = vunpack.c.h.b16 %v730
      %v2801 = vunpack.c.l.b16 %v731
      %v2802 = vunpack.c.h.b16 %v731
      %v2803 = vunpack.c.l.b16 %v732
      %v2804 = vunpack.c.h.b16 %v732
      %v2805 = vunpack.c.l.b16 %v733
      %v2806 = vunpack.c.h.b16 %v733
      %v2807 = vunpack.c.l.b16 %v734
      %v2808 = vunpack.c.h.b16 %v734
      %v2809 = vunpack.c.l.b16 %v735
      %v2810 = vunpack.c.h.b16 %v735
      %v2811 = vunpack.c.l.b16 %v736
      %v2812 = vunpack.c.h.b16 %v736
      %v2813 = vunpack.c.l.b16 %v737
      %v2814 = vunpack.c.h.b16 %v737
      %v2815 = vunpack.c.l.b16 %v738
      %v2816 = vunpack.c.h.b16 %v738
      %v2817 = vunpack.c.l.b16 %v739
      %v2818 = vunpack.c.h.b16 %v739
      %v2819 = vunpack.c.l.b16 %v740
      %v2820 = vunpack.c.h.b16 %v740
      %v2821 = vunpack.c.l.b16 %v741
      %v2822 = vunpack.c.h.b16 %v741
      %v2823 = vunpack.c.l.b16 %v742
      %v2824 = vunpack.c.h.b16 %v742
      %v2825 = vunpack.c.l.b16 %v743
      %v2826 = vunpack.c.h.b16 %v743
      %v2827 = vunpack.c.l.b16 %v744
      %v2828 = vunpack.c.h.b16 %v744
      %v2829 = vunpack.c.l.b16 %v745
      %v2830 = vunpack.c.h.b16 %v745
      %v2831 = vunpack.c.l.b16 %v746
      %v2832 = vunpack.c.h.b16 %v746
      %v2833 = vunpack.c.l.b16 %v747
      %v2834 = vunpack.c.h.b16 %v747
      %v2835 = vunpack.c.l.b16 %v748
      %v2836 = vunpack.c.h.b16 %v748
      %v2837 = vunpack.c.l.b16 %v749
      %v2838 = vunpack.c.h.b16 %v749
      %v2839 = vunpack.c.l.b16 %v750
      %v2840 = vunpack.c.h.b16 %v750
      %v2841 = vunpack.c.l.b16 %v751
      %v2842 = vunpack.c.h.b16 %v751
      %v2843 = vunpack.c.l.b16 %v752
      %v2844 = vunpack.c.h.b16 %v752
      %v2845 = vunpack.c.l.b16 %v753
      %v2846 = vunpack.c.h.b16 %v753
      %v2847 = vunpack.c.l.b16 %v754
      %v2848 = vunpack.c.h.b16 %v754
      %v2849 = vunpack.c.l.b16 %v755
      %v2850 = vunpack.c.h.b16 %v755
      %v2851 = vunpack.c.l.b16 %v756
      %v2852 = vunpack.c.h.b16 %v756
      %v2853 = vunpack.c.l.b16 %v757
      %v2854 = vunpack.c.h.b16 %v757
      %v2855 = vunpack.c.l.b16 %v758
      %v2856 = vunpack.c.h.b16 %v758
      %v2857 = vunpack.c.l.b16 %v759
      %v2858 = vunpack.c.h.b16 %v759
      %v2859 = vunpack.c.l.b16 %v760
      %v2860 = vunpack.c.h.b16 %v760
      %v2861 = vunpack.c.l.b16 %v761
      %v2862 = vunpack.c.h.b16 %v761
      %v2863 = vunpack.c.l.b16 %v762
      %v2864 = vunpack.c.h.b16 %v762
      %v2865 = vunpack.c.l.b16 %v763
      %v2866 = vunpack.c.h.b16 %v763
      %v2867 = vunpack.c.l.b16 %v764
      %v2868 = vunpack.c.h.b16 %v764
      %v2869 = vunpack.c.l.b16 %v765
      %v2870 = vunpack.c.h.b16 %v765
      %v2871 = vunpack.c.l.b16 %v766
      %v2872 = vunpack.c.h.b16 %v766
      %v2873 = vunpack.c.l.b16 %v767
      %v2874 = vunpack.c.h.b16 %v767
      %v2875 = vunpack.c.l.b16 %v768
      %v2876 = vunpack.c.h.b16 %v768
      %v2877 = vunpack.c.l.b16 %v769
      %v2878 = vunpack.c.h.b16 %v769
      %v2879 = vunpack.c.l.b16 %v770
      %v2880 = vunpack.c.h.b16 %v770
      %v2881 = vunpack.c.l.b16 %v771
      %v2882 = vunpack.c.h.b16 %v771
      %v2883 = vunpack.c.l.b16 %v772
      %v2884 = vunpack.c.h.b16 %v772
      %v2885 = vunpack.c.l.b16 %v773
      %v2886 = vunpack.c.h.b16 %v773
      %v2887 = vunpack.c.l.b16 %v774
      %v2888 = vunpack.c.h.b16 %v774
      %v2889 = vunpack.c.l.b16 %v775
      %v2890 = vunpack.c.h.b16 %v775
      %v2891 = vunpack.c.l.b16 %v776
      %v2892 = vunpack.c.h.b16 %v776
      %v2893 = vunpack.c.l.b16 %v777
      %v2894 = vunpack.c.h.b16 %v777
      %v2895 = vunpack.c.l.b16 %v778
      %v2896 = vunpack.c.h.b16 %v778
      %v2897 = vunpack.c.l.b16 %v779
      %v2898 = vunpack.c.h.b16 %v779
      %v2899 = vunpack.c.l.b16 %v780
      %v2900 = vunpack.c.h.b16 %v780
      %v2901 = vunpack.c.l.b16 %v781
      %v2902 = vunpack.c.h.b16 %v781
      %v2903 = vunpack.c.l.b16 %v782
      %v2904 = vunpack.c.h.b16 %v782
      %v2905 = vunpack.c.l.b16 %v783
      %v2906 = vunpack.c.h.b16 %v783
      %v2907 = vunpack.c.l.b16 %v784
      %v2908 = vunpack.c.h.b16 %v784
      %v2909 = vunpack.c.l.b16 %v785
      %v2910 = vunpack.c.h.b16 %v785
      %v2911 = vunpack.c.l.b16 %v786
      %v2912 = vunpack.c.h.b16 %v786
      %v2913 = vunpack.c.l.b16 %v787
      %v2914 = vunpack.c.h.b16 %v787
      %v2915 = vunpack.c.l.b16 %v788
      %v2916 = vunpack.c.h.b16 %v788
      %v2917 = vunpack.c.l.b16 %v789
      %v2918 = vunpack.c.h.b16 %v789
      %v2919 = vunpack.c.l.b16 %v790
      %v2920 = vunpack.c.h.b16 %v790
      %v2921 = vunpack.c.l.b16 %v791
      %v2922 = vunpack.c.h.b16 %v791
      %v2923 = vunpack.c.l.b16 %v792
      %v2924 = vunpack.c.h.b16 %v792
      %v2925 = vunpack.c.l.b16 %v793
      %v2926 = vunpack.c.h.b16 %v793
      %v2927 = vunpack.c.l.b16 %v794
      %v2928 = vunpack.c.h.b16 %v794
      %v2929 = vunpack.c.l.b16 %v795
      %v2930 = vunpack.c.h.b16 %v795
      %v2931 = vunpack.c.l.b16 %v796
      %v2932 = vunpack.c.h.b16 %v796
      %v2933 = vunpack.c.l.b16 %v797
      %v2934 = vunpack.c.h.b16 %v797
      %v2935 = vunpack.c.l.b16 %v798
      %v2936 = vunpack.c.h.b16 %v798
      %v2937 = vunpack.c.l.b16 %v799
      %v2938 = vunpack.c.h.b16 %v799
      %v2939 = vunpack.c.l.b16 %v800
      %v2940 = vunpack.c.h.b16 %v800
      %v2941 = vunpack.c.l.b16 %v801
      %v2942 = vunpack.c.h.b16 %v801
      %v2943 = vunpack.c.l.b16 %v802
      %v2944 = vunpack.c.h.b16 %v802
      %v2945 = vunpack.c.l.b16 %v803
      %v2946 = vunpack.c.h.b16 %v803
      %v2947 = vunpack.c.l.b16 %v804
      %v2948 = vunpack.c.h.b16 %v804
      %v2949 = vunpack.c.l.b16 %v805
      %v2950 = vunpack.c.h.b16 %v805
      %v2951 = vunpack.c.l.b16 %v806
      %v2952 = vunpack.c.h.b16 %v806
      %v2953 = vunpack.c.l.b16 %v807
      %v2954 = vunpack.c.h.b16 %v807
      %v2955 = vunpack.c.l.b16 %v808
      %v2956 = vunpack.c.h.b16 %v808
      %v2957 = vunpack.c.l.b16 %v809
      %v2958 = vunpack.c.h.b16 %v809
      %v2959 = vunpack.c.l.b16 %v810
      %v2960 = vunpack.c.h.b16 %v810
      %v2961 = vunpack.c.l.b16 %v811
      %v2962 = vunpack.c.h.b16 %v811
      %v2963 = vunpack.c.l.b16 %v812
      %v2964 = vunpack.c.h.b16 %v812
      %v2965 = vunpack.c.l.b16 %v813
      %v2966 = vunpack.c.h.b16 %v813
      %v2967 = vunpack.c.l.b16 %v814
      %v2968 = vunpack.c.h.b16 %v814
      %v2969 = vunpack.c.l.b16 %v815
      %v2970 = vunpack.c.h.b16 %v815
      %v2971 = vunpack.c.l.b16 %v816
      %v2972 = vunpack.c.h.b16 %v816
      %v2973 = vunpack.c.l.b16 %v817
      %v2974 = vunpack.c.h.b16 %v817
      %v2975 = vunpack.c.l.b16 %v818
      %v2976 = vunpack.c.h.b16 %v818
      %v2977 = vunpack.c.l.b16 %v819
      %v2978 = vunpack.c.h.b16 %v819
      %v2979 = vunpack.c.l.b16 %v820
      %v2980 = vunpack.c.h.b16 %v820
      %v2981 = vunpack.c.l.b16 %v821
      %v2982 = vunpack.c.h.b16 %v821
      %v2983 = vunpack.c.l.b16 %v822
      %v2984 = vunpack.c.h.b16 %v822
      %v2985 = vunpack.c.l.b16 %v823
      %v2986 = vunpack.c.h.b16 %v823
      %v2987 = vunpack.c.l.b16 %v824
      %v2988 = vunpack.c.h.b16 %v824
      %v2989 = vunpack.c.l.b16 %v825
      %v2990 = vunpack.c.h.b16 %v825
      %v2991 = vunpack.c.l.b16 %v826
      %v2992 = vunpack.c.h.b16 %v826
      %v2993 = vunpack.c.l.b16 %v827
      %v2994 = vunpack.c.h.b16 %v827
      %v2995 = vunpack.c.l.b16 %v828
      %v2996 = vunpack.c.h.b16 %v828
      %v2997 = vunpack.c.l.b16 %v829
      %v2998 = vunpack.c.h.b16 %v829
      %v2999 = vunpack.c.l.b16 %v830
      %v3000 = vunpack.c.h.b16 %v830
      %v3001 = vunpack.c.l.b16 %v831
      %v3002 = vunpack.c.h.b16 %v831
      %v3003 = vunpack.c.l.b16 %v832
      %v3004 = vunpack.c.h.b16 %v832
      %v3005 = vunpack.c.l.b16 %v833
      %v3006 = vunpack.c.h.b16 %v833
      %v3007 = vunpack.c.l.b16 %v834
      %v3008 = vunpack.c.h.b16 %v834
      %v3009 = vunpack.c.l.b16 %v835
      %v3010 = vunpack.c.h.b16 %v835
      %v3011 = vunpack.c.l.b16 %v836
      %v3012 = vunpack.c.h.b16 %v836
      %v3013 = vunpack.c.l.b16 %v837
      %v3014 = vunpack.c.h.b16 %v837
      %v3015 = vunpack.c.l.b16 %v838
      %v3016 = vunpack.c.h.b16 %v838
      %v3017 = vunpack.c.l.b16 %v839
      %v3018 = vunpack.c.h.b16 %v839
      %v3019 = vunpack.c.l.b16 %v840
      %v3020 = vunpack.c.h.b16 %v840
      %v3021 = vunpack.c.l.b16 %v841
      %v3022 = vunpack.c.h.b16 %v841
      %v3023 = vunpack.c.l.b16 %v842
      %v3024 = vunpack.c.h.b16 %v842
      %v3025 = vunpack.c.l.b16 %v843
      %v3026 = vunpack.c.h.b16 %v843
      %v3027 = vunpack.c.l.b16 %v844
      %v3028 = vunpack.c.h.b16 %v844
      %v3029 = vunpack.c.l.b16 %v845
      %v3030 = vunpack.c.h.b16 %v845
      %v3031 = vunpack.c.l.b16 %v846
      %v3032 = vunpack.c.h.b16 %v846
      %v3033 = vunpack.c.l.b16 %v847
      %v3034 = vunpack.c.h.b16 %v847
      %v3035 = vunpack.c.l.b16 %v848
      %v3036 = vunpack.c.h.b16 %v848
      %v3037 = vunpack.c.l.b16 %v849
      %v3038 = vunpack.c.h.b16 %v849
      %v3039 = vunpack.c.l.b16 %v850
      %v3040 = vunpack.c.h.b16 %v850
      %v3041 = vunpack.c.l.b16 %v851
      %v3042 = vunpack.c.h.b16 %v851
      %v3043 = vunpack.c.l.b16 %v852
      %v3044 = vunpack.c.h.b16 %v852
      %v3045 = vunpack.c.l.b16 %v853
      %v3046 = vunpack.c.h.b16 %v853
      %v3047 = vunpack.c.l.b16 %v854
      %v3048 = vunpack.c.h.b16 %v854
      %v3049 = vunpack.c.l.b16 %v855
      %v3050 = vunpack.c.h.b16 %v855
      %v3051 = vunpack.c.l.b16 %v856
      %v3052 = vunpack.c.h.b16 %v856
      %v3053 = vunpack.c.l.b16 %v857
      %v3054 = vunpack.c.h.b16 %v857
      %v3055 = vunpack.c.l.b16 %v858
      %v3056 = vunpack.c.h.b16 %v858
      %v3057 = vunpack.c.l.b16 %v859
      %v3058 = vunpack.c.h.b16 %v859
      %v3059 = vunpack.c.l.b16 %v860
      %v3060 = vunpack.c.h.b16 %v860
      %v3061 = vunpack.c.l.b16 %v861
      %v3062 = vunpack.c.h.b16 %v861
      %v3063 = vunpack.c.l.b16 %v862
      %v3064 = vunpack.c.h.b16 %v862
      %v3065 = vunpack.c.l.b16 %v863
      %v3066 = vunpack.c.h.b16 %v863
      %v3067 = vunpack.c.l.b16 %v864
      %v3068 = vunpack.c.h.b16 %v864
      %v3069 = vunpack.c.l.b16 %v865
      %v3070 = vunpack.c.h.b16 %v865
      %v3071 = vunpack.c.l.b16 %v866
      %v3072 = vunpack.c.h.b16 %v866
      %v3073 = vunpack.c.l.b16 %v867
      %v3074 = vunpack.c.h.b16 %v867
      %v3075 = vunpack.c.l.b16 %v868
      %v3076 = vunpack.c.h.b16 %v868
      %v3077 = vunpack.c.l.b16 %v869
      %v3078 = vunpack.c.h.b16 %v869
      %v3079 = vunpack.c.l.b16 %v870
      %v3080 = vunpack.c.h.b16 %v870
      %v3081 = vunpack.c.l.b16 %v871
      %v3082 = vunpack.c.h.b16 %v871
      %v3083 = vunpack.c.l.b16 %v872
      %v3084 = vunpack.c.h.b16 %v872
      %v3085 = vunpack.c.l.b16 %v873
      %v3086 = vunpack.c.h.b16 %v873
      %v3087 = vunpack.c.l.b16 %v874
      %v3088 = vunpack.c.h.b16 %v874
      %v3089 = vunpack.c.l.b16 %v875
      %v3090 = vunpack.c.h.b16 %v875
      %v3091 = vunpack.c.l.b16 %v876
      %v3092 = vunpack.c.h.b16 %v876
      %v3093 = vunpack.c.l.b16 %v877
      %v3094 = vunpack.c.h.b16 %v877
      %v3095 = vunpack.c.l.b16 %v878
      %v3096 = vunpack.c.h.b16 %v878
      %v3097 = vunpack.c.l.b16 %v879
      %v3098 = vunpack.c.h.b16 %v879
      %v3099 = vunpack.c.l.b16 %v880
      %v3100 = vunpack.c.h.b16 %v880
      %v3101 = vunpack.c.l.b16 %v881
      %v3102 = vunpack.c.h.b16 %v881
      %v3103 = vunpack.c.l.b16 %v882
      %v3104 = vunpack.c.h.b16 %v882
      %v3105 = vunpack.c.l.b16 %v883
      %v3106 = vunpack.c.h.b16 %v883
      %v3107 = vunpack.c.l.b16 %v884
      %v3108 = vunpack.c.h.b16 %v884
      %v3109 = vunpack.c.l.b16 %v885
      %v3110 = vunpack.c.h.b16 %v885
      %v3111 = vunpack.c.l.b16 %v886
      %v3112 = vunpack.c.h.b16 %v886
      %v3113 = vunpack.c.l.b16 %v887
      %v3114 = vunpack.c.h.b16 %v887
      %v3115 = vunpack.c.l.b16 %v888
      %v3116 = vunpack.c.h.b16 %v888
      %v3117 = vunpack.c.l.b16 %v889
      %v3118 = vunpack.c.h.b16 %v889
      %v3119 = vunpack.c.l.b16 %v890
      %v3120 = vunpack.c.h.b16 %v890
      %v3121 = vunpack.c.l.b16 %v891
      %v3122 = vunpack.c.h.b16 %v891
      %v3123 = vunpack.c.l.b16 %v892
      %v3124 = vunpack.c.h.b16 %v892
      %v3125 = vunpack.c.l.b16 %v893
      %v3126 = vunpack.c.h.b16 %v893
      %v3127 = vunpack.c.l.b16 %v894
      %v3128 = vunpack.c.h.b16 %v894
      %v3129 = vunpack.c.l.b16 %v895
      %v3130 = vunpack.c.h.b16 %v895
      %v3131 = vunpack.c.l.b16 %v896
      %v3132 = vunpack.c.h.b16 %v896
      %v3133 = vunpack.c.l.b16 %v897
      %v3134 = vunpack.c.h.b16 %v897
      %v3135 = vunpack.c.l.b16 %v898
      %v3136 = vunpack.c.h.b16 %v898
      %v3137 = vunpack.c.l.b16 %v899
      %v3138 = vunpack.c.h.b16 %v899
      %v3139 = vunpack.c.l.b16 %v900
      %v3140 = vunpack.c.h.b16 %v900
      %v3141 = vunpack.c.l.b16 %v901
      %v3142 = vunpack.c.h.b16 %v901
      %v3143 = vunpack.c.l.b16 %v902
      %v3144 = vunpack.c.h.b16 %v902
      %v3145 = vunpack.c.l.b16 %v903
      %v3146 = vunpack.c.h.b16 %v903
      %v3147 = vunpack.c.l.b16 %v904
      %v3148 = vunpack.c.h.b16 %v904
      %v3149 = vunpack.c.l.b16 %v905
      %v3150 = vunpack.c.h.b16 %v905
      %v3151 = vunpack.c.l.b16 %v906
      %v3152 = vunpack.c.h.b16 %v906
      %v3153 = vunpack.c.l.b16 %v907
      %v3154 = vunpack.c.h.b16 %v907
      %v3155 = vunpack.c.l.b16 %v908
      %v3156 = vunpack.c.h.b16 %v908
      %v3157 = vunpack.c.l.b16 %v909
      %v3158 = vunpack.c.h.b16 %v909
      %v3159 = vunpack.c.l.b16 %v910
      %v3160 = vunpack.c.h.b16 %v910
      %v3161 = vunpack.c.l.b16 %v911
      %v3162 = vunpack.c.h.b16 %v911
      %v3163 = vunpack.c.l.b16 %v912
      %v3164 = vunpack.c.h.b16 %v912
      %v3165 = vunpack.c.l.b16 %v913
      %v3166 = vunpack.c.h.b16 %v913
      %v3167 = vunpack.c.l.b16 %v914
      %v3168 = vunpack.c.h.b16 %v914
      %v3169 = vunpack.c.l.b16 %v915
      %v3170 = vunpack.c.h.b16 %v915
      %v3171 = vunpack.c.l.b16 %v916
      %v3172 = vunpack.c.h.b16 %v916
      %v3173 = vunpack.c.l.b16 %v917
      %v3174 = vunpack.c.h.b16 %v917
      %v3175 = vunpack.c.l.b16 %v918
      %v3176 = vunpack.c.h.b16 %v918
      %v3177 = vunpack.c.l.b16 %v919
      %v3178 = vunpack.c.h.b16 %v919
      %v3179 = vunpack.c.l.b16 %v920
      %v3180 = vunpack.c.h.b16 %v920
      %v3181 = vunpack.c.l.b16 %v921
      %v3182 = vunpack.c.h.b16 %v921
      %v3183 = vunpack.c.l.b16 %v922
      %v3184 = vunpack.c.h.b16 %v922
      %v3185 = vunpack.c.l.b16 %v923
      %v3186 = vunpack.c.h.b16 %v923
      %v3187 = vunpack.c.l.b16 %v924
      %v3188 = vunpack.c.h.b16 %v924
      %v3189 = vunpack.c.l.b16 %v925
      %v3190 = vunpack.c.h.b16 %v925
      %v3191 = vunpack.c.l.b16 %v926
      %v3192 = vunpack.c.h.b16 %v926
      %v3193 = vunpack.c.l.b16 %v927
      %v3194 = vunpack.c.h.b16 %v927
      %v3195 = vunpack.c.l.b16 %v928
      %v3196 = vunpack.c.h.b16 %v928
      %v3197 = vunpack.c.l.b16 %v929
      %v3198 = vunpack.c.h.b16 %v929
      %v3199 = vunpack.c.l.b16 %v930
      %v3200 = vunpack.c.h.b16 %v930
      %v3201 = vunpack.c.l.b16 %v931
      %v3202 = vunpack.c.h.b16 %v931
      %v3203 = vunpack.c.l.b16 %v932
      %v3204 = vunpack.c.h.b16 %v932
      %v3205 = vunpack.c.l.b16 %v933
      %v3206 = vunpack.c.h.b16 %v933
      %v3207 = vunpack.c.l.b16 %v934
      %v3208 = vunpack.c.h.b16 %v934
      %v3209 = vunpack.c.l.b16 %v935
      %v3210 = vunpack.c.h.b16 %v935
      %v3211 = vunpack.c.l.b16 %v936
      %v3212 = vunpack.c.h.b16 %v936
      %v3213 = vunpack.c.l.b16 %v937
      %v3214 = vunpack.c.h.b16 %v937
      %v3215 = vunpack.c.l.b16 %v938
      %v3216 = vunpack.c.h.b16 %v938
      %v3217 = vunpack.c.l.b16 %v939
      %v3218 = vunpack.c.h.b16 %v939
      %v3219 = vunpack.c.l.b16 %v940
      %v3220 = vunpack.c.h.b16 %v940
      %v3221 = vunpack.c.l.b16 %v941
      %v3222 = vunpack.c.h.b16 %v941
      %v3223 = vunpack.c.l.b16 %v942
      %v3224 = vunpack.c.h.b16 %v942
      %v3225 = vunpack.c.l.b16 %v943
      %v3226 = vunpack.c.h.b16 %v943
      %v3227 = vunpack.c.l.b16 %v944
      %v3228 = vunpack.c.h.b16 %v944
      %v3229 = vunpack.c.l.b16 %v945
      %v3230 = vunpack.c.h.b16 %v945
      %v3231 = vunpack.c.l.b16 %v946
      %v3232 = vunpack.c.h.b16 %v946
      %v3233 = vunpack.c.l.b16 %v947
      %v3234 = vunpack.c.h.b16 %v947
      %v3235 = vunpack.c.l.b16 %v948
      %v3236 = vunpack.c.h.b16 %v948
      %v3237 = vunpack.c.l.b16 %v949
      %v3238 = vunpack.c.h.b16 %v949
      %v3239 = vunpack.c.l.b16 %v950
      %v3240 = vunpack.c.h.b16 %v950
      %v3241 = vunpack.c.l.b16 %v951
      %v3242 = vunpack.c.h.b16 %v951
      %v3243 = vunpack.c.l.b16 %v952
      %v3244 = vunpack.c.h.b16 %v952
      %v3245 = vunpack.c.l.b16 %v953
      %v3246 = vunpack.c.h.b16 %v953
      %v3247 = vunpack.c.l.b16 %v954
      %v3248 = vunpack.c.h.b16 %v954
      %v3249 = vunpack.c.l.b16 %v955
      %v3250 = vunpack.c.h.b16 %v955
      %v3251 = vunpack.c.l.b16 %v956
      %v3252 = vunpack.c.h.b16 %v956
      %v3253 = vunpack.c.l.b16 %v957
      %v3254 = vunpack.c.h.b16 %v957
      %v3255 = vunpack.c.l.b16 %v958
      %v3256 = vunpack.c.h.b16 %v958
      %v3257 = vunpack.c.l.b16 %v959
      %v3258 = vunpack.c.h.b16 %v959
      %v3259 = vunpack.c.l.b16 %v960
      %v3260 = vunpack.c.h.b16 %v960
      %v3261 = vunpack.c.l.b16 %v961
      %v3262 = vunpack.c.h.b16 %v961
      %v3263 = vunpack.c.l.b16 %v962
      %v3264 = vunpack.c.h.b16 %v962
      %v3265 = vunpack.c.l.b16 %v963
      %v3266 = vunpack.c.h.b16 %v963
      %v3267 = vunpack.c.l.b16 %v964
      %v3268 = vunpack.c.h.b16 %v964
      %v3269 = vunpack.c.l.b16 %v965
      %v3270 = vunpack.c.h.b16 %v965
      %v3271 = vunpack.c.l.b16 %v966
      %v3272 = vunpack.c.h.b16 %v966
      %v3273 = vunpack.c.l.b16 %v967
      %v3274 = vunpack.c.h.b16 %v967
      %v3275 = vunpack.c.l.b16 %v968
      %v3276 = vunpack.c.h.b16 %v968
      %v3277 = vunpack.c.l.b16 %v969
      %v3278 = vunpack.c.h.b16 %v969
      %v3279 = vunpack.c.l.b16 %v970
      %v3280 = vunpack.c.h.b16 %v970
      %v3281 = vunpack.c.l.b16 %v971
      %v3282 = vunpack.c.h.b16 %v971
      %v3283 = vunpack.c.l.b16 %v972
      %v3284 = vunpack.c.h.b16 %v972
      %v3285 = vunpack.c.l.b16 %v973
      %v3286 = vunpack.c.h.b16 %v973
      %v3287 = vunpack.c.l.b16 %v974
      %v3288 = vunpack.c.h.b16 %v974
      %v3289 = vunpack.c.l.b16 %v975
      %v3290 = vunpack.c.h.b16 %v975
      %v3291 = vunpack.c.l.b16 %v976
      %v3292 = vunpack.c.h.b16 %v976
      %v3293 = vunpack.c.l.b16 %v977
      %v3294 = vunpack.c.h.b16 %v977
      %v3295 = vunpack.c.l.b16 %v978
      %v3296 = vunpack.c.h.b16 %v978
      %v3297 = vunpack.c.l.b16 %v979
      %v3298 = vunpack.c.h.b16 %v979
      %v3299 = vunpack.c.l.b16 %v980
      %v3300 = vunpack.c.h.b16 %v980
      %v3301 = vunpack.c.l.b16 %v981
      %v3302 = vunpack.c.h.b16 %v981
      %v3303 = vunpack.c.l.b16 %v982
      %v3304 = vunpack.c.h.b16 %v982
      %v3305 = vunpack.c.l.b16 %v983
      %v3306 = vunpack.c.h.b16 %v983
      %v3307 = vunpack.c.l.b16 %v984
      %v3308 = vunpack.c.h.b16 %v984
      %v3309 = vunpack.c.l.b16 %v985
      %v3310 = vunpack.c.h.b16 %v985
      %v3311 = vunpack.c.l.b16 %v986
      %v3312 = vunpack.c.h.b16 %v986
      %v3313 = vunpack.c.l.b16 %v987
      %v3314 = vunpack.c.h.b16 %v987
      %v3315 = vunpack.c.l.b16 %v988
      %v3316 = vunpack.c.h.b16 %v988
      %v3317 = vunpack.c.l.b16 %v989
      %v3318 = vunpack.c.h.b16 %v989
      %v3319 = vunpack.c.l.b16 %v990
      %v3320 = vunpack.c.h.b16 %v990
      %v3321 = vunpack.c.l.b16 %v991
      %v3322 = vunpack.c.h.b16 %v991
      %v3323 = vunpack.c.l.b16 %v992
      %v3324 = vunpack.c.h.b16 %v992
      %v3325 = vunpack.c.l.b16 %v993
      %v3326 = vunpack.c.h.b16 %v993
      %v3327 = vunpack.c.l.b16 %v994
      %v3328 = vunpack.c.h.b16 %v994
      %v3329 = vunpack.c.l.b16 %v995
      %v3330 = vunpack.c.h.b16 %v995
      %v3331 = vunpack.c.l.b16 %v996
      %v3332 = vunpack.c.h.b16 %v996
      %v3333 = vunpack.c.l.b16 %v997
      %v3334 = vunpack.c.h.b16 %v997
      %v3335 = vunpack.c.l.b16 %v998
      %v3336 = vunpack.c.h.b16 %v998
      %v3337 = vunpack.c.l.b16 %v999
      %v3338 = vunpack.c.h.b16 %v999
      %v3339 = vunpack.c.l.b16 %v1000
      %v3340 = vunpack.c.h.b16 %v1000
      %v3341 = vunpack.c.l.b16 %v1001
      %v3342 = vunpack.c.h.b16 %v1001
      %v3343 = vunpack.c.l.b16 %v1002
      %v3344 = vunpack.c.h.b16 %v1002
      %v3345 = vunpack.c.l.b16 %v1003
      %v3346 = vunpack.c.h.b16 %v1003
      %v3347 = vunpack.c.l.b16 %v1004
      %v3348 = vunpack.c.h.b16 %v1004
      %v3349 = vunpack.c.l.b16 %v1005
      %v3350 = vunpack.c.h.b16 %v1005
      %v3351 = vunpack.c.l.b16 %v1006
      %v3352 = vunpack.c.h.b16 %v1006
      %v3353 = vunpack.c.l.b16 %v1007
      %v3354 = vunpack.c.h.b16 %v1007
      %v3355 = vunpack.c.l.b16 %v1008
      %v3356 = vunpack.c.h.b16 %v1008
      %v3357 = vunpack.c.l.b16 %v1009
      %v3358 = vunpack.c.h.b16 %v1009
      %v3359 = vunpack.c.l.b16 %v1010
      %v3360 = vunpack.c.h.b16 %v1010
      %v3361 = vunpack.c.l.b16 %v1011
      %v3362 = vunpack.c.h.b16 %v1011
      %v3363 = vunpack.c.l.b16 %v1012
      %v3364 = vunpack.c.h.b16 %v1012
      %v3365 = vunpack.c.l.b16 %v1013
      %v3366 = vunpack.c.h.b16 %v1013
      %v3367 = vunpack.c.l.b16 %v1014
      %v3368 = vunpack.c.h.b16 %v1014
      %v3369 = vunpack.c.l.b16 %v1015
      %v3370 = vunpack.c.h.b16 %v1015
      %v3371 = vunpack.c.l.b16 %v1016
      %v3372 = vunpack.c.h.b16 %v1016
      %v3373 = vunpack.c.l.b16 %v1017
      %v3374 = vunpack.c.h.b16 %v1017
      %v3375 = vunpack.c.l.b16 %v1018
      %v3376 = vunpack.c.h.b16 %v1018
      %v3377 = vunpack.c.l.b16 %v1019
      %v3378 = vunpack.c.h.b16 %v1019
      %v3379 = vunpack.c.l.b16 %v1020
      %v3380 = vunpack.c.h.b16 %v1020
      %v3381 = vunpack.c.l.b16 %v1021
      %v3382 = vunpack.c.h.b16 %v1021
      %v3383 = vunpack.c.l.b16 %v1022
      %v3384 = vunpack.c.h.b16 %v1022
      %v3385 = vunpack.c.l.b16 %v1023
      %v3386 = vunpack.c.h.b16 %v1023
      %v3387 = vunpack.c.l.b16 %v1024
      %v3388 = vunpack.c.h.b16 %v1024
      %v3389 = vunpack.c.l.b16 %v1025
      %v3390 = vunpack.c.h.b16 %v1025
      %v3391 = vunpack.c.l.b16 %v1026
      %v3392 = vunpack.c.h.b16 %v1026
      %v3393 = vunpack.c.l.b16 %v1027
      %v3394 = vunpack.c.h.b16 %v1027
      %v3395 = vunpack.c.l.b16 %v1028
      %v3396 = vunpack.c.h.b16 %v1028
      %v3397 = vunpack.c.l.b16 %v1029
      %v3398 = vunpack.c.h.b16 %v1029
      %v3399 = vunpack.c.l.b16 %v1030
      %v3400 = vunpack.c.h.b16 %v1030
      %v3401 = vunpack.c.l.b16 %v1031
      %v3402 = vunpack.c.h.b16 %v1031
      %v3403 = vunpack.c.l.b16 %v1032
      %v3404 = vunpack.c.h.b16 %v1032
      %v3405 = vunpack.c.l.b16 %v1033
      %v3406 = vunpack.c.h.b16 %v1033
      %v3407 = vunpack.c.l.b16 %v1034
      %v3408 = vunpack.c.h.b16 %v1034
      %v3409 = vunpack.c.l.b16 %v1035
      %v3410 = vunpack.c.h.b16 %v1035
      %v3411 = vunpack.c.l.b16 %v1036
      %v3412 = vunpack.c.h.b16 %v1036
      %v3413 = vunpack.c.l.b16 %v1037
      %v3414 = vunpack.c.h.b16 %v1037
      %v3415 = vunpack.c.l.b16 %v1038
      %v3416 = vunpack.c.h.b16 %v1038
      %v3417 = vunpack.c.l.b16 %v1039
      %v3418 = vunpack.c.h.b16 %v1039
      %v3419 = vunpack.c.l.b16 %v1040
      %v3420 = vunpack.c.h.b16 %v1040
      %v3421 = vunpack.c.l.b16 %v1041
      %v3422 = vunpack.c.h.b16 %v1041
      %v3423 = vunpack.c.l.b16 %v1042
      %v3424 = vunpack.c.h.b16 %v1042
      %v3425 = vunpack.c.l.b16 %v1043
      %v3426 = vunpack.c.h.b16 %v1043
      %v3427 = vunpack.c.l.b16 %v1044
      %v3428 = vunpack.c.h.b16 %v1044
      %v3429 = vunpack.c.l.b16 %v1045
      %v3430 = vunpack.c.h.b16 %v1045
      %v3431 = vunpack.c.l.b16 %v1046
      %v3432 = vunpack.c.h.b16 %v1046
      %v3433 = vunpack.c.l.b16 %v1047
      %v3434 = vunpack.c.h.b16 %v1047
      %v3435 = vunpack.c.l.b16 %v1048
      %v3436 = vunpack.c.h.b16 %v1048
      %v3437 = vunpack.c.l.b16 %v1049
      %v3438 = vunpack.c.h.b16 %v1049
      %v3439 = vunpack.c.l.b16 %v1050
      %v3440 = vunpack.c.h.b16 %v1050
      %v3441 = vunpack.c.l.b16 %v1051
      %v3442 = vunpack.c.h.b16 %v1051
      %v3443 = vunpack.c.l.b16 %v1052
      %v3444 = vunpack.c.h.b16 %v1052
      %v3445 = vunpack.c.l.b16 %v1053
      %v3446 = vunpack.c.h.b16 %v1053
      %v3447 = vunpack.c.l.b16 %v1054
      %v3448 = vunpack.c.h.b16 %v1054
      %v3449 = vunpack.c.l.b16 %v1055
      %v3450 = vunpack.c.h.b16 %v1055
      %v3451 = vunpack.c.l.b16 %v1056
      %v3452 = vunpack.c.h.b16 %v1056
      %v3453 = vunpack.c.l.b16 %v1057
      %v3454 = vunpack.c.h.b16 %v1057
      %v3455 = vunpack.c.l.b16 %v1058
      %v3456 = vunpack.c.h.b16 %v1058
      %v3457 = vunpack.c.l.b16 %v1059
      %v3458 = vunpack.c.h.b16 %v1059
      %v3459 = vunpack.c.l.b16 %v1060
      %v3460 = vunpack.c.h.b16 %v1060
      %v3461 = vunpack.c.l.b16 %v1061
      %v3462 = vunpack.c.h.b16 %v1061
      %v3463 = vunpack.c.l.b16 %v1062
      %v3464 = vunpack.c.h.b16 %v1062
      %v3465 = vunpack.c.l.b16 %v1063
      %v3466 = vunpack.c.h.b16 %v1063
      %v3467 = vunpack.c.l.b16 %v1064
      %v3468 = vunpack.c.h.b16 %v1064
      %v3469 = vunpack.c.l.b16 %v1065
      %v3470 = vunpack.c.h.b16 %v1065
      %v3471 = vunpack.c.l.b16 %v1066
      %v3472 = vunpack.c.h.b16 %v1066
      %v3473 = vunpack.c.l.b16 %v1067
      %v3474 = vunpack.c.h.b16 %v1067
      %v3475 = vunpack.c.l.b16 %v1068
      %v3476 = vunpack.c.h.b16 %v1068
      %v3477 = vunpack.c.l.b16 %v1069
      %v3478 = vunpack.c.h.b16 %v1069
      %v3479 = vunpack.c.l.b16 %v1070
      %v3480 = vunpack.c.h.b16 %v1070
      %v3481 = vunpack.c.l.b16 %v1071
      %v3482 = vunpack.c.h.b16 %v1071
      %v3483 = vunpack.c.l.b16 %v1072
      %v3484 = vunpack.c.h.b16 %v1072
      %v3485 = vunpack.c.l.b16 %v1073
      %v3486 = vunpack.c.h.b16 %v1073
      %v3487 = vunpack.c.l.b16 %v1074
      %v3488 = vunpack.c.h.b16 %v1074
      %v3489 = vunpack.c.l.b16 %v1075
      %v3490 = vunpack.c.h.b16 %v1075
      %v3491 = vunpack.c.l.b16 %v1076
      %v3492 = vunpack.c.h.b16 %v1076
      %v3493 = vunpack.c.l.b16 %v1077
      %v3494 = vunpack.c.h.b16 %v1077
      %v3495 = vunpack.c.l.b16 %v1078
      %v3496 = vunpack.c.h.b16 %v1078
      %v3497 = vunpack.c.l.b16 %v1079
      %v3498 = vunpack.c.h.b16 %v1079
      %v3499 = vpack.c.b16 %v1935, %v1931
      %v3500 = vpack.c.b16 %v1936, %v1932
      %v3501 = vpack.c.b16 %v1937, %v1933
      %v3502 = vpack.c.b16 %v1938, %v1934
      %v3503 = vpack.c.b16 %v1943, %v1939
      %v3504 = vpack.c.b16 %v1944, %v1940
      %v3505 = vpack.c.b16 %v1945, %v1941
      %v3506 = vpack.c.b16 %v1946, %v1942
      %v3507 = vpack.c.b16 %v1951, %v1947
      %v3508 = vpack.c.b16 %v1952, %v1948
      %v3509 = vpack.c.b16 %v1953, %v1949
      %v3510 = vpack.c.b16 %v1954, %v1950
      %v3511 = vpack.c.b16 %v1959, %v1955
      %v3512 = vpack.c.b16 %v1960, %v1956
      %v3513 = vpack.c.b16 %v1961, %v1957
      %v3514 = vpack.c.b16 %v1962, %v1958
      %v3515 = vpack.c.b16 %v1967, %v1963
      %v3516 = vpack.c.b16 %v1968, %v1964
      %v3517 = vpack.c.b16 %v1969, %v1965
      %v3518 = vpack.c.b16 %v1970, %v1966
      %v3519 = vpack.c.b16 %v1975, %v1971
      %v3520 = vpack.c.b16 %v1976, %v1972
      %v3521 = vpack.c.b16 %v1977, %v1973
      %v3522 = vpack.c.b16 %v1978, %v1974
      %v3523 = vpack.c.b16 %v1983, %v1979
      %v3524 = vpack.c.b16 %v1984, %v1980
      %v3525 = vpack.c.b16 %v1985, %v1981
      %v3526 = vpack.c.b16 %v1986, %v1982
      %v3527 = vpack.c.b16 %v1991, %v1987
      %v3528 = vpack.c.b16 %v1992, %v1988
      %v3529 = vpack.c.b16 %v1993, %v1989
      %v3530 = vpack.c.b16 %v1994, %v1990
      %v3531 = vpack.c.b16 %v1999, %v1995
      %v3532 = vpack.c.b16 %v2000, %v1996
      %v3533 = vpack.c.b16 %v2001, %v1997
      %v3534 = vpack.c.b16 %v2002, %v1998
      %v3535 = vpack.c.b16 %v2007, %v2003
      %v3536 = vpack.c.b16 %v2008, %v2004
      %v3537 = vpack.c.b16 %v2009, %v2005
      %v3538 = vpack.c.b16 %v2010, %v2006
      %v3539 = vpack.c.b16 %v2015, %v2011
      %v3540 = vpack.c.b16 %v2016, %v2012
      %v3541 = vpack.c.b16 %v2017, %v2013
      %v3542 = vpack.c.b16 %v2018, %v2014
      %v3543 = vpack.c.b16 %v2023, %v2019
      %v3544 = vpack.c.b16 %v2024, %v2020
      %v3545 = vpack.c.b16 %v2025, %v2021
      %v3546 = vpack.c.b16 %v2026, %v2022
      %v3547 = vpack.c.b16 %v2031, %v2027
      %v3548 = vpack.c.b16 %v2032, %v2028
      %v3549 = vpack.c.b16 %v2033, %v2029
      %v3550 = vpack.c.b16 %v2034, %v2030
      %v3551 = vpack.c.b16 %v2039, %v2035
      %v3552 = vpack.c.b16 %v2040, %v2036
      %v3553 = vpack.c.b16 %v2041, %v2037
      %v3554 = vpack.c.b16 %v2042, %v2038
      %v3555 = vpack.c.b16 %v2047, %v2043
      %v3556 = vpack.c.b16 %v2048, %v2044
      %v3557 = vpack.c.b16 %v2049, %v2045
      %v3558 = vpack.c.b16 %v2050, %v2046
      %v3559 = vpack.c.b16 %v2055, %v2051
      %v3560 = vpack.c.b16 %v2056, %v2052
      %v3561 = vpack.c.b16 %v2057, %v2053
      %v3562 = vpack.c.b16 %v2058, %v2054
      %v3563 = vpack.c.b16 %v2063, %v2059
      %v3564 = vpack.c.b16 %v2064, %v2060
      %v3565 = vpack.c.b16 %v2065, %v2061
      %v3566 = vpack.c.b16 %v2066, %v2062
      %v3567 = vpack.c.b16 %v2071, %v2067
      %v3568 = vpack.c.b16 %v2072, %v2068
      %v3569 = vpack.c.b16 %v2073, %v2069
      %v3570 = vpack.c.b16 %v2074, %v2070
      %v3571 = vpack.c.b16 %v2079, %v2075
      %v3572 = vpack.c.b16 %v2080, %v2076
      %v3573 = vpack.c.b16 %v2081, %v2077
      %v3574 = vpack.c.b16 %v2082, %v2078
      %v3575 = vpack.c.b16 %v2087, %v2083
      %v3576 = vpack.c.b16 %v2088, %v2084
      %v3577 = vpack.c.b16 %v2089, %v2085
      %v3578 = vpack.c.b16 %v2090, %v2086
      %v3579 = vpack.c.b16 %v2095, %v2091
      %v3580 = vpack.c.b16 %v2096, %v2092
      %v3581 = vpack.c.b16 %v2097, %v2093
      %v3582 = vpack.c.b16 %v2098, %v2094
      %v3583 = vpack.c.b16 %v2103, %v2099
      %v3584 = vpack.c.b16 %v2104, %v2100
      %v3585 = vpack.c.b16 %v2105, %v2101
      %v3586 = vpack.c.b16 %v2106, %v2102
      %v3587 = vpack.c.b16 %v2111, %v2107
      %v3588 = vpack.c.b16 %v2112, %v2108
      %v3589 = vpack.c.b16 %v2113, %v2109
      %v3590 = vpack.c.b16 %v2114, %v2110
      %v3591 = vpack.c.b16 %v2119, %v2115
      %v3592 = vpack.c.b16 %v2120, %v2116
      %v3593 = vpack.c.b16 %v2121, %v2117
      %v3594 = vpack.c.b16 %v2122, %v2118
      %v3595 = vpack.c.b16 %v2127, %v2123
      %v3596 = vpack.c.b16 %v2128, %v2124
      %v3597 = vpack.c.b16 %v2129, %v2125
      %v3598 = vpack.c.b16 %v2130, %v2126
      %v3599 = vpack.c.b16 %v2135, %v2131
      %v3600 = vpack.c.b16 %v2136, %v2132
      %v3601 = vpack.c.b16 %v2137, %v2133
      %v3602 = vpack.c.b16 %v2138, %v2134
      %v3603 = vpack.c.b16 %v2143, %v2139
      %v3604 = vpack.c.b16 %v2144, %v2140
      %v3605 = vpack.c.b16 %v2145, %v2141
      %v3606 = vpack.c.b16 %v2146, %v2142
      %v3607 = vpack.c.b16 %v2151, %v2147
      %v3608 = vpack.c.b16 %v2152, %v2148
      %v3609 = vpack.c.b16 %v2153, %v2149
      %v3610 = vpack.c.b16 %v2154, %v2150
      %v3611 = vpack.c.b16 %v2159, %v2155
      %v3612 = vpack.c.b16 %v2160, %v2156
      %v3613 = vpack.c.b16 %v2161, %v2157
      %v3614 = vpack.c.b16 %v2162, %v2158
      %v3615 = vpack.c.b16 %v2167, %v2163
      %v3616 = vpack.c.b16 %v2168, %v2164
      %v3617 = vpack.c.b16 %v2169, %v2165
      %v3618 = vpack.c.b16 %v2170, %v2166
      %v3619 = vpack.c.b16 %v2175, %v2171
      %v3620 = vpack.c.b16 %v2176, %v2172
      %v3621 = vpack.c.b16 %v2177, %v2173
      %v3622 = vpack.c.b16 %v2178, %v2174
      %v3623 = vpack.c.b16 %v2183, %v2179
      %v3624 = vpack.c.b16 %v2184, %v2180
      %v3625 = vpack.c.b16 %v2185, %v2181
      %v3626 = vpack.c.b16 %v2186, %v2182
      %v3627 = vpack.c.b16 %v2191, %v2187
      %v3628 = vpack.c.b16 %v2192, %v2188
      %v3629 = vpack.c.b16 %v2193, %v2189
      %v3630 = vpack.c.b16 %v2194, %v2190
      %v3631 = vpack.c.b16 %v2199, %v2195
      %v3632 = vpack.c.b16 %v2200, %v2196
      %v3633 = vpack.c.b16 %v2201, %v2197
      %v3634 = vpack.c.b16 %v2202, %v2198
      %v3635 = vpack.c.b16 %v2207, %v2203
      %v3636 = vpack.c.b16 %v2208, %v2204
      %v3637 = vpack.c.b16 %v2209, %v2205
      %v3638 = vpack.c.b16 %v2210, %v2206
      %v3639 = vpack.c.b16 %v2215, %v2211
      %v3640 = vpack.c.b16 %v2216, %v2212
      %v3641 = vpack.c.b16 %v2217, %v2213
      %v3642 = vpack.c.b16 %v2218, %v2214
      %v3643 = vpack.c.b16 %v2223, %v2219
      %v3644 = vpack.c.b16 %v2224, %v2220
      %v3645 = vpack.c.b16 %v2225, %v2221
      %v3646 = vpack.c.b16 %v2226, %v2222
      %v3647 = vpack.c.b16 %v2231, %v2227
      %v3648 = vpack.c.b16 %v2232, %v2228
      %v3649 = vpack.c.b16 %v2233, %v2229
      %v3650 = vpack.c.b16 %v2234, %v2230
      %v3651 = vpack.c.b16 %v2239, %v2235
      %v3652 = vpack.c.b16 %v2240, %v2236
      %v3653 = vpack.c.b16 %v2241, %v2237
      %v3654 = vpack.c.b16 %v2242, %v2238
      %v3655 = vpack.c.b16 %v2247, %v2243
      %v3656 = vpack.c.b16 %v2248, %v2244
      %v3657 = vpack.c.b16 %v2249, %v2245
      %v3658 = vpack.c.b16 %v2250, %v2246
      %v3659 = vpack.c.b16 %v2255, %v2251
      %v3660 = vpack.c.b16 %v2256, %v2252
      %v3661 = vpack.c.b16 %v2257, %v2253
      %v3662 = vpack.c.b16 %v2258, %v2254
      %v3663 = vpack.c.b16 %v2263, %v2259
      %v3664 = vpack.c.b16 %v2264, %v2260
      %v3665 = vpack.c.b16 %v2265, %v2261
      %v3666 = vpack.c.b16 %v2266, %v2262
      %v3667 = vpack.c.b16 %v2271, %v2267
      %v3668 = vpack.c.b16 %v2272, %v2268
      %v3669 = vpack.c.b16 %v2273, %v2269
      %v3670 = vpack.c.b16 %v2274, %v2270
      %v3671 = vpack.c.b16 %v2279, %v2275
      %v3672 = vpack.c.b16 %v2280, %v2276
      %v3673 = vpack.c.b16 %v2281, %v2277
      %v3674 = vpack.c.b16 %v2282, %v2278
      %v3675 = vpack.c.b16 %v2287, %v2283
      %v3676 = vpack.c.b16 %v2288, %v2284
      %v3677 = vpack.c.b16 %v2289, %v2285
      %v3678 = vpack.c.b16 %v2290, %v2286
      %v3679 = vpack.c.b16 %v2295, %v2291
      %v3680 = vpack.c.b16 %v2296, %v2292
      %v3681 = vpack.c.b16 %v2297, %v2293
      %v3682 = vpack.c.b16 %v2298, %v2294
      %v3683 = vpack.c.b16 %v2303, %v2299
      %v3684 = vpack.c.b16 %v2304, %v2300
      %v3685 = vpack.c.b16 %v2305, %v2301
      %v3686 = vpack.c.b16 %v2306, %v2302
      %v3687 = vpack.c.b16 %v2311, %v2307
      %v3688 = vpack.c.b16 %v2312, %v2308
      %v3689 = vpack.c.b16 %v2313, %v2309
      %v3690 = vpack.c.b16 %v2314, %v2310
      %v3691 = vpack.c.b16 %v2319, %v2315
      %v3692 = vpack.c.b16 %v2320, %v2316
      %v3693 = vpack.c.b16 %v2321, %v2317
      %v3694 = vpack.c.b16 %v2322, %v2318
      %v3695 = vpack.c.b16 %v2327, %v2323
      %v3696 = vpack.c.b16 %v2328, %v2324
      %v3697 = vpack.c.b16 %v2329, %v2325
      %v3698 = vpack.c.b16 %v2330, %v2326
      %v3699 = vpack.c.b16 %v2335, %v2331
      %v3700 = vpack.c.b16 %v2336, %v2332
      %v3701 = vpack.c.b16 %v2337, %v2333
      %v3702 = vpack.c.b16 %v2338, %v2334
      %v3703 = vpack.c.b16 %v2343, %v2339
      %v3704 = vpack.c.b16 %v2344, %v2340
      %v3705 = vpack.c.b16 %v2345, %v2341
      %v3706 = vpack.c.b16 %v2346, %v2342
      %v3707 = vpack.c.b16 %v2351, %v2347
      %v3708 = vpack.c.b16 %v2352, %v2348
      %v3709 = vpack.c.b16 %v2353, %v2349
      %v3710 = vpack.c.b16 %v2354, %v2350
      %v3711 = vpack.c.b16 %v2359, %v2355
      %v3712 = vpack.c.b16 %v2360, %v2356
      %v3713 = vpack.c.b16 %v2361, %v2357
      %v3714 = vpack.c.b16 %v2362, %v2358
      %v3715 = vpack.c.b16 %v2367, %v2363
      %v3716 = vpack.c.b16 %v2368, %v2364
      %v3717 = vpack.c.b16 %v2369, %v2365
      %v3718 = vpack.c.b16 %v2370, %v2366
      %v3719 = vpack.c.b16 %v2375, %v2371
      %v3720 = vpack.c.b16 %v2376, %v2372
      %v3721 = vpack.c.b16 %v2377, %v2373
      %v3722 = vpack.c.b16 %v2378, %v2374
      %v3723 = vpack.c.b16 %v2383, %v2379
      %v3724 = vpack.c.b16 %v2384, %v2380
      %v3725 = vpack.c.b16 %v2385, %v2381
      %v3726 = vpack.c.b16 %v2386, %v2382
      %v3727 = vpack.c.b16 %v2391, %v2387
      %v3728 = vpack.c.b16 %v2392, %v2388
      %v3729 = vpack.c.b16 %v2393, %v2389
      %v3730 = vpack.c.b16 %v2394, %v2390
      %v3731 = vpack.c.b16 %v2399, %v2395
      %v3732 = vpack.c.b16 %v2400, %v2396
      %v3733 = vpack.c.b16 %v2401, %v2397
      %v3734 = vpack.c.b16 %v2402, %v2398
      %v3735 = vpack.c.b16 %v2407, %v2403
      %v3736 = vpack.c.b16 %v2408, %v2404
      %v3737 = vpack.c.b16 %v2409, %v2405
      %v3738 = vpack.c.b16 %v2410, %v2406
      %v3739 = vpack.c.b16 %v2415, %v2411
      %v3740 = vpack.c.b16 %v2416, %v2412
      %v3741 = vpack.c.b16 %v2417, %v2413
      %v3742 = vpack.c.b16 %v2418, %v2414
      %v3743 = vpack.c.b16 %v2423, %v2419
      %v3744 = vpack.c.b16 %v2424, %v2420
      %v3745 = vpack.c.b16 %v2425, %v2421
      %v3746 = vpack.c.b16 %v2426, %v2422
      %v3747 = vpack.c.b16 %v2431, %v2427
      %v3748 = vpack.c.b16 %v2432, %v2428
      %v3749 = vpack.c.b16 %v2433, %v2429
      %v3750 = vpack.c.b16 %v2434, %v2430
      %v3751 = vpack.c.b16 %v2439, %v2435
      %v3752 = vpack.c.b16 %v2440, %v2436
      %v3753 = vpack.c.b16 %v2441, %v2437
      %v3754 = vpack.c.b16 %v2442, %v2438
      %v3755 = vpack.c.b16 %v2447, %v2443
      %v3756 = vpack.c.b16 %v2448, %v2444
      %v3757 = vpack.c.b16 %v2449, %v2445
      %v3758 = vpack.c.b16 %v2450, %v2446
      %v3759 = vpack.c.b16 %v2455, %v2451
      %v3760 = vpack.c.b16 %v2456, %v2452
      %v3761 = vpack.c.b16 %v2457, %v2453
      %v3762 = vpack.c.b16 %v2458, %v2454
      %v3763 = vpack.c.b16 %v2463, %v2459
      %v3764 = vpack.c.b16 %v2464, %v2460
      %v3765 = vpack.c.b16 %v2465, %v2461
      %v3766 = vpack.c.b16 %v2466, %v2462
      %v3767 = vpack.c.b16 %v2471, %v2467
      %v3768 = vpack.c.b16 %v2472, %v2468
      %v3769 = vpack.c.b16 %v2473, %v2469
      %v3770 = vpack.c.b16 %v2474, %v2470
      %v3771 = vpack.c.b16 %v2479, %v2475
      %v3772 = vpack.c.b16 %v2480, %v2476
      %v3773 = vpack.c.b16 %v2481, %v2477
      %v3774 = vpack.c.b16 %v2482, %v2478
      %v3775 = vpack.c.b16 %v2487, %v2483
      %v3776 = vpack.c.b16 %v2488, %v2484
      %v3777 = vpack.c.b16 %v2489, %v2485
      %v3778 = vpack.c.b16 %v2490, %v2486
      %v3779 = vpack.c.b16 %v2495, %v2491
      %v3780 = vpack.c.b16 %v2496, %v2492
      %v3781 = vpack.c.b16 %v2497, %v2493
      %v3782 = vpack.c.b16 %v2498, %v2494
      %v3783 = vpack.c.b16 %v2503, %v2499
      %v3784 = vpack.c.b16 %v2504, %v2500
      %v3785 = vpack.c.b16 %v2505, %v2501
      %v3786 = vpack.c.b16 %v2506, %v2502
      %v3787 = vpack.c.b16 %v2511, %v2507
      %v3788 = vpack.c.b16 %v2512, %v2508
      %v3789 = vpack.c.b16 %v2513, %v2509
      %v3790 = vpack.c.b16 %v2514, %v2510
      %v3791 = vpack.c.b16 %v2519, %v2515
      %v3792 = vpack.c.b16 %v2520, %v2516
      %v3793 = vpack.c.b16 %v2521, %v2517
      %v3794 = vpack.c.b16 %v2522, %v2518
      %v3795 = vpack.c.b16 %v2527, %v2523
      %v3796 = vpack.c.b16 %v2528, %v2524
      %v3797 = vpack.c.b16 %v2529, %v2525
      %v3798 = vpack.c.b16 %v2530, %v2526
      %v3799 = vpack.c.b16 %v2535, %v2531
      %v3800 = vpack.c.b16 %v2536, %v2532
      %v3801 = vpack.c.b16 %v2537, %v2533
      %v3802 = vpack.c.b16 %v2538, %v2534
      %v3803 = vpack.c.b16 %v2543, %v2539
      %v3804 = vpack.c.b16 %v2544, %v2540
      %v3805 = vpack.c.b16 %v2545, %v2541
      %v3806 = vpack.c.b16 %v2546, %v2542
      %v3807 = vpack.c.b16 %v2551, %v2547
      %v3808 = vpack.c.b16 %v2552, %v2548
      %v3809 = vpack.c.b16 %v2553, %v2549
      %v3810 = vpack.c.b16 %v2554, %v2550
      %v3811 = vpack.c.b16 %v2559, %v2555
      %v3812 = vpack.c.b16 %v2560, %v2556
      %v3813 = vpack.c.b16 %v2561, %v2557
      %v3814 = vpack.c.b16 %v2562, %v2558
      %v3815 = vpack.c.b16 %v2567, %v2563
      %v3816 = vpack.c.b16 %v2568, %v2564
      %v3817 = vpack.c.b16 %v2569, %v2565
      %v3818 = vpack.c.b16 %v2570, %v2566
      %v3819 = vpack.c.b16 %v2575, %v2571
      %v3820 = vpack.c.b16 %v2576, %v2572
      %v3821 = vpack.c.b16 %v2577, %v2573
      %v3822 = vpack.c.b16 %v2578, %v2574
      %v3823 = vpack.c.b16 %v2583, %v2579
      %v3824 = vpack.c.b16 %v2584, %v2580
      %v3825 = vpack.c.b16 %v2585, %v2581
      %v3826 = vpack.c.b16 %v2586, %v2582
      %v3827 = vpack.c.b16 %v2591, %v2587
      %v3828 = vpack.c.b16 %v2592, %v2588
      %v3829 = vpack.c.b16 %v2593, %v2589
      %v3830 = vpack.c.b16 %v2594, %v2590
      %v3831 = vpack.c.b16 %v2599, %v2595
      %v3832 = vpack.c.b16 %v2600, %v2596
      %v3833 = vpack.c.b16 %v2601, %v2597
      %v3834 = vpack.c.b16 %v2602, %v2598
      %v3835 = vpack.c.b16 %v2607, %v2603
      %v3836 = vpack.c.b16 %v2608, %v2604
      %v3837 = vpack.c.b16 %v2609, %v2605
      %v3838 = vpack.c.b16 %v2610, %v2606
      %v3839 = vpack.c.b16 %v2615, %v2611
      %v3840 = vpack.c.b16 %v2616, %v2612
      %v3841 = vpack.c.b16 %v2617, %v2613
      %v3842 = vpack.c.b16 %v2618, %v2614
      %v3843 = vpack.c.b16 %v2623, %v2619
      %v3844 = vpack.c.b16 %v2624, %v2620
      %v3845 = vpack.c.b16 %v2625, %v2621
      %v3846 = vpack.c.b16 %v2626, %v2622
      %v3847 = vpack.c.b16 %v2631, %v2627
      %v3848 = vpack.c.b16 %v2632, %v2628
      %v3849 = vpack.c.b16 %v2633, %v2629
      %v3850 = vpack.c.b16 %v2634, %v2630
      %v3851 = vpack.c.b16 %v2639, %v2635
      %v3852 = vpack.c.b16 %v2640, %v2636
      %v3853 = vpack.c.b16 %v2641, %v2637
      %v3854 = vpack.c.b16 %v2642, %v2638
      %v3855 = vpack.c.b16 %v2647, %v2643
      %v3856 = vpack.c.b16 %v2648, %v2644
      %v3857 = vpack.c.b16 %v2649, %v2645
      %v3858 = vpack.c.b16 %v2650, %v2646
      %v3859 = vpack.c.b16 %v2655, %v2651
      %v3860 = vpack.c.b16 %v2656, %v2652
      %v3861 = vpack.c.b16 %v2657, %v2653
      %v3862 = vpack.c.b16 %v2658, %v2654
      %v3863 = vpack.c.b16 %v2663, %v2659
      %v3864 = vpack.c.b16 %v2664, %v2660
      %v3865 = vpack.c.b16 %v2665, %v2661
      %v3866 = vpack.c.b16 %v2666, %v2662
      %v3867 = vpack.c.b16 %v2671, %v2667
      %v3868 = vpack.c.b16 %v2672, %v2668
      %v3869 = vpack.c.b16 %v2673, %v2669
      %v3870 = vpack.c.b16 %v2674, %v2670
      %v3871 = vpack.c.b16 %v2679, %v2675
      %v3872 = vpack.c.b16 %v2680, %v2676
      %v3873 = vpack.c.b16 %v2681, %v2677
      %v3874 = vpack.c.b16 %v2682, %v2678
      %v3875 = vpack.c.b16 %v2687, %v2683
      %v3876 = vpack.c.b16 %v2688, %v2684
      %v3877 = vpack.c.b16 %v2689, %v2685
      %v3878 = vpack.c.b16 %v2690, %v2686
      %v3879 = vpack.c.b16 %v2695, %v2691
      %v3880 = vpack.c.b16 %v2696, %v2692
      %v3881 = vpack.c.b16 %v2697, %v2693
      %v3882 = vpack.c.b16 %v2698, %v2694
      %v3883 = vpack.c.b16 %v2703, %v2699
      %v3884 = vpack.c.b16 %v2704, %v2700
      %v3885 = vpack.c.b16 %v2705, %v2701
      %v3886 = vpack.c.b16 %v2706, %v2702
      %v3887 = vpack.c.b16 %v2711, %v2707
      %v3888 = vpack.c.b16 %v2712, %v2708
      %v3889 = vpack.c.b16 %v2713, %v2709
      %v3890 = vpack.c.b16 %v2714, %v2710
      %v3891 = vpack.c.b16 %v2719, %v2715
      %v3892 = vpack.c.b16 %v2720, %v2716
      %v3893 = vpack.c.b16 %v2721, %v2717
      %v3894 = vpack.c.b16 %v2722, %v2718
      %v3895 = vpack.c.b16 %v2727, %v2723
      %v3896 = vpack.c.b16 %v2728, %v2724
      %v3897 = vpack.c.b16 %v2729, %v2725
      %v3898 = vpack.c.b16 %v2730, %v2726
      %v3899 = vpack.c.b16 %v2735, %v2731
      %v3900 = vpack.c.b16 %v2736, %v2732
      %v3901 = vpack.c.b16 %v2737, %v2733
      %v3902 = vpack.c.b16 %v2738, %v2734
      %v3903 = vpack.c.b16 %v2743, %v2739
      %v3904 = vpack.c.b16 %v2744, %v2740
      %v3905 = vpack.c.b16 %v2745, %v2741
      %v3906 = vpack.c.b16 %v2746, %v2742
      %v3907 = vpack.c.b16 %v2751, %v2747
      %v3908 = vpack.c.b16 %v2752, %v2748
      %v3909 = vpack.c.b16 %v2753, %v2749
      %v3910 = vpack.c.b16 %v2754, %v2750
      %v3911 = vpack.c.b16 %v2759, %v2755
      %v3912 = vpack.c.b16 %v2760, %v2756
      %v3913 = vpack.c.b16 %v2761, %v2757
      %v3914 = vpack.c.b16 %v2762, %v2758
      %v3915 = vpack.c.b16 %v2767, %v2763
      %v3916 = vpack.c.b16 %v2768, %v2764
      %v3917 = vpack.c.b16 %v2769, %v2765
      %v3918 = vpack.c.b16 %v2770, %v2766
      %v3919 = vpack.c.b16 %v2775, %v2771
      %v3920 = vpack.c.b16 %v2776, %v2772
      %v3921 = vpack.c.b16 %v2777, %v2773
      %v3922 = vpack.c.b16 %v2778, %v2774
      %v3923 = vpack.c.b16 %v2783, %v2779
      %v3924 = vpack.c.b16 %v2784, %v2780
      %v3925 = vpack.c.b16 %v2785, %v2781
      %v3926 = vpack.c.b16 %v2786, %v2782
      %v3927 = vpack.c.b16 %v2791, %v2787
      %v3928 = vpack.c.b16 %v2792, %v2788
      %v3929 = vpack.c.b16 %v2793, %v2789
      %v3930 = vpack.c.b16 %v2794, %v2790
      %v3931 = vpack.c.b16 %v2799, %v2795
      %v3932 = vpack.c.b16 %v2800, %v2796
      %v3933 = vpack.c.b16 %v2801, %v2797
      %v3934 = vpack.c.b16 %v2802, %v2798
      %v3935 = vpack.c.b16 %v2807, %v2803
      %v3936 = vpack.c.b16 %v2808, %v2804
      %v3937 = vpack.c.b16 %v2809, %v2805
      %v3938 = vpack.c.b16 %v2810, %v2806
      %v3939 = vpack.c.b16 %v2815, %v2811
      %v3940 = vpack.c.b16 %v2816, %v2812
      %v3941 = vpack.c.b16 %v2817, %v2813
      %v3942 = vpack.c.b16 %v2818, %v2814
      %v3943 = vpack.c.b16 %v2823, %v2819
      %v3944 = vpack.c.b16 %v2824, %v2820
      %v3945 = vpack.c.b16 %v2825, %v2821
      %v3946 = vpack.c.b16 %v2826, %v2822
      %v3947 = vpack.c.b16 %v2831, %v2827
      %v3948 = vpack.c.b16 %v2832, %v2828
      %v3949 = vpack.c.b16 %v2833, %v2829
      %v3950 = vpack.c.b16 %v2834, %v2830
      %v3951 = vpack.c.b16 %v2839, %v2835
      %v3952 = vpack.c.b16 %v2840, %v2836
      %v3953 = vpack.c.b16 %v2841, %v2837
      %v3954 = vpack.c.b16 %v2842, %v2838
      %v3955 = vpack.c.b16 %v2847, %v2843
      %v3956 = vpack.c.b16 %v2848, %v2844
      %v3957 = vpack.c.b16 %v2849, %v2845
      %v3958 = vpack.c.b16 %v2850, %v2846
      %v3959 = vpack.c.b16 %v2855, %v2851
      %v3960 = vpack.c.b16 %v2856, %v2852
      %v3961 = vpack.c.b16 %v2857, %v2853
      %v3962 = vpack.c.b16 %v2858, %v2854
      %v3963 = vpack.c.b16 %v2863, %v2859
      %v3964 = vpack.c.b16 %v2864, %v2860
      %v3965 = vpack.c.b16 %v2865, %v2861
      %v3966 = vpack.c.b16 %v2866, %v2862
      %v3967 = vpack.c.b16 %v2871, %v2867
      %v3968 = vpack.c.b16 %v2872, %v2868
      %v3969 = vpack.c.b16 %v2873, %v2869
      %v3970 = vpack.c.b16 %v2874, %v2870
      %v3971 = vpack.c.b16 %v2879, %v2875
      %v3972 = vpack.c.b16 %v2880, %v2876
      %v3973 = vpack.c.b16 %v2881, %v2877
      %v3974 = vpack.c.b16 %v2882, %v2878
      %v3975 = vpack.c.b16 %v2887, %v2883
      %v3976 = vpack.c.b16 %v2888, %v2884
      %v3977 = vpack.c.b16 %v2889, %v2885
      %v3978 = vpack.c.b16 %v2890, %v2886
      %v3979 = vpack.c.b16 %v2895, %v2891
      %v3980 = vpack.c.b16 %v2896, %v2892
      %v3981 = vpack.c.b16 %v2897, %v2893
      %v3982 = vpack.c.b16 %v2898, %v2894
      %v3983 = vpack.c.b16 %v2903, %v2899
      %v3984 = vpack.c.b16 %v2904, %v2900
      %v3985 = vpack.c.b16 %v2905, %v2901
      %v3986 = vpack.c.b16 %v2906, %v2902
      %v3987 = vpack.c.b16 %v2911, %v2907
      %v3988 = vpack.c.b16 %v2912, %v2908
      %v3989 = vpack.c.b16 %v2913, %v2909
      %v3990 = vpack.c.b16 %v2914, %v2910
      %v3991 = vpack.c.b16 %v2919, %v2915
      %v3992 = vpack.c.b16 %v2920, %v2916
      %v3993 = vpack.c.b16 %v2921, %v2917
      %v3994 = vpack.c.b16 %v2922, %v2918
      %v3995 = vpack.c.b16 %v2927, %v2923
      %v3996 = vpack.c.b16 %v2928, %v2924
      %v3997 = vpack.c.b16 %v2929, %v2925
      %v3998 = vpack.c.b16 %v2930, %v2926
      %v3999 = vpack.c.b16 %v2935, %v2931
      %v4000 = vpack.c.b16 %v2936, %v2932
      %v4001 = vpack.c.b16 %v2937, %v2933
      %v4002 = vpack.c.b16 %v2938, %v2934
      %v4003 = vpack.c.b16 %v2943, %v2939
      %v4004 = vpack.c.b16 %v2944, %v2940
      %v4005 = vpack.c.b16 %v2945, %v2941
      %v4006 = vpack.c.b16 %v2946, %v2942
      %v4007 = vpack.c.b16 %v2951, %v2947
      %v4008 = vpack.c.b16 %v2952, %v2948
      %v4009 = vpack.c.b16 %v2953, %v2949
      %v4010 = vpack.c.b16 %v2954, %v2950
      %v4011 = vpack.c.b16 %v2959, %v2955
      %v4012 = vpack.c.b16 %v2960, %v2956
      %v4013 = vpack.c.b16 %v2961, %v2957
      %v4014 = vpack.c.b16 %v2962, %v2958
      %v4015 = vpack.c.b16 %v2967, %v2963
      %v4016 = vpack.c.b16 %v2968, %v2964
      %v4017 = vpack.c.b16 %v2969, %v2965
      %v4018 = vpack.c.b16 %v2970, %v2966
      %v4019 = vpack.c.b16 %v2975, %v2971
      %v4020 = vpack.c.b16 %v2976, %v2972
      %v4021 = vpack.c.b16 %v2977, %v2973
      %v4022 = vpack.c.b16 %v2978, %v2974
      %v4023 = vpack.c.b16 %v2983, %v2979
      %v4024 = vpack.c.b16 %v2984, %v2980
      %v4025 = vpack.c.b16 %v2985, %v2981
      %v4026 = vpack.c.b16 %v2986, %v2982
      %v4027 = vpack.c.b16 %v2991, %v2987
      %v4028 = vpack.c.b16 %v2992, %v2988
      %v4029 = vpack.c.b16 %v2993, %v2989
      %v4030 = vpack.c.b16 %v2994, %v2990
      %v4031 = vpack.c.b16 %v2999, %v2995
      %v4032 = vpack.c.b16 %v3000, %v2996
      %v4033 = vpack.c.b16 %v3001, %v2997
      %v4034 = vpack.c.b16 %v3002, %v2998
      %v4035 = vpack.c.b16 %v3007, %v3003
      %v4036 = vpack.c.b16 %v3008, %v3004
      %v4037 = vpack.c.b16 %v3009, %v3005
      %v4038 = vpack.c.b16 %v3010, %v3006
      %v4039 = vpack.c.b16 %v3015, %v3011
      %v4040 = vpack.c.b16 %v3016, %v3012
      %v4041 = vpack.c.b16 %v3017, %v3013
      %v4042 = vpack.c.b16 %v3018, %v3014
      %v4043 = vpack.c.b16 %v3023, %v3019
      %v4044 = vpack.c.b16 %v3024, %v3020
      %v4045 = vpack.c.b16 %v3025, %v3021
      %v4046 = vpack.c.b16 %v3026, %v3022
      %v4047 = vpack.c.b16 %v3031, %v3027
      %v4048 = vpack.c.b16 %v3032, %v3028
      %v4049 = vpack.c.b16 %v3033, %v3029
      %v4050 = vpack.c.b16 %v3034, %v3030
      %v4051 = vpack.c.b16 %v3039, %v3035
      %v4052 = vpack.c.b16 %v3040, %v3036
      %v4053 = vpack.c.b16 %v3041, %v3037
      %v4054 = vpack.c.b16 %v3042, %v3038
      %v4055 = vpack.c.b16 %v3047, %v3043
      %v4056 = vpack.c.b16 %v3048, %v3044
      %v4057 = vpack.c.b16 %v3049, %v3045
      %v4058 = vpack.c.b16 %v3050, %v3046
      %v4059 = vpack.c.b16 %v3055, %v3051
      %v4060 = vpack.c.b16 %v3056, %v3052
      %v4061 = vpack.c.b16 %v3057, %v3053
      %v4062 = vpack.c.b16 %v3058, %v3054
      %v4063 = vpack.c.b16 %v3063, %v3059
      %v4064 = vpack.c.b16 %v3064, %v3060
      %v4065 = vpack.c.b16 %v3065, %v3061
      %v4066 = vpack.c.b16 %v3066, %v3062
      %v4067 = vpack.c.b16 %v3071, %v3067
      %v4068 = vpack.c.b16 %v3072, %v3068
      %v4069 = vpack.c.b16 %v3073, %v3069
      %v4070 = vpack.c.b16 %v3074, %v3070
      %v4071 = vpack.c.b16 %v3079, %v3075
      %v4072 = vpack.c.b16 %v3080, %v3076
      %v4073 = vpack.c.b16 %v3081, %v3077
      %v4074 = vpack.c.b16 %v3082, %v3078
      %v4075 = vpack.c.b16 %v3087, %v3083
      %v4076 = vpack.c.b16 %v3088, %v3084
      %v4077 = vpack.c.b16 %v3089, %v3085
      %v4078 = vpack.c.b16 %v3090, %v3086
      %v4079 = vpack.c.b16 %v3095, %v3091
      %v4080 = vpack.c.b16 %v3096, %v3092
      %v4081 = vpack.c.b16 %v3097, %v3093
      %v4082 = vpack.c.b16 %v3098, %v3094
      %v4083 = vpack.c.b16 %v3103, %v3099
      %v4084 = vpack.c.b16 %v3104, %v3100
      %v4085 = vpack.c.b16 %v3105, %v3101
      %v4086 = vpack.c.b16 %v3106, %v3102
      %v4087 = vpack.c.b16 %v3111, %v3107
      %v4088 = vpack.c.b16 %v3112, %v3108
      %v4089 = vpack.c.b16 %v3113, %v3109
      %v4090 = vpack.c.b16 %v3114, %v3110
      %v4091 = vpack.c.b16 %v3119, %v3115
      %v4092 = vpack.c.b16 %v3120, %v3116
      %v4093 = vpack.c.b16 %v3121, %v3117
      %v4094 = vpack.c.b16 %v3122, %v3118
      %v4095 = vpack.c.b16 %v3127, %v3123
      %v4096 = vpack.c.b16 %v3128, %v3124
      %v4097 = vpack.c.b16 %v3129, %v3125
      %v4098 = vpack.c.b16 %v3130, %v3126
      %v4099 = vpack.c.b16 %v3135, %v3131
      %v4100 = vpack.c.b16 %v3136, %v3132
      %v4101 = vpack.c.b16 %v3137, %v3133
      %v4102 = vpack.c.b16 %v3138, %v3134
      %v4103 = vpack.c.b16 %v3143, %v3139
      %v4104 = vpack.c.b16 %v3144, %v3140
      %v4105 = vpack.c.b16 %v3145, %v3141
      %v4106 = vpack.c.b16 %v3146, %v3142
      %v4107 = vpack.c.b16 %v3151, %v3147
      %v4108 = vpack.c.b16 %v3152, %v3148
      %v4109 = vpack.c.b16 %v3153, %v3149
      %v4110 = vpack.c.b16 %v3154, %v3150
      %v4111 = vpack.c.b16 %v3159, %v3155
      %v4112 = vpack.c.b16 %v3160, %v3156
      %v4113 = vpack.c.b16 %v3161, %v3157
      %v4114 = vpack.c.b16 %v3162, %v3158
      %v4115 = vpack.c.b16 %v3167, %v3163
      %v4116 = vpack.c.b16 %v3168, %v3164
      %v4117 = vpack.c.b16 %v3169, %v3165
      %v4118 = vpack.c.b16 %v3170, %v3166
      %v4119 = vpack.c.b16 %v3175, %v3171
      %v4120 = vpack.c.b16 %v3176, %v3172
      %v4121 = vpack.c.b16 %v3177, %v3173
      %v4122 = vpack.c.b16 %v3178, %v3174
      %v4123 = vpack.c.b16 %v3183, %v3179
      %v4124 = vpack.c.b16 %v3184, %v3180
      %v4125 = vpack.c.b16 %v3185, %v3181
      %v4126 = vpack.c.b16 %v3186, %v3182
      %v4127 = vpack.c.b16 %v3191, %v3187
      %v4128 = vpack.c.b16 %v3192, %v3188
      %v4129 = vpack.c.b16 %v3193, %v3189
      %v4130 = vpack.c.b16 %v3194, %v3190
      %v4131 = vpack.c.b16 %v3199, %v3195
      %v4132 = vpack.c.b16 %v3200, %v3196
      %v4133 = vpack.c.b16 %v3201, %v3197
      %v4134 = vpack.c.b16 %v3202, %v3198
      %v4135 = vpack.c.b16 %v3207, %v3203
      %v4136 = vpack.c.b16 %v3208, %v3204
      %v4137 = vpack.c.b16 %v3209, %v3205
      %v4138 = vpack.c.b16 %v3210, %v3206
      %v4139 = vpack.c.b16 %v3215, %v3211
      %v4140 = vpack.c.b16 %v3216, %v3212
      %v4141 = vpack.c.b16 %v3217, %v3213
      %v4142 = vpack.c.b16 %v3218, %v3214
      %v4143 = vpack.c.b16 %v3223, %v3219
      %v4144 = vpack.c.b16 %v3224, %v3220
      %v4145 = vpack.c.b16 %v3225, %v3221
      %v4146 = vpack.c.b16 %v3226, %v3222
      %v4147 = vpack.c.b16 %v3231, %v3227
      %v4148 = vpack.c.b16 %v3232, %v3228
      %v4149 = vpack.c.b16 %v3233, %v3229
      %v4150 = vpack.c.b16 %v3234, %v3230
      %v4151 = vpack.c.b16 %v3239, %v3235
      %v4152 = vpack.c.b16 %v3240, %v3236
      %v4153 = vpack.c.b16 %v3241, %v3237
      %v4154 = vpack.c.b16 %v3242, %v3238
      %v4155 = vpack.c.b16 %v3247, %v3243
      %v4156 = vpack.c.b16 %v3248, %v3244
      %v4157 = vpack.c.b16 %v3249, %v3245
      %v4158 = vpack.c.b16 %v3250, %v3246
      %v4159 = vpack.c.b16 %v3255, %v3251
      %v4160 = vpack.c.b16 %v3256, %v3252
      %v4161 = vpack.c.b16 %v3257, %v3253
      %v4162 = vpack.c.b16 %v3258, %v3254
      %v4163 = vpack.c.b16 %v3263, %v3259
      %v4164 = vpack.c.b16 %v3264, %v3260
      %v4165 = vpack.c.b16 %v3265, %v3261
      %v4166 = vpack.c.b16 %v3266, %v3262
      %v4167 = vpack.c.b16 %v3271, %v3267
      %v4168 = vpack.c.b16 %v3272, %v3268
      %v4169 = vpack.c.b16 %v3273, %v3269
      %v4170 = vpack.c.b16 %v3274, %v3270
      %v4171 = vpack.c.b16 %v3279, %v3275
      %v4172 = vpack.c.b16 %v3280, %v3276
      %v4173 = vpack.c.b16 %v3281, %v3277
      %v4174 = vpack.c.b16 %v3282, %v3278
      %v4175 = vpack.c.b16 %v3287, %v3283
      %v4176 = vpack.c.b16 %v3288, %v3284
      %v4177 = vpack.c.b16 %v3289, %v3285
      %v4178 = vpack.c.b16 %v3290, %v3286
      %v4179 = vpack.c.b16 %v3295, %v3291
      %v4180 = vpack.c.b16 %v3296, %v3292
      %v4181 = vpack.c.b16 %v3297, %v3293
      %v4182 = vpack.c.b16 %v3298, %v3294
      %v4183 = vpack.c.b16 %v3303, %v3299
      %v4184 = vpack.c.b16 %v3304, %v3300
      %v4185 = vpack.c.b16 %v3305, %v3301
      %v4186 = vpack.c.b16 %v3306, %v3302
      %v4187 = vpack.c.b16 %v3311, %v3307
      %v4188 = vpack.c.b16 %v3312, %v3308
      %v4189 = vpack.c.b16 %v3313, %v3309
      %v4190 = vpack.c.b16 %v3314, %v3310
      %v4191 = vpack.c.b16 %v3319, %v3315
      %v4192 = vpack.c.b16 %v3320, %v3316
      %v4193 = vpack.c.b16 %v3321, %v3317
      %v4194 = vpack.c.b16 %v3322, %v3318
      %v4195 = vpack.c.b16 %v3327, %v3323
      %v4196 = vpack.c.b16 %v3328, %v3324
      %v4197 = vpack.c.b16 %v3329, %v3325
      %v4198 = vpack.c.b16 %v3330, %v3326
      %v4199 = vpack.c.b16 %v3335, %v3331
      %v4200 = vpack.c.b16 %v3336, %v3332
      %v4201 = vpack.c.b16 %v3337, %v3333
      %v4202 = vpack.c.b16 %v3338, %v3334
      %v4203 = vpack.c.b16 %v3343, %v3339
      %v4204 = vpack.c.b16 %v3344, %v3340
      %v4205 = vpack.c.b16 %v3345, %v3341
      %v4206 = vpack.c.b16 %v3346, %v3342
      %v4207 = vpack.c.b16 %v3351, %v3347
      %v4208 = vpack.c.b16 %v3352, %v3348
      %v4209 = vpack.c.b16 %v3353, %v3349
      %v4210 = vpack.c.b16 %v3354, %v3350
      %v4211 = vpack.c.b16 %v3359, %v3355
      %v4212 = vpack.c.b16 %v3360, %v3356
      %v4213 = vpack.c.b16 %v3361, %v3357
      %v4214 = vpack.c.b16 %v3362, %v3358
      %v4215 = vpack.c.b16 %v3367, %v3363
      %v4216 = vpack.c.b16 %v3368, %v3364
      %v4217 = vpack.c.b16 %v3369, %v3365
      %v4218 = vpack.c.b16 %v3370, %v3366
      %v4219 = vpack.c.b16 %v3375, %v3371
      %v4220 = vpack.c.b16 %v3376, %v3372
      %v4221 = vpack.c.b16 %v3377, %v3373
      %v4222 = vpack.c.b16 %v3378, %v3374
      %v4223 = vpack.c.b16 %v3383, %v3379
      %v4224 = vpack.c.b16 %v3384, %v3380
      %v4225 = vpack.c.b16 %v3385, %v3381
      %v4226 = vpack.c.b16 %v3386, %v3382
      %v4227 = vpack.c.b16 %v3391, %v3387
      %v4228 = vpack.c.b16 %v3392, %v3388
      %v4229 = vpack.c.b16 %v3393, %v3389
      %v4230 = vpack.c.b16 %v3394, %v3390
      %v4231 = vpack.c.b16 %v3399, %v3395
      %v4232 = vpack.c.b16 %v3400, %v3396
      %v4233 = vpack.c.b16 %v3401, %v3397
      %v4234 = vpack.c.b16 %v3402, %v3398
      %v4235 = vpack.c.b16 %v3407, %v3403
      %v4236 = vpack.c.b16 %v3408, %v3404
      %v4237 = vpack.c.b16 %v3409, %v3405
      %v4238 = vpack.c.b16 %v3410, %v3406
      %v4239 = vpack.c.b16 %v3415, %v3411
      %v4240 = vpack.c.b16 %v3416, %v3412
      %v4241 = vpack.c.b16 %v3417, %v3413
      %v4242 = vpack.c.b16 %v3418, %v3414
      %v4243 = vpack.c.b16 %v3423, %v3419
      %v4244 = vpack.c.b16 %v3424, %v3420
      %v4245 = vpack.c.b16 %v3425, %v3421
      %v4246 = vpack.c.b16 %v3426, %v3422
      %v4247 = vpack.c.b16 %v3431, %v3427
      %v4248 = vpack.c.b16 %v3432, %v3428
      %v4249 = vpack.c.b16 %v3433, %v3429
      %v4250 = vpack.c.b16 %v3434, %v3430
      %v4251 = vpack.c.b16 %v3439, %v3435
      %v4252 = vpack.c.b16 %v3440, %v3436
      %v4253 = vpack.c.b16 %v3441, %v3437
      %v4254 = vpack.c.b16 %v3442, %v3438
      %v4255 = vpack.c.b16 %v3447, %v3443
      %v4256 = vpack.c.b16 %v3448, %v3444
      %v4257 = vpack.c.b16 %v3449, %v3445
      %v4258 = vpack.c.b16 %v3450, %v3446
      %v4259 = vpack.c.b16 %v3455, %v3451
      %v4260 = vpack.c.b16 %v3456, %v3452
      %v4261 = vpack.c.b16 %v3457, %v3453
      %v4262 = vpack.c.b16 %v3458, %v3454
      %v4263 = vpack.c.b16 %v3463, %v3459
      %v4264 = vpack.c.b16 %v3464, %v3460
      %v4265 = vpack.c.b16 %v3465, %v3461
      %v4266 = vpack.c.b16 %v3466, %v3462
      %v4267 = vpack.c.b16 %v3471, %v3467
      %v4268 = vpack.c.b16 %v3472, %v3468
      %v4269 = vpack.c.b16 %v3473, %v3469
      %v4270 = vpack.c.b16 %v3474, %v3470
      %v4271 = vpack.c.b16 %v3479, %v3475
      %v4272 = vpack.c.b16 %v3480, %v3476
      %v4273 = vpack.c.b16 %v3481, %v3477
      %v4274 = vpack.c.b16 %v3482, %v3478
      %v4275 = vpack.c.b16 %v3487, %v3483
      %v4276 = vpack.c.b16 %v3488, %v3484
      %v4277 = vpack.c.b16 %v3489, %v3485
      %v4278 = vpack.c.b16 %v3490, %v3486
      %v4279 = vpack.c.b16 %v3495, %v3491
      %v4280 = vpack.c.b16 %v3496, %v3492
      %v4281 = vpack.c.b16 %v3497, %v3493
      %v4282 = vpack.c.b16 %v3498, %v3494
      %vm5067 = vcmask 523264
      %v5068 = vsel %vm5067, %v1122, 0
      %5070 = vmatpush.bf16.msra.mxu0 %v3527
      %5071 = vmatpush.bf16.msra.mxu0 %v3523
      %5072 = vmatpush.bf16.msra.mxu0 %v3519
      %5073 = vmatpush.bf16.msra.mxu0 %v3515
      %5074 = vmatpush.bf16.msra.mxu0 %v3511
      %5075 = vmatpush.bf16.msra.mxu0 %v3507
      %5076 = vmatpush.bf16.msra.mxu0 %v3503
      %5077 = vmatpush.bf16.msra.mxu0 %v3499
      %5078 = vmatmul.bf16.gmra.mxu0 %v1092
      %v5079 = vpop.f32.mrf.mxu0
      %v5080 = vadd.f32 %v1082, %v5079
      %v5081 = vpop.f32.mrf.mxu0
      %5082 = vdwg.mxu0
      %5083 = vmatpush.bf16.msra.mxu0 %v3559
      %5084 = vmatpush.bf16.msra.mxu0 %v3555
      %5085 = vmatpush.bf16.msra.mxu0 %v3551
      %5086 = vmatpush.bf16.msra.mxu0 %v3547
      %5087 = vmatpush.bf16.msra.mxu0 %v3543
      %5088 = vmatpush.bf16.msra.mxu0 %v3539
      %5089 = vmatpush.bf16.msra.mxu0 %v3535
      %5090 = vmatpush.bf16.msra.mxu0 %v3531
      %5091 = vmatmul.bf16.gmra.mxu0 %v1093
      %v5092 = vpop.f32.mrf.mxu0
      %v5093 = vadd.f32 %v5080, %v5092
      %v5094 = vpop.f32.mrf.mxu0
      %5095 = vdwg.mxu0
      %5096 = vmatpush.bf16.msra.mxu0 %v3591
      %5097 = vmatpush.bf16.msra.mxu0 %v3587
      %5098 = vmatpush.bf16.msra.mxu0 %v3583
      %5099 = vmatpush.bf16.msra.mxu0 %v3579
      %5100 = vmatpush.bf16.msra.mxu0 %v3575
      %5101 = vmatpush.bf16.msra.mxu0 %v3571
      %5102 = vmatpush.bf16.msra.mxu0 %v3567
      %5103 = vmatpush.bf16.msra.mxu0 %v3563
      %5104 = vmatmul.bf16.gmra.mxu0 %v1094
      %v5105 = vpop.f32.mrf.mxu0
      %v5106 = vadd.f32 %v5093, %v5105
      %v5107 = vpop.f32.mrf.mxu0
      %5108 = vdwg.mxu0
      %5109 = vmatpush.bf16.msra.mxu0 %v3623
      %5110 = vmatpush.bf16.msra.mxu0 %v3619
      %5111 = vmatpush.bf16.msra.mxu0 %v3615
      %5112 = vmatpush.bf16.msra.mxu0 %v3611
      %5113 = vmatpush.bf16.msra.mxu0 %v3607
      %5114 = vmatpush.bf16.msra.mxu0 %v3603
      %5115 = vmatpush.bf16.msra.mxu0 %v3599
      %5116 = vmatpush.bf16.msra.mxu0 %v3595
      %5117 = vmatmul.bf16.gmra.mxu0 %v1095
      %v5118 = vpop.f32.mrf.mxu0
      %v5119 = vadd.f32 %v5106, %v5118
      %v5120 = vpop.f32.mrf.mxu0
      %5121 = vdwg.mxu0
      %5122 = vmatpush.bf16.msra.mxu0 %v3655
      %5123 = vmatpush.bf16.msra.mxu0 %v3651
      %5124 = vmatpush.bf16.msra.mxu0 %v3647
      %5125 = vmatpush.bf16.msra.mxu0 %v3643
      %5126 = vmatpush.bf16.msra.mxu0 %v3639
      %5127 = vmatpush.bf16.msra.mxu0 %v3635
      %5128 = vmatpush.bf16.msra.mxu0 %v3631
      %5129 = vmatpush.bf16.msra.mxu0 %v3627
      %5130 = vmatmul.bf16.gmra.mxu0 %v1096
      %v5131 = vpop.f32.mrf.mxu0
      %v5132 = vadd.f32 %v5119, %v5131
      %v5133 = vpop.f32.mrf.mxu0
      %5134 = vdwg.mxu0
      %5135 = vmatpush.bf16.msra.mxu0 %v3687
      %5136 = vmatpush.bf16.msra.mxu0 %v3683
      %5137 = vmatpush.bf16.msra.mxu0 %v3679
      %5138 = vmatpush.bf16.msra.mxu0 %v3675
      %5139 = vmatpush.bf16.msra.mxu0 %v3671
      %5140 = vmatpush.bf16.msra.mxu0 %v3667
      %5141 = vmatpush.bf16.msra.mxu0 %v3663
      %5142 = vmatpush.bf16.msra.mxu0 %v3659
      %5143 = vmatmul.bf16.gmra.mxu0 %v1097
      %v5144 = vpop.f32.mrf.mxu0
      %v5145 = vadd.f32 %v5132, %v5144
      %v5146 = vpop.f32.mrf.mxu0
      %5147 = vdwg.mxu0
      %5148 = vmatpush.bf16.msra.mxu0 %v3719
      %5149 = vmatpush.bf16.msra.mxu0 %v3715
      %5150 = vmatpush.bf16.msra.mxu0 %v3711
      %5151 = vmatpush.bf16.msra.mxu0 %v3707
      %5152 = vmatpush.bf16.msra.mxu0 %v3703
      %5153 = vmatpush.bf16.msra.mxu0 %v3699
      %5154 = vmatpush.bf16.msra.mxu0 %v3695
      %5155 = vmatpush.bf16.msra.mxu0 %v3691
      %5156 = vmatmul.bf16.gmra.mxu0 %v1098
      %v5157 = vpop.f32.mrf.mxu0
      %v5158 = vadd.f32 %v5145, %v5157
      %v5159 = vpop.f32.mrf.mxu0
      %5160 = vdwg.mxu0
      %5161 = vmatpush.bf16.msra.mxu0 %v3751
      %5162 = vmatpush.bf16.msra.mxu0 %v3747
      %5163 = vmatpush.bf16.msra.mxu0 %v3743
      %5164 = vmatpush.bf16.msra.mxu0 %v3739
      %5165 = vmatpush.bf16.msra.mxu0 %v3735
      %5166 = vmatpush.bf16.msra.mxu0 %v3731
      %5167 = vmatpush.bf16.msra.mxu0 %v3727
      %5168 = vmatpush.bf16.msra.mxu0 %v3723
      %5169 = vmatmul.bf16.gmra.mxu0 %v1099
      %v5170 = vpop.f32.mrf.mxu0
      %v5171 = vadd.f32 %v5158, %v5170
      %v5172 = vpop.f32.mrf.mxu0
      %5173 = vdwg.mxu0
      %5174 = vmatpush.bf16.msra.mxu0 %v3783
      %5175 = vmatpush.bf16.msra.mxu0 %v3779
      %5176 = vmatpush.bf16.msra.mxu0 %v3775
      %5177 = vmatpush.bf16.msra.mxu0 %v3771
      %5178 = vmatpush.bf16.msra.mxu0 %v3767
      %5179 = vmatpush.bf16.msra.mxu0 %v3763
      %5180 = vmatpush.bf16.msra.mxu0 %v3759
      %5181 = vmatpush.bf16.msra.mxu0 %v3755
      %5182 = vmatmul.bf16.gmra.mxu0 %v1102
      %v5183 = vpop.f32.mrf.mxu0
      %v5184 = vadd.f32 %v5171, %v5183
      %v5185 = vpop.f32.mrf.mxu0
      %5186 = vdwg.mxu0
      %5187 = vmatpush.bf16.msra.mxu0 %v3815
      %5188 = vmatpush.bf16.msra.mxu0 %v3811
      %5189 = vmatpush.bf16.msra.mxu0 %v3807
      %5190 = vmatpush.bf16.msra.mxu0 %v3803
      %5191 = vmatpush.bf16.msra.mxu0 %v3799
      %5192 = vmatpush.bf16.msra.mxu0 %v3795
      %5193 = vmatpush.bf16.msra.mxu0 %v3791
      %5194 = vmatpush.bf16.msra.mxu0 %v3787
      %5195 = vmatmul.bf16.gmra.mxu0 %v1103
      %v5196 = vpop.f32.mrf.mxu0
      %v5197 = vadd.f32 %v5184, %v5196
      %v5198 = vpop.f32.mrf.mxu0
      %5199 = vdwg.mxu0
      %5200 = vmatpush.bf16.msra.mxu0 %v3847
      %5201 = vmatpush.bf16.msra.mxu0 %v3843
      %5202 = vmatpush.bf16.msra.mxu0 %v3839
      %5203 = vmatpush.bf16.msra.mxu0 %v3835
      %5204 = vmatpush.bf16.msra.mxu0 %v3831
      %5205 = vmatpush.bf16.msra.mxu0 %v3827
      %5206 = vmatpush.bf16.msra.mxu0 %v3823
      %5207 = vmatpush.bf16.msra.mxu0 %v3819
      %5208 = vmatmul.bf16.gmra.mxu0 %v1104
      %v5209 = vpop.f32.mrf.mxu0
      %v5210 = vadd.f32 %v5197, %v5209
      %v5211 = vpop.f32.mrf.mxu0
      %5212 = vdwg.mxu0
      %5213 = vmatpush.bf16.msra.mxu0 %v3879
      %5214 = vmatpush.bf16.msra.mxu0 %v3875
      %5215 = vmatpush.bf16.msra.mxu0 %v3871
      %5216 = vmatpush.bf16.msra.mxu0 %v3867
      %5217 = vmatpush.bf16.msra.mxu0 %v3863
      %5218 = vmatpush.bf16.msra.mxu0 %v3859
      %5219 = vmatpush.bf16.msra.mxu0 %v3855
      %5220 = vmatpush.bf16.msra.mxu0 %v3851
      %5221 = vmatmul.bf16.gmra.mxu0 %v1105
      %v5222 = vpop.f32.mrf.mxu0
      %v5223 = vadd.f32 %v5210, %v5222
      %v5224 = vpop.f32.mrf.mxu0
      %5225 = vdwg.mxu0
      %5226 = vmatpush.bf16.msra.mxu0 %v3911
      %5227 = vmatpush.bf16.msra.mxu0 %v3907
      %5228 = vmatpush.bf16.msra.mxu0 %v3903
      %5229 = vmatpush.bf16.msra.mxu0 %v3899
      %5230 = vmatpush.bf16.msra.mxu0 %v3895
      %5231 = vmatpush.bf16.msra.mxu0 %v3891
      %5232 = vmatpush.bf16.msra.mxu0 %v3887
      %5233 = vmatpush.bf16.msra.mxu0 %v3883
      %5234 = vmatmul.bf16.gmra.mxu0 %v1106
      %v5235 = vpop.f32.mrf.mxu0
      %v5236 = vadd.f32 %v5223, %v5235
      %v5237 = vpop.f32.mrf.mxu0
      %5238 = vdwg.mxu0
      %5239 = vmatpush.bf16.msra.mxu0 %v3943
      %5240 = vmatpush.bf16.msra.mxu0 %v3939
      %5241 = vmatpush.bf16.msra.mxu0 %v3935
      %5242 = vmatpush.bf16.msra.mxu0 %v3931
      %5243 = vmatpush.bf16.msra.mxu0 %v3927
      %5244 = vmatpush.bf16.msra.mxu0 %v3923
      %5245 = vmatpush.bf16.msra.mxu0 %v3919
      %5246 = vmatpush.bf16.msra.mxu0 %v3915
      %5247 = vmatmul.bf16.gmra.mxu0 %v1107
      %v5248 = vpop.f32.mrf.mxu0
      %v5249 = vadd.f32 %v5236, %v5248
      %v5250 = vpop.f32.mrf.mxu0
      %5251 = vdwg.mxu0
      %5252 = vmatpush.bf16.msra.mxu0 %v3975
      %5253 = vmatpush.bf16.msra.mxu0 %v3971
      %5254 = vmatpush.bf16.msra.mxu0 %v3967
      %5255 = vmatpush.bf16.msra.mxu0 %v3963
      %5256 = vmatpush.bf16.msra.mxu0 %v3959
      %5257 = vmatpush.bf16.msra.mxu0 %v3955
      %5258 = vmatpush.bf16.msra.mxu0 %v3951
      %5259 = vmatpush.bf16.msra.mxu0 %v3947
      %5260 = vmatmul.bf16.gmra.mxu0 %v1108
      %v5261 = vpop.f32.mrf.mxu0
      %v5262 = vadd.f32 %v5249, %v5261
      %v5263 = vpop.f32.mrf.mxu0
      %5264 = vdwg.mxu0
      %5265 = vmatpush.bf16.msra.mxu0 %v4007
      %5266 = vmatpush.bf16.msra.mxu0 %v4003
      %5267 = vmatpush.bf16.msra.mxu0 %v3999
      %5268 = vmatpush.bf16.msra.mxu0 %v3995
      %5269 = vmatpush.bf16.msra.mxu0 %v3991
      %5270 = vmatpush.bf16.msra.mxu0 %v3987
      %5271 = vmatpush.bf16.msra.mxu0 %v3983
      %5272 = vmatpush.bf16.msra.mxu0 %v3979
      %5273 = vmatmul.bf16.gmra.mxu0 %v1109
      %v5274 = vpop.f32.mrf.mxu0
      %v5275 = vadd.f32 %v5262, %v5274
      %v5276 = vpop.f32.mrf.mxu0
      %5277 = vdwg.mxu0
      %5278 = vmatpush.bf16.msra.mxu0 %v4039
      %5279 = vmatpush.bf16.msra.mxu0 %v4035
      %5280 = vmatpush.bf16.msra.mxu0 %v4031
      %5281 = vmatpush.bf16.msra.mxu0 %v4027
      %5282 = vmatpush.bf16.msra.mxu0 %v4023
      %5283 = vmatpush.bf16.msra.mxu0 %v4019
      %5284 = vmatpush.bf16.msra.mxu0 %v4015
      %5285 = vmatpush.bf16.msra.mxu0 %v4011
      %5286 = vmatmul.bf16.gmra.mxu0 %v1112
      %v5287 = vpop.f32.mrf.mxu0
      %v5288 = vadd.f32 %v5275, %v5287
      %v5289 = vpop.f32.mrf.mxu0
      %5290 = vdwg.mxu0
      %5291 = vmatpush.bf16.msra.mxu0 %v4071
      %5292 = vmatpush.bf16.msra.mxu0 %v4067
      %5293 = vmatpush.bf16.msra.mxu0 %v4063
      %5294 = vmatpush.bf16.msra.mxu0 %v4059
      %5295 = vmatpush.bf16.msra.mxu0 %v4055
      %5296 = vmatpush.bf16.msra.mxu0 %v4051
      %5297 = vmatpush.bf16.msra.mxu0 %v4047
      %5298 = vmatpush.bf16.msra.mxu0 %v4043
      %5299 = vmatmul.bf16.gmra.mxu0 %v1113
      %v5300 = vpop.f32.mrf.mxu0
      %v5301 = vadd.f32 %v5288, %v5300
      %v5302 = vpop.f32.mrf.mxu0
      %5303 = vdwg.mxu0
      %5304 = vmatpush.bf16.msra.mxu0 %v4103
      %5305 = vmatpush.bf16.msra.mxu0 %v4099
      %5306 = vmatpush.bf16.msra.mxu0 %v4095
      %5307 = vmatpush.bf16.msra.mxu0 %v4091
      %5308 = vmatpush.bf16.msra.mxu0 %v4087
      %5309 = vmatpush.bf16.msra.mxu0 %v4083
      %5310 = vmatpush.bf16.msra.mxu0 %v4079
      %5311 = vmatpush.bf16.msra.mxu0 %v4075
      %5312 = vmatmul.bf16.gmra.mxu0 %v1114
      %v5313 = vpop.f32.mrf.mxu0
      %v5314 = vadd.f32 %v5301, %v5313
      %v5315 = vpop.f32.mrf.mxu0
      %5316 = vdwg.mxu0
      %5317 = vmatpush.bf16.msra.mxu0 %v4135
      %5318 = vmatpush.bf16.msra.mxu0 %v4131
      %5319 = vmatpush.bf16.msra.mxu0 %v4127
      %5320 = vmatpush.bf16.msra.mxu0 %v4123
      %5321 = vmatpush.bf16.msra.mxu0 %v4119
      %5322 = vmatpush.bf16.msra.mxu0 %v4115
      %5323 = vmatpush.bf16.msra.mxu0 %v4111
      %5324 = vmatpush.bf16.msra.mxu0 %v4107
      %5325 = vmatmul.bf16.gmra.mxu0 %v1115
      %v5326 = vpop.f32.mrf.mxu0
      %v5327 = vadd.f32 %v5314, %v5326
      %v5328 = vpop.f32.mrf.mxu0
      %5329 = vdwg.mxu0
      %5330 = vmatpush.bf16.msra.mxu0 %v4167
      %5331 = vmatpush.bf16.msra.mxu0 %v4163
      %5332 = vmatpush.bf16.msra.mxu0 %v4159
      %5333 = vmatpush.bf16.msra.mxu0 %v4155
      %5334 = vmatpush.bf16.msra.mxu0 %v4151
      %5335 = vmatpush.bf16.msra.mxu0 %v4147
      %5336 = vmatpush.bf16.msra.mxu0 %v4143
      %5337 = vmatpush.bf16.msra.mxu0 %v4139
      %5338 = vmatmul.bf16.gmra.mxu0 %v1116
      %v5339 = vpop.f32.mrf.mxu0
      %v5340 = vadd.f32 %v5327, %v5339
      %v5341 = vpop.f32.mrf.mxu0
      %5342 = vdwg.mxu0
      %5343 = vmatpush.bf16.msra.mxu0 %v4199
      %5344 = vmatpush.bf16.msra.mxu0 %v4195
      %5345 = vmatpush.bf16.msra.mxu0 %v4191
      %5346 = vmatpush.bf16.msra.mxu0 %v4187
      %5347 = vmatpush.bf16.msra.mxu0 %v4183
      %5348 = vmatpush.bf16.msra.mxu0 %v4179
      %5349 = vmatpush.bf16.msra.mxu0 %v4175
      %5350 = vmatpush.bf16.msra.mxu0 %v4171
      %5351 = vmatmul.bf16.gmra.mxu0 %v1117
      %v5352 = vpop.f32.mrf.mxu0
      %v5353 = vadd.f32 %v5340, %v5352
      %v5354 = vpop.f32.mrf.mxu0
      %5355 = vdwg.mxu0
      %5356 = vmatpush.bf16.msra.mxu0 %v4231
      %5357 = vmatpush.bf16.msra.mxu0 %v4227
      %5358 = vmatpush.bf16.msra.mxu0 %v4223
      %5359 = vmatpush.bf16.msra.mxu0 %v4219
      %5360 = vmatpush.bf16.msra.mxu0 %v4215
      %5361 = vmatpush.bf16.msra.mxu0 %v4211
      %5362 = vmatpush.bf16.msra.mxu0 %v4207
      %5363 = vmatpush.bf16.msra.mxu0 %v4203
      %5364 = vmatmul.bf16.gmra.mxu0 %v1118
      %v5365 = vpop.f32.mrf.mxu0
      %v5366 = vadd.f32 %v5353, %v5365
      %v5367 = vpop.f32.mrf.mxu0
      %5368 = vdwg.mxu0
      %5369 = vmatpush.bf16.msra.mxu0 %v4263
      %5370 = vmatpush.bf16.msra.mxu0 %v4259
      %5371 = vmatpush.bf16.msra.mxu0 %v4255
      %5372 = vmatpush.bf16.msra.mxu0 %v4251
      %5373 = vmatpush.bf16.msra.mxu0 %v4247
      %5374 = vmatpush.bf16.msra.mxu0 %v4243
      %5375 = vmatpush.bf16.msra.mxu0 %v4239
      %5376 = vmatpush.bf16.msra.mxu0 %v4235
      %5377 = vmatmul.bf16.gmra.mxu0 %v1119
      %v5378 = vpop.f32.mrf.mxu0
      %v5379 = vadd.f32 %v5366, %v5378
      %v5380 = vpop.f32.mrf.mxu0
      %5381 = vdwg.mxu0
      %5382 = vmatpush.bf16.msra.mxu0 0
      %5383 = vmatpush.bf16.msra.mxu0 0
      %5384 = vmatpush.bf16.msra.mxu0 0
      %5385 = vmatpush.bf16.msra.mxu0 0
      %5386 = vmatpush.bf16.msra.mxu0 %v4279
      %5387 = vmatpush.bf16.msra.mxu0 %v4275
      %5388 = vmatpush.bf16.msra.mxu0 %v4271
      %5389 = vmatpush.bf16.msra.mxu0 %v4267
      %5390 = vmatmul.bf16.gmra.mxu0 %v5068
      %v5391 = vpop.f32.mrf.mxu0
      %v5392 = vadd.f32 %v5379, %v5391
      %v5393 = vpop.f32.mrf.mxu0
      %5394 = vdwg.mxu0
      %5395 = vmatpush.bf16.msra.mxu0 %v3528
      %5396 = vmatpush.bf16.msra.mxu0 %v3524
      %5397 = vmatpush.bf16.msra.mxu0 %v3520
      %5398 = vmatpush.bf16.msra.mxu0 %v3516
      %5399 = vmatpush.bf16.msra.mxu0 %v3512
      %5400 = vmatpush.bf16.msra.mxu0 %v3508
      %5401 = vmatpush.bf16.msra.mxu0 %v3504
      %5402 = vmatpush.bf16.msra.mxu0 %v3500
      %5403 = vmatmul.bf16.gmra.mxu0 %v1092
      %v5404 = vpop.f32.mrf.mxu0
      %v5405 = vadd.f32 %v1083, %v5404
      %v5406 = vpop.f32.mrf.mxu0
      %5407 = vdwg.mxu0
      %5408 = vmatpush.bf16.msra.mxu0 %v3560
      %5409 = vmatpush.bf16.msra.mxu0 %v3556
      %5410 = vmatpush.bf16.msra.mxu0 %v3552
      %5411 = vmatpush.bf16.msra.mxu0 %v3548
      %5412 = vmatpush.bf16.msra.mxu0 %v3544
      %5413 = vmatpush.bf16.msra.mxu0 %v3540
      %5414 = vmatpush.bf16.msra.mxu0 %v3536
      %5415 = vmatpush.bf16.msra.mxu0 %v3532
      %5416 = vmatmul.bf16.gmra.mxu0 %v1093
      %v5417 = vpop.f32.mrf.mxu0
      %v5418 = vadd.f32 %v5405, %v5417
      %v5419 = vpop.f32.mrf.mxu0
      %5420 = vdwg.mxu0
      %5421 = vmatpush.bf16.msra.mxu0 %v3592
      %5422 = vmatpush.bf16.msra.mxu0 %v3588
      %5423 = vmatpush.bf16.msra.mxu0 %v3584
      %5424 = vmatpush.bf16.msra.mxu0 %v3580
      %5425 = vmatpush.bf16.msra.mxu0 %v3576
      %5426 = vmatpush.bf16.msra.mxu0 %v3572
      %5427 = vmatpush.bf16.msra.mxu0 %v3568
      %5428 = vmatpush.bf16.msra.mxu0 %v3564
      %5429 = vmatmul.bf16.gmra.mxu0 %v1094
      %v5430 = vpop.f32.mrf.mxu0
      %v5431 = vadd.f32 %v5418, %v5430
      %v5432 = vpop.f32.mrf.mxu0
      %5433 = vdwg.mxu0
      %5434 = vmatpush.bf16.msra.mxu0 %v3624
      %5435 = vmatpush.bf16.msra.mxu0 %v3620
      %5436 = vmatpush.bf16.msra.mxu0 %v3616
      %5437 = vmatpush.bf16.msra.mxu0 %v3612
      %5438 = vmatpush.bf16.msra.mxu0 %v3608
      %5439 = vmatpush.bf16.msra.mxu0 %v3604
      %5440 = vmatpush.bf16.msra.mxu0 %v3600
      %5441 = vmatpush.bf16.msra.mxu0 %v3596
      %5442 = vmatmul.bf16.gmra.mxu0 %v1095
      %v5443 = vpop.f32.mrf.mxu0
      %v5444 = vadd.f32 %v5431, %v5443
      %v5445 = vpop.f32.mrf.mxu0
      %5446 = vdwg.mxu0
      %5447 = vmatpush.bf16.msra.mxu0 %v3656
      %5448 = vmatpush.bf16.msra.mxu0 %v3652
      %5449 = vmatpush.bf16.msra.mxu0 %v3648
      %5450 = vmatpush.bf16.msra.mxu0 %v3644
      %5451 = vmatpush.bf16.msra.mxu0 %v3640
      %5452 = vmatpush.bf16.msra.mxu0 %v3636
      %5453 = vmatpush.bf16.msra.mxu0 %v3632
      %5454 = vmatpush.bf16.msra.mxu0 %v3628
      %5455 = vmatmul.bf16.gmra.mxu0 %v1096
      %v5456 = vpop.f32.mrf.mxu0
      %v5457 = vadd.f32 %v5444, %v5456
      %v5458 = vpop.f32.mrf.mxu0
      %5459 = vdwg.mxu0
      %5460 = vmatpush.bf16.msra.mxu0 %v3688
      %5461 = vmatpush.bf16.msra.mxu0 %v3684
      %5462 = vmatpush.bf16.msra.mxu0 %v3680
      %5463 = vmatpush.bf16.msra.mxu0 %v3676
      %5464 = vmatpush.bf16.msra.mxu0 %v3672
      %5465 = vmatpush.bf16.msra.mxu0 %v3668
      %5466 = vmatpush.bf16.msra.mxu0 %v3664
      %5467 = vmatpush.bf16.msra.mxu0 %v3660
      %5468 = vmatmul.bf16.gmra.mxu0 %v1097
      %v5469 = vpop.f32.mrf.mxu0
      %v5470 = vadd.f32 %v5457, %v5469
      %v5471 = vpop.f32.mrf.mxu0
      %5472 = vdwg.mxu0
      %5473 = vmatpush.bf16.msra.mxu0 %v3720
      %5474 = vmatpush.bf16.msra.mxu0 %v3716
      %5475 = vmatpush.bf16.msra.mxu0 %v3712
      %5476 = vmatpush.bf16.msra.mxu0 %v3708
      %5477 = vmatpush.bf16.msra.mxu0 %v3704
      %5478 = vmatpush.bf16.msra.mxu0 %v3700
      %5479 = vmatpush.bf16.msra.mxu0 %v3696
      %5480 = vmatpush.bf16.msra.mxu0 %v3692
      %5481 = vmatmul.bf16.gmra.mxu0 %v1098
      %v5482 = vpop.f32.mrf.mxu0
      %v5483 = vadd.f32 %v5470, %v5482
      %v5484 = vpop.f32.mrf.mxu0
      %5485 = vdwg.mxu0
      %5486 = vmatpush.bf16.msra.mxu0 %v3752
      %5487 = vmatpush.bf16.msra.mxu0 %v3748
      %5488 = vmatpush.bf16.msra.mxu0 %v3744
      %5489 = vmatpush.bf16.msra.mxu0 %v3740
      %5490 = vmatpush.bf16.msra.mxu0 %v3736
      %5491 = vmatpush.bf16.msra.mxu0 %v3732
      %5492 = vmatpush.bf16.msra.mxu0 %v3728
      %5493 = vmatpush.bf16.msra.mxu0 %v3724
      %5494 = vmatmul.bf16.gmra.mxu0 %v1099
      %v5495 = vpop.f32.mrf.mxu0
      %v5496 = vadd.f32 %v5483, %v5495
      %v5497 = vpop.f32.mrf.mxu0
      %5498 = vdwg.mxu0
      %5499 = vmatpush.bf16.msra.mxu0 %v3784
      %5500 = vmatpush.bf16.msra.mxu0 %v3780
      %5501 = vmatpush.bf16.msra.mxu0 %v3776
      %5502 = vmatpush.bf16.msra.mxu0 %v3772
      %5503 = vmatpush.bf16.msra.mxu0 %v3768
      %5504 = vmatpush.bf16.msra.mxu0 %v3764
      %5505 = vmatpush.bf16.msra.mxu0 %v3760
      %5506 = vmatpush.bf16.msra.mxu0 %v3756
      %5507 = vmatmul.bf16.gmra.mxu0 %v1102
      %v5508 = vpop.f32.mrf.mxu0
      %v5509 = vadd.f32 %v5496, %v5508
      %v5510 = vpop.f32.mrf.mxu0
      %5511 = vdwg.mxu0
      %5512 = vmatpush.bf16.msra.mxu0 %v3816
      %5513 = vmatpush.bf16.msra.mxu0 %v3812
      %5514 = vmatpush.bf16.msra.mxu0 %v3808
      %5515 = vmatpush.bf16.msra.mxu0 %v3804
      %5516 = vmatpush.bf16.msra.mxu0 %v3800
      %5517 = vmatpush.bf16.msra.mxu0 %v3796
      %5518 = vmatpush.bf16.msra.mxu0 %v3792
      %5519 = vmatpush.bf16.msra.mxu0 %v3788
      %5520 = vmatmul.bf16.gmra.mxu0 %v1103
      %v5521 = vpop.f32.mrf.mxu0
      %v5522 = vadd.f32 %v5509, %v5521
      %v5523 = vpop.f32.mrf.mxu0
      %5524 = vdwg.mxu0
      %5525 = vmatpush.bf16.msra.mxu0 %v3848
      %5526 = vmatpush.bf16.msra.mxu0 %v3844
      %5527 = vmatpush.bf16.msra.mxu0 %v3840
      %5528 = vmatpush.bf16.msra.mxu0 %v3836
      %5529 = vmatpush.bf16.msra.mxu0 %v3832
      %5530 = vmatpush.bf16.msra.mxu0 %v3828
      %5531 = vmatpush.bf16.msra.mxu0 %v3824
      %5532 = vmatpush.bf16.msra.mxu0 %v3820
      %5533 = vmatmul.bf16.gmra.mxu0 %v1104
      %v5534 = vpop.f32.mrf.mxu0
      %v5535 = vadd.f32 %v5522, %v5534
      %v5536 = vpop.f32.mrf.mxu0
      %5537 = vdwg.mxu0
      %5538 = vmatpush.bf16.msra.mxu0 %v3880
      %5539 = vmatpush.bf16.msra.mxu0 %v3876
      %5540 = vmatpush.bf16.msra.mxu0 %v3872
      %5541 = vmatpush.bf16.msra.mxu0 %v3868
      %5542 = vmatpush.bf16.msra.mxu0 %v3864
      %5543 = vmatpush.bf16.msra.mxu0 %v3860
      %5544 = vmatpush.bf16.msra.mxu0 %v3856
      %5545 = vmatpush.bf16.msra.mxu0 %v3852
      %5546 = vmatmul.bf16.gmra.mxu0 %v1105
      %v5547 = vpop.f32.mrf.mxu0
      %v5548 = vadd.f32 %v5535, %v5547
      %v5549 = vpop.f32.mrf.mxu0
      %5550 = vdwg.mxu0
      %5551 = vmatpush.bf16.msra.mxu0 %v3912
      %5552 = vmatpush.bf16.msra.mxu0 %v3908
      %5553 = vmatpush.bf16.msra.mxu0 %v3904
      %5554 = vmatpush.bf16.msra.mxu0 %v3900
      %5555 = vmatpush.bf16.msra.mxu0 %v3896
      %5556 = vmatpush.bf16.msra.mxu0 %v3892
      %5557 = vmatpush.bf16.msra.mxu0 %v3888
      %5558 = vmatpush.bf16.msra.mxu0 %v3884
      %5559 = vmatmul.bf16.gmra.mxu0 %v1106
      %v5560 = vpop.f32.mrf.mxu0
      %v5561 = vadd.f32 %v5548, %v5560
      %v5562 = vpop.f32.mrf.mxu0
      %5563 = vdwg.mxu0
      %5564 = vmatpush.bf16.msra.mxu0 %v3944
      %5565 = vmatpush.bf16.msra.mxu0 %v3940
      %5566 = vmatpush.bf16.msra.mxu0 %v3936
      %5567 = vmatpush.bf16.msra.mxu0 %v3932
      %5568 = vmatpush.bf16.msra.mxu0 %v3928
      %5569 = vmatpush.bf16.msra.mxu0 %v3924
      %5570 = vmatpush.bf16.msra.mxu0 %v3920
      %5571 = vmatpush.bf16.msra.mxu0 %v3916
      %5572 = vmatmul.bf16.gmra.mxu0 %v1107
      %v5573 = vpop.f32.mrf.mxu0
      %v5574 = vadd.f32 %v5561, %v5573
      %v5575 = vpop.f32.mrf.mxu0
      %5576 = vdwg.mxu0
      %5577 = vmatpush.bf16.msra.mxu0 %v3976
      %5578 = vmatpush.bf16.msra.mxu0 %v3972
      %5579 = vmatpush.bf16.msra.mxu0 %v3968
      %5580 = vmatpush.bf16.msra.mxu0 %v3964
      %5581 = vmatpush.bf16.msra.mxu0 %v3960
      %5582 = vmatpush.bf16.msra.mxu0 %v3956
      %5583 = vmatpush.bf16.msra.mxu0 %v3952
      %5584 = vmatpush.bf16.msra.mxu0 %v3948
      %5585 = vmatmul.bf16.gmra.mxu0 %v1108
      %v5586 = vpop.f32.mrf.mxu0
      %v5587 = vadd.f32 %v5574, %v5586
      %v5588 = vpop.f32.mrf.mxu0
      %5589 = vdwg.mxu0
      %5590 = vmatpush.bf16.msra.mxu0 %v4008
      %5591 = vmatpush.bf16.msra.mxu0 %v4004
      %5592 = vmatpush.bf16.msra.mxu0 %v4000
      %5593 = vmatpush.bf16.msra.mxu0 %v3996
      %5594 = vmatpush.bf16.msra.mxu0 %v3992
      %5595 = vmatpush.bf16.msra.mxu0 %v3988
      %5596 = vmatpush.bf16.msra.mxu0 %v3984
      %5597 = vmatpush.bf16.msra.mxu0 %v3980
      %5598 = vmatmul.bf16.gmra.mxu0 %v1109
      %v5599 = vpop.f32.mrf.mxu0
      %v5600 = vadd.f32 %v5587, %v5599
      %v5601 = vpop.f32.mrf.mxu0
      %5602 = vdwg.mxu0
      %5603 = vmatpush.bf16.msra.mxu0 %v4040
      %5604 = vmatpush.bf16.msra.mxu0 %v4036
      %5605 = vmatpush.bf16.msra.mxu0 %v4032
      %5606 = vmatpush.bf16.msra.mxu0 %v4028
      %5607 = vmatpush.bf16.msra.mxu0 %v4024
      %5608 = vmatpush.bf16.msra.mxu0 %v4020
      %5609 = vmatpush.bf16.msra.mxu0 %v4016
      %5610 = vmatpush.bf16.msra.mxu0 %v4012
      %5611 = vmatmul.bf16.gmra.mxu0 %v1112
      %v5612 = vpop.f32.mrf.mxu0
      %v5613 = vadd.f32 %v5600, %v5612
      %v5614 = vpop.f32.mrf.mxu0
      %5615 = vdwg.mxu0
      %5616 = vmatpush.bf16.msra.mxu0 %v4072
      %5617 = vmatpush.bf16.msra.mxu0 %v4068
      %5618 = vmatpush.bf16.msra.mxu0 %v4064
      %5619 = vmatpush.bf16.msra.mxu0 %v4060
      %5620 = vmatpush.bf16.msra.mxu0 %v4056
      %5621 = vmatpush.bf16.msra.mxu0 %v4052
      %5622 = vmatpush.bf16.msra.mxu0 %v4048
      %5623 = vmatpush.bf16.msra.mxu0 %v4044
      %5624 = vmatmul.bf16.gmra.mxu0 %v1113
      %v5625 = vpop.f32.mrf.mxu0
      %v5626 = vadd.f32 %v5613, %v5625
      %v5627 = vpop.f32.mrf.mxu0
      %5628 = vdwg.mxu0
      %5629 = vmatpush.bf16.msra.mxu0 %v4104
      %5630 = vmatpush.bf16.msra.mxu0 %v4100
      %5631 = vmatpush.bf16.msra.mxu0 %v4096
      %5632 = vmatpush.bf16.msra.mxu0 %v4092
      %5633 = vmatpush.bf16.msra.mxu0 %v4088
      %5634 = vmatpush.bf16.msra.mxu0 %v4084
      %5635 = vmatpush.bf16.msra.mxu0 %v4080
      %5636 = vmatpush.bf16.msra.mxu0 %v4076
      %5637 = vmatmul.bf16.gmra.mxu0 %v1114
      %v5638 = vpop.f32.mrf.mxu0
      %v5639 = vadd.f32 %v5626, %v5638
      %v5640 = vpop.f32.mrf.mxu0
      %5641 = vdwg.mxu0
      %5642 = vmatpush.bf16.msra.mxu0 %v4136
      %5643 = vmatpush.bf16.msra.mxu0 %v4132
      %5644 = vmatpush.bf16.msra.mxu0 %v4128
      %5645 = vmatpush.bf16.msra.mxu0 %v4124
      %5646 = vmatpush.bf16.msra.mxu0 %v4120
      %5647 = vmatpush.bf16.msra.mxu0 %v4116
      %5648 = vmatpush.bf16.msra.mxu0 %v4112
      %5649 = vmatpush.bf16.msra.mxu0 %v4108
      %5650 = vmatmul.bf16.gmra.mxu0 %v1115
      %v5651 = vpop.f32.mrf.mxu0
      %v5652 = vadd.f32 %v5639, %v5651
      %v5653 = vpop.f32.mrf.mxu0
      %5654 = vdwg.mxu0
      %5655 = vmatpush.bf16.msra.mxu0 %v4168
      %5656 = vmatpush.bf16.msra.mxu0 %v4164
      %5657 = vmatpush.bf16.msra.mxu0 %v4160
      %5658 = vmatpush.bf16.msra.mxu0 %v4156
      %5659 = vmatpush.bf16.msra.mxu0 %v4152
      %5660 = vmatpush.bf16.msra.mxu0 %v4148
      %5661 = vmatpush.bf16.msra.mxu0 %v4144
      %5662 = vmatpush.bf16.msra.mxu0 %v4140
      %5663 = vmatmul.bf16.gmra.mxu0 %v1116
      %v5664 = vpop.f32.mrf.mxu0
      %v5665 = vadd.f32 %v5652, %v5664
      %v5666 = vpop.f32.mrf.mxu0
      %5667 = vdwg.mxu0
      %5668 = vmatpush.bf16.msra.mxu0 %v4200
      %5669 = vmatpush.bf16.msra.mxu0 %v4196
      %5670 = vmatpush.bf16.msra.mxu0 %v4192
      %5671 = vmatpush.bf16.msra.mxu0 %v4188
      %5672 = vmatpush.bf16.msra.mxu0 %v4184
      %5673 = vmatpush.bf16.msra.mxu0 %v4180
      %5674 = vmatpush.bf16.msra.mxu0 %v4176
      %5675 = vmatpush.bf16.msra.mxu0 %v4172
      %5676 = vmatmul.bf16.gmra.mxu0 %v1117
      %v5677 = vpop.f32.mrf.mxu0
      %v5678 = vadd.f32 %v5665, %v5677
      %v5679 = vpop.f32.mrf.mxu0
      %5680 = vdwg.mxu0
      %5681 = vmatpush.bf16.msra.mxu0 %v4232
      %5682 = vmatpush.bf16.msra.mxu0 %v4228
      %5683 = vmatpush.bf16.msra.mxu0 %v4224
      %5684 = vmatpush.bf16.msra.mxu0 %v4220
      %5685 = vmatpush.bf16.msra.mxu0 %v4216
      %5686 = vmatpush.bf16.msra.mxu0 %v4212
      %5687 = vmatpush.bf16.msra.mxu0 %v4208
      %5688 = vmatpush.bf16.msra.mxu0 %v4204
      %5689 = vmatmul.bf16.gmra.mxu0 %v1118
      %v5690 = vpop.f32.mrf.mxu0
      %v5691 = vadd.f32 %v5678, %v5690
      %v5692 = vpop.f32.mrf.mxu0
      %5693 = vdwg.mxu0
      %5694 = vmatpush.bf16.msra.mxu0 %v4264
      %5695 = vmatpush.bf16.msra.mxu0 %v4260
      %5696 = vmatpush.bf16.msra.mxu0 %v4256
      %5697 = vmatpush.bf16.msra.mxu0 %v4252
      %5698 = vmatpush.bf16.msra.mxu0 %v4248
      %5699 = vmatpush.bf16.msra.mxu0 %v4244
      %5700 = vmatpush.bf16.msra.mxu0 %v4240
      %5701 = vmatpush.bf16.msra.mxu0 %v4236
      %5702 = vmatmul.bf16.gmra.mxu0 %v1119
      %v5703 = vpop.f32.mrf.mxu0
      %v5704 = vadd.f32 %v5691, %v5703
      %v5705 = vpop.f32.mrf.mxu0
      %5706 = vdwg.mxu0
      %5707 = vmatpush.bf16.msra.mxu0 0
      %5708 = vmatpush.bf16.msra.mxu0 0
      %5709 = vmatpush.bf16.msra.mxu0 0
      %5710 = vmatpush.bf16.msra.mxu0 0
      %5711 = vmatpush.bf16.msra.mxu0 %v4280
      %5712 = vmatpush.bf16.msra.mxu0 %v4276
      %5713 = vmatpush.bf16.msra.mxu0 %v4272
      %5714 = vmatpush.bf16.msra.mxu0 %v4268
      %5715 = vmatmul.bf16.gmra.mxu0 %v5068
      %v5716 = vpop.f32.mrf.mxu0
      %v5717 = vadd.f32 %v5704, %v5716
      %v5718 = vpop.f32.mrf.mxu0
      %5719 = vdwg.mxu0
      %5720 = vmatpush.bf16.msra.mxu0 %v3529
      %5721 = vmatpush.bf16.msra.mxu0 %v3525
      %5722 = vmatpush.bf16.msra.mxu0 %v3521
      %5723 = vmatpush.bf16.msra.mxu0 %v3517
      %5724 = vmatpush.bf16.msra.mxu0 %v3513
      %5725 = vmatpush.bf16.msra.mxu0 %v3509
      %5726 = vmatpush.bf16.msra.mxu0 %v3505
      %5727 = vmatpush.bf16.msra.mxu0 %v3501
      %5728 = vmatmul.bf16.gmra.mxu0 %v1092
      %v5729 = vpop.f32.mrf.mxu0
      %v5730 = vadd.f32 %v1084, %v5729
      %v5731 = vpop.f32.mrf.mxu0
      %5732 = vdwg.mxu0
      %5733 = vmatpush.bf16.msra.mxu0 %v3561
      %5734 = vmatpush.bf16.msra.mxu0 %v3557
      %5735 = vmatpush.bf16.msra.mxu0 %v3553
      %5736 = vmatpush.bf16.msra.mxu0 %v3549
      %5737 = vmatpush.bf16.msra.mxu0 %v3545
      %5738 = vmatpush.bf16.msra.mxu0 %v3541
      %5739 = vmatpush.bf16.msra.mxu0 %v3537
      %5740 = vmatpush.bf16.msra.mxu0 %v3533
      %5741 = vmatmul.bf16.gmra.mxu0 %v1093
      %v5742 = vpop.f32.mrf.mxu0
      %v5743 = vadd.f32 %v5730, %v5742
      %v5744 = vpop.f32.mrf.mxu0
      %5745 = vdwg.mxu0
      %5746 = vmatpush.bf16.msra.mxu0 %v3593
      %5747 = vmatpush.bf16.msra.mxu0 %v3589
      %5748 = vmatpush.bf16.msra.mxu0 %v3585
      %5749 = vmatpush.bf16.msra.mxu0 %v3581
      %5750 = vmatpush.bf16.msra.mxu0 %v3577
      %5751 = vmatpush.bf16.msra.mxu0 %v3573
      %5752 = vmatpush.bf16.msra.mxu0 %v3569
      %5753 = vmatpush.bf16.msra.mxu0 %v3565
      %5754 = vmatmul.bf16.gmra.mxu0 %v1094
      %v5755 = vpop.f32.mrf.mxu0
      %v5756 = vadd.f32 %v5743, %v5755
      %v5757 = vpop.f32.mrf.mxu0
      %5758 = vdwg.mxu0
      %5759 = vmatpush.bf16.msra.mxu0 %v3625
      %5760 = vmatpush.bf16.msra.mxu0 %v3621
      %5761 = vmatpush.bf16.msra.mxu0 %v3617
      %5762 = vmatpush.bf16.msra.mxu0 %v3613
      %5763 = vmatpush.bf16.msra.mxu0 %v3609
      %5764 = vmatpush.bf16.msra.mxu0 %v3605
      %5765 = vmatpush.bf16.msra.mxu0 %v3601
      %5766 = vmatpush.bf16.msra.mxu0 %v3597
      %5767 = vmatmul.bf16.gmra.mxu0 %v1095
      %v5768 = vpop.f32.mrf.mxu0
      %v5769 = vadd.f32 %v5756, %v5768
      %v5770 = vpop.f32.mrf.mxu0
      %5771 = vdwg.mxu0
      %5772 = vmatpush.bf16.msra.mxu0 %v3657
      %5773 = vmatpush.bf16.msra.mxu0 %v3653
      %5774 = vmatpush.bf16.msra.mxu0 %v3649
      %5775 = vmatpush.bf16.msra.mxu0 %v3645
      %5776 = vmatpush.bf16.msra.mxu0 %v3641
      %5777 = vmatpush.bf16.msra.mxu0 %v3637
      %5778 = vmatpush.bf16.msra.mxu0 %v3633
      %5779 = vmatpush.bf16.msra.mxu0 %v3629
      %5780 = vmatmul.bf16.gmra.mxu0 %v1096
      %v5781 = vpop.f32.mrf.mxu0
      %v5782 = vadd.f32 %v5769, %v5781
      %v5783 = vpop.f32.mrf.mxu0
      %5784 = vdwg.mxu0
      %5785 = vmatpush.bf16.msra.mxu0 %v3689
      %5786 = vmatpush.bf16.msra.mxu0 %v3685
      %5787 = vmatpush.bf16.msra.mxu0 %v3681
      %5788 = vmatpush.bf16.msra.mxu0 %v3677
      %5789 = vmatpush.bf16.msra.mxu0 %v3673
      %5790 = vmatpush.bf16.msra.mxu0 %v3669
      %5791 = vmatpush.bf16.msra.mxu0 %v3665
      %5792 = vmatpush.bf16.msra.mxu0 %v3661
      %5793 = vmatmul.bf16.gmra.mxu0 %v1097
      %v5794 = vpop.f32.mrf.mxu0
      %v5795 = vadd.f32 %v5782, %v5794
      %v5796 = vpop.f32.mrf.mxu0
      %5797 = vdwg.mxu0
      %5798 = vmatpush.bf16.msra.mxu0 %v3721
      %5799 = vmatpush.bf16.msra.mxu0 %v3717
      %5800 = vmatpush.bf16.msra.mxu0 %v3713
      %5801 = vmatpush.bf16.msra.mxu0 %v3709
      %5802 = vmatpush.bf16.msra.mxu0 %v3705
      %5803 = vmatpush.bf16.msra.mxu0 %v3701
      %5804 = vmatpush.bf16.msra.mxu0 %v3697
      %5805 = vmatpush.bf16.msra.mxu0 %v3693
      %5806 = vmatmul.bf16.gmra.mxu0 %v1098
      %v5807 = vpop.f32.mrf.mxu0
      %v5808 = vadd.f32 %v5795, %v5807
      %v5809 = vpop.f32.mrf.mxu0
      %5810 = vdwg.mxu0
      %5811 = vmatpush.bf16.msra.mxu0 %v3753
      %5812 = vmatpush.bf16.msra.mxu0 %v3749
      %5813 = vmatpush.bf16.msra.mxu0 %v3745
      %5814 = vmatpush.bf16.msra.mxu0 %v3741
      %5815 = vmatpush.bf16.msra.mxu0 %v3737
      %5816 = vmatpush.bf16.msra.mxu0 %v3733
      %5817 = vmatpush.bf16.msra.mxu0 %v3729
      %5818 = vmatpush.bf16.msra.mxu0 %v3725
      %5819 = vmatmul.bf16.gmra.mxu0 %v1099
      %v5820 = vpop.f32.mrf.mxu0
      %v5821 = vadd.f32 %v5808, %v5820
      %v5822 = vpop.f32.mrf.mxu0
      %5823 = vdwg.mxu0
      %5824 = vmatpush.bf16.msra.mxu0 %v3785
      %5825 = vmatpush.bf16.msra.mxu0 %v3781
      %5826 = vmatpush.bf16.msra.mxu0 %v3777
      %5827 = vmatpush.bf16.msra.mxu0 %v3773
      %5828 = vmatpush.bf16.msra.mxu0 %v3769
      %5829 = vmatpush.bf16.msra.mxu0 %v3765
      %5830 = vmatpush.bf16.msra.mxu0 %v3761
      %5831 = vmatpush.bf16.msra.mxu0 %v3757
      %5832 = vmatmul.bf16.gmra.mxu0 %v1102
      %v5833 = vpop.f32.mrf.mxu0
      %v5834 = vadd.f32 %v5821, %v5833
      %v5835 = vpop.f32.mrf.mxu0
      %5836 = vdwg.mxu0
      %5837 = vmatpush.bf16.msra.mxu0 %v3817
      %5838 = vmatpush.bf16.msra.mxu0 %v3813
      %5839 = vmatpush.bf16.msra.mxu0 %v3809
      %5840 = vmatpush.bf16.msra.mxu0 %v3805
      %5841 = vmatpush.bf16.msra.mxu0 %v3801
      %5842 = vmatpush.bf16.msra.mxu0 %v3797
      %5843 = vmatpush.bf16.msra.mxu0 %v3793
      %5844 = vmatpush.bf16.msra.mxu0 %v3789
      %5845 = vmatmul.bf16.gmra.mxu0 %v1103
      %v5846 = vpop.f32.mrf.mxu0
      %v5847 = vadd.f32 %v5834, %v5846
      %v5848 = vpop.f32.mrf.mxu0
      %5849 = vdwg.mxu0
      %5850 = vmatpush.bf16.msra.mxu0 %v3849
      %5851 = vmatpush.bf16.msra.mxu0 %v3845
      %5852 = vmatpush.bf16.msra.mxu0 %v3841
      %5853 = vmatpush.bf16.msra.mxu0 %v3837
      %5854 = vmatpush.bf16.msra.mxu0 %v3833
      %5855 = vmatpush.bf16.msra.mxu0 %v3829
      %5856 = vmatpush.bf16.msra.mxu0 %v3825
      %5857 = vmatpush.bf16.msra.mxu0 %v3821
      %5858 = vmatmul.bf16.gmra.mxu0 %v1104
      %v5859 = vpop.f32.mrf.mxu0
      %v5860 = vadd.f32 %v5847, %v5859
      %v5861 = vpop.f32.mrf.mxu0
      %5862 = vdwg.mxu0
      %5863 = vmatpush.bf16.msra.mxu0 %v3881
      %5864 = vmatpush.bf16.msra.mxu0 %v3877
      %5865 = vmatpush.bf16.msra.mxu0 %v3873
      %5866 = vmatpush.bf16.msra.mxu0 %v3869
      %5867 = vmatpush.bf16.msra.mxu0 %v3865
      %5868 = vmatpush.bf16.msra.mxu0 %v3861
      %5869 = vmatpush.bf16.msra.mxu0 %v3857
      %5870 = vmatpush.bf16.msra.mxu0 %v3853
      %5871 = vmatmul.bf16.gmra.mxu0 %v1105
      %v5872 = vpop.f32.mrf.mxu0
      %v5873 = vadd.f32 %v5860, %v5872
      %v5874 = vpop.f32.mrf.mxu0
      %5875 = vdwg.mxu0
      %5876 = vmatpush.bf16.msra.mxu0 %v3913
      %5877 = vmatpush.bf16.msra.mxu0 %v3909
      %5878 = vmatpush.bf16.msra.mxu0 %v3905
      %5879 = vmatpush.bf16.msra.mxu0 %v3901
      %5880 = vmatpush.bf16.msra.mxu0 %v3897
      %5881 = vmatpush.bf16.msra.mxu0 %v3893
      %5882 = vmatpush.bf16.msra.mxu0 %v3889
      %5883 = vmatpush.bf16.msra.mxu0 %v3885
      %5884 = vmatmul.bf16.gmra.mxu0 %v1106
      %v5885 = vpop.f32.mrf.mxu0
      %v5886 = vadd.f32 %v5873, %v5885
      %v5887 = vpop.f32.mrf.mxu0
      %5888 = vdwg.mxu0
      %5889 = vmatpush.bf16.msra.mxu0 %v3945
      %5890 = vmatpush.bf16.msra.mxu0 %v3941
      %5891 = vmatpush.bf16.msra.mxu0 %v3937
      %5892 = vmatpush.bf16.msra.mxu0 %v3933
      %5893 = vmatpush.bf16.msra.mxu0 %v3929
      %5894 = vmatpush.bf16.msra.mxu0 %v3925
      %5895 = vmatpush.bf16.msra.mxu0 %v3921
      %5896 = vmatpush.bf16.msra.mxu0 %v3917
      %5897 = vmatmul.bf16.gmra.mxu0 %v1107
      %v5898 = vpop.f32.mrf.mxu0
      %v5899 = vadd.f32 %v5886, %v5898
      %v5900 = vpop.f32.mrf.mxu0
      %5901 = vdwg.mxu0
      %5902 = vmatpush.bf16.msra.mxu0 %v3977
      %5903 = vmatpush.bf16.msra.mxu0 %v3973
      %5904 = vmatpush.bf16.msra.mxu0 %v3969
      %5905 = vmatpush.bf16.msra.mxu0 %v3965
      %5906 = vmatpush.bf16.msra.mxu0 %v3961
      %5907 = vmatpush.bf16.msra.mxu0 %v3957
      %5908 = vmatpush.bf16.msra.mxu0 %v3953
      %5909 = vmatpush.bf16.msra.mxu0 %v3949
      %5910 = vmatmul.bf16.gmra.mxu0 %v1108
      %v5911 = vpop.f32.mrf.mxu0
      %v5912 = vadd.f32 %v5899, %v5911
      %v5913 = vpop.f32.mrf.mxu0
      %5914 = vdwg.mxu0
      %5915 = vmatpush.bf16.msra.mxu0 %v4009
      %5916 = vmatpush.bf16.msra.mxu0 %v4005
      %5917 = vmatpush.bf16.msra.mxu0 %v4001
      %5918 = vmatpush.bf16.msra.mxu0 %v3997
      %5919 = vmatpush.bf16.msra.mxu0 %v3993
      %5920 = vmatpush.bf16.msra.mxu0 %v3989
      %5921 = vmatpush.bf16.msra.mxu0 %v3985
      %5922 = vmatpush.bf16.msra.mxu0 %v3981
      %5923 = vmatmul.bf16.gmra.mxu0 %v1109
      %v5924 = vpop.f32.mrf.mxu0
      %v5925 = vadd.f32 %v5912, %v5924
      %v5926 = vpop.f32.mrf.mxu0
      %5927 = vdwg.mxu0
      %5928 = vmatpush.bf16.msra.mxu0 %v4041
      %5929 = vmatpush.bf16.msra.mxu0 %v4037
      %5930 = vmatpush.bf16.msra.mxu0 %v4033
      %5931 = vmatpush.bf16.msra.mxu0 %v4029
      %5932 = vmatpush.bf16.msra.mxu0 %v4025
      %5933 = vmatpush.bf16.msra.mxu0 %v4021
      %5934 = vmatpush.bf16.msra.mxu0 %v4017
      %5935 = vmatpush.bf16.msra.mxu0 %v4013
      %5936 = vmatmul.bf16.gmra.mxu0 %v1112
      %v5937 = vpop.f32.mrf.mxu0
      %v5938 = vadd.f32 %v5925, %v5937
      %v5939 = vpop.f32.mrf.mxu0
      %5940 = vdwg.mxu0
      %5941 = vmatpush.bf16.msra.mxu0 %v4073
      %5942 = vmatpush.bf16.msra.mxu0 %v4069
      %5943 = vmatpush.bf16.msra.mxu0 %v4065
      %5944 = vmatpush.bf16.msra.mxu0 %v4061
      %5945 = vmatpush.bf16.msra.mxu0 %v4057
      %5946 = vmatpush.bf16.msra.mxu0 %v4053
      %5947 = vmatpush.bf16.msra.mxu0 %v4049
      %5948 = vmatpush.bf16.msra.mxu0 %v4045
      %5949 = vmatmul.bf16.gmra.mxu0 %v1113
      %v5950 = vpop.f32.mrf.mxu0
      %v5951 = vadd.f32 %v5938, %v5950
      %v5952 = vpop.f32.mrf.mxu0
      %5953 = vdwg.mxu0
      %5954 = vmatpush.bf16.msra.mxu0 %v4105
      %5955 = vmatpush.bf16.msra.mxu0 %v4101
      %5956 = vmatpush.bf16.msra.mxu0 %v4097
      %5957 = vmatpush.bf16.msra.mxu0 %v4093
      %5958 = vmatpush.bf16.msra.mxu0 %v4089
      %5959 = vmatpush.bf16.msra.mxu0 %v4085
      %5960 = vmatpush.bf16.msra.mxu0 %v4081
      %5961 = vmatpush.bf16.msra.mxu0 %v4077
      %5962 = vmatmul.bf16.gmra.mxu0 %v1114
      %v5963 = vpop.f32.mrf.mxu0
      %v5964 = vadd.f32 %v5951, %v5963
      %v5965 = vpop.f32.mrf.mxu0
      %5966 = vdwg.mxu0
      %5967 = vmatpush.bf16.msra.mxu0 %v4137
      %5968 = vmatpush.bf16.msra.mxu0 %v4133
      %5969 = vmatpush.bf16.msra.mxu0 %v4129
      %5970 = vmatpush.bf16.msra.mxu0 %v4125
      %5971 = vmatpush.bf16.msra.mxu0 %v4121
      %5972 = vmatpush.bf16.msra.mxu0 %v4117
      %5973 = vmatpush.bf16.msra.mxu0 %v4113
      %5974 = vmatpush.bf16.msra.mxu0 %v4109
      %5975 = vmatmul.bf16.gmra.mxu0 %v1115
      %v5976 = vpop.f32.mrf.mxu0
      %v5977 = vadd.f32 %v5964, %v5976
      %v5978 = vpop.f32.mrf.mxu0
      %5979 = vdwg.mxu0
      %5980 = vmatpush.bf16.msra.mxu0 %v4169
      %5981 = vmatpush.bf16.msra.mxu0 %v4165
      %5982 = vmatpush.bf16.msra.mxu0 %v4161
      %5983 = vmatpush.bf16.msra.mxu0 %v4157
      %5984 = vmatpush.bf16.msra.mxu0 %v4153
      %5985 = vmatpush.bf16.msra.mxu0 %v4149
      %5986 = vmatpush.bf16.msra.mxu0 %v4145
      %5987 = vmatpush.bf16.msra.mxu0 %v4141
      %5988 = vmatmul.bf16.gmra.mxu0 %v1116
      %v5989 = vpop.f32.mrf.mxu0
      %v5990 = vadd.f32 %v5977, %v5989
      %v5991 = vpop.f32.mrf.mxu0
      %5992 = vdwg.mxu0
      %5993 = vmatpush.bf16.msra.mxu0 %v4201
      %5994 = vmatpush.bf16.msra.mxu0 %v4197
      %5995 = vmatpush.bf16.msra.mxu0 %v4193
      %5996 = vmatpush.bf16.msra.mxu0 %v4189
      %5997 = vmatpush.bf16.msra.mxu0 %v4185
      %5998 = vmatpush.bf16.msra.mxu0 %v4181
      %5999 = vmatpush.bf16.msra.mxu0 %v4177
      %6000 = vmatpush.bf16.msra.mxu0 %v4173
      %6001 = vmatmul.bf16.gmra.mxu0 %v1117
      %v6002 = vpop.f32.mrf.mxu0
      %v6003 = vadd.f32 %v5990, %v6002
      %v6004 = vpop.f32.mrf.mxu0
      %6005 = vdwg.mxu0
      %6006 = vmatpush.bf16.msra.mxu0 %v4233
      %6007 = vmatpush.bf16.msra.mxu0 %v4229
      %6008 = vmatpush.bf16.msra.mxu0 %v4225
      %6009 = vmatpush.bf16.msra.mxu0 %v4221
      %6010 = vmatpush.bf16.msra.mxu0 %v4217
      %6011 = vmatpush.bf16.msra.mxu0 %v4213
      %6012 = vmatpush.bf16.msra.mxu0 %v4209
      %6013 = vmatpush.bf16.msra.mxu0 %v4205
      %6014 = vmatmul.bf16.gmra.mxu0 %v1118
      %v6015 = vpop.f32.mrf.mxu0
      %v6016 = vadd.f32 %v6003, %v6015
      %v6017 = vpop.f32.mrf.mxu0
      %6018 = vdwg.mxu0
      %6019 = vmatpush.bf16.msra.mxu0 %v4265
      %6020 = vmatpush.bf16.msra.mxu0 %v4261
      %6021 = vmatpush.bf16.msra.mxu0 %v4257
      %6022 = vmatpush.bf16.msra.mxu0 %v4253
      %6023 = vmatpush.bf16.msra.mxu0 %v4249
      %6024 = vmatpush.bf16.msra.mxu0 %v4245
      %6025 = vmatpush.bf16.msra.mxu0 %v4241
      %6026 = vmatpush.bf16.msra.mxu0 %v4237
      %6027 = vmatmul.bf16.gmra.mxu0 %v1119
      %v6028 = vpop.f32.mrf.mxu0
      %v6029 = vadd.f32 %v6016, %v6028
      %v6030 = vpop.f32.mrf.mxu0
      %6031 = vdwg.mxu0
      %6032 = vmatpush.bf16.msra.mxu0 0
      %6033 = vmatpush.bf16.msra.mxu0 0
      %6034 = vmatpush.bf16.msra.mxu0 0
      %6035 = vmatpush.bf16.msra.mxu0 0
      %6036 = vmatpush.bf16.msra.mxu0 %v4281
      %6037 = vmatpush.bf16.msra.mxu0 %v4277
      %6038 = vmatpush.bf16.msra.mxu0 %v4273
      %6039 = vmatpush.bf16.msra.mxu0 %v4269
      %6040 = vmatmul.bf16.gmra.mxu0 %v5068
      %v6041 = vpop.f32.mrf.mxu0
      %v6042 = vadd.f32 %v6029, %v6041
      %v6043 = vpop.f32.mrf.mxu0
      %6044 = vdwg.mxu0
      %6045 = vmatpush.bf16.msra.mxu0 %v3530
      %6046 = vmatpush.bf16.msra.mxu0 %v3526
      %6047 = vmatpush.bf16.msra.mxu0 %v3522
      %6048 = vmatpush.bf16.msra.mxu0 %v3518
      %6049 = vmatpush.bf16.msra.mxu0 %v3514
      %6050 = vmatpush.bf16.msra.mxu0 %v3510
      %6051 = vmatpush.bf16.msra.mxu0 %v3506
      %6052 = vmatpush.bf16.msra.mxu0 %v3502
      %6053 = vmatmul.bf16.gmra.mxu0 %v1092
      %v6054 = vpop.f32.mrf.mxu0
      %v6055 = vadd.f32 %v1085, %v6054
      %v6056 = vpop.f32.mrf.mxu0
      %6057 = vdwg.mxu0
      %6058 = vmatpush.bf16.msra.mxu0 %v3562
      %6059 = vmatpush.bf16.msra.mxu0 %v3558
      %6060 = vmatpush.bf16.msra.mxu0 %v3554
      %6061 = vmatpush.bf16.msra.mxu0 %v3550
      %6062 = vmatpush.bf16.msra.mxu0 %v3546
      %6063 = vmatpush.bf16.msra.mxu0 %v3542
      %6064 = vmatpush.bf16.msra.mxu0 %v3538
      %6065 = vmatpush.bf16.msra.mxu0 %v3534
      %6066 = vmatmul.bf16.gmra.mxu0 %v1093
      %v6067 = vpop.f32.mrf.mxu0
      %v6068 = vadd.f32 %v6055, %v6067
      %v6069 = vpop.f32.mrf.mxu0
      %6070 = vdwg.mxu0
      %6071 = vmatpush.bf16.msra.mxu0 %v3594
      %6072 = vmatpush.bf16.msra.mxu0 %v3590
      %6073 = vmatpush.bf16.msra.mxu0 %v3586
      %6074 = vmatpush.bf16.msra.mxu0 %v3582
      %6075 = vmatpush.bf16.msra.mxu0 %v3578
      %6076 = vmatpush.bf16.msra.mxu0 %v3574
      %6077 = vmatpush.bf16.msra.mxu0 %v3570
      %6078 = vmatpush.bf16.msra.mxu0 %v3566
      %6079 = vmatmul.bf16.gmra.mxu0 %v1094
      %v6080 = vpop.f32.mrf.mxu0
      %v6081 = vadd.f32 %v6068, %v6080
      %v6082 = vpop.f32.mrf.mxu0
      %6083 = vdwg.mxu0
      %6084 = vmatpush.bf16.msra.mxu0 %v3626
      %6085 = vmatpush.bf16.msra.mxu0 %v3622
      %6086 = vmatpush.bf16.msra.mxu0 %v3618
      %6087 = vmatpush.bf16.msra.mxu0 %v3614
      %6088 = vmatpush.bf16.msra.mxu0 %v3610
      %6089 = vmatpush.bf16.msra.mxu0 %v3606
      %6090 = vmatpush.bf16.msra.mxu0 %v3602
      %6091 = vmatpush.bf16.msra.mxu0 %v3598
      %6092 = vmatmul.bf16.gmra.mxu0 %v1095
      %v6093 = vpop.f32.mrf.mxu0
      %v6094 = vadd.f32 %v6081, %v6093
      %v6095 = vpop.f32.mrf.mxu0
      %6096 = vdwg.mxu0
      %6097 = vmatpush.bf16.msra.mxu0 %v3658
      %6098 = vmatpush.bf16.msra.mxu0 %v3654
      %6099 = vmatpush.bf16.msra.mxu0 %v3650
      %6100 = vmatpush.bf16.msra.mxu0 %v3646
      %6101 = vmatpush.bf16.msra.mxu0 %v3642
      %6102 = vmatpush.bf16.msra.mxu0 %v3638
      %6103 = vmatpush.bf16.msra.mxu0 %v3634
      %6104 = vmatpush.bf16.msra.mxu0 %v3630
      %6105 = vmatmul.bf16.gmra.mxu0 %v1096
      %v6106 = vpop.f32.mrf.mxu0
      %v6107 = vadd.f32 %v6094, %v6106
      %v6108 = vpop.f32.mrf.mxu0
      %6109 = vdwg.mxu0
      %6110 = vmatpush.bf16.msra.mxu0 %v3690
      %6111 = vmatpush.bf16.msra.mxu0 %v3686
      %6112 = vmatpush.bf16.msra.mxu0 %v3682
      %6113 = vmatpush.bf16.msra.mxu0 %v3678
      %6114 = vmatpush.bf16.msra.mxu0 %v3674
      %6115 = vmatpush.bf16.msra.mxu0 %v3670
      %6116 = vmatpush.bf16.msra.mxu0 %v3666
      %6117 = vmatpush.bf16.msra.mxu0 %v3662
      %6118 = vmatmul.bf16.gmra.mxu0 %v1097
      %v6119 = vpop.f32.mrf.mxu0
      %v6120 = vadd.f32 %v6107, %v6119
      %v6121 = vpop.f32.mrf.mxu0
      %6122 = vdwg.mxu0
      %6123 = vmatpush.bf16.msra.mxu0 %v3722
      %6124 = vmatpush.bf16.msra.mxu0 %v3718
      %6125 = vmatpush.bf16.msra.mxu0 %v3714
      %6126 = vmatpush.bf16.msra.mxu0 %v3710
      %6127 = vmatpush.bf16.msra.mxu0 %v3706
      %6128 = vmatpush.bf16.msra.mxu0 %v3702
      %6129 = vmatpush.bf16.msra.mxu0 %v3698
      %6130 = vmatpush.bf16.msra.mxu0 %v3694
      %6131 = vmatmul.bf16.gmra.mxu0 %v1098
      %v6132 = vpop.f32.mrf.mxu0
      %v6133 = vadd.f32 %v6120, %v6132
      %v6134 = vpop.f32.mrf.mxu0
      %6135 = vdwg.mxu0
      %6136 = vmatpush.bf16.msra.mxu0 %v3754
      %6137 = vmatpush.bf16.msra.mxu0 %v3750
      %6138 = vmatpush.bf16.msra.mxu0 %v3746
      %6139 = vmatpush.bf16.msra.mxu0 %v3742
      %6140 = vmatpush.bf16.msra.mxu0 %v3738
      %6141 = vmatpush.bf16.msra.mxu0 %v3734
      %6142 = vmatpush.bf16.msra.mxu0 %v3730
      %6143 = vmatpush.bf16.msra.mxu0 %v3726
      %6144 = vmatmul.bf16.gmra.mxu0 %v1099
      %v6145 = vpop.f32.mrf.mxu0
      %v6146 = vadd.f32 %v6133, %v6145
      %v6147 = vpop.f32.mrf.mxu0
      %6148 = vdwg.mxu0
      %6149 = vmatpush.bf16.msra.mxu0 %v3786
      %6150 = vmatpush.bf16.msra.mxu0 %v3782
      %6151 = vmatpush.bf16.msra.mxu0 %v3778
      %6152 = vmatpush.bf16.msra.mxu0 %v3774
      %6153 = vmatpush.bf16.msra.mxu0 %v3770
      %6154 = vmatpush.bf16.msra.mxu0 %v3766
      %6155 = vmatpush.bf16.msra.mxu0 %v3762
      %6156 = vmatpush.bf16.msra.mxu0 %v3758
      %6157 = vmatmul.bf16.gmra.mxu0 %v1102
      %v6158 = vpop.f32.mrf.mxu0
      %v6159 = vadd.f32 %v6146, %v6158
      %v6160 = vpop.f32.mrf.mxu0
      %6161 = vdwg.mxu0
      %6162 = vmatpush.bf16.msra.mxu0 %v3818
      %6163 = vmatpush.bf16.msra.mxu0 %v3814
      %6164 = vmatpush.bf16.msra.mxu0 %v3810
      %6165 = vmatpush.bf16.msra.mxu0 %v3806
      %6166 = vmatpush.bf16.msra.mxu0 %v3802
      %6167 = vmatpush.bf16.msra.mxu0 %v3798
      %6168 = vmatpush.bf16.msra.mxu0 %v3794
      %6169 = vmatpush.bf16.msra.mxu0 %v3790
      %6170 = vmatmul.bf16.gmra.mxu0 %v1103
      %v6171 = vpop.f32.mrf.mxu0
      %v6172 = vadd.f32 %v6159, %v6171
      %v6173 = vpop.f32.mrf.mxu0
      %6174 = vdwg.mxu0
      %6175 = vmatpush.bf16.msra.mxu0 %v3850
      %6176 = vmatpush.bf16.msra.mxu0 %v3846
      %6177 = vmatpush.bf16.msra.mxu0 %v3842
      %6178 = vmatpush.bf16.msra.mxu0 %v3838
      %6179 = vmatpush.bf16.msra.mxu0 %v3834
      %6180 = vmatpush.bf16.msra.mxu0 %v3830
      %6181 = vmatpush.bf16.msra.mxu0 %v3826
      %6182 = vmatpush.bf16.msra.mxu0 %v3822
      %6183 = vmatmul.bf16.gmra.mxu0 %v1104
      %v6184 = vpop.f32.mrf.mxu0
      %v6185 = vadd.f32 %v6172, %v6184
      %v6186 = vpop.f32.mrf.mxu0
      %6187 = vdwg.mxu0
      %6188 = vmatpush.bf16.msra.mxu0 %v3882
      %6189 = vmatpush.bf16.msra.mxu0 %v3878
      %6190 = vmatpush.bf16.msra.mxu0 %v3874
      %6191 = vmatpush.bf16.msra.mxu0 %v3870
      %6192 = vmatpush.bf16.msra.mxu0 %v3866
      %6193 = vmatpush.bf16.msra.mxu0 %v3862
      %6194 = vmatpush.bf16.msra.mxu0 %v3858
      %6195 = vmatpush.bf16.msra.mxu0 %v3854
      %6196 = vmatmul.bf16.gmra.mxu0 %v1105
      %v6197 = vpop.f32.mrf.mxu0
      %v6198 = vadd.f32 %v6185, %v6197
      %v6199 = vpop.f32.mrf.mxu0
      %6200 = vdwg.mxu0
      %6201 = vmatpush.bf16.msra.mxu0 %v3914
      %6202 = vmatpush.bf16.msra.mxu0 %v3910
      %6203 = vmatpush.bf16.msra.mxu0 %v3906
      %6204 = vmatpush.bf16.msra.mxu0 %v3902
      %6205 = vmatpush.bf16.msra.mxu0 %v3898
      %6206 = vmatpush.bf16.msra.mxu0 %v3894
      %6207 = vmatpush.bf16.msra.mxu0 %v3890
      %6208 = vmatpush.bf16.msra.mxu0 %v3886
      %6209 = vmatmul.bf16.gmra.mxu0 %v1106
      %v6210 = vpop.f32.mrf.mxu0
      %v6211 = vadd.f32 %v6198, %v6210
      %v6212 = vpop.f32.mrf.mxu0
      %6213 = vdwg.mxu0
      %6214 = vmatpush.bf16.msra.mxu0 %v3946
      %6215 = vmatpush.bf16.msra.mxu0 %v3942
      %6216 = vmatpush.bf16.msra.mxu0 %v3938
      %6217 = vmatpush.bf16.msra.mxu0 %v3934
      %6218 = vmatpush.bf16.msra.mxu0 %v3930
      %6219 = vmatpush.bf16.msra.mxu0 %v3926
      %6220 = vmatpush.bf16.msra.mxu0 %v3922
      %6221 = vmatpush.bf16.msra.mxu0 %v3918
      %6222 = vmatmul.bf16.gmra.mxu0 %v1107
      %v6223 = vpop.f32.mrf.mxu0
      %v6224 = vadd.f32 %v6211, %v6223
      %v6225 = vpop.f32.mrf.mxu0
      %6226 = vdwg.mxu0
      %6227 = vmatpush.bf16.msra.mxu0 %v3978
      %6228 = vmatpush.bf16.msra.mxu0 %v3974
      %6229 = vmatpush.bf16.msra.mxu0 %v3970
      %6230 = vmatpush.bf16.msra.mxu0 %v3966
      %6231 = vmatpush.bf16.msra.mxu0 %v3962
      %6232 = vmatpush.bf16.msra.mxu0 %v3958
      %6233 = vmatpush.bf16.msra.mxu0 %v3954
      %6234 = vmatpush.bf16.msra.mxu0 %v3950
      %6235 = vmatmul.bf16.gmra.mxu0 %v1108
      %v6236 = vpop.f32.mrf.mxu0
      %v6237 = vadd.f32 %v6224, %v6236
      %v6238 = vpop.f32.mrf.mxu0
      %6239 = vdwg.mxu0
      %6240 = vmatpush.bf16.msra.mxu0 %v4010
      %6241 = vmatpush.bf16.msra.mxu0 %v4006
      %6242 = vmatpush.bf16.msra.mxu0 %v4002
      %6243 = vmatpush.bf16.msra.mxu0 %v3998
      %6244 = vmatpush.bf16.msra.mxu0 %v3994
      %6245 = vmatpush.bf16.msra.mxu0 %v3990
      %6246 = vmatpush.bf16.msra.mxu0 %v3986
      %6247 = vmatpush.bf16.msra.mxu0 %v3982
      %6248 = vmatmul.bf16.gmra.mxu0 %v1109
      %v6249 = vpop.f32.mrf.mxu0
      %v6250 = vadd.f32 %v6237, %v6249
      %v6251 = vpop.f32.mrf.mxu0
      %6252 = vdwg.mxu0
      %6253 = vmatpush.bf16.msra.mxu0 %v4042
      %6254 = vmatpush.bf16.msra.mxu0 %v4038
      %6255 = vmatpush.bf16.msra.mxu0 %v4034
      %6256 = vmatpush.bf16.msra.mxu0 %v4030
      %6257 = vmatpush.bf16.msra.mxu0 %v4026
      %6258 = vmatpush.bf16.msra.mxu0 %v4022
      %6259 = vmatpush.bf16.msra.mxu0 %v4018
      %6260 = vmatpush.bf16.msra.mxu0 %v4014
      %6261 = vmatmul.bf16.gmra.mxu0 %v1112
      %v6262 = vpop.f32.mrf.mxu0
      %v6263 = vadd.f32 %v6250, %v6262
      %v6264 = vpop.f32.mrf.mxu0
      %6265 = vdwg.mxu0
      %6266 = vmatpush.bf16.msra.mxu0 %v4074
      %6267 = vmatpush.bf16.msra.mxu0 %v4070
      %6268 = vmatpush.bf16.msra.mxu0 %v4066
      %6269 = vmatpush.bf16.msra.mxu0 %v4062
      %6270 = vmatpush.bf16.msra.mxu0 %v4058
      %6271 = vmatpush.bf16.msra.mxu0 %v4054
      %6272 = vmatpush.bf16.msra.mxu0 %v4050
      %6273 = vmatpush.bf16.msra.mxu0 %v4046
      %6274 = vmatmul.bf16.gmra.mxu0 %v1113
      %v6275 = vpop.f32.mrf.mxu0
      %v6276 = vadd.f32 %v6263, %v6275
      %v6277 = vpop.f32.mrf.mxu0
      %6278 = vdwg.mxu0
      %6279 = vmatpush.bf16.msra.mxu0 %v4106
      %6280 = vmatpush.bf16.msra.mxu0 %v4102
      %6281 = vmatpush.bf16.msra.mxu0 %v4098
      %6282 = vmatpush.bf16.msra.mxu0 %v4094
      %6283 = vmatpush.bf16.msra.mxu0 %v4090
      %6284 = vmatpush.bf16.msra.mxu0 %v4086
      %6285 = vmatpush.bf16.msra.mxu0 %v4082
      %6286 = vmatpush.bf16.msra.mxu0 %v4078
      %6287 = vmatmul.bf16.gmra.mxu0 %v1114
      %v6288 = vpop.f32.mrf.mxu0
      %v6289 = vadd.f32 %v6276, %v6288
      %v6290 = vpop.f32.mrf.mxu0
      %6291 = vdwg.mxu0
      %6292 = vmatpush.bf16.msra.mxu0 %v4138
      %6293 = vmatpush.bf16.msra.mxu0 %v4134
      %6294 = vmatpush.bf16.msra.mxu0 %v4130
      %6295 = vmatpush.bf16.msra.mxu0 %v4126
      %6296 = vmatpush.bf16.msra.mxu0 %v4122
      %6297 = vmatpush.bf16.msra.mxu0 %v4118
      %6298 = vmatpush.bf16.msra.mxu0 %v4114
      %6299 = vmatpush.bf16.msra.mxu0 %v4110
      %6300 = vmatmul.bf16.gmra.mxu0 %v1115
      %v6301 = vpop.f32.mrf.mxu0
      %v6302 = vadd.f32 %v6289, %v6301
      %v6303 = vpop.f32.mrf.mxu0
      %6304 = vdwg.mxu0
      %6305 = vmatpush.bf16.msra.mxu0 %v4170
      %6306 = vmatpush.bf16.msra.mxu0 %v4166
      %6307 = vmatpush.bf16.msra.mxu0 %v4162
      %6308 = vmatpush.bf16.msra.mxu0 %v4158
      %6309 = vmatpush.bf16.msra.mxu0 %v4154
      %6310 = vmatpush.bf16.msra.mxu0 %v4150
      %6311 = vmatpush.bf16.msra.mxu0 %v4146
      %6312 = vmatpush.bf16.msra.mxu0 %v4142
      %6313 = vmatmul.bf16.gmra.mxu0 %v1116
      %v6314 = vpop.f32.mrf.mxu0
      %v6315 = vadd.f32 %v6302, %v6314
      %v6316 = vpop.f32.mrf.mxu0
      %6317 = vdwg.mxu0
      %6318 = vmatpush.bf16.msra.mxu0 %v4202
      %6319 = vmatpush.bf16.msra.mxu0 %v4198
      %6320 = vmatpush.bf16.msra.mxu0 %v4194
      %6321 = vmatpush.bf16.msra.mxu0 %v4190
      %6322 = vmatpush.bf16.msra.mxu0 %v4186
      %6323 = vmatpush.bf16.msra.mxu0 %v4182
      %6324 = vmatpush.bf16.msra.mxu0 %v4178
      %6325 = vmatpush.bf16.msra.mxu0 %v4174
      %6326 = vmatmul.bf16.gmra.mxu0 %v1117
      %v6327 = vpop.f32.mrf.mxu0
      %v6328 = vadd.f32 %v6315, %v6327
      %v6329 = vpop.f32.mrf.mxu0
      %6330 = vdwg.mxu0
      %6331 = vmatpush.bf16.msra.mxu0 %v4234
      %6332 = vmatpush.bf16.msra.mxu0 %v4230
      %6333 = vmatpush.bf16.msra.mxu0 %v4226
      %6334 = vmatpush.bf16.msra.mxu0 %v4222
      %6335 = vmatpush.bf16.msra.mxu0 %v4218
      %6336 = vmatpush.bf16.msra.mxu0 %v4214
      %6337 = vmatpush.bf16.msra.mxu0 %v4210
      %6338 = vmatpush.bf16.msra.mxu0 %v4206
      %6339 = vmatmul.bf16.gmra.mxu0 %v1118
      %v6340 = vpop.f32.mrf.mxu0
      %v6341 = vadd.f32 %v6328, %v6340
      %v6342 = vpop.f32.mrf.mxu0
      %6343 = vdwg.mxu0
      %6344 = vmatpush.bf16.msra.mxu0 %v4266
      %6345 = vmatpush.bf16.msra.mxu0 %v4262
      %6346 = vmatpush.bf16.msra.mxu0 %v4258
      %6347 = vmatpush.bf16.msra.mxu0 %v4254
      %6348 = vmatpush.bf16.msra.mxu0 %v4250
      %6349 = vmatpush.bf16.msra.mxu0 %v4246
      %6350 = vmatpush.bf16.msra.mxu0 %v4242
      %6351 = vmatpush.bf16.msra.mxu0 %v4238
      %6352 = vmatmul.bf16.gmra.mxu0 %v1119
      %v6353 = vpop.f32.mrf.mxu0
      %v6354 = vadd.f32 %v6341, %v6353
      %v6355 = vpop.f32.mrf.mxu0
      %6356 = vdwg.mxu0
      %6357 = vmatpush.bf16.msra.mxu0 0
      %6358 = vmatpush.bf16.msra.mxu0 0
      %6359 = vmatpush.bf16.msra.mxu0 0
      %6360 = vmatpush.bf16.msra.mxu0 0
      %6361 = vmatpush.bf16.msra.mxu0 %v4282
      %6362 = vmatpush.bf16.msra.mxu0 %v4278
      %6363 = vmatpush.bf16.msra.mxu0 %v4274
      %6364 = vmatpush.bf16.msra.mxu0 %v4270
      %6365 = vmatmul.bf16.gmra.mxu0 %v5068
      %v6366 = vpop.f32.mrf.mxu0
      %v6367 = vadd.f32 %v6354, %v6366
      %v6368 = vpop.f32.mrf.mxu0
      %6369 = vdwg.mxu0
      %v6370 = vmax.f32 %v5392, 0.0
      %v6371 = vmax.f32 %v5717, 0.0
      %v6372 = vmax.f32 %v6042, 0.0
      %v6373 = vmax.f32 %v6367, 0.0
      %v6374 = vpack.c.bf16 %v6370, %v6370
      %v6375 = vpack.c.bf16 %v6371, %v6371
      %v6376 = vpack.c.bf16 %v6372, %v6372
      %v6377 = vpack.c.bf16 %v6373, %v6373
      %v6378 = vld [vmem:[%s283] sm:$0xf]
      %v6379 = vld [vmem:[%s283 + $0x4] sm:$0xf]
      %v6380 = vld [vmem:[%s283 + $0x8] sm:$0xf]
      %v6381 = vld [vmem:[%s283 + $0xc] sm:$0xf]
      %v6382 = vld [vmem:[%s283 + $0x10] sm:$0xf]
      %v6383 = vld [vmem:[%s283 + $0x14] sm:$0xf]
      %v6384 = vld [vmem:[%s283 + $0x18] sm:$0xf]
      %v6385 = vld [vmem:[%s283 + $0x1c] sm:$0xf]
      %v6386 = vld [vmem:[%s283 + $0x20] sm:$0xf]
      %v6387 = vld [vmem:[%s283 + $0x24] sm:$0xf]
      %v6388 = vld [vmem:[%s283 + $0x28] sm:$0xf]
      %v6389 = vld [vmem:[%s283 + $0x2c] sm:$0xf]
      %v6390 = vld [vmem:[%s283 + $0x30] sm:$0xf]
      %v6391 = vld [vmem:[%s283 + $0x34] sm:$0xf]
      %v6392 = vld [vmem:[%s283 + $0x38] sm:$0xf]
      %v6393 = vld [vmem:[%s283 + $0x3c] sm:$0xf]
      %v6394 = vld [vmem:[%s283 + $0x40] sm:$0xf]
      %v6395 = vld [vmem:[%s283 + $0x44] sm:$0xf]
      %v6396 = vld [vmem:[%s283 + $0x48] sm:$0xf]
      %v6397 = vld [vmem:[%s283 + $0x4c] sm:$0xf]
      %v6398 = vld [vmem:[%s283 + $0x50] sm:$0xf]
      %v6399 = vld [vmem:[%s283 + $0x54] sm:$0xf]
      %v6400 = vld [vmem:[%s283 + $0x58] sm:$0xf]
      %v6401 = vld [vmem:[%s283 + $0x5c] sm:$0xf]
      %v6402 = vld [vmem:[%s283 + $0x60] sm:$0xf]
      %v6403 = vld [vmem:[%s283 + $0x64] sm:$0xf]
      %v6404 = vld [vmem:[%s283 + $0x68] sm:$0xf]
      %v6405 = vld [vmem:[%s283 + $0x6c] sm:$0xf]
      %v6406 = vld [vmem:[%s283 + $0x70] sm:$0xf]
      %v6407 = vld [vmem:[%s283 + $0x74] sm:$0xf]
      %v6408 = vld [vmem:[%s283 + $0x78] sm:$0xf]
      %v6409 = vld [vmem:[%s283 + $0x7c] sm:$0xf]
      %v6410 = vld [vmem:[%s283 + $0x80] sm:$0xf]
      %v6411 = vld [vmem:[%s283 + $0x84] sm:$0xf]
      %v6412 = vld [vmem:[%s283 + $0x88] sm:$0xf]
      %v6413 = vld [vmem:[%s283 + $0x8c] sm:$0xf]
      %v6414 = vld [vmem:[%s283 + $0x90] sm:$0xf]
      %v6415 = vld [vmem:[%s283 + $0x94] sm:$0xf]
      %v6416 = vld [vmem:[%s283 + $0x98] sm:$0xf]
      %v6417 = vld [vmem:[%s283 + $0x9c] sm:$0xf]
      %v6418 = vld [vmem:[%s283 + $0xa0] sm:$0xf]
      %v6419 = vld [vmem:[%s283 + $0xa4] sm:$0xf]
      %v6420 = vld [vmem:[%s283 + $0xa8] sm:$0xf]
      %v6421 = vld [vmem:[%s283 + $0xac] sm:$0xf]
      %v6422 = vld [vmem:[%s283 + $0xb0] sm:$0xf]
      %v6423 = vld [vmem:[%s283 + $0xb4] sm:$0xf]
      %v6424 = vld [vmem:[%s283 + $0xb8] sm:$0xf]
      %v6425 = vld [vmem:[%s283 + $0xbc] sm:$0xf]
      %v6426 = vld [vmem:[%s283 + $0xc0] sm:$0xf]
      %v6427 = vld [vmem:[%s283 + $0xc4] sm:$0xf]
      %v6428 = vld [vmem:[%s283 + $0xc8] sm:$0xf]
      %v6429 = vld [vmem:[%s283 + $0xcc] sm:$0xf]
      %v6430 = vld [vmem:[%s283 + $0xd0] sm:$0xf]
      %v6431 = vld [vmem:[%s283 + $0xd4] sm:$0xf]
      %v6432 = vld [vmem:[%s283 + $0xd8] sm:$0xf]
      %v6433 = vld [vmem:[%s283 + $0xdc] sm:$0xf]
      %v6434 = vld [vmem:[%s283 + $0xe0] sm:$0xf]
      %v6435 = vld [vmem:[%s283 + $0xe4] sm:$0xf]
      %v6436 = vld [vmem:[%s283 + $0xe8] sm:$0xf]
      %v6437 = vld [vmem:[%s283 + $0xec] sm:$0xf]
      %v6438 = vld [vmem:[%s283 + $0xf0] sm:$0xf]
      %v6439 = vld [vmem:[%s283 + $0xf4] sm:$0xf]
      %v6440 = vld [vmem:[%s283 + $0xf8] sm:$0xf]
      %v6441 = vld [vmem:[%s283 + $0xfc] sm:$0xf]
      %v6442 = vld [vmem:[%s286] sm:$0x1]
      %v6444 = vperm.slane %v6442, 0
      %v6510 = vunpack.c.l.b16 %v6378
      %v6511 = vunpack.c.l.b16 %v6379
      %v6512 = vunpack.c.l.b16 %v6380
      %v6513 = vunpack.c.l.b16 %v6381
      %v6514 = vunpack.c.l.b16 %v6382
      %v6515 = vunpack.c.l.b16 %v6383
      %v6516 = vunpack.c.l.b16 %v6384
      %v6517 = vunpack.c.l.b16 %v6385
      %v6518 = vunpack.c.l.b16 %v6386
      %v6519 = vunpack.c.l.b16 %v6387
      %v6520 = vunpack.c.l.b16 %v6388
      %v6521 = vunpack.c.l.b16 %v6389
      %v6522 = vunpack.c.l.b16 %v6390
      %v6523 = vunpack.c.l.b16 %v6391
      %v6524 = vunpack.c.l.b16 %v6392
      %v6525 = vunpack.c.l.b16 %v6393
      %v6526 = vunpack.c.l.b16 %v6394
      %v6527 = vunpack.c.l.b16 %v6395
      %v6528 = vunpack.c.l.b16 %v6396
      %v6529 = vunpack.c.l.b16 %v6397
      %v6530 = vunpack.c.l.b16 %v6398
      %v6531 = vunpack.c.l.b16 %v6399
      %v6532 = vunpack.c.l.b16 %v6400
      %v6533 = vunpack.c.l.b16 %v6401
      %v6534 = vunpack.c.l.b16 %v6402
      %v6535 = vunpack.c.l.b16 %v6403
      %v6536 = vunpack.c.l.b16 %v6404
      %v6537 = vunpack.c.l.b16 %v6405
      %v6538 = vunpack.c.l.b16 %v6406
      %v6539 = vunpack.c.l.b16 %v6407
      %v6540 = vunpack.c.l.b16 %v6408
      %v6541 = vunpack.c.l.b16 %v6409
      %v6542 = vunpack.c.l.b16 %v6410
      %v6543 = vunpack.c.l.b16 %v6411
      %v6544 = vunpack.c.l.b16 %v6412
      %v6545 = vunpack.c.l.b16 %v6413
      %v6546 = vunpack.c.l.b16 %v6414
      %v6547 = vunpack.c.l.b16 %v6415
      %v6548 = vunpack.c.l.b16 %v6416
      %v6549 = vunpack.c.l.b16 %v6417
      %v6550 = vunpack.c.l.b16 %v6418
      %v6551 = vunpack.c.l.b16 %v6419
      %v6552 = vunpack.c.l.b16 %v6420
      %v6553 = vunpack.c.l.b16 %v6421
      %v6554 = vunpack.c.l.b16 %v6422
      %v6555 = vunpack.c.l.b16 %v6423
      %v6556 = vunpack.c.l.b16 %v6424
      %v6557 = vunpack.c.l.b16 %v6425
      %v6558 = vunpack.c.l.b16 %v6426
      %v6559 = vunpack.c.l.b16 %v6427
      %v6560 = vunpack.c.l.b16 %v6428
      %v6561 = vunpack.c.l.b16 %v6429
      %v6562 = vunpack.c.l.b16 %v6430
      %v6563 = vunpack.c.l.b16 %v6431
      %v6564 = vunpack.c.l.b16 %v6432
      %v6565 = vunpack.c.l.b16 %v6433
      %v6566 = vunpack.c.l.b16 %v6434
      %v6567 = vunpack.c.l.b16 %v6435
      %v6568 = vunpack.c.l.b16 %v6436
      %v6569 = vunpack.c.l.b16 %v6437
      %v6570 = vunpack.c.l.b16 %v6438
      %v6571 = vunpack.c.l.b16 %v6439
      %v6572 = vunpack.c.l.b16 %v6440
      %v6573 = vunpack.c.l.b16 %v6441
      %v6574 = vpack.c.b16 %v6511, %v6510
      %v6575 = vpack.c.b16 %v6513, %v6512
      %v6576 = vpack.c.b16 %v6515, %v6514
      %v6577 = vpack.c.b16 %v6517, %v6516
      %v6578 = vpack.c.b16 %v6519, %v6518
      %v6579 = vpack.c.b16 %v6521, %v6520
      %v6580 = vpack.c.b16 %v6523, %v6522
      %v6581 = vpack.c.b16 %v6525, %v6524
      %v6582 = vpack.c.b16 %v6527, %v6526
      %v6583 = vpack.c.b16 %v6529, %v6528
      %v6584 = vpack.c.b16 %v6531, %v6530
      %v6585 = vpack.c.b16 %v6533, %v6532
      %v6586 = vpack.c.b16 %v6535, %v6534
      %v6587 = vpack.c.b16 %v6537, %v6536
      %v6588 = vpack.c.b16 %v6539, %v6538
      %v6589 = vpack.c.b16 %v6541, %v6540
      %v6590 = vpack.c.b16 %v6543, %v6542
      %v6591 = vpack.c.b16 %v6545, %v6544
      %v6592 = vpack.c.b16 %v6547, %v6546
      %v6593 = vpack.c.b16 %v6549, %v6548
      %v6594 = vpack.c.b16 %v6551, %v6550
      %v6595 = vpack.c.b16 %v6553, %v6552
      %v6596 = vpack.c.b16 %v6555, %v6554
      %v6597 = vpack.c.b16 %v6557, %v6556
      %v6598 = vpack.c.b16 %v6559, %v6558
      %v6599 = vpack.c.b16 %v6561, %v6560
      %v6600 = vpack.c.b16 %v6563, %v6562
      %v6601 = vpack.c.b16 %v6565, %v6564
      %v6602 = vpack.c.b16 %v6567, %v6566
      %v6603 = vpack.c.b16 %v6569, %v6568
      %v6604 = vpack.c.b16 %v6571, %v6570
      %v6605 = vpack.c.b16 %v6573, %v6572
      %6638 = vmatpush.bf16.msra.mxu0 %v6581
      %6639 = vmatpush.bf16.msra.mxu0 %v6580
      %6640 = vmatpush.bf16.msra.mxu0 %v6579
      %6641 = vmatpush.bf16.msra.mxu0 %v6578
      %6642 = vmatpush.bf16.msra.mxu0 %v6577
      %6643 = vmatpush.bf16.msra.mxu0 %v6576
      %6644 = vmatpush.bf16.msra.mxu0 %v6575
      %6645 = vmatpush.bf16.msra.mxu0 %v6574
      %6646 = vmatmul.bf16.gmra.mxu0 %v6374
      %v6647 = vpop.f32.mrf.mxu0
      %v6648 = vadd.f32 %v6444, %v6647
      %v6649 = vpop.f32.mrf.mxu0
      %6650 = vdwg.mxu0
      %6651 = vmatpush.bf16.msra.mxu0 %v6589
      %6652 = vmatpush.bf16.msra.mxu0 %v6588
      %6653 = vmatpush.bf16.msra.mxu0 %v6587
      %6654 = vmatpush.bf16.msra.mxu0 %v6586
      %6655 = vmatpush.bf16.msra.mxu0 %v6585
      %6656 = vmatpush.bf16.msra.mxu0 %v6584
      %6657 = vmatpush.bf16.msra.mxu0 %v6583
      %6658 = vmatpush.bf16.msra.mxu0 %v6582
      %6659 = vmatmul.bf16.gmra.mxu0 %v6375
      %v6660 = vpop.f32.mrf.mxu0
      %v6661 = vadd.f32 %v6648, %v6660
      %v6662 = vpop.f32.mrf.mxu0
      %6663 = vdwg.mxu0
      %6664 = vmatpush.bf16.msra.mxu0 %v6597
      %6665 = vmatpush.bf16.msra.mxu0 %v6596
      %6666 = vmatpush.bf16.msra.mxu0 %v6595
      %6667 = vmatpush.bf16.msra.mxu0 %v6594
      %6668 = vmatpush.bf16.msra.mxu0 %v6593
      %6669 = vmatpush.bf16.msra.mxu0 %v6592
      %6670 = vmatpush.bf16.msra.mxu0 %v6591
      %6671 = vmatpush.bf16.msra.mxu0 %v6590
      %6672 = vmatmul.bf16.gmra.mxu0 %v6376
      %v6673 = vpop.f32.mrf.mxu0
      %v6674 = vadd.f32 %v6661, %v6673
      %v6675 = vpop.f32.mrf.mxu0
      %6676 = vdwg.mxu0
      %6677 = vmatpush.bf16.msra.mxu0 %v6605
      %6678 = vmatpush.bf16.msra.mxu0 %v6604
      %6679 = vmatpush.bf16.msra.mxu0 %v6603
      %6680 = vmatpush.bf16.msra.mxu0 %v6602
      %6681 = vmatpush.bf16.msra.mxu0 %v6601
      %6682 = vmatpush.bf16.msra.mxu0 %v6600
      %6683 = vmatpush.bf16.msra.mxu0 %v6599
      %6684 = vmatpush.bf16.msra.mxu0 %v6598
      %6685 = vmatmul.bf16.gmra.mxu0 %v6377
      %v6686 = vpop.f32.mrf.mxu0
      %v6687 = vadd.f32 %v6674, %v6686
      %v6688 = vpop.f32.mrf.mxu0
      %6689 = vdwg.mxu0
      %p6690 = scmp.eq.s32.totalorder %s16, 0
      // Predicated region
      $region41: #{actor_critic_forward.7} parent=39 // pred_check
        %p6691 = pneg %p6690
      $region42: #{actor_critic_forward.7} parent=39 // pred_check_branch
        %6693 = sbr.rel (%p6691) target = $region44
      $region43: #{actor_critic_forward.7} parent=39 // pred_region
        %6694 = vst [vmem:[%s290] sm:$0x3] %v6687
      $region44: #{actor_critic_forward.7} parent=39 // pred_fallthru
        _
      %p6695 = scmp.eq.s32.totalorder %s16, 1
      // Predicated region
      $region45: #{actor_critic_forward.7} parent=39 // pred_check
        %p6696 = pneg %p6695
      $region46: #{actor_critic_forward.7} parent=39 // pred_check_branch
        %6698 = sbr.rel (%p6696) target = $region48
      $region47: #{actor_critic_forward.7} parent=39 // pred_region
        %v6699 = vlaneseq
        %v6700 = vand.u32 %v6699, 127
        %vm6701 = vcmp.lt.s32.totalorder %v6700, 14
        %v6702 = vsel %vm6701, %v6687, -inf
        %vm6703 = vcmask 1041408
        %v6704 = vsel %vm6703, %v6702, -inf
        %6705 = vmax.xlane.f32.xlu0 %v6704
        %v6706 = vpop.xlane.xlu0 %6705
        %v6707 = vsub.f32 %v6702, %v6706
        %v6708 = vmul.f32 %v6707, 1.442695
        %v6709 = vpow.pop %v6708
        %v6710 = vsel %vm6701, %v6709, 0.0
        %v6711 = vsel %vm6703, %v6710, 0.0
        %6712 = vadd.xlane.f32.xlu0 %v6711
        %v6713 = vpop.xlane.xlu0 %6712
        %v6714 = vrcp.pop %v6713
        %v6715 = vmul.f32 %v6713, %v6714
        %v6716 = vsub.f32 1.0, %v6715
        %v6717 = vmul.f32 %v6714, %v6716
        %v6718 = vadd.f32 %v6714, %v6717
        %vm6719 = vweird.f32 %v6713
        %vm6720 = vweird.f32 %v6714
        %vm6721 = vmor %vm6719, %vm6720
        %v6722 = vsel %vm6721, %v6714, %v6718
        %v6723 = vand.u32 2147483647, %v6713
        %vm6724 = vcmp.eq.f32.partialorder %v6723, 8.507059e+37
        %v6725 = vand.u32 %v6713, 2147483648
        %v6726 = vor.u32 1.1754944e-38, %v6725
        %v6727 = vsel %vm6724, %v6726, %v6722
        %v6728 = vmul.f32 %v6710, %v6727
        %6729 = vst [vmem:[%s290] sm:$0x3] %v6728
      $region48: #{actor_critic_forward.7} parent=39 // pred_fallthru
        _
      %p6730 = scmp.lt.s32.totalorder %s16, 1
      %s6731 = scalar_select %p6730, %s16, 1
      %s6732 = smul.addr %s6731, 2
      %s6733 = scalar_lea.vmem %s5, %s6732
      // Predicated region
      $region49: #{actor_critic_forward.7} parent=39 // pred_check
        %p6734 = pneg %p164
      $region50: #{actor_critic_forward.7} parent=39 // pred_check_branch
        %6736 = sbr.rel (%p6734) target = $region52
      $region51: #{actor_critic_forward.7} parent=39 // pred_region
        _
      $region52: #{actor_critic_forward.7} parent=39 // pred_fallthru
        _
    $region40: #{actor_critic_forward.7} parent=5 // pred_fallthru
      _
    %p6737 = scmp.le.s32.totalorder 2, %s11
    // Predicated region
    $region53: #{actor_critic_forward.7} parent=5 // pred_check
      %p6738 = pneg %p6737
    $region54: #{actor_critic_forward.7} parent=5 // pred_check_branch
      %6740 = sbr.rel (%p6738) target = $region56
    $region55: #{actor_critic_forward.7} parent=5 // pred_region
      %s6741 = ssub.s32 %s11, 2
      // Predicated region
      $region57: #{actor_critic_forward.7} parent=55 // pred_check
        %p6742 = pneg %p170
      $region58: #{actor_critic_forward.7} parent=55 // pred_check_branch
        %6744 = sbr.rel (%p6742) target = $region60
      $region59: #{actor_critic_forward.7} parent=55 // pred_region
        %p6745 = scmp.lt.s32.totalorder %s17, 1
        %s6746 = scalar_select %p6745, %s17, 1
        %s6747 = smul.addr %s6746, 2
        %s6748 = scalar_lea.vmem %s5, %s6747
      $region60: #{actor_critic_forward.7} parent=55 // pred_fallthru
        _
    $region56: #{actor_critic_forward.7} parent=5 // pred_fallthru
      _
  $region6: #{actor_critic_forward.7} parent=0 // loop_footer
    %s15 = sadd.s32 1, %s11
  $region7: #{actor_critic_forward.7} parent=0 // loop_footer_branch
    %10 = sbr.rel target = $region3
  $region8: #{actor_critic_forward.7} parent=0 // loop_exit
    _

</llo_original>
